<compile_context>
chip_gen: v6e
topology: v6e:2x2x1
jax: 0.10.0
libtpu: 0.0.40
codegen_flags: <defaults>
</compile_context>

<pallas_src>
import jax
import jax.numpy as jnp
from jax.experimental import pallas as pl
from jax.experimental.pallas import tpu as pltpu


def _fc_relu_kernel(x_ref, w_ref, b_ref, o_ref):
    # grid = (N // block_n, K // block_k): axis 0 is parallel over output lanes
    # (megacore split on v7x), axis 1 is the K reduction ("arbitrary", last).
    k = pl.program_id(1)

    @pl.when(k == 0)
    def _():
        o_ref[...] = jnp.zeros_like(o_ref)          # f32 output = resident accumulator

    # Activations are fully resident in VMEM as (num_k, B, block_k); pick the
    # current K slab with a cheap leading-axis dynamic index (no per-step DMA).
    xk = x_ref[k].astype(w_ref.dtype)               # (B, block_k); no-op cast for f32 W
    o_ref[...] += jnp.dot(xk, w_ref[...], preferred_element_type=jnp.float32)

    @pl.when(k == pl.num_programs(1) - 1)
    def _():
        # Bias + ReLU fused into the single finalize store.
        # TODO(synk): nn.Dropout is identity here (inference); training-mode
        # masking would use pltpu.prng_seed / pltpu.prng_random_bits.
        o_ref[...] = jnp.maximum(o_ref[...] + b_ref[...], 0.0)


def fc_layer_forward(x, w, b, *, block_k=6144, block_n=384):
    """y = relu(x.reshape(B, -1) @ w + b); dropout is identity at inference.

    `w` may be float32 (exact module semantics) or bfloat16 (halves the
    HBM-bound weight stream that dominates runtime); accumulation is f32 either way.
    """
    B = x.shape[0]
    xf = x.reshape(B, -1).astype(jnp.float32)        # x.view(x.size(0), -1)
    K, N = w.shape
    assert xf.shape[1] == K, "flattened input must match Linear in_features"
    # 153600 is NOT divisible by 4096/8192; valid block_k: 3072, 5120, 6144, 7680.
    assert K % block_k == 0, "block_k must divide in_features"
    assert N % block_n == 0 and block_n % 128 == 0, "block_n must be a lane-aligned divisor of N"
    num_k = K // block_k
    num_n = N // block_n

    # Activations are tiny (B*K*4 = 1.2 MiB): keep them fully VMEM-resident,
    # pre-split into per-K-step slabs so the kernel indexes slab k on the
    # leading axis instead of issuing 25 tiny per-step DMAs.
    x_slabs = xf.reshape(B, num_k, block_k).transpose(1, 0, 2)   # (num_k, B, block_k)
    b2 = b.astype(jnp.float32).reshape(1, N)

    cost = pl.CostEstimate(
        flops=2 * B * K * N,
        bytes_accessed=K * N * w.dtype.itemsize + B * K * 4 + B * N * 4,
        transcendentals=0)

    return pl.pallas_call(
        _fc_relu_kernel,
        out_shape=jax.ShapeDtypeStruct((B, N), jnp.float32),
        grid=(num_n, num_k),                                      # (parallel N, reduce K)
        in_specs=[
            pl.BlockSpec((num_k, B, block_k), lambda n, k: (0, 0, 0)),  # resident activations
            pl.BlockSpec((block_k, block_n), lambda n, k: (k, n)),      # streamed weight slab
            pl.BlockSpec((1, block_n), lambda n, k: (0, n)),            # bias (per N tile)
        ],
        out_specs=pl.BlockSpec((B, block_n), lambda n, k: (0, n)),      # resident f32 accumulator
        compiler_params=pltpu.CompilerParams(
            dimension_semantics=("parallel", "arbitrary"),
            vmem_limit_bytes=48 << 20),          # needed on v5e (16 MiB default scoped); safe on v7x (64 MiB phys)
        cost_estimate=cost,
    )(x_slabs, w, b2)


if __name__ == "__main__":
    # The module hard-codes nn.Linear(200 * 768, 768); keep those dims.
    B, SEQ, HID = 2, 200, 768
    IN_FEATURES = SEQ * HID

    key = jax.random.PRNGKey(0)
    kx, kw, kb = jax.random.split(key, 3)
    x = jax.random.normal(kx, (B, SEQ, HID), jnp.float32)
    w = jax.random.normal(kw, (IN_FEATURES, HID), jnp.float32) * 0.02
    b = jax.random.normal(kb, (HID,), jnp.float32) * 0.02

    xf = x.reshape(B, -1)

    # --- Exact module semantics: f32 weights ---------------------------------
    y = jax.block_until_ready(fc_layer_forward(x, w, b))
    assert y.shape == (B, HID)
    assert bool(jnp.all(jnp.isfinite(y)))
    assert bool(jnp.all(y >= 0.0))                 # ReLU output is non-negative
    ref = jnp.maximum(
        jax.lax.dot(xf, w, precision=jax.lax.Precision.HIGHEST) + b, 0.0)
    assert bool(jnp.allclose(y, ref, rtol=5e-3, atol=5e-3)), \
        float(jnp.max(jnp.abs(y - ref)))

    # --- Perf path: bf16 weight streaming (halves the ~450 MiB weight read) ---
    w_bf16 = w.astype(jnp.bfloat16)
    y16 = jax.block_until_ready(fc_layer_forward(x, w_bf16, b))
    ref16 = jnp.maximum(
        jax.lax.dot(xf.astype(jnp.bfloat16).astype(jnp.float32),
                    w_bf16.astype(jnp.float32),
                    precision=jax.lax.Precision.HIGHEST) + b, 0.0)
    assert y16.shape == (B, HID)
    assert bool(jnp.all(y16 >= 0.0))
    assert bool(jnp.allclose(y16, ref16, rtol=1e-2, atol=1e-2)), \
        float(jnp.max(jnp.abs(y16 - ref16)))

    print("KERNEL_OK")
</pallas_src>

<mosaic_0001>
module attributes {stable_mosaic.version = 11 : i64} {
  func.func @_fc_relu_kernel(%arg0: i32, %arg1: i32, %arg2: memref<25x2x6144xf32, #tpu.memory_space<vmem>>, %arg3: memref<6144x384xf32, #tpu.memory_space<vmem>>, %arg4: memref<1x384xf32, #tpu.memory_space<vmem>>, %arg5: memref<2x384xf32, #tpu.memory_space<vmem>>) attributes {dimension_semantics = [#tpu.dimension_semantics<parallel>, #tpu.dimension_semantics<arbitrary>], iteration_bounds = array<i64: 2, 25>, scalar_prefetch = 0 : i64, scratch_operands = 0 : i64, tpu.core_type = #tpu.core_type<tc>, window_params = [{pipeline_mode = #tpu.pipeline_mode<synchronous>, transform_indices = @transform_0, window_bounds = array<i64: 25, 2, 6144>}, {transform_indices = @transform_1, window_bounds = array<i64: 6144, 384>}, {transform_indices = @transform_2, window_bounds = array<i64: 1, 384>}, {transform_indices = @transform_3, window_bounds = array<i64: 2, 384>}]} {
    %c0_i32 = arith.constant 0 : i32
    %0 = arith.cmpi eq, %arg1, %c0_i32 : i32
    %1 = arith.extui %0 : i1 to i32
    %c0_i32_0 = arith.constant 0 : i32
    %2 = arith.cmpi ne, %1, %c0_i32_0 : i32
    scf.if %2 {
      %cst_9 = arith.constant 0.000000e+00 : f32
      %14 = vector.broadcast %cst_9 : f32 to vector<2x384xf32>
      %c0_10 = arith.constant 0 : index
      %c0_11 = arith.constant 0 : index
      %15 = vector.load %arg5[%c0_10, %c0_11] : memref<2x384xf32, #tpu.memory_space<vmem>>, vector<2x384xf32>
      tpu.vector_store %arg5[%c0_10, %c0_11], %14 {strides = array<i32>} : memref<2x384xf32, #tpu.memory_space<vmem>>, vector<2x384xf32>,
    } else {
    }
    %3 = arith.index_cast %arg1 : i32 to index
    %c0 = arith.constant 0 : index
    %c0_1 = arith.constant 0 : index
    %4 = vector.load %arg2[%3, %c0, %c0_1] : memref<25x2x6144xf32, #tpu.memory_space<vmem>>, vector<1x2x6144xf32>
    %5 = vector.shape_cast %4 : vector<1x2x6144xf32> to vector<2x6144xf32>
    %c0_2 = arith.constant 0 : index
    %c0_3 = arith.constant 0 : index
    %6 = vector.load %arg5[%c0_2, %c0_3] : memref<2x384xf32, #tpu.memory_space<vmem>>, vector<2x384xf32>
    %c0_4 = arith.constant 0 : index
    %c0_5 = arith.constant 0 : index
    %7 = vector.load %arg3[%c0_4, %c0_5] : memref<6144x384xf32, #tpu.memory_space<vmem>>, vector<6144x384xf32>
    %cst = arith.constant dense<0.000000e+00> : vector<2x384xf32>
    %8 = tpu.matmul %5, %7, %cst {dimension_numbers = #tpu.dot_dimension_numbers<[1], [0], [0], [1], [0, 0, 1, 1], [], []>} : vector<2x6144xf32>, vector<6144x384xf32>, vector<2x384xf32> -> vector<2x384xf32>
    %9 = arith.addf %6, %8 : vector<2x384xf32>
    %c0_6 = arith.constant 0 : index
    %c0_7 = arith.constant 0 : index
    %10 = vector.load %arg5[%c0_6, %c0_7] : memref<2x384xf32, #tpu.memory_space<vmem>>, vector<2x384xf32>
    tpu.vector_store %arg5[%c0_6, %c0_7], %9 {strides = array<i32>} : memref<2x384xf32, #tpu.memory_space<vmem>>, vector<2x384xf32>,
    %c24_i32 = arith.constant 24 : i32
    %11 = arith.cmpi eq, %arg1, %c24_i32 : i32
    %12 = arith.extui %11 : i1 to i32
    %c0_i32_8 = arith.constant 0 : i32
    %13 = arith.cmpi ne, %12, %c0_i32_8 : i32
    scf.if %13 {
      %c0_9 = arith.constant 0 : index
      %c0_10 = arith.constant 0 : index
      %14 = vector.load %arg5[%c0_9, %c0_10] : memref<2x384xf32, #tpu.memory_space<vmem>>, vector<2x384xf32>
      %c0_11 = arith.constant 0 : index
      %c0_12 = arith.constant 0 : index
      %15 = vector.load %arg4[%c0_11, %c0_12] : memref<1x384xf32, #tpu.memory_space<vmem>>, vector<1x384xf32>
      %16 = vector.broadcast %15 : vector<1x384xf32> to vector<2x384xf32>
      %17 = arith.addf %14, %16 : vector<2x384xf32>
      %cst_13 = arith.constant 0.000000e+00 : f32
      %18 = vector.broadcast %cst_13 : f32 to vector<2x384xf32>
      %19 = arith.maximumf %17, %18 : vector<2x384xf32>
      %c0_14 = arith.constant 0 : index
      %c0_15 = arith.constant 0 : index
      %20 = vector.load %arg5[%c0_14, %c0_15] : memref<2x384xf32, #tpu.memory_space<vmem>>, vector<2x384xf32>
      tpu.vector_store %arg5[%c0_14, %c0_15], %19 {strides = array<i32>} : memref<2x384xf32, #tpu.memory_space<vmem>>, vector<2x384xf32>,
    } else {
    }
    return
  }
  func.func @transform_0(%arg0: i32, %arg1: i32) -> (i32, i32, i32) {
    %c0_i32 = arith.constant 0 : i32
    %c0_i32_0 = arith.constant 0 : i32
    %c0_i32_1 = arith.constant 0 : i32
    %c0_i32_2 = arith.constant 0 : i32
    return %c0_i32, %c0_i32_0, %c0_i32_1 : i32, i32, i32
  }
  func.func @transform_1(%arg0: i32, %arg1: i32) -> (i32, i32) {
    %c0_i32 = arith.constant 0 : i32
    return %arg1, %arg0 : i32, i32
  }
  func.func @transform_2(%arg0: i32, %arg1: i32) -> (i32, i32) {
    %c0_i32 = arith.constant 0 : i32
    %c0_i32_0 = arith.constant 0 : i32
    return %c0_i32, %arg0 : i32, i32
  }
  func.func @transform_3(%arg0: i32, %arg1: i32) -> (i32, i32) {
    %c0_i32 = arith.constant 0 : i32
    %c0_i32_0 = arith.constant 0 : i32
    return %c0_i32, %arg0 : i32, i32
  }
}

</mosaic_0001>

<llo_original>
// kernel: tpu_custom_call.1
$region0: #{tpu_custom_call.1}
  #allocation0 [shape = 'u32[]', space=smem, size = 0x4, offset = 0x4, fixed_abs, tag = 'smem constant byte address 0x4 - core index']
  #allocation1 [shape = 'u32[144,128]{1,0:T(1,128)}', space=vmem, size = 0x12000, scoped, tag = 'internal scratch']
  %s0 = inlined_call_operand.hbm [shape: f32[25,2,6144], index: 0, kind: input, shape index: {}]
  %s1 = inlined_call_operand.hbm [shape: f32[153600,768], index: 1, kind: input, shape index: {}]
  %s2 = inlined_call_operand.hbm [shape: f32[1,768], index: 2, kind: input, shape index: {}]
  %s3 = inlined_call_operand.hbm [shape: f32[2,768], index: 3, kind: output, shape index: {}]
  %s4 = sld [smem:[#allocation0]]
  $region65: #{tpu_custom_call.1} parent=0
    _
  %s6 = ssub.s32 1, %s4
  %s7 = scalar_select 0, %s6, %s4
  $region1: #{tpu_custom_call.1} parent=0
    #allocation2 [shape = 'u8[1228800]{0}', space=vmem, size = 0x12c000, scoped, tag = 'input window, operand 0, single buffered']
    #allocation3 [shape = 's32[2]{0}', space=sflag, size = 0x8, scoped, tag = 'scoped memory for tpu_custom_call.1']
    #allocation4 [shape = 's32[2]{0}', space=sflag, size = 0x8, scoped, tag = 'scoped memory for tpu_custom_call.1']
    #allocation5 [shape = 'u8[18874368]{0}', space=vmem, size = 0x1200000, scoped, tag = 'input window, operand 1']
    #allocation6 [shape = 's32[2]{0}', space=sflag, size = 0x8, scoped, tag = 'scoped memory for tpu_custom_call.1']
    #allocation7 [shape = 'u8[3072]{0}', space=vmem, size = 0xc00, scoped, tag = 'input window, operand 2']
    #allocation8 [shape = 'u8[6144]{0}', space=vmem, size = 0x1800, scoped, tag = 'output window, operand 0']
    %8 = vsyncpa [#allocation3], 0
    %9 = vsyncpa [#allocation6], 0
    %s10 = scalar_lea.sflag [#allocation6], 1
    %11 = vsyncpa %s10, 0
    %12 = vsyncpa [#allocation4], 0
    %s13 = scalar_lea.sflag [#allocation4], 1
    %14 = vsyncpa %s13, 0
    loop: start=0, step=1, limit=52
    $region2: #{tpu_custom_call.1} parent=1 // loop_pre_header
      _
    $region3: #{tpu_custom_call.1} parent=1 // loop_header
      %s16 = sphi 0, %s20
      %p17 = scmp.ge.s32.totalorder %s16, 52
      %s23 = sphi 0, %s35
      %s24 = sphi 0, %s31
      %s25 = sphi 0, %s23
      %s26 = sphi 0, %s24
      %s27 = sphi 0, %s25
      %s28 = sphi 0, %s26
      %s36 = sphi 0, %s36
      %s38 = sphi 0, %s36
      %s39 = sphi 0, %s38
      %s53 = sphi 0, %s39
      %s61 = sphi 0, %s63
      %s64 = sphi 0, %s61
      %s65 = sphi 0, %s64
      %s81 = sphi 0, %s65
      %s87 = sphi 0, %s89
      %s90 = sphi 0, %s87
      %s91 = sphi 0, %s90
      %s107 = sphi 0, %s91
      %s113 = sphi 0, %s115
      %s116 = sphi 0, %s113
      %s117 = sphi 0, %s116
      %s133 = sphi 0, %s117
    $region4: #{tpu_custom_call.1} parent=1 // loop_header_branch
      %19 = sbr.rel (%p17) target = $region8
    $region5: #{tpu_custom_call.1} parent=1 // loop_body
      %s21 = ssub.s32 %s16, 1
      %s22 = ssub.s32 %s16, 2
      %s29 = sadd.s32 1, %s24
      %p30 = scmp.ge.s32.totalorder %s29, 25
      %s31 = scalar_select %p30, 0, %s29
      %s32 = sadd.s32 1, %s23
      %s33 = scalar_select %p30, %s32, %s23
      %p34 = scmp.ge.s32.totalorder %s33, 2
      %s35 = scalar_select %p34, 0, %s33
      %s37 = sadd.s32 %s36, 1
      %p40 = scmp.eq.s32.totalorder %s16, 49
      %p41 = scmp.ne.s32.totalorder %s36, %s38
      %p42 = scmp.eq.s32.totalorder %s16, 0
      %p43 = por %p41, %p42
      %p44 = scmp.ne.s32.totalorder %s36, %s38
      %p45 = scmp.eq.s32.totalorder %s21, 49
      %p46 = por %p44, %p45
      %p47 = scmp.ne.s32.totalorder %s38, %s39
      %p48 = scmp.eq.s32.totalorder %s21, 0
      %p49 = por %p47, %p48
      %p50 = scmp.ne.s32.totalorder %s38, %s39
      %p51 = scmp.eq.s32.totalorder %s22, 49
      %p52 = por %p50, %p51
      %p54 = scmp.ne.s32.totalorder %s39, %s53
      %p55 = scmp.eq.s32.totalorder %s22, 0
      %p56 = por %p54, %p55
      %s57 = ssub.s32 %s24, %s31
      %s58 = ssub.s32 %s23, %s35
      %s59 = sor.u32 %s57, %s58
      %p60 = scmp.eq.s32.totalorder %s59, 0
      %s62 = sadd.s32 %s61, 1
      %s63 = scalar_select %p60, %s61, %s62
      %p66 = pneg %p60
      %p67 = scmp.eq.s32.totalorder %s16, 49
      %p68 = por %p66, %p67
      %p69 = scmp.ne.s32.totalorder %s61, %s64
      %p70 = scmp.eq.s32.totalorder %s16, 0
      %p71 = por %p69, %p70
      %p72 = scmp.ne.s32.totalorder %s61, %s64
      %p73 = scmp.eq.s32.totalorder %s21, 49
      %p74 = por %p72, %p73
      %p75 = scmp.ne.s32.totalorder %s64, %s65
      %p76 = scmp.eq.s32.totalorder %s21, 0
      %p77 = por %p75, %p76
      %p78 = scmp.ne.s32.totalorder %s64, %s65
      %p79 = scmp.eq.s32.totalorder %s22, 49
      %p80 = por %p78, %p79
      %p82 = scmp.ne.s32.totalorder %s65, %s81
      %p83 = scmp.eq.s32.totalorder %s22, 0
      %p84 = por %p82, %p83
      %s85 = ssub.s32 %s23, %s35
      %p86 = scmp.eq.s32.totalorder %s85, 0
      %s88 = sadd.s32 %s87, 1
      %s89 = scalar_select %p86, %s87, %s88
      %p92 = pneg %p86
      %p93 = scmp.eq.s32.totalorder %s16, 49
      %p94 = por %p92, %p93
      %p95 = scmp.ne.s32.totalorder %s87, %s90
      %p96 = scmp.eq.s32.totalorder %s16, 0
      %p97 = por %p95, %p96
      %p98 = scmp.ne.s32.totalorder %s87, %s90
      %p99 = scmp.eq.s32.totalorder %s21, 49
      %p100 = por %p98, %p99
      %p101 = scmp.ne.s32.totalorder %s90, %s91
      %p102 = scmp.eq.s32.totalorder %s21, 0
      %p103 = por %p101, %p102
      %p104 = scmp.ne.s32.totalorder %s90, %s91
      %p105 = scmp.eq.s32.totalorder %s22, 49
      %p106 = por %p104, %p105
      %p108 = scmp.ne.s32.totalorder %s91, %s107
      %p109 = scmp.eq.s32.totalorder %s22, 0
      %p110 = por %p108, %p109
      %s111 = ssub.s32 %s23, %s35
      %p112 = scmp.eq.s32.totalorder %s111, 0
      %s114 = sadd.s32 %s113, 1
      %s115 = scalar_select %p112, %s113, %s114
      %p118 = pneg %p112
      %p119 = scmp.eq.s32.totalorder %s16, 49
      %p120 = por %p118, %p119
      %p121 = scmp.ne.s32.totalorder %s113, %s116
      %p122 = scmp.eq.s32.totalorder %s16, 0
      %p123 = por %p121, %p122
      %p124 = scmp.ne.s32.totalorder %s113, %s116
      %p125 = scmp.eq.s32.totalorder %s21, 49
      %p126 = por %p124, %p125
      %p127 = scmp.ne.s32.totalorder %s116, %s117
      %p128 = scmp.eq.s32.totalorder %s21, 0
      %p129 = por %p127, %p128
      %p130 = scmp.ne.s32.totalorder %s116, %s117
      %p131 = scmp.eq.s32.totalorder %s22, 49
      %p132 = por %p130, %p131
      %p134 = scmp.ne.s32.totalorder %s117, %s133
      %p135 = scmp.eq.s32.totalorder %s22, 0
      %p136 = por %p134, %p135
      %p137 = scmp.le.s32.totalorder 1, %s16
      %p138 = scmp.lt.s32.totalorder %s16, 51
      %p139 = pnand %p137, %p138
      %p140 = pneg %p139
      // Predicated region
      $region9: #{tpu_custom_call.1} parent=5 // pred_check
        _
      $region10: #{tpu_custom_call.1} parent=5 // pred_check_branch
        %142 = sbr.rel (%p139) target = $region12
      $region11: #{tpu_custom_call.1} parent=5 // pred_region
        %s143 = ssub.s32 %s16, 1
        // Predicated region
        $region13: #{tpu_custom_call.1} parent=11 // pred_check
          %p144 = pneg %p49
        $region14: #{tpu_custom_call.1} parent=11 // pred_check_branch
          %146 = sbr.rel (%p144) target = $region16
        $region15: #{tpu_custom_call.1} parent=11 // pred_region
          %s148 = ssub.s32 38400, 38400
          %149 = vsyncadd [#allocation3], %s148
          %s150 = sshll.u32 [#allocation2], 4
          %s151 = int_to_ptr.vmem [resolvable:$true] %s150
          %156 = dma.hbm_to_vmem [thread:$0]  %s0, 38400, %s151, [#allocation3], 1536, 1536, 96
        $region16: #{tpu_custom_call.1} parent=11 // pred_fallthru
          _
      $region12: #{tpu_custom_call.1} parent=5 // pred_fallthru
        _
      %p157 = scmp.lt.s32.totalorder %s16, 50
      // Predicated region
      $region17: #{tpu_custom_call.1} parent=5 // pred_check
        %p158 = pneg %p157
      $region18: #{tpu_custom_call.1} parent=5 // pred_check_branch
        %160 = sbr.rel (%p158) target = $region20
      $region19: #{tpu_custom_call.1} parent=5 // pred_region
        // Predicated region
        $region21: #{tpu_custom_call.1} parent=19 // pred_check
          %p161 = pneg %p71
        $region22: #{tpu_custom_call.1} parent=19 // pred_check_branch
          %163 = sbr.rel (%p161) target = $region24
        $region23: #{tpu_custom_call.1} parent=19 // pred_region
          %s164 = sand.u32 %s16, 1
          %s165 = scalar_lea.sflag [#allocation6], %s164
          %s166 = sand.u32 %s61, 1
          %s167 = smul.addr %s166, 18432
          %s168 = scalar_lea.vmem [#allocation5], %s167
          %s169 = smul.u32 768, %s24
          %s170 = smul.u32 3, %s23
          %s172 = ssub.s32 294912, 294912
          %173 = vsyncadd %s165, %s172
          %s174 = smul.addr %s169, 6
          %s175 = sadd.s32 %s170, %s174
          %s176 = smul.addr %s175, 128
          %s177 = scalar_lea.hbm %s1, %s176
          %s178 = sshll.u32 %s168, 4
          %s179 = int_to_ptr.vmem [resolvable:$true] %s178
          %184 = dma.hbm_to_vmem [thread:$0]  %s177, 294912, %s179, %s165, 768, 384, 24
        $region24: #{tpu_custom_call.1} parent=19 // pred_fallthru
          _
        // Predicated region
        $region25: #{tpu_custom_call.1} parent=19 // pred_check
          %p185 = pneg %p97
        $region26: #{tpu_custom_call.1} parent=19 // pred_check_branch
          %187 = sbr.rel (%p185) target = $region28
        $region27: #{tpu_custom_call.1} parent=19 // pred_region
          %s188 = sand.u32 %s16, 1
          %s189 = scalar_lea.sflag [#allocation6], %s188
          %s190 = sand.u32 %s87, 1
          %s191 = smul.addr %s190, 3
          %s192 = scalar_lea.vmem [#allocation7], %s191
          %s193 = smul.u32 3, %s23
          %s195 = ssub.s32 48, 48
          %196 = vsyncadd %s189, %s195
          %s197 = smul.addr %s193, 16
          %s198 = scalar_lea.hbm %s2, %s197
          %s200 = sshll.u32 %s192, 4
          %s201 = int_to_ptr.vmem [resolvable:$true] %s200
          %203 = dma.hbm_to_vmem [thread:$0]  %s198, 48, %s201, %s189
        $region28: #{tpu_custom_call.1} parent=19 // pred_fallthru
          _
      $region20: #{tpu_custom_call.1} parent=5 // pred_fallthru
        _
      %p204 = scmp.le.s32.totalorder 1, %s16
      %p205 = scmp.lt.s32.totalorder %s16, 51
      %p206 = pnand %p204, %p205
      %p207 = pneg %p206
      // Predicated region
      $region29: #{tpu_custom_call.1} parent=5 // pred_check
        _
      $region30: #{tpu_custom_call.1} parent=5 // pred_check_branch
        %209 = sbr.rel (%p206) target = $region32
      $region31: #{tpu_custom_call.1} parent=5 // pred_region
        %s210 = ssub.s32 %s16, 1
        // Predicated region
        $region33: #{tpu_custom_call.1} parent=31 // pred_check
          %p211 = pneg %p49
        $region34: #{tpu_custom_call.1} parent=31 // pred_check_branch
          %213 = sbr.rel (%p211) target = $region36
        $region35: #{tpu_custom_call.1} parent=31 // pred_region
          %214 = dma.done [#allocation3], 38400
        $region36: #{tpu_custom_call.1} parent=31 // pred_fallthru
          _
        %s215 = sand.u32 %s21, 1
        %s216 = scalar_lea.sflag [#allocation6], %s215
        %s217 = sand.u32 %s64, 1
        %s218 = smul.addr %s217, 18432
        %s219 = scalar_lea.vmem [#allocation5], %s218
        // Predicated region
        $region37: #{tpu_custom_call.1} parent=31 // pred_check
          %p220 = pneg %p77
        $region38: #{tpu_custom_call.1} parent=31 // pred_check_branch
          %222 = sbr.rel (%p220) target = $region40
        $region39: #{tpu_custom_call.1} parent=31 // pred_region
          %223 = dma.done %s216, 294912
        $region40: #{tpu_custom_call.1} parent=31 // pred_fallthru
          _
        %s224 = sand.u32 %s21, 1
        %s225 = scalar_lea.sflag [#allocation6], %s224
        %s226 = sand.u32 %s90, 1
        %s227 = smul.addr %s226, 3
        %s228 = scalar_lea.vmem [#allocation7], %s227
        // Predicated region
        $region41: #{tpu_custom_call.1} parent=31 // pred_check
          %p229 = pneg %p103
        $region42: #{tpu_custom_call.1} parent=31 // pred_check_branch
          %231 = sbr.rel (%p229) target = $region44
        $region43: #{tpu_custom_call.1} parent=31 // pred_region
          %232 = dma.done %s225, 48
        $region44: #{tpu_custom_call.1} parent=31 // pred_fallthru
          _
        %p233 = pneg %p49
        %p234 = pneg %p46
        %s235 = sand.u32 %s21, 1
        %s236 = scalar_lea.sflag [#allocation6], %s235
        %s237 = sand.u32 %s64, 1
        %s238 = smul.addr %s237, 18432
        %s239 = scalar_lea.vmem [#allocation5], %s238
        %p240 = pneg %p77
        %p241 = pneg %p74
        %s242 = sand.u32 %s21, 1
        %s243 = scalar_lea.sflag [#allocation6], %s242
        %s244 = sand.u32 %s90, 1
        %s245 = smul.addr %s244, 3
        %s246 = scalar_lea.vmem [#allocation7], %s245
        %p247 = pneg %p103
        %p248 = pneg %p100
        %p249 = pneg %p129
        %p250 = pneg %p126
        %s251 = sand.u32 %s116, 1
        %s252 = scalar_lea.sflag [#allocation4], %s251
        %s253 = sand.u32 %s116, 1
        %s254 = smul.addr %s253, 6
        %s255 = scalar_lea.vmem [#allocation8], %s254
        %s256 = smul.u32 768, %s26
        %s257 = smul.u32 3, %s25
        %s258 = smul.u32 3, %s25
        %s259 = smul.u32 3, %s25
        %p260 = scmp.eq.s32.totalorder %s26, 0
        // Predicated region
        $region45: #{tpu_custom_call.1} parent=31 // pred_check
          %p261 = pneg %p260
        $region46: #{tpu_custom_call.1} parent=31 // pred_check_branch
          %263 = sbr.rel (%p261) target = $region48
        $region47: #{tpu_custom_call.1} parent=31 // pred_region
          %264 = vst [vmem:[%s255] sm:$0x3f] 0.0
        $region48: #{tpu_custom_call.1} parent=31 // pred_fallthru
          _
        %s265 = smul.u32 %s26, 48
        %s266 = smul.addr %s265, 2
        %s267 = scalar_lea.vmem [#allocation2], %s266
        %v268 = vld [vmem:[%s267] sm:$0xff]
        %v269 = vld [vmem:[%s267 + $0x8] sm:$0xff]
        %v270 = vld [vmem:[%s267 + $0x10] sm:$0xff]
        %v271 = vld [vmem:[%s267 + $0x18] sm:$0xff]
        %v272 = vld [vmem:[%s267 + $0x20] sm:$0xff]
        %v273 = vld [vmem:[%s267 + $0x28] sm:$0xff]
        %v274 = vld [vmem:[%s267 + $0x30] sm:$0xff]
        %v275 = vld [vmem:[%s267 + $0x38] sm:$0xff]
        %v276 = vld [vmem:[%s267 + $0x40] sm:$0xff]
        %v277 = vld [vmem:[%s267 + $0x48] sm:$0xff]
        %v278 = vld [vmem:[%s267 + $0x50] sm:$0xff]
        %v279 = vld [vmem:[%s267 + $0x58] sm:$0xff]
        %v280 = vld [vmem:[%s255] sm:$0x3f]
        %v281 = vld [vmem:[%s219] sm:$0xff]
        %v282 = vld [vmem:[%s219 + $0x8] sm:$0xff]
        %v283 = vld [vmem:[%s219 + $0x10] sm:$0xff]
        %v284 = vld [vmem:[%s219 + $0x18] sm:$0xff]
        %v285 = vld [vmem:[%s219 + $0x20] sm:$0xff]
        %v286 = vld [vmem:[%s219 + $0x28] sm:$0xff]
        %v287 = vld [vmem:[%s219 + $0x30] sm:$0xff]
        %v288 = vld [vmem:[%s219 + $0x38] sm:$0xff]
        %v289 = vld [vmem:[%s219 + $0x40] sm:$0xff]
        %v290 = vld [vmem:[%s219 + $0x48] sm:$0xff]
        %v291 = vld [vmem:[%s219 + $0x50] sm:$0xff]
        %v292 = vld [vmem:[%s219 + $0x58] sm:$0xff]
        %v293 = vld [vmem:[%s219 + $0x60] sm:$0xff]
        %v294 = vld [vmem:[%s219 + $0x68] sm:$0xff]
        %v295 = vld [vmem:[%s219 + $0x70] sm:$0xff]
        %v296 = vld [vmem:[%s219 + $0x78] sm:$0xff]
        %v297 = vld [vmem:[%s219 + $0x80] sm:$0xff]
        %v298 = vld [vmem:[%s219 + $0x88] sm:$0xff]
        %v299 = vld [vmem:[%s219 + $0x90] sm:$0xff]
        %v300 = vld [vmem:[%s219 + $0x98] sm:$0xff]
        %v301 = vld [vmem:[%s219 + $0xa0] sm:$0xff]
        %v302 = vld [vmem:[%s219 + $0xa8] sm:$0xff]
        %v303 = vld [vmem:[%s219 + $0xb0] sm:$0xff]
        %v304 = vld [vmem:[%s219 + $0xb8] sm:$0xff]
        %v305 = vld [vmem:[%s219 + $0xc0] sm:$0xff]
        %v306 = vld [vmem:[%s219 + $0xc8] sm:$0xff]
        %v307 = vld [vmem:[%s219 + $0xd0] sm:$0xff]
        %v308 = vld [vmem:[%s219 + $0xd8] sm:$0xff]
        %v309 = vld [vmem:[%s219 + $0xe0] sm:$0xff]
        %v310 = vld [vmem:[%s219 + $0xe8] sm:$0xff]
        %v311 = vld [vmem:[%s219 + $0xf0] sm:$0xff]
        %v312 = vld [vmem:[%s219 + $0xf8] sm:$0xff]
        %v313 = vld [vmem:[%s219 + $0x100] sm:$0xff]
        %v314 = vld [vmem:[%s219 + $0x108] sm:$0xff]
        %v315 = vld [vmem:[%s219 + $0x110] sm:$0xff]
        %v316 = vld [vmem:[%s219 + $0x118] sm:$0xff]
        %v317 = vld [vmem:[%s219 + $0x120] sm:$0xff]
        %v318 = vld [vmem:[%s219 + $0x128] sm:$0xff]
        %v319 = vld [vmem:[%s219 + $0x130] sm:$0xff]
        %v320 = vld [vmem:[%s219 + $0x138] sm:$0xff]
        %v321 = vld [vmem:[%s219 + $0x140] sm:$0xff]
        %v322 = vld [vmem:[%s219 + $0x148] sm:$0xff]
        %v323 = vld [vmem:[%s219 + $0x150] sm:$0xff]
        %v324 = vld [vmem:[%s219 + $0x158] sm:$0xff]
        %v325 = vld [vmem:[%s219 + $0x160] sm:$0xff]
        %v326 = vld [vmem:[%s219 + $0x168] sm:$0xff]
        %v327 = vld [vmem:[%s219 + $0x170] sm:$0xff]
        %v328 = vld [vmem:[%s219 + $0x178] sm:$0xff]
        %v329 = vld [vmem:[%s219 + $0x180] sm:$0xff]
        %v330 = vld [vmem:[%s219 + $0x188] sm:$0xff]
        %v331 = vld [vmem:[%s219 + $0x190] sm:$0xff]
        %v332 = vld [vmem:[%s219 + $0x198] sm:$0xff]
        %v333 = vld [vmem:[%s219 + $0x1a0] sm:$0xff]
        %v334 = vld [vmem:[%s219 + $0x1a8] sm:$0xff]
        %v335 = vld [vmem:[%s219 + $0x1b0] sm:$0xff]
        %v336 = vld [vmem:[%s219 + $0x1b8] sm:$0xff]
        %v337 = vld [vmem:[%s219 + $0x1c0] sm:$0xff]
        %v338 = vld [vmem:[%s219 + $0x1c8] sm:$0xff]
        %v339 = vld [vmem:[%s219 + $0x1d0] sm:$0xff]
        %v340 = vld [vmem:[%s219 + $0x1d8] sm:$0xff]
        %v341 = vld [vmem:[%s219 + $0x1e0] sm:$0xff]
        %v342 = vld [vmem:[%s219 + $0x1e8] sm:$0xff]
        %v343 = vld [vmem:[%s219 + $0x1f0] sm:$0xff]
        %v344 = vld [vmem:[%s219 + $0x1f8] sm:$0xff]
        %v345 = vld [vmem:[%s219 + $0x200] sm:$0xff]
        %v346 = vld [vmem:[%s219 + $0x208] sm:$0xff]
        %v347 = vld [vmem:[%s219 + $0x210] sm:$0xff]
        %v348 = vld [vmem:[%s219 + $0x218] sm:$0xff]
        %v349 = vld [vmem:[%s219 + $0x220] sm:$0xff]
        %v350 = vld [vmem:[%s219 + $0x228] sm:$0xff]
        %v351 = vld [vmem:[%s219 + $0x230] sm:$0xff]
        %v352 = vld [vmem:[%s219 + $0x238] sm:$0xff]
        %v353 = vld [vmem:[%s219 + $0x240] sm:$0xff]
        %v354 = vld [vmem:[%s219 + $0x248] sm:$0xff]
        %v355 = vld [vmem:[%s219 + $0x250] sm:$0xff]
        %v356 = vld [vmem:[%s219 + $0x258] sm:$0xff]
        %v357 = vld [vmem:[%s219 + $0x260] sm:$0xff]
        %v358 = vld [vmem:[%s219 + $0x268] sm:$0xff]
        %v359 = vld [vmem:[%s219 + $0x270] sm:$0xff]
        %v360 = vld [vmem:[%s219 + $0x278] sm:$0xff]
        %v361 = vld [vmem:[%s219 + $0x280] sm:$0xff]
        %v362 = vld [vmem:[%s219 + $0x288] sm:$0xff]
        %v363 = vld [vmem:[%s219 + $0x290] sm:$0xff]
        %v364 = vld [vmem:[%s219 + $0x298] sm:$0xff]
        %v365 = vld [vmem:[%s219 + $0x2a0] sm:$0xff]
        %v366 = vld [vmem:[%s219 + $0x2a8] sm:$0xff]
        %v367 = vld [vmem:[%s219 + $0x2b0] sm:$0xff]
        %v368 = vld [vmem:[%s219 + $0x2b8] sm:$0xff]
        %v369 = vld [vmem:[%s219 + $0x2c0] sm:$0xff]
        %v370 = vld [vmem:[%s219 + $0x2c8] sm:$0xff]
        %v371 = vld [vmem:[%s219 + $0x2d0] sm:$0xff]
        %v372 = vld [vmem:[%s219 + $0x2d8] sm:$0xff]
        %v373 = vld [vmem:[%s219 + $0x2e0] sm:$0xff]
        %v374 = vld [vmem:[%s219 + $0x2e8] sm:$0xff]
        %v375 = vld [vmem:[%s219 + $0x2f0] sm:$0xff]
        %v376 = vld [vmem:[%s219 + $0x2f8] sm:$0xff]
        %v377 = vld [vmem:[%s219 + $0x300] sm:$0xff]
        %v378 = vld [vmem:[%s219 + $0x308] sm:$0xff]
        %v379 = vld [vmem:[%s219 + $0x310] sm:$0xff]
        %v380 = vld [vmem:[%s219 + $0x318] sm:$0xff]
        %v381 = vld [vmem:[%s219 + $0x320] sm:$0xff]
        %v382 = vld [vmem:[%s219 + $0x328] sm:$0xff]
        %v383 = vld [vmem:[%s219 + $0x330] sm:$0xff]
        %v384 = vld [vmem:[%s219 + $0x338] sm:$0xff]
        %v385 = vld [vmem:[%s219 + $0x340] sm:$0xff]
        %v386 = vld [vmem:[%s219 + $0x348] sm:$0xff]
        %v387 = vld [vmem:[%s219 + $0x350] sm:$0xff]
        %v388 = vld [vmem:[%s219 + $0x358] sm:$0xff]
        %v389 = vld [vmem:[%s219 + $0x360] sm:$0xff]
        %v390 = vld [vmem:[%s219 + $0x368] sm:$0xff]
        %v391 = vld [vmem:[%s219 + $0x370] sm:$0xff]
        %v392 = vld [vmem:[%s219 + $0x378] sm:$0xff]
        %v393 = vld [vmem:[%s219 + $0x380] sm:$0xff]
        %v394 = vld [vmem:[%s219 + $0x388] sm:$0xff]
        %v395 = vld [vmem:[%s219 + $0x390] sm:$0xff]
        %v396 = vld [vmem:[%s219 + $0x398] sm:$0xff]
        %v397 = vld [vmem:[%s219 + $0x3a0] sm:$0xff]
        %v398 = vld [vmem:[%s219 + $0x3a8] sm:$0xff]
        %v399 = vld [vmem:[%s219 + $0x3b0] sm:$0xff]
        %v400 = vld [vmem:[%s219 + $0x3b8] sm:$0xff]
        %v401 = vld [vmem:[%s219 + $0x3c0] sm:$0xff]
        %v402 = vld [vmem:[%s219 + $0x3c8] sm:$0xff]
        %v403 = vld [vmem:[%s219 + $0x3d0] sm:$0xff]
        %v404 = vld [vmem:[%s219 + $0x3d8] sm:$0xff]
        %v405 = vld [vmem:[%s219 + $0x3e0] sm:$0xff]
        %v406 = vld [vmem:[%s219 + $0x3e8] sm:$0xff]
        %v407 = vld [vmem:[%s219 + $0x3f0] sm:$0xff]
        %v408 = vld [vmem:[%s219 + $0x3f8] sm:$0xff]
        %v409 = vld [vmem:[%s219 + $0x400] sm:$0xff]
        %v410 = vld [vmem:[%s219 + $0x408] sm:$0xff]
        %v411 = vld [vmem:[%s219 + $0x410] sm:$0xff]
        %v412 = vld [vmem:[%s219 + $0x418] sm:$0xff]
        %v413 = vld [vmem:[%s219 + $0x420] sm:$0xff]
        %v414 = vld [vmem:[%s219 + $0x428] sm:$0xff]
        %v415 = vld [vmem:[%s219 + $0x430] sm:$0xff]
        %v416 = vld [vmem:[%s219 + $0x438] sm:$0xff]
        %v417 = vld [vmem:[%s219 + $0x440] sm:$0xff]
        %v418 = vld [vmem:[%s219 + $0x448] sm:$0xff]
        %v419 = vld [vmem:[%s219 + $0x450] sm:$0xff]
        %v420 = vld [vmem:[%s219 + $0x458] sm:$0xff]
        %v421 = vld [vmem:[%s219 + $0x460] sm:$0xff]
        %v422 = vld [vmem:[%s219 + $0x468] sm:$0xff]
        %v423 = vld [vmem:[%s219 + $0x470] sm:$0xff]
        %v424 = vld [vmem:[%s219 + $0x478] sm:$0xff]
        %v425 = vld [vmem:[%s219 + $0x480] sm:$0xff]
        %v426 = vld [vmem:[%s219 + $0x488] sm:$0xff]
        %v427 = vld [vmem:[%s219 + $0x490] sm:$0xff]
        %v428 = vld [vmem:[%s219 + $0x498] sm:$0xff]
        %v429 = vld [vmem:[%s219 + $0x4a0] sm:$0xff]
        %v430 = vld [vmem:[%s219 + $0x4a8] sm:$0xff]
        %v431 = vld [vmem:[%s219 + $0x4b0] sm:$0xff]
        %v432 = vld [vmem:[%s219 + $0x4b8] sm:$0xff]
        %v433 = vld [vmem:[%s219 + $0x4c0] sm:$0xff]
        %v434 = vld [vmem:[%s219 + $0x4c8] sm:$0xff]
        %v435 = vld [vmem:[%s219 + $0x4d0] sm:$0xff]
        %v436 = vld [vmem:[%s219 + $0x4d8] sm:$0xff]
        %v437 = vld [vmem:[%s219 + $0x4e0] sm:$0xff]
        %v438 = vld [vmem:[%s219 + $0x4e8] sm:$0xff]
        %v439 = vld [vmem:[%s219 + $0x4f0] sm:$0xff]
        %v440 = vld [vmem:[%s219 + $0x4f8] sm:$0xff]
        %v441 = vld [vmem:[%s219 + $0x500] sm:$0xff]
        %v442 = vld [vmem:[%s219 + $0x508] sm:$0xff]
        %v443 = vld [vmem:[%s219 + $0x510] sm:$0xff]
        %v444 = vld [vmem:[%s219 + $0x518] sm:$0xff]
        %v445 = vld [vmem:[%s219 + $0x520] sm:$0xff]
        %v446 = vld [vmem:[%s219 + $0x528] sm:$0xff]
        %v447 = vld [vmem:[%s219 + $0x530] sm:$0xff]
        %v448 = vld [vmem:[%s219 + $0x538] sm:$0xff]
        %v449 = vld [vmem:[%s219 + $0x540] sm:$0xff]
        %v450 = vld [vmem:[%s219 + $0x548] sm:$0xff]
        %v451 = vld [vmem:[%s219 + $0x550] sm:$0xff]
        %v452 = vld [vmem:[%s219 + $0x558] sm:$0xff]
        %v453 = vld [vmem:[%s219 + $0x560] sm:$0xff]
        %v454 = vld [vmem:[%s219 + $0x568] sm:$0xff]
        %v455 = vld [vmem:[%s219 + $0x570] sm:$0xff]
        %v456 = vld [vmem:[%s219 + $0x578] sm:$0xff]
        %v457 = vld [vmem:[%s219 + $0x580] sm:$0xff]
        %v458 = vld [vmem:[%s219 + $0x588] sm:$0xff]
        %v459 = vld [vmem:[%s219 + $0x590] sm:$0xff]
        %v460 = vld [vmem:[%s219 + $0x598] sm:$0xff]
        %v461 = vld [vmem:[%s219 + $0x5a0] sm:$0xff]
        %v462 = vld [vmem:[%s219 + $0x5a8] sm:$0xff]
        %v463 = vld [vmem:[%s219 + $0x5b0] sm:$0xff]
        %v464 = vld [vmem:[%s219 + $0x5b8] sm:$0xff]
        %v465 = vld [vmem:[%s219 + $0x5c0] sm:$0xff]
        %v466 = vld [vmem:[%s219 + $0x5c8] sm:$0xff]
        %v467 = vld [vmem:[%s219 + $0x5d0] sm:$0xff]
        %v468 = vld [vmem:[%s219 + $0x5d8] sm:$0xff]
        %v469 = vld [vmem:[%s219 + $0x5e0] sm:$0xff]
        %v470 = vld [vmem:[%s219 + $0x5e8] sm:$0xff]
        %v471 = vld [vmem:[%s219 + $0x5f0] sm:$0xff]
        %v472 = vld [vmem:[%s219 + $0x5f8] sm:$0xff]
        %v473 = vld [vmem:[%s219 + $0x600] sm:$0xff]
        %v474 = vld [vmem:[%s219 + $0x608] sm:$0xff]
        %v475 = vld [vmem:[%s219 + $0x610] sm:$0xff]
        %v476 = vld [vmem:[%s219 + $0x618] sm:$0xff]
        %v477 = vld [vmem:[%s219 + $0x620] sm:$0xff]
        %v478 = vld [vmem:[%s219 + $0x628] sm:$0xff]
        %v479 = vld [vmem:[%s219 + $0x630] sm:$0xff]
        %v480 = vld [vmem:[%s219 + $0x638] sm:$0xff]
        %v481 = vld [vmem:[%s219 + $0x640] sm:$0xff]
        %v482 = vld [vmem:[%s219 + $0x648] sm:$0xff]
        %v483 = vld [vmem:[%s219 + $0x650] sm:$0xff]
        %v484 = vld [vmem:[%s219 + $0x658] sm:$0xff]
        %v485 = vld [vmem:[%s219 + $0x660] sm:$0xff]
        %v486 = vld [vmem:[%s219 + $0x668] sm:$0xff]
        %v487 = vld [vmem:[%s219 + $0x670] sm:$0xff]
        %v488 = vld [vmem:[%s219 + $0x678] sm:$0xff]
        %v489 = vld [vmem:[%s219 + $0x680] sm:$0xff]
        %v490 = vld [vmem:[%s219 + $0x688] sm:$0xff]
        %v491 = vld [vmem:[%s219 + $0x690] sm:$0xff]
        %v492 = vld [vmem:[%s219 + $0x698] sm:$0xff]
        %v493 = vld [vmem:[%s219 + $0x6a0] sm:$0xff]
        %v494 = vld [vmem:[%s219 + $0x6a8] sm:$0xff]
        %v495 = vld [vmem:[%s219 + $0x6b0] sm:$0xff]
        %v496 = vld [vmem:[%s219 + $0x6b8] sm:$0xff]
        %v497 = vld [vmem:[%s219 + $0x6c0] sm:$0xff]
        %v498 = vld [vmem:[%s219 + $0x6c8] sm:$0xff]
        %v499 = vld [vmem:[%s219 + $0x6d0] sm:$0xff]
        %v500 = vld [vmem:[%s219 + $0x6d8] sm:$0xff]
        %v501 = vld [vmem:[%s219 + $0x6e0] sm:$0xff]
        %v502 = vld [vmem:[%s219 + $0x6e8] sm:$0xff]
        %v503 = vld [vmem:[%s219 + $0x6f0] sm:$0xff]
        %v504 = vld [vmem:[%s219 + $0x6f8] sm:$0xff]
        %v505 = vld [vmem:[%s219 + $0x700] sm:$0xff]
        %v506 = vld [vmem:[%s219 + $0x708] sm:$0xff]
        %v507 = vld [vmem:[%s219 + $0x710] sm:$0xff]
        %v508 = vld [vmem:[%s219 + $0x718] sm:$0xff]
        %v509 = vld [vmem:[%s219 + $0x720] sm:$0xff]
        %v510 = vld [vmem:[%s219 + $0x728] sm:$0xff]
        %v511 = vld [vmem:[%s219 + $0x730] sm:$0xff]
        %v512 = vld [vmem:[%s219 + $0x738] sm:$0xff]
        %v513 = vld [vmem:[%s219 + $0x740] sm:$0xff]
        %v514 = vld [vmem:[%s219 + $0x748] sm:$0xff]
        %v515 = vld [vmem:[%s219 + $0x750] sm:$0xff]
        %v516 = vld [vmem:[%s219 + $0x758] sm:$0xff]
        %v517 = vld [vmem:[%s219 + $0x760] sm:$0xff]
        %v518 = vld [vmem:[%s219 + $0x768] sm:$0xff]
        %v519 = vld [vmem:[%s219 + $0x770] sm:$0xff]
        %v520 = vld [vmem:[%s219 + $0x778] sm:$0xff]
        %v521 = vld [vmem:[%s219 + $0x780] sm:$0xff]
        %v522 = vld [vmem:[%s219 + $0x788] sm:$0xff]
        %v523 = vld [vmem:[%s219 + $0x790] sm:$0xff]
        %v524 = vld [vmem:[%s219 + $0x798] sm:$0xff]
        %v525 = vld [vmem:[%s219 + $0x7a0] sm:$0xff]
        %v526 = vld [vmem:[%s219 + $0x7a8] sm:$0xff]
        %v527 = vld [vmem:[%s219 + $0x7b0] sm:$0xff]
        %v528 = vld [vmem:[%s219 + $0x7b8] sm:$0xff]
        %v529 = vld [vmem:[%s219 + $0x7c0] sm:$0xff]
        %v530 = vld [vmem:[%s219 + $0x7c8] sm:$0xff]
        %v531 = vld [vmem:[%s219 + $0x7d0] sm:$0xff]
        %v532 = vld [vmem:[%s219 + $0x7d8] sm:$0xff]
        %v533 = vld [vmem:[%s219 + $0x7e0] sm:$0xff]
        %v534 = vld [vmem:[%s219 + $0x7e8] sm:$0xff]
        %v535 = vld [vmem:[%s219 + $0x7f0] sm:$0xff]
        %v536 = vld [vmem:[%s219 + $0x7f8] sm:$0xff]
        %v537 = vld [vmem:[%s219 + $0x800] sm:$0xff]
        %v538 = vld [vmem:[%s219 + $0x808] sm:$0xff]
        %v539 = vld [vmem:[%s219 + $0x810] sm:$0xff]
        %v540 = vld [vmem:[%s219 + $0x818] sm:$0xff]
        %v541 = vld [vmem:[%s219 + $0x820] sm:$0xff]
        %v542 = vld [vmem:[%s219 + $0x828] sm:$0xff]
        %v543 = vld [vmem:[%s219 + $0x830] sm:$0xff]
        %v544 = vld [vmem:[%s219 + $0x838] sm:$0xff]
        %v545 = vld [vmem:[%s219 + $0x840] sm:$0xff]
        %v546 = vld [vmem:[%s219 + $0x848] sm:$0xff]
        %v547 = vld [vmem:[%s219 + $0x850] sm:$0xff]
        %v548 = vld [vmem:[%s219 + $0x858] sm:$0xff]
        %v549 = vld [vmem:[%s219 + $0x860] sm:$0xff]
        %v550 = vld [vmem:[%s219 + $0x868] sm:$0xff]
        %v551 = vld [vmem:[%s219 + $0x870] sm:$0xff]
        %v552 = vld [vmem:[%s219 + $0x878] sm:$0xff]
        %v553 = vld [vmem:[%s219 + $0x880] sm:$0xff]
        %v554 = vld [vmem:[%s219 + $0x888] sm:$0xff]
        %v555 = vld [vmem:[%s219 + $0x890] sm:$0xff]
        %v556 = vld [vmem:[%s219 + $0x898] sm:$0xff]
        %v557 = vld [vmem:[%s219 + $0x8a0] sm:$0xff]
        %v558 = vld [vmem:[%s219 + $0x8a8] sm:$0xff]
        %v559 = vld [vmem:[%s219 + $0x8b0] sm:$0xff]
        %v560 = vld [vmem:[%s219 + $0x8b8] sm:$0xff]
        %v561 = vld [vmem:[%s219 + $0x8c0] sm:$0xff]
        %v562 = vld [vmem:[%s219 + $0x8c8] sm:$0xff]
        %v563 = vld [vmem:[%s219 + $0x8d0] sm:$0xff]
        %v564 = vld [vmem:[%s219 + $0x8d8] sm:$0xff]
        %v565 = vld [vmem:[%s219 + $0x8e0] sm:$0xff]
        %v566 = vld [vmem:[%s219 + $0x8e8] sm:$0xff]
        %v567 = vld [vmem:[%s219 + $0x8f0] sm:$0xff]
        %v568 = vld [vmem:[%s219 + $0x8f8] sm:$0xff]
        %v569 = vld [vmem:[%s219 + $0x900] sm:$0xff]
        %v570 = vld [vmem:[%s219 + $0x908] sm:$0xff]
        %v571 = vld [vmem:[%s219 + $0x910] sm:$0xff]
        %v572 = vld [vmem:[%s219 + $0x918] sm:$0xff]
        %v573 = vld [vmem:[%s219 + $0x920] sm:$0xff]
        %v574 = vld [vmem:[%s219 + $0x928] sm:$0xff]
        %v575 = vld [vmem:[%s219 + $0x930] sm:$0xff]
        %v576 = vld [vmem:[%s219 + $0x938] sm:$0xff]
        %v577 = vld [vmem:[%s219 + $0x940] sm:$0xff]
        %v578 = vld [vmem:[%s219 + $0x948] sm:$0xff]
        %v579 = vld [vmem:[%s219 + $0x950] sm:$0xff]
        %v580 = vld [vmem:[%s219 + $0x958] sm:$0xff]
        %v581 = vld [vmem:[%s219 + $0x960] sm:$0xff]
        %v582 = vld [vmem:[%s219 + $0x968] sm:$0xff]
        %v583 = vld [vmem:[%s219 + $0x970] sm:$0xff]
        %v584 = vld [vmem:[%s219 + $0x978] sm:$0xff]
        %v585 = vld [vmem:[%s219 + $0x980] sm:$0xff]
        %v586 = vld [vmem:[%s219 + $0x988] sm:$0xff]
        %v587 = vld [vmem:[%s219 + $0x990] sm:$0xff]
        %v588 = vld [vmem:[%s219 + $0x998] sm:$0xff]
        %v589 = vld [vmem:[%s219 + $0x9a0] sm:$0xff]
        %v590 = vld [vmem:[%s219 + $0x9a8] sm:$0xff]
        %v591 = vld [vmem:[%s219 + $0x9b0] sm:$0xff]
        %v592 = vld [vmem:[%s219 + $0x9b8] sm:$0xff]
        %v593 = vld [vmem:[%s219 + $0x9c0] sm:$0xff]
        %v594 = vld [vmem:[%s219 + $0x9c8] sm:$0xff]
        %v595 = vld [vmem:[%s219 + $0x9d0] sm:$0xff]
        %v596 = vld [vmem:[%s219 + $0x9d8] sm:$0xff]
        %v597 = vld [vmem:[%s219 + $0x9e0] sm:$0xff]
        %v598 = vld [vmem:[%s219 + $0x9e8] sm:$0xff]
        %v599 = vld [vmem:[%s219 + $0x9f0] sm:$0xff]
        %v600 = vld [vmem:[%s219 + $0x9f8] sm:$0xff]
        %v601 = vld [vmem:[%s219 + $0xa00] sm:$0xff]
        %v602 = vld [vmem:[%s219 + $0xa08] sm:$0xff]
        %v603 = vld [vmem:[%s219 + $0xa10] sm:$0xff]
        %v604 = vld [vmem:[%s219 + $0xa18] sm:$0xff]
        %v605 = vld [vmem:[%s219 + $0xa20] sm:$0xff]
        %v606 = vld [vmem:[%s219 + $0xa28] sm:$0xff]
        %v607 = vld [vmem:[%s219 + $0xa30] sm:$0xff]
        %v608 = vld [vmem:[%s219 + $0xa38] sm:$0xff]
        %v609 = vld [vmem:[%s219 + $0xa40] sm:$0xff]
        %v610 = vld [vmem:[%s219 + $0xa48] sm:$0xff]
        %v611 = vld [vmem:[%s219 + $0xa50] sm:$0xff]
        %v612 = vld [vmem:[%s219 + $0xa58] sm:$0xff]
        %v613 = vld [vmem:[%s219 + $0xa60] sm:$0xff]
        %v614 = vld [vmem:[%s219 + $0xa68] sm:$0xff]
        %v615 = vld [vmem:[%s219 + $0xa70] sm:$0xff]
        %v616 = vld [vmem:[%s219 + $0xa78] sm:$0xff]
        %v617 = vld [vmem:[%s219 + $0xa80] sm:$0xff]
        %v618 = vld [vmem:[%s219 + $0xa88] sm:$0xff]
        %v619 = vld [vmem:[%s219 + $0xa90] sm:$0xff]
        %v620 = vld [vmem:[%s219 + $0xa98] sm:$0xff]
        %v621 = vld [vmem:[%s219 + $0xaa0] sm:$0xff]
        %v622 = vld [vmem:[%s219 + $0xaa8] sm:$0xff]
        %v623 = vld [vmem:[%s219 + $0xab0] sm:$0xff]
        %v624 = vld [vmem:[%s219 + $0xab8] sm:$0xff]
        %v625 = vld [vmem:[%s219 + $0xac0] sm:$0xff]
        %v626 = vld [vmem:[%s219 + $0xac8] sm:$0xff]
        %v627 = vld [vmem:[%s219 + $0xad0] sm:$0xff]
        %v628 = vld [vmem:[%s219 + $0xad8] sm:$0xff]
        %v629 = vld [vmem:[%s219 + $0xae0] sm:$0xff]
        %v630 = vld [vmem:[%s219 + $0xae8] sm:$0xff]
        %v631 = vld [vmem:[%s219 + $0xaf0] sm:$0xff]
        %v632 = vld [vmem:[%s219 + $0xaf8] sm:$0xff]
        %v633 = vld [vmem:[%s219 + $0xb00] sm:$0xff]
        %v634 = vld [vmem:[%s219 + $0xb08] sm:$0xff]
        %v635 = vld [vmem:[%s219 + $0xb10] sm:$0xff]
        %v636 = vld [vmem:[%s219 + $0xb18] sm:$0xff]
        %v637 = vld [vmem:[%s219 + $0xb20] sm:$0xff]
        %v638 = vld [vmem:[%s219 + $0xb28] sm:$0xff]
        %v639 = vld [vmem:[%s219 + $0xb30] sm:$0xff]
        %v640 = vld [vmem:[%s219 + $0xb38] sm:$0xff]
        %v641 = vld [vmem:[%s219 + $0xb40] sm:$0xff]
        %v642 = vld [vmem:[%s219 + $0xb48] sm:$0xff]
        %v643 = vld [vmem:[%s219 + $0xb50] sm:$0xff]
        %v644 = vld [vmem:[%s219 + $0xb58] sm:$0xff]
        %v645 = vld [vmem:[%s219 + $0xb60] sm:$0xff]
        %v646 = vld [vmem:[%s219 + $0xb68] sm:$0xff]
        %v647 = vld [vmem:[%s219 + $0xb70] sm:$0xff]
        %v648 = vld [vmem:[%s219 + $0xb78] sm:$0xff]
        %v649 = vld [vmem:[%s219 + $0xb80] sm:$0xff]
        %v650 = vld [vmem:[%s219 + $0xb88] sm:$0xff]
        %v651 = vld [vmem:[%s219 + $0xb90] sm:$0xff]
        %v652 = vld [vmem:[%s219 + $0xb98] sm:$0xff]
        %v653 = vld [vmem:[%s219 + $0xba0] sm:$0xff]
        %v654 = vld [vmem:[%s219 + $0xba8] sm:$0xff]
        %v655 = vld [vmem:[%s219 + $0xbb0] sm:$0xff]
        %v656 = vld [vmem:[%s219 + $0xbb8] sm:$0xff]
        %v657 = vld [vmem:[%s219 + $0xbc0] sm:$0xff]
        %v658 = vld [vmem:[%s219 + $0xbc8] sm:$0xff]
        %v659 = vld [vmem:[%s219 + $0xbd0] sm:$0xff]
        %v660 = vld [vmem:[%s219 + $0xbd8] sm:$0xff]
        %v661 = vld [vmem:[%s219 + $0xbe0] sm:$0xff]
        %v662 = vld [vmem:[%s219 + $0xbe8] sm:$0xff]
        %v663 = vld [vmem:[%s219 + $0xbf0] sm:$0xff]
        %v664 = vld [vmem:[%s219 + $0xbf8] sm:$0xff]
        %v665 = vld [vmem:[%s219 + $0xc00] sm:$0xff]
        %v666 = vld [vmem:[%s219 + $0xc08] sm:$0xff]
        %v667 = vld [vmem:[%s219 + $0xc10] sm:$0xff]
        %v668 = vld [vmem:[%s219 + $0xc18] sm:$0xff]
        %v669 = vld [vmem:[%s219 + $0xc20] sm:$0xff]
        %v670 = vld [vmem:[%s219 + $0xc28] sm:$0xff]
        %v671 = vld [vmem:[%s219 + $0xc30] sm:$0xff]
        %v672 = vld [vmem:[%s219 + $0xc38] sm:$0xff]
        %v673 = vld [vmem:[%s219 + $0xc40] sm:$0xff]
        %v674 = vld [vmem:[%s219 + $0xc48] sm:$0xff]
        %v675 = vld [vmem:[%s219 + $0xc50] sm:$0xff]
        %v676 = vld [vmem:[%s219 + $0xc58] sm:$0xff]
        %v677 = vld [vmem:[%s219 + $0xc60] sm:$0xff]
        %v678 = vld [vmem:[%s219 + $0xc68] sm:$0xff]
        %v679 = vld [vmem:[%s219 + $0xc70] sm:$0xff]
        %v680 = vld [vmem:[%s219 + $0xc78] sm:$0xff]
        %v681 = vld [vmem:[%s219 + $0xc80] sm:$0xff]
        %v682 = vld [vmem:[%s219 + $0xc88] sm:$0xff]
        %v683 = vld [vmem:[%s219 + $0xc90] sm:$0xff]
        %v684 = vld [vmem:[%s219 + $0xc98] sm:$0xff]
        %v685 = vld [vmem:[%s219 + $0xca0] sm:$0xff]
        %v686 = vld [vmem:[%s219 + $0xca8] sm:$0xff]
        %v687 = vld [vmem:[%s219 + $0xcb0] sm:$0xff]
        %v688 = vld [vmem:[%s219 + $0xcb8] sm:$0xff]
        %v689 = vld [vmem:[%s219 + $0xcc0] sm:$0xff]
        %v690 = vld [vmem:[%s219 + $0xcc8] sm:$0xff]
        %v691 = vld [vmem:[%s219 + $0xcd0] sm:$0xff]
        %v692 = vld [vmem:[%s219 + $0xcd8] sm:$0xff]
        %v693 = vld [vmem:[%s219 + $0xce0] sm:$0xff]
        %v694 = vld [vmem:[%s219 + $0xce8] sm:$0xff]
        %v695 = vld [vmem:[%s219 + $0xcf0] sm:$0xff]
        %v696 = vld [vmem:[%s219 + $0xcf8] sm:$0xff]
        %v697 = vld [vmem:[%s219 + $0xd00] sm:$0xff]
        %v698 = vld [vmem:[%s219 + $0xd08] sm:$0xff]
        %v699 = vld [vmem:[%s219 + $0xd10] sm:$0xff]
        %v700 = vld [vmem:[%s219 + $0xd18] sm:$0xff]
        %v701 = vld [vmem:[%s219 + $0xd20] sm:$0xff]
        %v702 = vld [vmem:[%s219 + $0xd28] sm:$0xff]
        %v703 = vld [vmem:[%s219 + $0xd30] sm:$0xff]
        %v704 = vld [vmem:[%s219 + $0xd38] sm:$0xff]
        %v705 = vld [vmem:[%s219 + $0xd40] sm:$0xff]
        %v706 = vld [vmem:[%s219 + $0xd48] sm:$0xff]
        %v707 = vld [vmem:[%s219 + $0xd50] sm:$0xff]
        %v708 = vld [vmem:[%s219 + $0xd58] sm:$0xff]
        %v709 = vld [vmem:[%s219 + $0xd60] sm:$0xff]
        %v710 = vld [vmem:[%s219 + $0xd68] sm:$0xff]
        %v711 = vld [vmem:[%s219 + $0xd70] sm:$0xff]
        %v712 = vld [vmem:[%s219 + $0xd78] sm:$0xff]
        %v713 = vld [vmem:[%s219 + $0xd80] sm:$0xff]
        %v714 = vld [vmem:[%s219 + $0xd88] sm:$0xff]
        %v715 = vld [vmem:[%s219 + $0xd90] sm:$0xff]
        %v716 = vld [vmem:[%s219 + $0xd98] sm:$0xff]
        %v717 = vld [vmem:[%s219 + $0xda0] sm:$0xff]
        %v718 = vld [vmem:[%s219 + $0xda8] sm:$0xff]
        %v719 = vld [vmem:[%s219 + $0xdb0] sm:$0xff]
        %v720 = vld [vmem:[%s219 + $0xdb8] sm:$0xff]
        %v721 = vld [vmem:[%s219 + $0xdc0] sm:$0xff]
        %v722 = vld [vmem:[%s219 + $0xdc8] sm:$0xff]
        %v723 = vld [vmem:[%s219 + $0xdd0] sm:$0xff]
        %v724 = vld [vmem:[%s219 + $0xdd8] sm:$0xff]
        %v725 = vld [vmem:[%s219 + $0xde0] sm:$0xff]
        %v726 = vld [vmem:[%s219 + $0xde8] sm:$0xff]
        %v727 = vld [vmem:[%s219 + $0xdf0] sm:$0xff]
        %v728 = vld [vmem:[%s219 + $0xdf8] sm:$0xff]
        %v729 = vld [vmem:[%s219 + $0xe00] sm:$0xff]
        %v730 = vld [vmem:[%s219 + $0xe08] sm:$0xff]
        %v731 = vld [vmem:[%s219 + $0xe10] sm:$0xff]
        %v732 = vld [vmem:[%s219 + $0xe18] sm:$0xff]
        %v733 = vld [vmem:[%s219 + $0xe20] sm:$0xff]
        %v734 = vld [vmem:[%s219 + $0xe28] sm:$0xff]
        %v735 = vld [vmem:[%s219 + $0xe30] sm:$0xff]
        %v736 = vld [vmem:[%s219 + $0xe38] sm:$0xff]
        %v737 = vld [vmem:[%s219 + $0xe40] sm:$0xff]
        %v738 = vld [vmem:[%s219 + $0xe48] sm:$0xff]
        %v739 = vld [vmem:[%s219 + $0xe50] sm:$0xff]
        %v740 = vld [vmem:[%s219 + $0xe58] sm:$0xff]
        %v741 = vld [vmem:[%s219 + $0xe60] sm:$0xff]
        %v742 = vld [vmem:[%s219 + $0xe68] sm:$0xff]
        %v743 = vld [vmem:[%s219 + $0xe70] sm:$0xff]
        %v744 = vld [vmem:[%s219 + $0xe78] sm:$0xff]
        %v745 = vld [vmem:[%s219 + $0xe80] sm:$0xff]
        %v746 = vld [vmem:[%s219 + $0xe88] sm:$0xff]
        %v747 = vld [vmem:[%s219 + $0xe90] sm:$0xff]
        %v748 = vld [vmem:[%s219 + $0xe98] sm:$0xff]
        %v749 = vld [vmem:[%s219 + $0xea0] sm:$0xff]
        %v750 = vld [vmem:[%s219 + $0xea8] sm:$0xff]
        %v751 = vld [vmem:[%s219 + $0xeb0] sm:$0xff]
        %v752 = vld [vmem:[%s219 + $0xeb8] sm:$0xff]
        %v753 = vld [vmem:[%s219 + $0xec0] sm:$0xff]
        %v754 = vld [vmem:[%s219 + $0xec8] sm:$0xff]
        %v755 = vld [vmem:[%s219 + $0xed0] sm:$0xff]
        %v756 = vld [vmem:[%s219 + $0xed8] sm:$0xff]
        %v757 = vld [vmem:[%s219 + $0xee0] sm:$0xff]
        %v758 = vld [vmem:[%s219 + $0xee8] sm:$0xff]
        %v759 = vld [vmem:[%s219 + $0xef0] sm:$0xff]
        %v760 = vld [vmem:[%s219 + $0xef8] sm:$0xff]
        %v761 = vld [vmem:[%s219 + $0xf00] sm:$0xff]
        %v762 = vld [vmem:[%s219 + $0xf08] sm:$0xff]
        %v763 = vld [vmem:[%s219 + $0xf10] sm:$0xff]
        %v764 = vld [vmem:[%s219 + $0xf18] sm:$0xff]
        %v765 = vld [vmem:[%s219 + $0xf20] sm:$0xff]
        %v766 = vld [vmem:[%s219 + $0xf28] sm:$0xff]
        %v767 = vld [vmem:[%s219 + $0xf30] sm:$0xff]
        %v768 = vld [vmem:[%s219 + $0xf38] sm:$0xff]
        %v769 = vld [vmem:[%s219 + $0xf40] sm:$0xff]
        %v770 = vld [vmem:[%s219 + $0xf48] sm:$0xff]
        %v771 = vld [vmem:[%s219 + $0xf50] sm:$0xff]
        %v772 = vld [vmem:[%s219 + $0xf58] sm:$0xff]
        %v773 = vld [vmem:[%s219 + $0xf60] sm:$0xff]
        %v774 = vld [vmem:[%s219 + $0xf68] sm:$0xff]
        %v775 = vld [vmem:[%s219 + $0xf70] sm:$0xff]
        %v776 = vld [vmem:[%s219 + $0xf78] sm:$0xff]
        %v777 = vld [vmem:[%s219 + $0xf80] sm:$0xff]
        %v778 = vld [vmem:[%s219 + $0xf88] sm:$0xff]
        %v779 = vld [vmem:[%s219 + $0xf90] sm:$0xff]
        %v780 = vld [vmem:[%s219 + $0xf98] sm:$0xff]
        %v781 = vld [vmem:[%s219 + $0xfa0] sm:$0xff]
        %v782 = vld [vmem:[%s219 + $0xfa8] sm:$0xff]
        %v783 = vld [vmem:[%s219 + $0xfb0] sm:$0xff]
        %v784 = vld [vmem:[%s219 + $0xfb8] sm:$0xff]
        %v785 = vld [vmem:[%s219 + $0xfc0] sm:$0xff]
        %v786 = vld [vmem:[%s219 + $0xfc8] sm:$0xff]
        %v787 = vld [vmem:[%s219 + $0xfd0] sm:$0xff]
        %v788 = vld [vmem:[%s219 + $0xfd8] sm:$0xff]
        %v789 = vld [vmem:[%s219 + $0xfe0] sm:$0xff]
        %v790 = vld [vmem:[%s219 + $0xfe8] sm:$0xff]
        %v791 = vld [vmem:[%s219 + $0xff0] sm:$0xff]
        %v792 = vld [vmem:[%s219 + $0xff8] sm:$0xff]
        %v793 = vld [vmem:[%s219 + $0x1000] sm:$0xff]
        %v794 = vld [vmem:[%s219 + $0x1008] sm:$0xff]
        %v795 = vld [vmem:[%s219 + $0x1010] sm:$0xff]
        %v796 = vld [vmem:[%s219 + $0x1018] sm:$0xff]
        %v797 = vld [vmem:[%s219 + $0x1020] sm:$0xff]
        %v798 = vld [vmem:[%s219 + $0x1028] sm:$0xff]
        %v799 = vld [vmem:[%s219 + $0x1030] sm:$0xff]
        %v800 = vld [vmem:[%s219 + $0x1038] sm:$0xff]
        %v801 = vld [vmem:[%s219 + $0x1040] sm:$0xff]
        %v802 = vld [vmem:[%s219 + $0x1048] sm:$0xff]
        %v803 = vld [vmem:[%s219 + $0x1050] sm:$0xff]
        %v804 = vld [vmem:[%s219 + $0x1058] sm:$0xff]
        %v805 = vld [vmem:[%s219 + $0x1060] sm:$0xff]
        %v806 = vld [vmem:[%s219 + $0x1068] sm:$0xff]
        %v807 = vld [vmem:[%s219 + $0x1070] sm:$0xff]
        %v808 = vld [vmem:[%s219 + $0x1078] sm:$0xff]
        %v809 = vld [vmem:[%s219 + $0x1080] sm:$0xff]
        %v810 = vld [vmem:[%s219 + $0x1088] sm:$0xff]
        %v811 = vld [vmem:[%s219 + $0x1090] sm:$0xff]
        %v812 = vld [vmem:[%s219 + $0x1098] sm:$0xff]
        %v813 = vld [vmem:[%s219 + $0x10a0] sm:$0xff]
        %v814 = vld [vmem:[%s219 + $0x10a8] sm:$0xff]
        %v815 = vld [vmem:[%s219 + $0x10b0] sm:$0xff]
        %v816 = vld [vmem:[%s219 + $0x10b8] sm:$0xff]
        %v817 = vld [vmem:[%s219 + $0x10c0] sm:$0xff]
        %v818 = vld [vmem:[%s219 + $0x10c8] sm:$0xff]
        %v819 = vld [vmem:[%s219 + $0x10d0] sm:$0xff]
        %v820 = vld [vmem:[%s219 + $0x10d8] sm:$0xff]
        %v821 = vld [vmem:[%s219 + $0x10e0] sm:$0xff]
        %v822 = vld [vmem:[%s219 + $0x10e8] sm:$0xff]
        %v823 = vld [vmem:[%s219 + $0x10f0] sm:$0xff]
        %v824 = vld [vmem:[%s219 + $0x10f8] sm:$0xff]
        %v825 = vld [vmem:[%s219 + $0x1100] sm:$0xff]
        %v826 = vld [vmem:[%s219 + $0x1108] sm:$0xff]
        %v827 = vld [vmem:[%s219 + $0x1110] sm:$0xff]
        %v828 = vld [vmem:[%s219 + $0x1118] sm:$0xff]
        %v829 = vld [vmem:[%s219 + $0x1120] sm:$0xff]
        %v830 = vld [vmem:[%s219 + $0x1128] sm:$0xff]
        %v831 = vld [vmem:[%s219 + $0x1130] sm:$0xff]
        %v832 = vld [vmem:[%s219 + $0x1138] sm:$0xff]
        %v833 = vld [vmem:[%s219 + $0x1140] sm:$0xff]
        %v834 = vld [vmem:[%s219 + $0x1148] sm:$0xff]
        %v835 = vld [vmem:[%s219 + $0x1150] sm:$0xff]
        %v836 = vld [vmem:[%s219 + $0x1158] sm:$0xff]
        %v837 = vld [vmem:[%s219 + $0x1160] sm:$0xff]
        %v838 = vld [vmem:[%s219 + $0x1168] sm:$0xff]
        %v839 = vld [vmem:[%s219 + $0x1170] sm:$0xff]
        %v840 = vld [vmem:[%s219 + $0x1178] sm:$0xff]
        %v841 = vld [vmem:[%s219 + $0x1180] sm:$0xff]
        %v842 = vld [vmem:[%s219 + $0x1188] sm:$0xff]
        %v843 = vld [vmem:[%s219 + $0x1190] sm:$0xff]
        %v844 = vld [vmem:[%s219 + $0x1198] sm:$0xff]
        %v845 = vld [vmem:[%s219 + $0x11a0] sm:$0xff]
        %v846 = vld [vmem:[%s219 + $0x11a8] sm:$0xff]
        %v847 = vld [vmem:[%s219 + $0x11b0] sm:$0xff]
        %v848 = vld [vmem:[%s219 + $0x11b8] sm:$0xff]
        %v849 = vld [vmem:[%s219 + $0x11c0] sm:$0xff]
        %v850 = vld [vmem:[%s219 + $0x11c8] sm:$0xff]
        %v851 = vld [vmem:[%s219 + $0x11d0] sm:$0xff]
        %v852 = vld [vmem:[%s219 + $0x11d8] sm:$0xff]
        %v853 = vld [vmem:[%s219 + $0x11e0] sm:$0xff]
        %v854 = vld [vmem:[%s219 + $0x11e8] sm:$0xff]
        %v855 = vld [vmem:[%s219 + $0x11f0] sm:$0xff]
        %v856 = vld [vmem:[%s219 + $0x11f8] sm:$0xff]
        %v857 = vld [vmem:[%s219 + $0x1200] sm:$0xff]
        %v858 = vld [vmem:[%s219 + $0x1208] sm:$0xff]
        %v859 = vld [vmem:[%s219 + $0x1210] sm:$0xff]
        %v860 = vld [vmem:[%s219 + $0x1218] sm:$0xff]
        %v861 = vld [vmem:[%s219 + $0x1220] sm:$0xff]
        %v862 = vld [vmem:[%s219 + $0x1228] sm:$0xff]
        %v863 = vld [vmem:[%s219 + $0x1230] sm:$0xff]
        %v864 = vld [vmem:[%s219 + $0x1238] sm:$0xff]
        %v865 = vld [vmem:[%s219 + $0x1240] sm:$0xff]
        %v866 = vld [vmem:[%s219 + $0x1248] sm:$0xff]
        %v867 = vld [vmem:[%s219 + $0x1250] sm:$0xff]
        %v868 = vld [vmem:[%s219 + $0x1258] sm:$0xff]
        %v869 = vld [vmem:[%s219 + $0x1260] sm:$0xff]
        %v870 = vld [vmem:[%s219 + $0x1268] sm:$0xff]
        %v871 = vld [vmem:[%s219 + $0x1270] sm:$0xff]
        %v872 = vld [vmem:[%s219 + $0x1278] sm:$0xff]
        %v873 = vld [vmem:[%s219 + $0x1280] sm:$0xff]
        %v874 = vld [vmem:[%s219 + $0x1288] sm:$0xff]
        %v875 = vld [vmem:[%s219 + $0x1290] sm:$0xff]
        %v876 = vld [vmem:[%s219 + $0x1298] sm:$0xff]
        %v877 = vld [vmem:[%s219 + $0x12a0] sm:$0xff]
        %v878 = vld [vmem:[%s219 + $0x12a8] sm:$0xff]
        %v879 = vld [vmem:[%s219 + $0x12b0] sm:$0xff]
        %v880 = vld [vmem:[%s219 + $0x12b8] sm:$0xff]
        %v881 = vld [vmem:[%s219 + $0x12c0] sm:$0xff]
        %v882 = vld [vmem:[%s219 + $0x12c8] sm:$0xff]
        %v883 = vld [vmem:[%s219 + $0x12d0] sm:$0xff]
        %v884 = vld [vmem:[%s219 + $0x12d8] sm:$0xff]
        %v885 = vld [vmem:[%s219 + $0x12e0] sm:$0xff]
        %v886 = vld [vmem:[%s219 + $0x12e8] sm:$0xff]
        %v887 = vld [vmem:[%s219 + $0x12f0] sm:$0xff]
        %v888 = vld [vmem:[%s219 + $0x12f8] sm:$0xff]
        %v889 = vld [vmem:[%s219 + $0x1300] sm:$0xff]
        %v890 = vld [vmem:[%s219 + $0x1308] sm:$0xff]
        %v891 = vld [vmem:[%s219 + $0x1310] sm:$0xff]
        %v892 = vld [vmem:[%s219 + $0x1318] sm:$0xff]
        %v893 = vld [vmem:[%s219 + $0x1320] sm:$0xff]
        %v894 = vld [vmem:[%s219 + $0x1328] sm:$0xff]
        %v895 = vld [vmem:[%s219 + $0x1330] sm:$0xff]
        %v896 = vld [vmem:[%s219 + $0x1338] sm:$0xff]
        %v897 = vld [vmem:[%s219 + $0x1340] sm:$0xff]
        %v898 = vld [vmem:[%s219 + $0x1348] sm:$0xff]
        %v899 = vld [vmem:[%s219 + $0x1350] sm:$0xff]
        %v900 = vld [vmem:[%s219 + $0x1358] sm:$0xff]
        %v901 = vld [vmem:[%s219 + $0x1360] sm:$0xff]
        %v902 = vld [vmem:[%s219 + $0x1368] sm:$0xff]
        %v903 = vld [vmem:[%s219 + $0x1370] sm:$0xff]
        %v904 = vld [vmem:[%s219 + $0x1378] sm:$0xff]
        %v905 = vld [vmem:[%s219 + $0x1380] sm:$0xff]
        %v906 = vld [vmem:[%s219 + $0x1388] sm:$0xff]
        %v907 = vld [vmem:[%s219 + $0x1390] sm:$0xff]
        %v908 = vld [vmem:[%s219 + $0x1398] sm:$0xff]
        %v909 = vld [vmem:[%s219 + $0x13a0] sm:$0xff]
        %v910 = vld [vmem:[%s219 + $0x13a8] sm:$0xff]
        %v911 = vld [vmem:[%s219 + $0x13b0] sm:$0xff]
        %v912 = vld [vmem:[%s219 + $0x13b8] sm:$0xff]
        %v913 = vld [vmem:[%s219 + $0x13c0] sm:$0xff]
        %v914 = vld [vmem:[%s219 + $0x13c8] sm:$0xff]
        %v915 = vld [vmem:[%s219 + $0x13d0] sm:$0xff]
        %v916 = vld [vmem:[%s219 + $0x13d8] sm:$0xff]
        %v917 = vld [vmem:[%s219 + $0x13e0] sm:$0xff]
        %v918 = vld [vmem:[%s219 + $0x13e8] sm:$0xff]
        %v919 = vld [vmem:[%s219 + $0x13f0] sm:$0xff]
        %v920 = vld [vmem:[%s219 + $0x13f8] sm:$0xff]
        %v921 = vld [vmem:[%s219 + $0x1400] sm:$0xff]
        %v922 = vld [vmem:[%s219 + $0x1408] sm:$0xff]
        %v923 = vld [vmem:[%s219 + $0x1410] sm:$0xff]
        %v924 = vld [vmem:[%s219 + $0x1418] sm:$0xff]
        %v925 = vld [vmem:[%s219 + $0x1420] sm:$0xff]
        %v926 = vld [vmem:[%s219 + $0x1428] sm:$0xff]
        %v927 = vld [vmem:[%s219 + $0x1430] sm:$0xff]
        %v928 = vld [vmem:[%s219 + $0x1438] sm:$0xff]
        %v929 = vld [vmem:[%s219 + $0x1440] sm:$0xff]
        %v930 = vld [vmem:[%s219 + $0x1448] sm:$0xff]
        %v931 = vld [vmem:[%s219 + $0x1450] sm:$0xff]
        %v932 = vld [vmem:[%s219 + $0x1458] sm:$0xff]
        %v933 = vld [vmem:[%s219 + $0x1460] sm:$0xff]
        %v934 = vld [vmem:[%s219 + $0x1468] sm:$0xff]
        %v935 = vld [vmem:[%s219 + $0x1470] sm:$0xff]
        %v936 = vld [vmem:[%s219 + $0x1478] sm:$0xff]
        %v937 = vld [vmem:[%s219 + $0x1480] sm:$0xff]
        %v938 = vld [vmem:[%s219 + $0x1488] sm:$0xff]
        %v939 = vld [vmem:[%s219 + $0x1490] sm:$0xff]
        %v940 = vld [vmem:[%s219 + $0x1498] sm:$0xff]
        %v941 = vld [vmem:[%s219 + $0x14a0] sm:$0xff]
        %v942 = vld [vmem:[%s219 + $0x14a8] sm:$0xff]
        %v943 = vld [vmem:[%s219 + $0x14b0] sm:$0xff]
        %v944 = vld [vmem:[%s219 + $0x14b8] sm:$0xff]
        %v945 = vld [vmem:[%s219 + $0x14c0] sm:$0xff]
        %v946 = vld [vmem:[%s219 + $0x14c8] sm:$0xff]
        %v947 = vld [vmem:[%s219 + $0x14d0] sm:$0xff]
        %v948 = vld [vmem:[%s219 + $0x14d8] sm:$0xff]
        %v949 = vld [vmem:[%s219 + $0x14e0] sm:$0xff]
        %v950 = vld [vmem:[%s219 + $0x14e8] sm:$0xff]
        %v951 = vld [vmem:[%s219 + $0x14f0] sm:$0xff]
        %v952 = vld [vmem:[%s219 + $0x14f8] sm:$0xff]
        %v953 = vld [vmem:[%s219 + $0x1500] sm:$0xff]
        %v954 = vld [vmem:[%s219 + $0x1508] sm:$0xff]
        %v955 = vld [vmem:[%s219 + $0x1510] sm:$0xff]
        %v956 = vld [vmem:[%s219 + $0x1518] sm:$0xff]
        %v957 = vld [vmem:[%s219 + $0x1520] sm:$0xff]
        %v958 = vld [vmem:[%s219 + $0x1528] sm:$0xff]
        %v959 = vld [vmem:[%s219 + $0x1530] sm:$0xff]
        %v960 = vld [vmem:[%s219 + $0x1538] sm:$0xff]
        %v961 = vld [vmem:[%s219 + $0x1540] sm:$0xff]
        %v962 = vld [vmem:[%s219 + $0x1548] sm:$0xff]
        %v963 = vld [vmem:[%s219 + $0x1550] sm:$0xff]
        %v964 = vld [vmem:[%s219 + $0x1558] sm:$0xff]
        %v965 = vld [vmem:[%s219 + $0x1560] sm:$0xff]
        %v966 = vld [vmem:[%s219 + $0x1568] sm:$0xff]
        %v967 = vld [vmem:[%s219 + $0x1570] sm:$0xff]
        %v968 = vld [vmem:[%s219 + $0x1578] sm:$0xff]
        %v969 = vld [vmem:[%s219 + $0x1580] sm:$0xff]
        %v970 = vld [vmem:[%s219 + $0x1588] sm:$0xff]
        %v971 = vld [vmem:[%s219 + $0x1590] sm:$0xff]
        %v972 = vld [vmem:[%s219 + $0x1598] sm:$0xff]
        %v973 = vld [vmem:[%s219 + $0x15a0] sm:$0xff]
        %v974 = vld [vmem:[%s219 + $0x15a8] sm:$0xff]
        %v975 = vld [vmem:[%s219 + $0x15b0] sm:$0xff]
        %v976 = vld [vmem:[%s219 + $0x15b8] sm:$0xff]
        %v977 = vld [vmem:[%s219 + $0x15c0] sm:$0xff]
        %v978 = vld [vmem:[%s219 + $0x15c8] sm:$0xff]
        %v979 = vld [vmem:[%s219 + $0x15d0] sm:$0xff]
        %v980 = vld [vmem:[%s219 + $0x15d8] sm:$0xff]
        %v981 = vld [vmem:[%s219 + $0x15e0] sm:$0xff]
        %v982 = vld [vmem:[%s219 + $0x15e8] sm:$0xff]
        %v983 = vld [vmem:[%s219 + $0x15f0] sm:$0xff]
        %v984 = vld [vmem:[%s219 + $0x15f8] sm:$0xff]
        %v985 = vld [vmem:[%s219 + $0x1600] sm:$0xff]
        %v986 = vld [vmem:[%s219 + $0x1608] sm:$0xff]
        %v987 = vld [vmem:[%s219 + $0x1610] sm:$0xff]
        %v988 = vld [vmem:[%s219 + $0x1618] sm:$0xff]
        %v989 = vld [vmem:[%s219 + $0x1620] sm:$0xff]
        %v990 = vld [vmem:[%s219 + $0x1628] sm:$0xff]
        %v991 = vld [vmem:[%s219 + $0x1630] sm:$0xff]
        %v992 = vld [vmem:[%s219 + $0x1638] sm:$0xff]
        %v993 = vld [vmem:[%s219 + $0x1640] sm:$0xff]
        %v994 = vld [vmem:[%s219 + $0x1648] sm:$0xff]
        %v995 = vld [vmem:[%s219 + $0x1650] sm:$0xff]
        %v996 = vld [vmem:[%s219 + $0x1658] sm:$0xff]
        %v997 = vld [vmem:[%s219 + $0x1660] sm:$0xff]
        %v998 = vld [vmem:[%s219 + $0x1668] sm:$0xff]
        %v999 = vld [vmem:[%s219 + $0x1670] sm:$0xff]
        %v1000 = vld [vmem:[%s219 + $0x1678] sm:$0xff]
        %v1001 = vld [vmem:[%s219 + $0x1680] sm:$0xff]
        %v1002 = vld [vmem:[%s219 + $0x1688] sm:$0xff]
        %v1003 = vld [vmem:[%s219 + $0x1690] sm:$0xff]
        %v1004 = vld [vmem:[%s219 + $0x1698] sm:$0xff]
        %v1005 = vld [vmem:[%s219 + $0x16a0] sm:$0xff]
        %v1006 = vld [vmem:[%s219 + $0x16a8] sm:$0xff]
        %v1007 = vld [vmem:[%s219 + $0x16b0] sm:$0xff]
        %v1008 = vld [vmem:[%s219 + $0x16b8] sm:$0xff]
        %v1009 = vld [vmem:[%s219 + $0x16c0] sm:$0xff]
        %v1010 = vld [vmem:[%s219 + $0x16c8] sm:$0xff]
        %v1011 = vld [vmem:[%s219 + $0x16d0] sm:$0xff]
        %v1012 = vld [vmem:[%s219 + $0x16d8] sm:$0xff]
        %v1013 = vld [vmem:[%s219 + $0x16e0] sm:$0xff]
        %v1014 = vld [vmem:[%s219 + $0x16e8] sm:$0xff]
        %v1015 = vld [vmem:[%s219 + $0x16f0] sm:$0xff]
        %v1016 = vld [vmem:[%s219 + $0x16f8] sm:$0xff]
        %v1017 = vld [vmem:[%s219 + $0x1700] sm:$0xff]
        %v1018 = vld [vmem:[%s219 + $0x1708] sm:$0xff]
        %v1019 = vld [vmem:[%s219 + $0x1710] sm:$0xff]
        %v1020 = vld [vmem:[%s219 + $0x1718] sm:$0xff]
        %v1021 = vld [vmem:[%s219 + $0x1720] sm:$0xff]
        %v1022 = vld [vmem:[%s219 + $0x1728] sm:$0xff]
        %v1023 = vld [vmem:[%s219 + $0x1730] sm:$0xff]
        %v1024 = vld [vmem:[%s219 + $0x1738] sm:$0xff]
        %v1025 = vld [vmem:[%s219 + $0x1740] sm:$0xff]
        %v1026 = vld [vmem:[%s219 + $0x1748] sm:$0xff]
        %v1027 = vld [vmem:[%s219 + $0x1750] sm:$0xff]
        %v1028 = vld [vmem:[%s219 + $0x1758] sm:$0xff]
        %v1029 = vld [vmem:[%s219 + $0x1760] sm:$0xff]
        %v1030 = vld [vmem:[%s219 + $0x1768] sm:$0xff]
        %v1031 = vld [vmem:[%s219 + $0x1770] sm:$0xff]
        %v1032 = vld [vmem:[%s219 + $0x1778] sm:$0xff]
        %v1033 = vld [vmem:[%s219 + $0x1780] sm:$0xff]
        %v1034 = vld [vmem:[%s219 + $0x1788] sm:$0xff]
        %v1035 = vld [vmem:[%s219 + $0x1790] sm:$0xff]
        %v1036 = vld [vmem:[%s219 + $0x1798] sm:$0xff]
        %v1037 = vld [vmem:[%s219 + $0x17a0] sm:$0xff]
        %v1038 = vld [vmem:[%s219 + $0x17a8] sm:$0xff]
        %v1039 = vld [vmem:[%s219 + $0x17b0] sm:$0xff]
        %v1040 = vld [vmem:[%s219 + $0x17b8] sm:$0xff]
        %v1041 = vld [vmem:[%s219 + $0x17c0] sm:$0xff]
        %v1042 = vld [vmem:[%s219 + $0x17c8] sm:$0xff]
        %v1043 = vld [vmem:[%s219 + $0x17d0] sm:$0xff]
        %v1044 = vld [vmem:[%s219 + $0x17d8] sm:$0xff]
        %v1045 = vld [vmem:[%s219 + $0x17e0] sm:$0xff]
        %v1046 = vld [vmem:[%s219 + $0x17e8] sm:$0xff]
        %v1047 = vld [vmem:[%s219 + $0x17f0] sm:$0xff]
        %v1048 = vld [vmem:[%s219 + $0x17f8] sm:$0xff]
        %v1049 = vld [vmem:[%s219 + $0x1800] sm:$0xff]
        %v1050 = vld [vmem:[%s219 + $0x1808] sm:$0xff]
        %v1051 = vld [vmem:[%s219 + $0x1810] sm:$0xff]
        %v1052 = vld [vmem:[%s219 + $0x1818] sm:$0xff]
        %v1053 = vld [vmem:[%s219 + $0x1820] sm:$0xff]
        %v1054 = vld [vmem:[%s219 + $0x1828] sm:$0xff]
        %v1055 = vld [vmem:[%s219 + $0x1830] sm:$0xff]
        %v1056 = vld [vmem:[%s219 + $0x1838] sm:$0xff]
        %v1057 = vld [vmem:[%s219 + $0x1840] sm:$0xff]
        %v1058 = vld [vmem:[%s219 + $0x1848] sm:$0xff]
        %v1059 = vld [vmem:[%s219 + $0x1850] sm:$0xff]
        %v1060 = vld [vmem:[%s219 + $0x1858] sm:$0xff]
        %v1061 = vld [vmem:[%s219 + $0x1860] sm:$0xff]
        %v1062 = vld [vmem:[%s219 + $0x1868] sm:$0xff]
        %v1063 = vld [vmem:[%s219 + $0x1870] sm:$0xff]
        %v1064 = vld [vmem:[%s219 + $0x1878] sm:$0xff]
        %v1065 = vld [vmem:[%s219 + $0x1880] sm:$0xff]
        %v1066 = vld [vmem:[%s219 + $0x1888] sm:$0xff]
        %v1067 = vld [vmem:[%s219 + $0x1890] sm:$0xff]
        %v1068 = vld [vmem:[%s219 + $0x1898] sm:$0xff]
        %v1069 = vld [vmem:[%s219 + $0x18a0] sm:$0xff]
        %v1070 = vld [vmem:[%s219 + $0x18a8] sm:$0xff]
        %v1071 = vld [vmem:[%s219 + $0x18b0] sm:$0xff]
        %v1072 = vld [vmem:[%s219 + $0x18b8] sm:$0xff]
        %v1073 = vld [vmem:[%s219 + $0x18c0] sm:$0xff]
        %v1074 = vld [vmem:[%s219 + $0x18c8] sm:$0xff]
        %v1075 = vld [vmem:[%s219 + $0x18d0] sm:$0xff]
        %v1076 = vld [vmem:[%s219 + $0x18d8] sm:$0xff]
        %v1077 = vld [vmem:[%s219 + $0x18e0] sm:$0xff]
        %v1078 = vld [vmem:[%s219 + $0x18e8] sm:$0xff]
        %v1079 = vld [vmem:[%s219 + $0x18f0] sm:$0xff]
        %v1080 = vld [vmem:[%s219 + $0x18f8] sm:$0xff]
        %v1081 = vld [vmem:[%s219 + $0x1900] sm:$0xff]
        %v1082 = vld [vmem:[%s219 + $0x1908] sm:$0xff]
        %v1083 = vld [vmem:[%s219 + $0x1910] sm:$0xff]
        %v1084 = vld [vmem:[%s219 + $0x1918] sm:$0xff]
        %v1085 = vld [vmem:[%s219 + $0x1920] sm:$0xff]
        %v1086 = vld [vmem:[%s219 + $0x1928] sm:$0xff]
        %v1087 = vld [vmem:[%s219 + $0x1930] sm:$0xff]
        %v1088 = vld [vmem:[%s219 + $0x1938] sm:$0xff]
        %v1089 = vld [vmem:[%s219 + $0x1940] sm:$0xff]
        %v1090 = vld [vmem:[%s219 + $0x1948] sm:$0xff]
        %v1091 = vld [vmem:[%s219 + $0x1950] sm:$0xff]
        %v1092 = vld [vmem:[%s219 + $0x1958] sm:$0xff]
        %v1093 = vld [vmem:[%s219 + $0x1960] sm:$0xff]
        %v1094 = vld [vmem:[%s219 + $0x1968] sm:$0xff]
        %v1095 = vld [vmem:[%s219 + $0x1970] sm:$0xff]
        %v1096 = vld [vmem:[%s219 + $0x1978] sm:$0xff]
        %v1097 = vld [vmem:[%s219 + $0x1980] sm:$0xff]
        %v1098 = vld [vmem:[%s219 + $0x1988] sm:$0xff]
        %v1099 = vld [vmem:[%s219 + $0x1990] sm:$0xff]
        %v1100 = vld [vmem:[%s219 + $0x1998] sm:$0xff]
        %v1101 = vld [vmem:[%s219 + $0x19a0] sm:$0xff]
        %v1102 = vld [vmem:[%s219 + $0x19a8] sm:$0xff]
        %v1103 = vld [vmem:[%s219 + $0x19b0] sm:$0xff]
        %v1104 = vld [vmem:[%s219 + $0x19b8] sm:$0xff]
        %v1105 = vld [vmem:[%s219 + $0x19c0] sm:$0xff]
        %v1106 = vld [vmem:[%s219 + $0x19c8] sm:$0xff]
        %v1107 = vld [vmem:[%s219 + $0x19d0] sm:$0xff]
        %v1108 = vld [vmem:[%s219 + $0x19d8] sm:$0xff]
        %v1109 = vld [vmem:[%s219 + $0x19e0] sm:$0xff]
        %v1110 = vld [vmem:[%s219 + $0x19e8] sm:$0xff]
        %v1111 = vld [vmem:[%s219 + $0x19f0] sm:$0xff]
        %v1112 = vld [vmem:[%s219 + $0x19f8] sm:$0xff]
        %v1113 = vld [vmem:[%s219 + $0x1a00] sm:$0xff]
        %v1114 = vld [vmem:[%s219 + $0x1a08] sm:$0xff]
        %v1115 = vld [vmem:[%s219 + $0x1a10] sm:$0xff]
        %v1116 = vld [vmem:[%s219 + $0x1a18] sm:$0xff]
        %v1117 = vld [vmem:[%s219 + $0x1a20] sm:$0xff]
        %v1118 = vld [vmem:[%s219 + $0x1a28] sm:$0xff]
        %v1119 = vld [vmem:[%s219 + $0x1a30] sm:$0xff]
        %v1120 = vld [vmem:[%s219 + $0x1a38] sm:$0xff]
        %v1121 = vld [vmem:[%s219 + $0x1a40] sm:$0xff]
        %v1122 = vld [vmem:[%s219 + $0x1a48] sm:$0xff]
        %v1123 = vld [vmem:[%s219 + $0x1a50] sm:$0xff]
        %v1124 = vld [vmem:[%s219 + $0x1a58] sm:$0xff]
        %v1125 = vld [vmem:[%s219 + $0x1a60] sm:$0xff]
        %v1126 = vld [vmem:[%s219 + $0x1a68] sm:$0xff]
        %v1127 = vld [vmem:[%s219 + $0x1a70] sm:$0xff]
        %v1128 = vld [vmem:[%s219 + $0x1a78] sm:$0xff]
        %v1129 = vld [vmem:[%s219 + $0x1a80] sm:$0xff]
        %v1130 = vld [vmem:[%s219 + $0x1a88] sm:$0xff]
        %v1131 = vld [vmem:[%s219 + $0x1a90] sm:$0xff]
        %v1132 = vld [vmem:[%s219 + $0x1a98] sm:$0xff]
        %v1133 = vld [vmem:[%s219 + $0x1aa0] sm:$0xff]
        %v1134 = vld [vmem:[%s219 + $0x1aa8] sm:$0xff]
        %v1135 = vld [vmem:[%s219 + $0x1ab0] sm:$0xff]
        %v1136 = vld [vmem:[%s219 + $0x1ab8] sm:$0xff]
        %v1137 = vld [vmem:[%s219 + $0x1ac0] sm:$0xff]
        %v1138 = vld [vmem:[%s219 + $0x1ac8] sm:$0xff]
        %v1139 = vld [vmem:[%s219 + $0x1ad0] sm:$0xff]
        %v1140 = vld [vmem:[%s219 + $0x1ad8] sm:$0xff]
        %v1141 = vld [vmem:[%s219 + $0x1ae0] sm:$0xff]
        %v1142 = vld [vmem:[%s219 + $0x1ae8] sm:$0xff]
        %v1143 = vld [vmem:[%s219 + $0x1af0] sm:$0xff]
        %v1144 = vld [vmem:[%s219 + $0x1af8] sm:$0xff]
        %v1145 = vld [vmem:[%s219 + $0x1b00] sm:$0xff]
        %v1146 = vld [vmem:[%s219 + $0x1b08] sm:$0xff]
        %v1147 = vld [vmem:[%s219 + $0x1b10] sm:$0xff]
        %v1148 = vld [vmem:[%s219 + $0x1b18] sm:$0xff]
        %v1149 = vld [vmem:[%s219 + $0x1b20] sm:$0xff]
        %v1150 = vld [vmem:[%s219 + $0x1b28] sm:$0xff]
        %v1151 = vld [vmem:[%s219 + $0x1b30] sm:$0xff]
        %v1152 = vld [vmem:[%s219 + $0x1b38] sm:$0xff]
        %v1153 = vld [vmem:[%s219 + $0x1b40] sm:$0xff]
        %v1154 = vld [vmem:[%s219 + $0x1b48] sm:$0xff]
        %v1155 = vld [vmem:[%s219 + $0x1b50] sm:$0xff]
        %v1156 = vld [vmem:[%s219 + $0x1b58] sm:$0xff]
        %v1157 = vld [vmem:[%s219 + $0x1b60] sm:$0xff]
        %v1158 = vld [vmem:[%s219 + $0x1b68] sm:$0xff]
        %v1159 = vld [vmem:[%s219 + $0x1b70] sm:$0xff]
        %v1160 = vld [vmem:[%s219 + $0x1b78] sm:$0xff]
        %v1161 = vld [vmem:[%s219 + $0x1b80] sm:$0xff]
        %v1162 = vld [vmem:[%s219 + $0x1b88] sm:$0xff]
        %v1163 = vld [vmem:[%s219 + $0x1b90] sm:$0xff]
        %v1164 = vld [vmem:[%s219 + $0x1b98] sm:$0xff]
        %v1165 = vld [vmem:[%s219 + $0x1ba0] sm:$0xff]
        %v1166 = vld [vmem:[%s219 + $0x1ba8] sm:$0xff]
        %v1167 = vld [vmem:[%s219 + $0x1bb0] sm:$0xff]
        %v1168 = vld [vmem:[%s219 + $0x1bb8] sm:$0xff]
        %v1169 = vld [vmem:[%s219 + $0x1bc0] sm:$0xff]
        %v1170 = vld [vmem:[%s219 + $0x1bc8] sm:$0xff]
        %v1171 = vld [vmem:[%s219 + $0x1bd0] sm:$0xff]
        %v1172 = vld [vmem:[%s219 + $0x1bd8] sm:$0xff]
        %v1173 = vld [vmem:[%s219 + $0x1be0] sm:$0xff]
        %v1174 = vld [vmem:[%s219 + $0x1be8] sm:$0xff]
        %v1175 = vld [vmem:[%s219 + $0x1bf0] sm:$0xff]
        %v1176 = vld [vmem:[%s219 + $0x1bf8] sm:$0xff]
        %v1177 = vld [vmem:[%s219 + $0x1c00] sm:$0xff]
        %v1178 = vld [vmem:[%s219 + $0x1c08] sm:$0xff]
        %v1179 = vld [vmem:[%s219 + $0x1c10] sm:$0xff]
        %v1180 = vld [vmem:[%s219 + $0x1c18] sm:$0xff]
        %v1181 = vld [vmem:[%s219 + $0x1c20] sm:$0xff]
        %v1182 = vld [vmem:[%s219 + $0x1c28] sm:$0xff]
        %v1183 = vld [vmem:[%s219 + $0x1c30] sm:$0xff]
        %v1184 = vld [vmem:[%s219 + $0x1c38] sm:$0xff]
        %v1185 = vld [vmem:[%s219 + $0x1c40] sm:$0xff]
        %v1186 = vld [vmem:[%s219 + $0x1c48] sm:$0xff]
        %v1187 = vld [vmem:[%s219 + $0x1c50] sm:$0xff]
        %v1188 = vld [vmem:[%s219 + $0x1c58] sm:$0xff]
        %v1189 = vld [vmem:[%s219 + $0x1c60] sm:$0xff]
        %v1190 = vld [vmem:[%s219 + $0x1c68] sm:$0xff]
        %v1191 = vld [vmem:[%s219 + $0x1c70] sm:$0xff]
        %v1192 = vld [vmem:[%s219 + $0x1c78] sm:$0xff]
        %v1193 = vld [vmem:[%s219 + $0x1c80] sm:$0xff]
        %v1194 = vld [vmem:[%s219 + $0x1c88] sm:$0xff]
        %v1195 = vld [vmem:[%s219 + $0x1c90] sm:$0xff]
        %v1196 = vld [vmem:[%s219 + $0x1c98] sm:$0xff]
        %v1197 = vld [vmem:[%s219 + $0x1ca0] sm:$0xff]
        %v1198 = vld [vmem:[%s219 + $0x1ca8] sm:$0xff]
        %v1199 = vld [vmem:[%s219 + $0x1cb0] sm:$0xff]
        %v1200 = vld [vmem:[%s219 + $0x1cb8] sm:$0xff]
        %v1201 = vld [vmem:[%s219 + $0x1cc0] sm:$0xff]
        %v1202 = vld [vmem:[%s219 + $0x1cc8] sm:$0xff]
        %v1203 = vld [vmem:[%s219 + $0x1cd0] sm:$0xff]
        %v1204 = vld [vmem:[%s219 + $0x1cd8] sm:$0xff]
        %v1205 = vld [vmem:[%s219 + $0x1ce0] sm:$0xff]
        %v1206 = vld [vmem:[%s219 + $0x1ce8] sm:$0xff]
        %v1207 = vld [vmem:[%s219 + $0x1cf0] sm:$0xff]
        %v1208 = vld [vmem:[%s219 + $0x1cf8] sm:$0xff]
        %v1209 = vld [vmem:[%s219 + $0x1d00] sm:$0xff]
        %v1210 = vld [vmem:[%s219 + $0x1d08] sm:$0xff]
        %v1211 = vld [vmem:[%s219 + $0x1d10] sm:$0xff]
        %v1212 = vld [vmem:[%s219 + $0x1d18] sm:$0xff]
        %v1213 = vld [vmem:[%s219 + $0x1d20] sm:$0xff]
        %v1214 = vld [vmem:[%s219 + $0x1d28] sm:$0xff]
        %v1215 = vld [vmem:[%s219 + $0x1d30] sm:$0xff]
        %v1216 = vld [vmem:[%s219 + $0x1d38] sm:$0xff]
        %v1217 = vld [vmem:[%s219 + $0x1d40] sm:$0xff]
        %v1218 = vld [vmem:[%s219 + $0x1d48] sm:$0xff]
        %v1219 = vld [vmem:[%s219 + $0x1d50] sm:$0xff]
        %v1220 = vld [vmem:[%s219 + $0x1d58] sm:$0xff]
        %v1221 = vld [vmem:[%s219 + $0x1d60] sm:$0xff]
        %v1222 = vld [vmem:[%s219 + $0x1d68] sm:$0xff]
        %v1223 = vld [vmem:[%s219 + $0x1d70] sm:$0xff]
        %v1224 = vld [vmem:[%s219 + $0x1d78] sm:$0xff]
        %v1225 = vld [vmem:[%s219 + $0x1d80] sm:$0xff]
        %v1226 = vld [vmem:[%s219 + $0x1d88] sm:$0xff]
        %v1227 = vld [vmem:[%s219 + $0x1d90] sm:$0xff]
        %v1228 = vld [vmem:[%s219 + $0x1d98] sm:$0xff]
        %v1229 = vld [vmem:[%s219 + $0x1da0] sm:$0xff]
        %v1230 = vld [vmem:[%s219 + $0x1da8] sm:$0xff]
        %v1231 = vld [vmem:[%s219 + $0x1db0] sm:$0xff]
        %v1232 = vld [vmem:[%s219 + $0x1db8] sm:$0xff]
        %v1233 = vld [vmem:[%s219 + $0x1dc0] sm:$0xff]
        %v1234 = vld [vmem:[%s219 + $0x1dc8] sm:$0xff]
        %v1235 = vld [vmem:[%s219 + $0x1dd0] sm:$0xff]
        %v1236 = vld [vmem:[%s219 + $0x1dd8] sm:$0xff]
        %v1237 = vld [vmem:[%s219 + $0x1de0] sm:$0xff]
        %v1238 = vld [vmem:[%s219 + $0x1de8] sm:$0xff]
        %v1239 = vld [vmem:[%s219 + $0x1df0] sm:$0xff]
        %v1240 = vld [vmem:[%s219 + $0x1df8] sm:$0xff]
        %v1241 = vld [vmem:[%s219 + $0x1e00] sm:$0xff]
        %v1242 = vld [vmem:[%s219 + $0x1e08] sm:$0xff]
        %v1243 = vld [vmem:[%s219 + $0x1e10] sm:$0xff]
        %v1244 = vld [vmem:[%s219 + $0x1e18] sm:$0xff]
        %v1245 = vld [vmem:[%s219 + $0x1e20] sm:$0xff]
        %v1246 = vld [vmem:[%s219 + $0x1e28] sm:$0xff]
        %v1247 = vld [vmem:[%s219 + $0x1e30] sm:$0xff]
        %v1248 = vld [vmem:[%s219 + $0x1e38] sm:$0xff]
        %v1249 = vld [vmem:[%s219 + $0x1e40] sm:$0xff]
        %v1250 = vld [vmem:[%s219 + $0x1e48] sm:$0xff]
        %v1251 = vld [vmem:[%s219 + $0x1e50] sm:$0xff]
        %v1252 = vld [vmem:[%s219 + $0x1e58] sm:$0xff]
        %v1253 = vld [vmem:[%s219 + $0x1e60] sm:$0xff]
        %v1254 = vld [vmem:[%s219 + $0x1e68] sm:$0xff]
        %v1255 = vld [vmem:[%s219 + $0x1e70] sm:$0xff]
        %v1256 = vld [vmem:[%s219 + $0x1e78] sm:$0xff]
        %v1257 = vld [vmem:[%s219 + $0x1e80] sm:$0xff]
        %v1258 = vld [vmem:[%s219 + $0x1e88] sm:$0xff]
        %v1259 = vld [vmem:[%s219 + $0x1e90] sm:$0xff]
        %v1260 = vld [vmem:[%s219 + $0x1e98] sm:$0xff]
        %v1261 = vld [vmem:[%s219 + $0x1ea0] sm:$0xff]
        %v1262 = vld [vmem:[%s219 + $0x1ea8] sm:$0xff]
        %v1263 = vld [vmem:[%s219 + $0x1eb0] sm:$0xff]
        %v1264 = vld [vmem:[%s219 + $0x1eb8] sm:$0xff]
        %v1265 = vld [vmem:[%s219 + $0x1ec0] sm:$0xff]
        %v1266 = vld [vmem:[%s219 + $0x1ec8] sm:$0xff]
        %v1267 = vld [vmem:[%s219 + $0x1ed0] sm:$0xff]
        %v1268 = vld [vmem:[%s219 + $0x1ed8] sm:$0xff]
        %v1269 = vld [vmem:[%s219 + $0x1ee0] sm:$0xff]
        %v1270 = vld [vmem:[%s219 + $0x1ee8] sm:$0xff]
        %v1271 = vld [vmem:[%s219 + $0x1ef0] sm:$0xff]
        %v1272 = vld [vmem:[%s219 + $0x1ef8] sm:$0xff]
        %v1273 = vld [vmem:[%s219 + $0x1f00] sm:$0xff]
        %v1274 = vld [vmem:[%s219 + $0x1f08] sm:$0xff]
        %v1275 = vld [vmem:[%s219 + $0x1f10] sm:$0xff]
        %v1276 = vld [vmem:[%s219 + $0x1f18] sm:$0xff]
        %v1277 = vld [vmem:[%s219 + $0x1f20] sm:$0xff]
        %v1278 = vld [vmem:[%s219 + $0x1f28] sm:$0xff]
        %v1279 = vld [vmem:[%s219 + $0x1f30] sm:$0xff]
        %v1280 = vld [vmem:[%s219 + $0x1f38] sm:$0xff]
        %v1281 = vld [vmem:[%s219 + $0x1f40] sm:$0xff]
        %v1282 = vld [vmem:[%s219 + $0x1f48] sm:$0xff]
        %v1283 = vld [vmem:[%s219 + $0x1f50] sm:$0xff]
        %v1284 = vld [vmem:[%s219 + $0x1f58] sm:$0xff]
        %v1285 = vld [vmem:[%s219 + $0x1f60] sm:$0xff]
        %v1286 = vld [vmem:[%s219 + $0x1f68] sm:$0xff]
        %v1287 = vld [vmem:[%s219 + $0x1f70] sm:$0xff]
        %v1288 = vld [vmem:[%s219 + $0x1f78] sm:$0xff]
        %v1289 = vld [vmem:[%s219 + $0x1f80] sm:$0xff]
        %v1290 = vld [vmem:[%s219 + $0x1f88] sm:$0xff]
        %v1291 = vld [vmem:[%s219 + $0x1f90] sm:$0xff]
        %v1292 = vld [vmem:[%s219 + $0x1f98] sm:$0xff]
        %v1293 = vld [vmem:[%s219 + $0x1fa0] sm:$0xff]
        %v1294 = vld [vmem:[%s219 + $0x1fa8] sm:$0xff]
        %v1295 = vld [vmem:[%s219 + $0x1fb0] sm:$0xff]
        %v1296 = vld [vmem:[%s219 + $0x1fb8] sm:$0xff]
        %v1297 = vld [vmem:[%s219 + $0x1fc0] sm:$0xff]
        %v1298 = vld [vmem:[%s219 + $0x1fc8] sm:$0xff]
        %v1299 = vld [vmem:[%s219 + $0x1fd0] sm:$0xff]
        %v1300 = vld [vmem:[%s219 + $0x1fd8] sm:$0xff]
        %v1301 = vld [vmem:[%s219 + $0x1fe0] sm:$0xff]
        %v1302 = vld [vmem:[%s219 + $0x1fe8] sm:$0xff]
        %v1303 = vld [vmem:[%s219 + $0x1ff0] sm:$0xff]
        %v1304 = vld [vmem:[%s219 + $0x1ff8] sm:$0xff]
        %v1305 = vld [vmem:[%s219 + $0x2000] sm:$0xff]
        %v1306 = vld [vmem:[%s219 + $0x2008] sm:$0xff]
        %v1307 = vld [vmem:[%s219 + $0x2010] sm:$0xff]
        %v1308 = vld [vmem:[%s219 + $0x2018] sm:$0xff]
        %v1309 = vld [vmem:[%s219 + $0x2020] sm:$0xff]
        %v1310 = vld [vmem:[%s219 + $0x2028] sm:$0xff]
        %v1311 = vld [vmem:[%s219 + $0x2030] sm:$0xff]
        %v1312 = vld [vmem:[%s219 + $0x2038] sm:$0xff]
        %v1313 = vld [vmem:[%s219 + $0x2040] sm:$0xff]
        %v1314 = vld [vmem:[%s219 + $0x2048] sm:$0xff]
        %v1315 = vld [vmem:[%s219 + $0x2050] sm:$0xff]
        %v1316 = vld [vmem:[%s219 + $0x2058] sm:$0xff]
        %v1317 = vld [vmem:[%s219 + $0x2060] sm:$0xff]
        %v1318 = vld [vmem:[%s219 + $0x2068] sm:$0xff]
        %v1319 = vld [vmem:[%s219 + $0x2070] sm:$0xff]
        %v1320 = vld [vmem:[%s219 + $0x2078] sm:$0xff]
        %v1321 = vld [vmem:[%s219 + $0x2080] sm:$0xff]
        %v1322 = vld [vmem:[%s219 + $0x2088] sm:$0xff]
        %v1323 = vld [vmem:[%s219 + $0x2090] sm:$0xff]
        %v1324 = vld [vmem:[%s219 + $0x2098] sm:$0xff]
        %v1325 = vld [vmem:[%s219 + $0x20a0] sm:$0xff]
        %v1326 = vld [vmem:[%s219 + $0x20a8] sm:$0xff]
        %v1327 = vld [vmem:[%s219 + $0x20b0] sm:$0xff]
        %v1328 = vld [vmem:[%s219 + $0x20b8] sm:$0xff]
        %v1329 = vld [vmem:[%s219 + $0x20c0] sm:$0xff]
        %v1330 = vld [vmem:[%s219 + $0x20c8] sm:$0xff]
        %v1331 = vld [vmem:[%s219 + $0x20d0] sm:$0xff]
        %v1332 = vld [vmem:[%s219 + $0x20d8] sm:$0xff]
        %v1333 = vld [vmem:[%s219 + $0x20e0] sm:$0xff]
        %v1334 = vld [vmem:[%s219 + $0x20e8] sm:$0xff]
        %v1335 = vld [vmem:[%s219 + $0x20f0] sm:$0xff]
        %v1336 = vld [vmem:[%s219 + $0x20f8] sm:$0xff]
        %v1337 = vld [vmem:[%s219 + $0x2100] sm:$0xff]
        %v1338 = vld [vmem:[%s219 + $0x2108] sm:$0xff]
        %v1339 = vld [vmem:[%s219 + $0x2110] sm:$0xff]
        %v1340 = vld [vmem:[%s219 + $0x2118] sm:$0xff]
        %v1341 = vld [vmem:[%s219 + $0x2120] sm:$0xff]
        %v1342 = vld [vmem:[%s219 + $0x2128] sm:$0xff]
        %v1343 = vld [vmem:[%s219 + $0x2130] sm:$0xff]
        %v1344 = vld [vmem:[%s219 + $0x2138] sm:$0xff]
        %v1345 = vld [vmem:[%s219 + $0x2140] sm:$0xff]
        %v1346 = vld [vmem:[%s219 + $0x2148] sm:$0xff]
        %v1347 = vld [vmem:[%s219 + $0x2150] sm:$0xff]
        %v1348 = vld [vmem:[%s219 + $0x2158] sm:$0xff]
        %v1349 = vld [vmem:[%s219 + $0x2160] sm:$0xff]
        %v1350 = vld [vmem:[%s219 + $0x2168] sm:$0xff]
        %v1351 = vld [vmem:[%s219 + $0x2170] sm:$0xff]
        %v1352 = vld [vmem:[%s219 + $0x2178] sm:$0xff]
        %v1353 = vld [vmem:[%s219 + $0x2180] sm:$0xff]
        %v1354 = vld [vmem:[%s219 + $0x2188] sm:$0xff]
        %v1355 = vld [vmem:[%s219 + $0x2190] sm:$0xff]
        %v1356 = vld [vmem:[%s219 + $0x2198] sm:$0xff]
        %v1357 = vld [vmem:[%s219 + $0x21a0] sm:$0xff]
        %v1358 = vld [vmem:[%s219 + $0x21a8] sm:$0xff]
        %v1359 = vld [vmem:[%s219 + $0x21b0] sm:$0xff]
        %v1360 = vld [vmem:[%s219 + $0x21b8] sm:$0xff]
        %v1361 = vld [vmem:[%s219 + $0x21c0] sm:$0xff]
        %v1362 = vld [vmem:[%s219 + $0x21c8] sm:$0xff]
        %v1363 = vld [vmem:[%s219 + $0x21d0] sm:$0xff]
        %v1364 = vld [vmem:[%s219 + $0x21d8] sm:$0xff]
        %v1365 = vld [vmem:[%s219 + $0x21e0] sm:$0xff]
        %v1366 = vld [vmem:[%s219 + $0x21e8] sm:$0xff]
        %v1367 = vld [vmem:[%s219 + $0x21f0] sm:$0xff]
        %v1368 = vld [vmem:[%s219 + $0x21f8] sm:$0xff]
        %v1369 = vld [vmem:[%s219 + $0x2200] sm:$0xff]
        %v1370 = vld [vmem:[%s219 + $0x2208] sm:$0xff]
        %v1371 = vld [vmem:[%s219 + $0x2210] sm:$0xff]
        %v1372 = vld [vmem:[%s219 + $0x2218] sm:$0xff]
        %v1373 = vld [vmem:[%s219 + $0x2220] sm:$0xff]
        %v1374 = vld [vmem:[%s219 + $0x2228] sm:$0xff]
        %v1375 = vld [vmem:[%s219 + $0x2230] sm:$0xff]
        %v1376 = vld [vmem:[%s219 + $0x2238] sm:$0xff]
        %v1377 = vld [vmem:[%s219 + $0x2240] sm:$0xff]
        %v1378 = vld [vmem:[%s219 + $0x2248] sm:$0xff]
        %v1379 = vld [vmem:[%s219 + $0x2250] sm:$0xff]
        %v1380 = vld [vmem:[%s219 + $0x2258] sm:$0xff]
        %v1381 = vld [vmem:[%s219 + $0x2260] sm:$0xff]
        %v1382 = vld [vmem:[%s219 + $0x2268] sm:$0xff]
        %v1383 = vld [vmem:[%s219 + $0x2270] sm:$0xff]
        %v1384 = vld [vmem:[%s219 + $0x2278] sm:$0xff]
        %v1385 = vld [vmem:[%s219 + $0x2280] sm:$0xff]
        %v1386 = vld [vmem:[%s219 + $0x2288] sm:$0xff]
        %v1387 = vld [vmem:[%s219 + $0x2290] sm:$0xff]
        %v1388 = vld [vmem:[%s219 + $0x2298] sm:$0xff]
        %v1389 = vld [vmem:[%s219 + $0x22a0] sm:$0xff]
        %v1390 = vld [vmem:[%s219 + $0x22a8] sm:$0xff]
        %v1391 = vld [vmem:[%s219 + $0x22b0] sm:$0xff]
        %v1392 = vld [vmem:[%s219 + $0x22b8] sm:$0xff]
        %v1393 = vld [vmem:[%s219 + $0x22c0] sm:$0xff]
        %v1394 = vld [vmem:[%s219 + $0x22c8] sm:$0xff]
        %v1395 = vld [vmem:[%s219 + $0x22d0] sm:$0xff]
        %v1396 = vld [vmem:[%s219 + $0x22d8] sm:$0xff]
        %v1397 = vld [vmem:[%s219 + $0x22e0] sm:$0xff]
        %v1398 = vld [vmem:[%s219 + $0x22e8] sm:$0xff]
        %v1399 = vld [vmem:[%s219 + $0x22f0] sm:$0xff]
        %v1400 = vld [vmem:[%s219 + $0x22f8] sm:$0xff]
        %v1401 = vld [vmem:[%s219 + $0x2300] sm:$0xff]
        %v1402 = vld [vmem:[%s219 + $0x2308] sm:$0xff]
        %v1403 = vld [vmem:[%s219 + $0x2310] sm:$0xff]
        %v1404 = vld [vmem:[%s219 + $0x2318] sm:$0xff]
        %v1405 = vld [vmem:[%s219 + $0x2320] sm:$0xff]
        %v1406 = vld [vmem:[%s219 + $0x2328] sm:$0xff]
        %v1407 = vld [vmem:[%s219 + $0x2330] sm:$0xff]
        %v1408 = vld [vmem:[%s219 + $0x2338] sm:$0xff]
        %v1409 = vld [vmem:[%s219 + $0x2340] sm:$0xff]
        %v1410 = vld [vmem:[%s219 + $0x2348] sm:$0xff]
        %v1411 = vld [vmem:[%s219 + $0x2350] sm:$0xff]
        %v1412 = vld [vmem:[%s219 + $0x2358] sm:$0xff]
        %v1413 = vld [vmem:[%s219 + $0x2360] sm:$0xff]
        %v1414 = vld [vmem:[%s219 + $0x2368] sm:$0xff]
        %v1415 = vld [vmem:[%s219 + $0x2370] sm:$0xff]
        %v1416 = vld [vmem:[%s219 + $0x2378] sm:$0xff]
        %v1417 = vld [vmem:[%s219 + $0x2380] sm:$0xff]
        %v1418 = vld [vmem:[%s219 + $0x2388] sm:$0xff]
        %v1419 = vld [vmem:[%s219 + $0x2390] sm:$0xff]
        %v1420 = vld [vmem:[%s219 + $0x2398] sm:$0xff]
        %v1421 = vld [vmem:[%s219 + $0x23a0] sm:$0xff]
        %v1422 = vld [vmem:[%s219 + $0x23a8] sm:$0xff]
        %v1423 = vld [vmem:[%s219 + $0x23b0] sm:$0xff]
        %v1424 = vld [vmem:[%s219 + $0x23b8] sm:$0xff]
        %v1425 = vld [vmem:[%s219 + $0x23c0] sm:$0xff]
        %v1426 = vld [vmem:[%s219 + $0x23c8] sm:$0xff]
        %v1427 = vld [vmem:[%s219 + $0x23d0] sm:$0xff]
        %v1428 = vld [vmem:[%s219 + $0x23d8] sm:$0xff]
        %v1429 = vld [vmem:[%s219 + $0x23e0] sm:$0xff]
        %v1430 = vld [vmem:[%s219 + $0x23e8] sm:$0xff]
        %v1431 = vld [vmem:[%s219 + $0x23f0] sm:$0xff]
        %v1432 = vld [vmem:[%s219 + $0x23f8] sm:$0xff]
        %v1433 = vld [vmem:[%s219 + $0x2400] sm:$0xff]
        %v1434 = vld [vmem:[%s219 + $0x2408] sm:$0xff]
        %v1435 = vld [vmem:[%s219 + $0x2410] sm:$0xff]
        %v1436 = vld [vmem:[%s219 + $0x2418] sm:$0xff]
        %v1437 = vld [vmem:[%s219 + $0x2420] sm:$0xff]
        %v1438 = vld [vmem:[%s219 + $0x2428] sm:$0xff]
        %v1439 = vld [vmem:[%s219 + $0x2430] sm:$0xff]
        %v1440 = vld [vmem:[%s219 + $0x2438] sm:$0xff]
        %v1441 = vld [vmem:[%s219 + $0x2440] sm:$0xff]
        %v1442 = vld [vmem:[%s219 + $0x2448] sm:$0xff]
        %v1443 = vld [vmem:[%s219 + $0x2450] sm:$0xff]
        %v1444 = vld [vmem:[%s219 + $0x2458] sm:$0xff]
        %v1445 = vld [vmem:[%s219 + $0x2460] sm:$0xff]
        %v1446 = vld [vmem:[%s219 + $0x2468] sm:$0xff]
        %v1447 = vld [vmem:[%s219 + $0x2470] sm:$0xff]
        %v1448 = vld [vmem:[%s219 + $0x2478] sm:$0xff]
        %v1449 = vld [vmem:[%s219 + $0x2480] sm:$0xff]
        %v1450 = vld [vmem:[%s219 + $0x2488] sm:$0xff]
        %v1451 = vld [vmem:[%s219 + $0x2490] sm:$0xff]
        %v1452 = vld [vmem:[%s219 + $0x2498] sm:$0xff]
        %v1453 = vld [vmem:[%s219 + $0x24a0] sm:$0xff]
        %v1454 = vld [vmem:[%s219 + $0x24a8] sm:$0xff]
        %v1455 = vld [vmem:[%s219 + $0x24b0] sm:$0xff]
        %v1456 = vld [vmem:[%s219 + $0x24b8] sm:$0xff]
        %v1457 = vld [vmem:[%s219 + $0x24c0] sm:$0xff]
        %v1458 = vld [vmem:[%s219 + $0x24c8] sm:$0xff]
        %v1459 = vld [vmem:[%s219 + $0x24d0] sm:$0xff]
        %v1460 = vld [vmem:[%s219 + $0x24d8] sm:$0xff]
        %v1461 = vld [vmem:[%s219 + $0x24e0] sm:$0xff]
        %v1462 = vld [vmem:[%s219 + $0x24e8] sm:$0xff]
        %v1463 = vld [vmem:[%s219 + $0x24f0] sm:$0xff]
        %v1464 = vld [vmem:[%s219 + $0x24f8] sm:$0xff]
        %v1465 = vld [vmem:[%s219 + $0x2500] sm:$0xff]
        %v1466 = vld [vmem:[%s219 + $0x2508] sm:$0xff]
        %v1467 = vld [vmem:[%s219 + $0x2510] sm:$0xff]
        %v1468 = vld [vmem:[%s219 + $0x2518] sm:$0xff]
        %v1469 = vld [vmem:[%s219 + $0x2520] sm:$0xff]
        %v1470 = vld [vmem:[%s219 + $0x2528] sm:$0xff]
        %v1471 = vld [vmem:[%s219 + $0x2530] sm:$0xff]
        %v1472 = vld [vmem:[%s219 + $0x2538] sm:$0xff]
        %v1473 = vld [vmem:[%s219 + $0x2540] sm:$0xff]
        %v1474 = vld [vmem:[%s219 + $0x2548] sm:$0xff]
        %v1475 = vld [vmem:[%s219 + $0x2550] sm:$0xff]
        %v1476 = vld [vmem:[%s219 + $0x2558] sm:$0xff]
        %v1477 = vld [vmem:[%s219 + $0x2560] sm:$0xff]
        %v1478 = vld [vmem:[%s219 + $0x2568] sm:$0xff]
        %v1479 = vld [vmem:[%s219 + $0x2570] sm:$0xff]
        %v1480 = vld [vmem:[%s219 + $0x2578] sm:$0xff]
        %v1481 = vld [vmem:[%s219 + $0x2580] sm:$0xff]
        %v1482 = vld [vmem:[%s219 + $0x2588] sm:$0xff]
        %v1483 = vld [vmem:[%s219 + $0x2590] sm:$0xff]
        %v1484 = vld [vmem:[%s219 + $0x2598] sm:$0xff]
        %v1485 = vld [vmem:[%s219 + $0x25a0] sm:$0xff]
        %v1486 = vld [vmem:[%s219 + $0x25a8] sm:$0xff]
        %v1487 = vld [vmem:[%s219 + $0x25b0] sm:$0xff]
        %v1488 = vld [vmem:[%s219 + $0x25b8] sm:$0xff]
        %v1489 = vld [vmem:[%s219 + $0x25c0] sm:$0xff]
        %v1490 = vld [vmem:[%s219 + $0x25c8] sm:$0xff]
        %v1491 = vld [vmem:[%s219 + $0x25d0] sm:$0xff]
        %v1492 = vld [vmem:[%s219 + $0x25d8] sm:$0xff]
        %v1493 = vld [vmem:[%s219 + $0x25e0] sm:$0xff]
        %v1494 = vld [vmem:[%s219 + $0x25e8] sm:$0xff]
        %v1495 = vld [vmem:[%s219 + $0x25f0] sm:$0xff]
        %v1496 = vld [vmem:[%s219 + $0x25f8] sm:$0xff]
        %v1497 = vld [vmem:[%s219 + $0x2600] sm:$0xff]
        %v1498 = vld [vmem:[%s219 + $0x2608] sm:$0xff]
        %v1499 = vld [vmem:[%s219 + $0x2610] sm:$0xff]
        %v1500 = vld [vmem:[%s219 + $0x2618] sm:$0xff]
        %v1501 = vld [vmem:[%s219 + $0x2620] sm:$0xff]
        %v1502 = vld [vmem:[%s219 + $0x2628] sm:$0xff]
        %v1503 = vld [vmem:[%s219 + $0x2630] sm:$0xff]
        %v1504 = vld [vmem:[%s219 + $0x2638] sm:$0xff]
        %v1505 = vld [vmem:[%s219 + $0x2640] sm:$0xff]
        %v1506 = vld [vmem:[%s219 + $0x2648] sm:$0xff]
        %v1507 = vld [vmem:[%s219 + $0x2650] sm:$0xff]
        %v1508 = vld [vmem:[%s219 + $0x2658] sm:$0xff]
        %v1509 = vld [vmem:[%s219 + $0x2660] sm:$0xff]
        %v1510 = vld [vmem:[%s219 + $0x2668] sm:$0xff]
        %v1511 = vld [vmem:[%s219 + $0x2670] sm:$0xff]
        %v1512 = vld [vmem:[%s219 + $0x2678] sm:$0xff]
        %v1513 = vld [vmem:[%s219 + $0x2680] sm:$0xff]
        %v1514 = vld [vmem:[%s219 + $0x2688] sm:$0xff]
        %v1515 = vld [vmem:[%s219 + $0x2690] sm:$0xff]
        %v1516 = vld [vmem:[%s219 + $0x2698] sm:$0xff]
        %v1517 = vld [vmem:[%s219 + $0x26a0] sm:$0xff]
        %v1518 = vld [vmem:[%s219 + $0x26a8] sm:$0xff]
        %v1519 = vld [vmem:[%s219 + $0x26b0] sm:$0xff]
        %v1520 = vld [vmem:[%s219 + $0x26b8] sm:$0xff]
        %v1521 = vld [vmem:[%s219 + $0x26c0] sm:$0xff]
        %v1522 = vld [vmem:[%s219 + $0x26c8] sm:$0xff]
        %v1523 = vld [vmem:[%s219 + $0x26d0] sm:$0xff]
        %v1524 = vld [vmem:[%s219 + $0x26d8] sm:$0xff]
        %v1525 = vld [vmem:[%s219 + $0x26e0] sm:$0xff]
        %v1526 = vld [vmem:[%s219 + $0x26e8] sm:$0xff]
        %v1527 = vld [vmem:[%s219 + $0x26f0] sm:$0xff]
        %v1528 = vld [vmem:[%s219 + $0x26f8] sm:$0xff]
        %v1529 = vld [vmem:[%s219 + $0x2700] sm:$0xff]
        %v1530 = vld [vmem:[%s219 + $0x2708] sm:$0xff]
        %v1531 = vld [vmem:[%s219 + $0x2710] sm:$0xff]
        %v1532 = vld [vmem:[%s219 + $0x2718] sm:$0xff]
        %v1533 = vld [vmem:[%s219 + $0x2720] sm:$0xff]
        %v1534 = vld [vmem:[%s219 + $0x2728] sm:$0xff]
        %v1535 = vld [vmem:[%s219 + $0x2730] sm:$0xff]
        %v1536 = vld [vmem:[%s219 + $0x2738] sm:$0xff]
        %v1537 = vld [vmem:[%s219 + $0x2740] sm:$0xff]
        %v1538 = vld [vmem:[%s219 + $0x2748] sm:$0xff]
        %v1539 = vld [vmem:[%s219 + $0x2750] sm:$0xff]
        %v1540 = vld [vmem:[%s219 + $0x2758] sm:$0xff]
        %v1541 = vld [vmem:[%s219 + $0x2760] sm:$0xff]
        %v1542 = vld [vmem:[%s219 + $0x2768] sm:$0xff]
        %v1543 = vld [vmem:[%s219 + $0x2770] sm:$0xff]
        %v1544 = vld [vmem:[%s219 + $0x2778] sm:$0xff]
        %v1545 = vld [vmem:[%s219 + $0x2780] sm:$0xff]
        %v1546 = vld [vmem:[%s219 + $0x2788] sm:$0xff]
        %v1547 = vld [vmem:[%s219 + $0x2790] sm:$0xff]
        %v1548 = vld [vmem:[%s219 + $0x2798] sm:$0xff]
        %v1549 = vld [vmem:[%s219 + $0x27a0] sm:$0xff]
        %v1550 = vld [vmem:[%s219 + $0x27a8] sm:$0xff]
        %v1551 = vld [vmem:[%s219 + $0x27b0] sm:$0xff]
        %v1552 = vld [vmem:[%s219 + $0x27b8] sm:$0xff]
        %v1553 = vld [vmem:[%s219 + $0x27c0] sm:$0xff]
        %v1554 = vld [vmem:[%s219 + $0x27c8] sm:$0xff]
        %v1555 = vld [vmem:[%s219 + $0x27d0] sm:$0xff]
        %v1556 = vld [vmem:[%s219 + $0x27d8] sm:$0xff]
        %v1557 = vld [vmem:[%s219 + $0x27e0] sm:$0xff]
        %v1558 = vld [vmem:[%s219 + $0x27e8] sm:$0xff]
        %v1559 = vld [vmem:[%s219 + $0x27f0] sm:$0xff]
        %v1560 = vld [vmem:[%s219 + $0x27f8] sm:$0xff]
        %v1561 = vld [vmem:[%s219 + $0x2800] sm:$0xff]
        %v1562 = vld [vmem:[%s219 + $0x2808] sm:$0xff]
        %v1563 = vld [vmem:[%s219 + $0x2810] sm:$0xff]
        %v1564 = vld [vmem:[%s219 + $0x2818] sm:$0xff]
        %v1565 = vld [vmem:[%s219 + $0x2820] sm:$0xff]
        %v1566 = vld [vmem:[%s219 + $0x2828] sm:$0xff]
        %v1567 = vld [vmem:[%s219 + $0x2830] sm:$0xff]
        %v1568 = vld [vmem:[%s219 + $0x2838] sm:$0xff]
        %v1569 = vld [vmem:[%s219 + $0x2840] sm:$0xff]
        %v1570 = vld [vmem:[%s219 + $0x2848] sm:$0xff]
        %v1571 = vld [vmem:[%s219 + $0x2850] sm:$0xff]
        %v1572 = vld [vmem:[%s219 + $0x2858] sm:$0xff]
        %v1573 = vld [vmem:[%s219 + $0x2860] sm:$0xff]
        %v1574 = vld [vmem:[%s219 + $0x2868] sm:$0xff]
        %v1575 = vld [vmem:[%s219 + $0x2870] sm:$0xff]
        %v1576 = vld [vmem:[%s219 + $0x2878] sm:$0xff]
        %v1577 = vld [vmem:[%s219 + $0x2880] sm:$0xff]
        %v1578 = vld [vmem:[%s219 + $0x2888] sm:$0xff]
        %v1579 = vld [vmem:[%s219 + $0x2890] sm:$0xff]
        %v1580 = vld [vmem:[%s219 + $0x2898] sm:$0xff]
        %v1581 = vld [vmem:[%s219 + $0x28a0] sm:$0xff]
        %v1582 = vld [vmem:[%s219 + $0x28a8] sm:$0xff]
        %v1583 = vld [vmem:[%s219 + $0x28b0] sm:$0xff]
        %v1584 = vld [vmem:[%s219 + $0x28b8] sm:$0xff]
        %v1585 = vld [vmem:[%s219 + $0x28c0] sm:$0xff]
        %v1586 = vld [vmem:[%s219 + $0x28c8] sm:$0xff]
        %v1587 = vld [vmem:[%s219 + $0x28d0] sm:$0xff]
        %v1588 = vld [vmem:[%s219 + $0x28d8] sm:$0xff]
        %v1589 = vld [vmem:[%s219 + $0x28e0] sm:$0xff]
        %v1590 = vld [vmem:[%s219 + $0x28e8] sm:$0xff]
        %v1591 = vld [vmem:[%s219 + $0x28f0] sm:$0xff]
        %v1592 = vld [vmem:[%s219 + $0x28f8] sm:$0xff]
        %v1593 = vld [vmem:[%s219 + $0x2900] sm:$0xff]
        %v1594 = vld [vmem:[%s219 + $0x2908] sm:$0xff]
        %v1595 = vld [vmem:[%s219 + $0x2910] sm:$0xff]
        %v1596 = vld [vmem:[%s219 + $0x2918] sm:$0xff]
        %v1597 = vld [vmem:[%s219 + $0x2920] sm:$0xff]
        %v1598 = vld [vmem:[%s219 + $0x2928] sm:$0xff]
        %v1599 = vld [vmem:[%s219 + $0x2930] sm:$0xff]
        %v1600 = vld [vmem:[%s219 + $0x2938] sm:$0xff]
        %v1601 = vld [vmem:[%s219 + $0x2940] sm:$0xff]
        %v1602 = vld [vmem:[%s219 + $0x2948] sm:$0xff]
        %v1603 = vld [vmem:[%s219 + $0x2950] sm:$0xff]
        %v1604 = vld [vmem:[%s219 + $0x2958] sm:$0xff]
        %v1605 = vld [vmem:[%s219 + $0x2960] sm:$0xff]
        %v1606 = vld [vmem:[%s219 + $0x2968] sm:$0xff]
        %v1607 = vld [vmem:[%s219 + $0x2970] sm:$0xff]
        %v1608 = vld [vmem:[%s219 + $0x2978] sm:$0xff]
        %v1609 = vld [vmem:[%s219 + $0x2980] sm:$0xff]
        %v1610 = vld [vmem:[%s219 + $0x2988] sm:$0xff]
        %v1611 = vld [vmem:[%s219 + $0x2990] sm:$0xff]
        %v1612 = vld [vmem:[%s219 + $0x2998] sm:$0xff]
        %v1613 = vld [vmem:[%s219 + $0x29a0] sm:$0xff]
        %v1614 = vld [vmem:[%s219 + $0x29a8] sm:$0xff]
        %v1615 = vld [vmem:[%s219 + $0x29b0] sm:$0xff]
        %v1616 = vld [vmem:[%s219 + $0x29b8] sm:$0xff]
        %v1617 = vld [vmem:[%s219 + $0x29c0] sm:$0xff]
        %v1618 = vld [vmem:[%s219 + $0x29c8] sm:$0xff]
        %v1619 = vld [vmem:[%s219 + $0x29d0] sm:$0xff]
        %v1620 = vld [vmem:[%s219 + $0x29d8] sm:$0xff]
        %v1621 = vld [vmem:[%s219 + $0x29e0] sm:$0xff]
        %v1622 = vld [vmem:[%s219 + $0x29e8] sm:$0xff]
        %v1623 = vld [vmem:[%s219 + $0x29f0] sm:$0xff]
        %v1624 = vld [vmem:[%s219 + $0x29f8] sm:$0xff]
        %v1625 = vld [vmem:[%s219 + $0x2a00] sm:$0xff]
        %v1626 = vld [vmem:[%s219 + $0x2a08] sm:$0xff]
        %v1627 = vld [vmem:[%s219 + $0x2a10] sm:$0xff]
        %v1628 = vld [vmem:[%s219 + $0x2a18] sm:$0xff]
        %v1629 = vld [vmem:[%s219 + $0x2a20] sm:$0xff]
        %v1630 = vld [vmem:[%s219 + $0x2a28] sm:$0xff]
        %v1631 = vld [vmem:[%s219 + $0x2a30] sm:$0xff]
        %v1632 = vld [vmem:[%s219 + $0x2a38] sm:$0xff]
        %v1633 = vld [vmem:[%s219 + $0x2a40] sm:$0xff]
        %v1634 = vld [vmem:[%s219 + $0x2a48] sm:$0xff]
        %v1635 = vld [vmem:[%s219 + $0x2a50] sm:$0xff]
        %v1636 = vld [vmem:[%s219 + $0x2a58] sm:$0xff]
        %v1637 = vld [vmem:[%s219 + $0x2a60] sm:$0xff]
        %v1638 = vld [vmem:[%s219 + $0x2a68] sm:$0xff]
        %v1639 = vld [vmem:[%s219 + $0x2a70] sm:$0xff]
        %v1640 = vld [vmem:[%s219 + $0x2a78] sm:$0xff]
        %v1641 = vld [vmem:[%s219 + $0x2a80] sm:$0xff]
        %v1642 = vld [vmem:[%s219 + $0x2a88] sm:$0xff]
        %v1643 = vld [vmem:[%s219 + $0x2a90] sm:$0xff]
        %v1644 = vld [vmem:[%s219 + $0x2a98] sm:$0xff]
        %v1645 = vld [vmem:[%s219 + $0x2aa0] sm:$0xff]
        %v1646 = vld [vmem:[%s219 + $0x2aa8] sm:$0xff]
        %v1647 = vld [vmem:[%s219 + $0x2ab0] sm:$0xff]
        %v1648 = vld [vmem:[%s219 + $0x2ab8] sm:$0xff]
        %v1649 = vld [vmem:[%s219 + $0x2ac0] sm:$0xff]
        %v1650 = vld [vmem:[%s219 + $0x2ac8] sm:$0xff]
        %v1651 = vld [vmem:[%s219 + $0x2ad0] sm:$0xff]
        %v1652 = vld [vmem:[%s219 + $0x2ad8] sm:$0xff]
        %v1653 = vld [vmem:[%s219 + $0x2ae0] sm:$0xff]
        %v1654 = vld [vmem:[%s219 + $0x2ae8] sm:$0xff]
        %v1655 = vld [vmem:[%s219 + $0x2af0] sm:$0xff]
        %v1656 = vld [vmem:[%s219 + $0x2af8] sm:$0xff]
        %v1657 = vld [vmem:[%s219 + $0x2b00] sm:$0xff]
        %v1658 = vld [vmem:[%s219 + $0x2b08] sm:$0xff]
        %v1659 = vld [vmem:[%s219 + $0x2b10] sm:$0xff]
        %v1660 = vld [vmem:[%s219 + $0x2b18] sm:$0xff]
        %v1661 = vld [vmem:[%s219 + $0x2b20] sm:$0xff]
        %v1662 = vld [vmem:[%s219 + $0x2b28] sm:$0xff]
        %v1663 = vld [vmem:[%s219 + $0x2b30] sm:$0xff]
        %v1664 = vld [vmem:[%s219 + $0x2b38] sm:$0xff]
        %v1665 = vld [vmem:[%s219 + $0x2b40] sm:$0xff]
        %v1666 = vld [vmem:[%s219 + $0x2b48] sm:$0xff]
        %v1667 = vld [vmem:[%s219 + $0x2b50] sm:$0xff]
        %v1668 = vld [vmem:[%s219 + $0x2b58] sm:$0xff]
        %v1669 = vld [vmem:[%s219 + $0x2b60] sm:$0xff]
        %v1670 = vld [vmem:[%s219 + $0x2b68] sm:$0xff]
        %v1671 = vld [vmem:[%s219 + $0x2b70] sm:$0xff]
        %v1672 = vld [vmem:[%s219 + $0x2b78] sm:$0xff]
        %v1673 = vld [vmem:[%s219 + $0x2b80] sm:$0xff]
        %v1674 = vld [vmem:[%s219 + $0x2b88] sm:$0xff]
        %v1675 = vld [vmem:[%s219 + $0x2b90] sm:$0xff]
        %v1676 = vld [vmem:[%s219 + $0x2b98] sm:$0xff]
        %v1677 = vld [vmem:[%s219 + $0x2ba0] sm:$0xff]
        %v1678 = vld [vmem:[%s219 + $0x2ba8] sm:$0xff]
        %v1679 = vld [vmem:[%s219 + $0x2bb0] sm:$0xff]
        %v1680 = vld [vmem:[%s219 + $0x2bb8] sm:$0xff]
        %v1681 = vld [vmem:[%s219 + $0x2bc0] sm:$0xff]
        %v1682 = vld [vmem:[%s219 + $0x2bc8] sm:$0xff]
        %v1683 = vld [vmem:[%s219 + $0x2bd0] sm:$0xff]
        %v1684 = vld [vmem:[%s219 + $0x2bd8] sm:$0xff]
        %v1685 = vld [vmem:[%s219 + $0x2be0] sm:$0xff]
        %v1686 = vld [vmem:[%s219 + $0x2be8] sm:$0xff]
        %v1687 = vld [vmem:[%s219 + $0x2bf0] sm:$0xff]
        %v1688 = vld [vmem:[%s219 + $0x2bf8] sm:$0xff]
        %v1689 = vld [vmem:[%s219 + $0x2c00] sm:$0xff]
        %v1690 = vld [vmem:[%s219 + $0x2c08] sm:$0xff]
        %v1691 = vld [vmem:[%s219 + $0x2c10] sm:$0xff]
        %v1692 = vld [vmem:[%s219 + $0x2c18] sm:$0xff]
        %v1693 = vld [vmem:[%s219 + $0x2c20] sm:$0xff]
        %v1694 = vld [vmem:[%s219 + $0x2c28] sm:$0xff]
        %v1695 = vld [vmem:[%s219 + $0x2c30] sm:$0xff]
        %v1696 = vld [vmem:[%s219 + $0x2c38] sm:$0xff]
        %v1697 = vld [vmem:[%s219 + $0x2c40] sm:$0xff]
        %v1698 = vld [vmem:[%s219 + $0x2c48] sm:$0xff]
        %v1699 = vld [vmem:[%s219 + $0x2c50] sm:$0xff]
        %v1700 = vld [vmem:[%s219 + $0x2c58] sm:$0xff]
        %v1701 = vld [vmem:[%s219 + $0x2c60] sm:$0xff]
        %v1702 = vld [vmem:[%s219 + $0x2c68] sm:$0xff]
        %v1703 = vld [vmem:[%s219 + $0x2c70] sm:$0xff]
        %v1704 = vld [vmem:[%s219 + $0x2c78] sm:$0xff]
        %v1705 = vld [vmem:[%s219 + $0x2c80] sm:$0xff]
        %v1706 = vld [vmem:[%s219 + $0x2c88] sm:$0xff]
        %v1707 = vld [vmem:[%s219 + $0x2c90] sm:$0xff]
        %v1708 = vld [vmem:[%s219 + $0x2c98] sm:$0xff]
        %v1709 = vld [vmem:[%s219 + $0x2ca0] sm:$0xff]
        %v1710 = vld [vmem:[%s219 + $0x2ca8] sm:$0xff]
        %v1711 = vld [vmem:[%s219 + $0x2cb0] sm:$0xff]
        %v1712 = vld [vmem:[%s219 + $0x2cb8] sm:$0xff]
        %v1713 = vld [vmem:[%s219 + $0x2cc0] sm:$0xff]
        %v1714 = vld [vmem:[%s219 + $0x2cc8] sm:$0xff]
        %v1715 = vld [vmem:[%s219 + $0x2cd0] sm:$0xff]
        %v1716 = vld [vmem:[%s219 + $0x2cd8] sm:$0xff]
        %v1717 = vld [vmem:[%s219 + $0x2ce0] sm:$0xff]
        %v1718 = vld [vmem:[%s219 + $0x2ce8] sm:$0xff]
        %v1719 = vld [vmem:[%s219 + $0x2cf0] sm:$0xff]
        %v1720 = vld [vmem:[%s219 + $0x2cf8] sm:$0xff]
        %v1721 = vld [vmem:[%s219 + $0x2d00] sm:$0xff]
        %v1722 = vld [vmem:[%s219 + $0x2d08] sm:$0xff]
        %v1723 = vld [vmem:[%s219 + $0x2d10] sm:$0xff]
        %v1724 = vld [vmem:[%s219 + $0x2d18] sm:$0xff]
        %v1725 = vld [vmem:[%s219 + $0x2d20] sm:$0xff]
        %v1726 = vld [vmem:[%s219 + $0x2d28] sm:$0xff]
        %v1727 = vld [vmem:[%s219 + $0x2d30] sm:$0xff]
        %v1728 = vld [vmem:[%s219 + $0x2d38] sm:$0xff]
        %v1729 = vld [vmem:[%s219 + $0x2d40] sm:$0xff]
        %v1730 = vld [vmem:[%s219 + $0x2d48] sm:$0xff]
        %v1731 = vld [vmem:[%s219 + $0x2d50] sm:$0xff]
        %v1732 = vld [vmem:[%s219 + $0x2d58] sm:$0xff]
        %v1733 = vld [vmem:[%s219 + $0x2d60] sm:$0xff]
        %v1734 = vld [vmem:[%s219 + $0x2d68] sm:$0xff]
        %v1735 = vld [vmem:[%s219 + $0x2d70] sm:$0xff]
        %v1736 = vld [vmem:[%s219 + $0x2d78] sm:$0xff]
        %v1737 = vld [vmem:[%s219 + $0x2d80] sm:$0xff]
        %v1738 = vld [vmem:[%s219 + $0x2d88] sm:$0xff]
        %v1739 = vld [vmem:[%s219 + $0x2d90] sm:$0xff]
        %v1740 = vld [vmem:[%s219 + $0x2d98] sm:$0xff]
        %v1741 = vld [vmem:[%s219 + $0x2da0] sm:$0xff]
        %v1742 = vld [vmem:[%s219 + $0x2da8] sm:$0xff]
        %v1743 = vld [vmem:[%s219 + $0x2db0] sm:$0xff]
        %v1744 = vld [vmem:[%s219 + $0x2db8] sm:$0xff]
        %v1745 = vld [vmem:[%s219 + $0x2dc0] sm:$0xff]
        %v1746 = vld [vmem:[%s219 + $0x2dc8] sm:$0xff]
        %v1747 = vld [vmem:[%s219 + $0x2dd0] sm:$0xff]
        %v1748 = vld [vmem:[%s219 + $0x2dd8] sm:$0xff]
        %v1749 = vld [vmem:[%s219 + $0x2de0] sm:$0xff]
        %v1750 = vld [vmem:[%s219 + $0x2de8] sm:$0xff]
        %v1751 = vld [vmem:[%s219 + $0x2df0] sm:$0xff]
        %v1752 = vld [vmem:[%s219 + $0x2df8] sm:$0xff]
        %v1753 = vld [vmem:[%s219 + $0x2e00] sm:$0xff]
        %v1754 = vld [vmem:[%s219 + $0x2e08] sm:$0xff]
        %v1755 = vld [vmem:[%s219 + $0x2e10] sm:$0xff]
        %v1756 = vld [vmem:[%s219 + $0x2e18] sm:$0xff]
        %v1757 = vld [vmem:[%s219 + $0x2e20] sm:$0xff]
        %v1758 = vld [vmem:[%s219 + $0x2e28] sm:$0xff]
        %v1759 = vld [vmem:[%s219 + $0x2e30] sm:$0xff]
        %v1760 = vld [vmem:[%s219 + $0x2e38] sm:$0xff]
        %v1761 = vld [vmem:[%s219 + $0x2e40] sm:$0xff]
        %v1762 = vld [vmem:[%s219 + $0x2e48] sm:$0xff]
        %v1763 = vld [vmem:[%s219 + $0x2e50] sm:$0xff]
        %v1764 = vld [vmem:[%s219 + $0x2e58] sm:$0xff]
        %v1765 = vld [vmem:[%s219 + $0x2e60] sm:$0xff]
        %v1766 = vld [vmem:[%s219 + $0x2e68] sm:$0xff]
        %v1767 = vld [vmem:[%s219 + $0x2e70] sm:$0xff]
        %v1768 = vld [vmem:[%s219 + $0x2e78] sm:$0xff]
        %v1769 = vld [vmem:[%s219 + $0x2e80] sm:$0xff]
        %v1770 = vld [vmem:[%s219 + $0x2e88] sm:$0xff]
        %v1771 = vld [vmem:[%s219 + $0x2e90] sm:$0xff]
        %v1772 = vld [vmem:[%s219 + $0x2e98] sm:$0xff]
        %v1773 = vld [vmem:[%s219 + $0x2ea0] sm:$0xff]
        %v1774 = vld [vmem:[%s219 + $0x2ea8] sm:$0xff]
        %v1775 = vld [vmem:[%s219 + $0x2eb0] sm:$0xff]
        %v1776 = vld [vmem:[%s219 + $0x2eb8] sm:$0xff]
        %v1777 = vld [vmem:[%s219 + $0x2ec0] sm:$0xff]
        %v1778 = vld [vmem:[%s219 + $0x2ec8] sm:$0xff]
        %v1779 = vld [vmem:[%s219 + $0x2ed0] sm:$0xff]
        %v1780 = vld [vmem:[%s219 + $0x2ed8] sm:$0xff]
        %v1781 = vld [vmem:[%s219 + $0x2ee0] sm:$0xff]
        %v1782 = vld [vmem:[%s219 + $0x2ee8] sm:$0xff]
        %v1783 = vld [vmem:[%s219 + $0x2ef0] sm:$0xff]
        %v1784 = vld [vmem:[%s219 + $0x2ef8] sm:$0xff]
        %v1785 = vld [vmem:[%s219 + $0x2f00] sm:$0xff]
        %v1786 = vld [vmem:[%s219 + $0x2f08] sm:$0xff]
        %v1787 = vld [vmem:[%s219 + $0x2f10] sm:$0xff]
        %v1788 = vld [vmem:[%s219 + $0x2f18] sm:$0xff]
        %v1789 = vld [vmem:[%s219 + $0x2f20] sm:$0xff]
        %v1790 = vld [vmem:[%s219 + $0x2f28] sm:$0xff]
        %v1791 = vld [vmem:[%s219 + $0x2f30] sm:$0xff]
        %v1792 = vld [vmem:[%s219 + $0x2f38] sm:$0xff]
        %v1793 = vld [vmem:[%s219 + $0x2f40] sm:$0xff]
        %v1794 = vld [vmem:[%s219 + $0x2f48] sm:$0xff]
        %v1795 = vld [vmem:[%s219 + $0x2f50] sm:$0xff]
        %v1796 = vld [vmem:[%s219 + $0x2f58] sm:$0xff]
        %v1797 = vld [vmem:[%s219 + $0x2f60] sm:$0xff]
        %v1798 = vld [vmem:[%s219 + $0x2f68] sm:$0xff]
        %v1799 = vld [vmem:[%s219 + $0x2f70] sm:$0xff]
        %v1800 = vld [vmem:[%s219 + $0x2f78] sm:$0xff]
        %v1801 = vld [vmem:[%s219 + $0x2f80] sm:$0xff]
        %v1802 = vld [vmem:[%s219 + $0x2f88] sm:$0xff]
        %v1803 = vld [vmem:[%s219 + $0x2f90] sm:$0xff]
        %v1804 = vld [vmem:[%s219 + $0x2f98] sm:$0xff]
        %v1805 = vld [vmem:[%s219 + $0x2fa0] sm:$0xff]
        %v1806 = vld [vmem:[%s219 + $0x2fa8] sm:$0xff]
        %v1807 = vld [vmem:[%s219 + $0x2fb0] sm:$0xff]
        %v1808 = vld [vmem:[%s219 + $0x2fb8] sm:$0xff]
        %v1809 = vld [vmem:[%s219 + $0x2fc0] sm:$0xff]
        %v1810 = vld [vmem:[%s219 + $0x2fc8] sm:$0xff]
        %v1811 = vld [vmem:[%s219 + $0x2fd0] sm:$0xff]
        %v1812 = vld [vmem:[%s219 + $0x2fd8] sm:$0xff]
        %v1813 = vld [vmem:[%s219 + $0x2fe0] sm:$0xff]
        %v1814 = vld [vmem:[%s219 + $0x2fe8] sm:$0xff]
        %v1815 = vld [vmem:[%s219 + $0x2ff0] sm:$0xff]
        %v1816 = vld [vmem:[%s219 + $0x2ff8] sm:$0xff]
        %v1817 = vld [vmem:[%s219 + $0x3000] sm:$0xff]
        %v1818 = vld [vmem:[%s219 + $0x3008] sm:$0xff]
        %v1819 = vld [vmem:[%s219 + $0x3010] sm:$0xff]
        %v1820 = vld [vmem:[%s219 + $0x3018] sm:$0xff]
        %v1821 = vld [vmem:[%s219 + $0x3020] sm:$0xff]
        %v1822 = vld [vmem:[%s219 + $0x3028] sm:$0xff]
        %v1823 = vld [vmem:[%s219 + $0x3030] sm:$0xff]
        %v1824 = vld [vmem:[%s219 + $0x3038] sm:$0xff]
        %v1825 = vld [vmem:[%s219 + $0x3040] sm:$0xff]
        %v1826 = vld [vmem:[%s219 + $0x3048] sm:$0xff]
        %v1827 = vld [vmem:[%s219 + $0x3050] sm:$0xff]
        %v1828 = vld [vmem:[%s219 + $0x3058] sm:$0xff]
        %v1829 = vld [vmem:[%s219 + $0x3060] sm:$0xff]
        %v1830 = vld [vmem:[%s219 + $0x3068] sm:$0xff]
        %v1831 = vld [vmem:[%s219 + $0x3070] sm:$0xff]
        %v1832 = vld [vmem:[%s219 + $0x3078] sm:$0xff]
        %v1833 = vld [vmem:[%s219 + $0x3080] sm:$0xff]
        %v1834 = vld [vmem:[%s219 + $0x3088] sm:$0xff]
        %v1835 = vld [vmem:[%s219 + $0x3090] sm:$0xff]
        %v1836 = vld [vmem:[%s219 + $0x3098] sm:$0xff]
        %v1837 = vld [vmem:[%s219 + $0x30a0] sm:$0xff]
        %v1838 = vld [vmem:[%s219 + $0x30a8] sm:$0xff]
        %v1839 = vld [vmem:[%s219 + $0x30b0] sm:$0xff]
        %v1840 = vld [vmem:[%s219 + $0x30b8] sm:$0xff]
        %v1841 = vld [vmem:[%s219 + $0x30c0] sm:$0xff]
        %v1842 = vld [vmem:[%s219 + $0x30c8] sm:$0xff]
        %v1843 = vld [vmem:[%s219 + $0x30d0] sm:$0xff]
        %v1844 = vld [vmem:[%s219 + $0x30d8] sm:$0xff]
        %v1845 = vld [vmem:[%s219 + $0x30e0] sm:$0xff]
        %v1846 = vld [vmem:[%s219 + $0x30e8] sm:$0xff]
        %v1847 = vld [vmem:[%s219 + $0x30f0] sm:$0xff]
        %v1848 = vld [vmem:[%s219 + $0x30f8] sm:$0xff]
        %v1849 = vld [vmem:[%s219 + $0x3100] sm:$0xff]
        %v1850 = vld [vmem:[%s219 + $0x3108] sm:$0xff]
        %v1851 = vld [vmem:[%s219 + $0x3110] sm:$0xff]
        %v1852 = vld [vmem:[%s219 + $0x3118] sm:$0xff]
        %v1853 = vld [vmem:[%s219 + $0x3120] sm:$0xff]
        %v1854 = vld [vmem:[%s219 + $0x3128] sm:$0xff]
        %v1855 = vld [vmem:[%s219 + $0x3130] sm:$0xff]
        %v1856 = vld [vmem:[%s219 + $0x3138] sm:$0xff]
        %v1857 = vld [vmem:[%s219 + $0x3140] sm:$0xff]
        %v1858 = vld [vmem:[%s219 + $0x3148] sm:$0xff]
        %v1859 = vld [vmem:[%s219 + $0x3150] sm:$0xff]
        %v1860 = vld [vmem:[%s219 + $0x3158] sm:$0xff]
        %v1861 = vld [vmem:[%s219 + $0x3160] sm:$0xff]
        %v1862 = vld [vmem:[%s219 + $0x3168] sm:$0xff]
        %v1863 = vld [vmem:[%s219 + $0x3170] sm:$0xff]
        %v1864 = vld [vmem:[%s219 + $0x3178] sm:$0xff]
        %v1865 = vld [vmem:[%s219 + $0x3180] sm:$0xff]
        %v1866 = vld [vmem:[%s219 + $0x3188] sm:$0xff]
        %v1867 = vld [vmem:[%s219 + $0x3190] sm:$0xff]
        %v1868 = vld [vmem:[%s219 + $0x3198] sm:$0xff]
        %v1869 = vld [vmem:[%s219 + $0x31a0] sm:$0xff]
        %v1870 = vld [vmem:[%s219 + $0x31a8] sm:$0xff]
        %v1871 = vld [vmem:[%s219 + $0x31b0] sm:$0xff]
        %v1872 = vld [vmem:[%s219 + $0x31b8] sm:$0xff]
        %v1873 = vld [vmem:[%s219 + $0x31c0] sm:$0xff]
        %v1874 = vld [vmem:[%s219 + $0x31c8] sm:$0xff]
        %v1875 = vld [vmem:[%s219 + $0x31d0] sm:$0xff]
        %v1876 = vld [vmem:[%s219 + $0x31d8] sm:$0xff]
        %v1877 = vld [vmem:[%s219 + $0x31e0] sm:$0xff]
        %v1878 = vld [vmem:[%s219 + $0x31e8] sm:$0xff]
        %v1879 = vld [vmem:[%s219 + $0x31f0] sm:$0xff]
        %v1880 = vld [vmem:[%s219 + $0x31f8] sm:$0xff]
        %v1881 = vld [vmem:[%s219 + $0x3200] sm:$0xff]
        %v1882 = vld [vmem:[%s219 + $0x3208] sm:$0xff]
        %v1883 = vld [vmem:[%s219 + $0x3210] sm:$0xff]
        %v1884 = vld [vmem:[%s219 + $0x3218] sm:$0xff]
        %v1885 = vld [vmem:[%s219 + $0x3220] sm:$0xff]
        %v1886 = vld [vmem:[%s219 + $0x3228] sm:$0xff]
        %v1887 = vld [vmem:[%s219 + $0x3230] sm:$0xff]
        %v1888 = vld [vmem:[%s219 + $0x3238] sm:$0xff]
        %v1889 = vld [vmem:[%s219 + $0x3240] sm:$0xff]
        %v1890 = vld [vmem:[%s219 + $0x3248] sm:$0xff]
        %v1891 = vld [vmem:[%s219 + $0x3250] sm:$0xff]
        %v1892 = vld [vmem:[%s219 + $0x3258] sm:$0xff]
        %v1893 = vld [vmem:[%s219 + $0x3260] sm:$0xff]
        %v1894 = vld [vmem:[%s219 + $0x3268] sm:$0xff]
        %v1895 = vld [vmem:[%s219 + $0x3270] sm:$0xff]
        %v1896 = vld [vmem:[%s219 + $0x3278] sm:$0xff]
        %v1897 = vld [vmem:[%s219 + $0x3280] sm:$0xff]
        %v1898 = vld [vmem:[%s219 + $0x3288] sm:$0xff]
        %v1899 = vld [vmem:[%s219 + $0x3290] sm:$0xff]
        %v1900 = vld [vmem:[%s219 + $0x3298] sm:$0xff]
        %v1901 = vld [vmem:[%s219 + $0x32a0] sm:$0xff]
        %v1902 = vld [vmem:[%s219 + $0x32a8] sm:$0xff]
        %v1903 = vld [vmem:[%s219 + $0x32b0] sm:$0xff]
        %v1904 = vld [vmem:[%s219 + $0x32b8] sm:$0xff]
        %v1905 = vld [vmem:[%s219 + $0x32c0] sm:$0xff]
        %v1906 = vld [vmem:[%s219 + $0x32c8] sm:$0xff]
        %v1907 = vld [vmem:[%s219 + $0x32d0] sm:$0xff]
        %v1908 = vld [vmem:[%s219 + $0x32d8] sm:$0xff]
        %v1909 = vld [vmem:[%s219 + $0x32e0] sm:$0xff]
        %v1910 = vld [vmem:[%s219 + $0x32e8] sm:$0xff]
        %v1911 = vld [vmem:[%s219 + $0x32f0] sm:$0xff]
        %v1912 = vld [vmem:[%s219 + $0x32f8] sm:$0xff]
        %v1913 = vld [vmem:[%s219 + $0x3300] sm:$0xff]
        %v1914 = vld [vmem:[%s219 + $0x3308] sm:$0xff]
        %v1915 = vld [vmem:[%s219 + $0x3310] sm:$0xff]
        %v1916 = vld [vmem:[%s219 + $0x3318] sm:$0xff]
        %v1917 = vld [vmem:[%s219 + $0x3320] sm:$0xff]
        %v1918 = vld [vmem:[%s219 + $0x3328] sm:$0xff]
        %v1919 = vld [vmem:[%s219 + $0x3330] sm:$0xff]
        %v1920 = vld [vmem:[%s219 + $0x3338] sm:$0xff]
        %v1921 = vld [vmem:[%s219 + $0x3340] sm:$0xff]
        %v1922 = vld [vmem:[%s219 + $0x3348] sm:$0xff]
        %v1923 = vld [vmem:[%s219 + $0x3350] sm:$0xff]
        %v1924 = vld [vmem:[%s219 + $0x3358] sm:$0xff]
        %v1925 = vld [vmem:[%s219 + $0x3360] sm:$0xff]
        %v1926 = vld [vmem:[%s219 + $0x3368] sm:$0xff]
        %v1927 = vld [vmem:[%s219 + $0x3370] sm:$0xff]
        %v1928 = vld [vmem:[%s219 + $0x3378] sm:$0xff]
        %v1929 = vld [vmem:[%s219 + $0x3380] sm:$0xff]
        %v1930 = vld [vmem:[%s219 + $0x3388] sm:$0xff]
        %v1931 = vld [vmem:[%s219 + $0x3390] sm:$0xff]
        %v1932 = vld [vmem:[%s219 + $0x3398] sm:$0xff]
        %v1933 = vld [vmem:[%s219 + $0x33a0] sm:$0xff]
        %v1934 = vld [vmem:[%s219 + $0x33a8] sm:$0xff]
        %v1935 = vld [vmem:[%s219 + $0x33b0] sm:$0xff]
        %v1936 = vld [vmem:[%s219 + $0x33b8] sm:$0xff]
        %v1937 = vld [vmem:[%s219 + $0x33c0] sm:$0xff]
        %v1938 = vld [vmem:[%s219 + $0x33c8] sm:$0xff]
        %v1939 = vld [vmem:[%s219 + $0x33d0] sm:$0xff]
        %v1940 = vld [vmem:[%s219 + $0x33d8] sm:$0xff]
        %v1941 = vld [vmem:[%s219 + $0x33e0] sm:$0xff]
        %v1942 = vld [vmem:[%s219 + $0x33e8] sm:$0xff]
        %v1943 = vld [vmem:[%s219 + $0x33f0] sm:$0xff]
        %v1944 = vld [vmem:[%s219 + $0x33f8] sm:$0xff]
        %v1945 = vld [vmem:[%s219 + $0x3400] sm:$0xff]
        %v1946 = vld [vmem:[%s219 + $0x3408] sm:$0xff]
        %v1947 = vld [vmem:[%s219 + $0x3410] sm:$0xff]
        %v1948 = vld [vmem:[%s219 + $0x3418] sm:$0xff]
        %v1949 = vld [vmem:[%s219 + $0x3420] sm:$0xff]
        %v1950 = vld [vmem:[%s219 + $0x3428] sm:$0xff]
        %v1951 = vld [vmem:[%s219 + $0x3430] sm:$0xff]
        %v1952 = vld [vmem:[%s219 + $0x3438] sm:$0xff]
        %v1953 = vld [vmem:[%s219 + $0x3440] sm:$0xff]
        %v1954 = vld [vmem:[%s219 + $0x3448] sm:$0xff]
        %v1955 = vld [vmem:[%s219 + $0x3450] sm:$0xff]
        %v1956 = vld [vmem:[%s219 + $0x3458] sm:$0xff]
        %v1957 = vld [vmem:[%s219 + $0x3460] sm:$0xff]
        %v1958 = vld [vmem:[%s219 + $0x3468] sm:$0xff]
        %v1959 = vld [vmem:[%s219 + $0x3470] sm:$0xff]
        %v1960 = vld [vmem:[%s219 + $0x3478] sm:$0xff]
        %v1961 = vld [vmem:[%s219 + $0x3480] sm:$0xff]
        %v1962 = vld [vmem:[%s219 + $0x3488] sm:$0xff]
        %v1963 = vld [vmem:[%s219 + $0x3490] sm:$0xff]
        %v1964 = vld [vmem:[%s219 + $0x3498] sm:$0xff]
        %v1965 = vld [vmem:[%s219 + $0x34a0] sm:$0xff]
        %v1966 = vld [vmem:[%s219 + $0x34a8] sm:$0xff]
        %v1967 = vld [vmem:[%s219 + $0x34b0] sm:$0xff]
        %v1968 = vld [vmem:[%s219 + $0x34b8] sm:$0xff]
        %v1969 = vld [vmem:[%s219 + $0x34c0] sm:$0xff]
        %v1970 = vld [vmem:[%s219 + $0x34c8] sm:$0xff]
        %v1971 = vld [vmem:[%s219 + $0x34d0] sm:$0xff]
        %v1972 = vld [vmem:[%s219 + $0x34d8] sm:$0xff]
        %v1973 = vld [vmem:[%s219 + $0x34e0] sm:$0xff]
        %v1974 = vld [vmem:[%s219 + $0x34e8] sm:$0xff]
        %v1975 = vld [vmem:[%s219 + $0x34f0] sm:$0xff]
        %v1976 = vld [vmem:[%s219 + $0x34f8] sm:$0xff]
        %v1977 = vld [vmem:[%s219 + $0x3500] sm:$0xff]
        %v1978 = vld [vmem:[%s219 + $0x3508] sm:$0xff]
        %v1979 = vld [vmem:[%s219 + $0x3510] sm:$0xff]
        %v1980 = vld [vmem:[%s219 + $0x3518] sm:$0xff]
        %v1981 = vld [vmem:[%s219 + $0x3520] sm:$0xff]
        %v1982 = vld [vmem:[%s219 + $0x3528] sm:$0xff]
        %v1983 = vld [vmem:[%s219 + $0x3530] sm:$0xff]
        %v1984 = vld [vmem:[%s219 + $0x3538] sm:$0xff]
        %v1985 = vld [vmem:[%s219 + $0x3540] sm:$0xff]
        %v1986 = vld [vmem:[%s219 + $0x3548] sm:$0xff]
        %v1987 = vld [vmem:[%s219 + $0x3550] sm:$0xff]
        %v1988 = vld [vmem:[%s219 + $0x3558] sm:$0xff]
        %v1989 = vld [vmem:[%s219 + $0x3560] sm:$0xff]
        %v1990 = vld [vmem:[%s219 + $0x3568] sm:$0xff]
        %v1991 = vld [vmem:[%s219 + $0x3570] sm:$0xff]
        %v1992 = vld [vmem:[%s219 + $0x3578] sm:$0xff]
        %v1993 = vld [vmem:[%s219 + $0x3580] sm:$0xff]
        %v1994 = vld [vmem:[%s219 + $0x3588] sm:$0xff]
        %v1995 = vld [vmem:[%s219 + $0x3590] sm:$0xff]
        %v1996 = vld [vmem:[%s219 + $0x3598] sm:$0xff]
        %v1997 = vld [vmem:[%s219 + $0x35a0] sm:$0xff]
        %v1998 = vld [vmem:[%s219 + $0x35a8] sm:$0xff]
        %v1999 = vld [vmem:[%s219 + $0x35b0] sm:$0xff]
        %v2000 = vld [vmem:[%s219 + $0x35b8] sm:$0xff]
        %v2001 = vld [vmem:[%s219 + $0x35c0] sm:$0xff]
        %v2002 = vld [vmem:[%s219 + $0x35c8] sm:$0xff]
        %v2003 = vld [vmem:[%s219 + $0x35d0] sm:$0xff]
        %v2004 = vld [vmem:[%s219 + $0x35d8] sm:$0xff]
        %v2005 = vld [vmem:[%s219 + $0x35e0] sm:$0xff]
        %v2006 = vld [vmem:[%s219 + $0x35e8] sm:$0xff]
        %v2007 = vld [vmem:[%s219 + $0x35f0] sm:$0xff]
        %v2008 = vld [vmem:[%s219 + $0x35f8] sm:$0xff]
        %v2009 = vld [vmem:[%s219 + $0x3600] sm:$0xff]
        %v2010 = vld [vmem:[%s219 + $0x3608] sm:$0xff]
        %v2011 = vld [vmem:[%s219 + $0x3610] sm:$0xff]
        %v2012 = vld [vmem:[%s219 + $0x3618] sm:$0xff]
        %v2013 = vld [vmem:[%s219 + $0x3620] sm:$0xff]
        %v2014 = vld [vmem:[%s219 + $0x3628] sm:$0xff]
        %v2015 = vld [vmem:[%s219 + $0x3630] sm:$0xff]
        %v2016 = vld [vmem:[%s219 + $0x3638] sm:$0xff]
        %v2017 = vld [vmem:[%s219 + $0x3640] sm:$0xff]
        %v2018 = vld [vmem:[%s219 + $0x3648] sm:$0xff]
        %v2019 = vld [vmem:[%s219 + $0x3650] sm:$0xff]
        %v2020 = vld [vmem:[%s219 + $0x3658] sm:$0xff]
        %v2021 = vld [vmem:[%s219 + $0x3660] sm:$0xff]
        %v2022 = vld [vmem:[%s219 + $0x3668] sm:$0xff]
        %v2023 = vld [vmem:[%s219 + $0x3670] sm:$0xff]
        %v2024 = vld [vmem:[%s219 + $0x3678] sm:$0xff]
        %v2025 = vld [vmem:[%s219 + $0x3680] sm:$0xff]
        %v2026 = vld [vmem:[%s219 + $0x3688] sm:$0xff]
        %v2027 = vld [vmem:[%s219 + $0x3690] sm:$0xff]
        %v2028 = vld [vmem:[%s219 + $0x3698] sm:$0xff]
        %v2029 = vld [vmem:[%s219 + $0x36a0] sm:$0xff]
        %v2030 = vld [vmem:[%s219 + $0x36a8] sm:$0xff]
        %v2031 = vld [vmem:[%s219 + $0x36b0] sm:$0xff]
        %v2032 = vld [vmem:[%s219 + $0x36b8] sm:$0xff]
        %v2033 = vld [vmem:[%s219 + $0x36c0] sm:$0xff]
        %v2034 = vld [vmem:[%s219 + $0x36c8] sm:$0xff]
        %v2035 = vld [vmem:[%s219 + $0x36d0] sm:$0xff]
        %v2036 = vld [vmem:[%s219 + $0x36d8] sm:$0xff]
        %v2037 = vld [vmem:[%s219 + $0x36e0] sm:$0xff]
        %v2038 = vld [vmem:[%s219 + $0x36e8] sm:$0xff]
        %v2039 = vld [vmem:[%s219 + $0x36f0] sm:$0xff]
        %v2040 = vld [vmem:[%s219 + $0x36f8] sm:$0xff]
        %v2041 = vld [vmem:[%s219 + $0x3700] sm:$0xff]
        %v2042 = vld [vmem:[%s219 + $0x3708] sm:$0xff]
        %v2043 = vld [vmem:[%s219 + $0x3710] sm:$0xff]
        %v2044 = vld [vmem:[%s219 + $0x3718] sm:$0xff]
        %v2045 = vld [vmem:[%s219 + $0x3720] sm:$0xff]
        %v2046 = vld [vmem:[%s219 + $0x3728] sm:$0xff]
        %v2047 = vld [vmem:[%s219 + $0x3730] sm:$0xff]
        %v2048 = vld [vmem:[%s219 + $0x3738] sm:$0xff]
        %v2049 = vld [vmem:[%s219 + $0x3740] sm:$0xff]
        %v2050 = vld [vmem:[%s219 + $0x3748] sm:$0xff]
        %v2051 = vld [vmem:[%s219 + $0x3750] sm:$0xff]
        %v2052 = vld [vmem:[%s219 + $0x3758] sm:$0xff]
        %v2053 = vld [vmem:[%s219 + $0x3760] sm:$0xff]
        %v2054 = vld [vmem:[%s219 + $0x3768] sm:$0xff]
        %v2055 = vld [vmem:[%s219 + $0x3770] sm:$0xff]
        %v2056 = vld [vmem:[%s219 + $0x3778] sm:$0xff]
        %v2057 = vld [vmem:[%s219 + $0x3780] sm:$0xff]
        %v2058 = vld [vmem:[%s219 + $0x3788] sm:$0xff]
        %v2059 = vld [vmem:[%s219 + $0x3790] sm:$0xff]
        %v2060 = vld [vmem:[%s219 + $0x3798] sm:$0xff]
        %v2061 = vld [vmem:[%s219 + $0x37a0] sm:$0xff]
        %v2062 = vld [vmem:[%s219 + $0x37a8] sm:$0xff]
        %v2063 = vld [vmem:[%s219 + $0x37b0] sm:$0xff]
        %v2064 = vld [vmem:[%s219 + $0x37b8] sm:$0xff]
        %v2065 = vld [vmem:[%s219 + $0x37c0] sm:$0xff]
        %v2066 = vld [vmem:[%s219 + $0x37c8] sm:$0xff]
        %v2067 = vld [vmem:[%s219 + $0x37d0] sm:$0xff]
        %v2068 = vld [vmem:[%s219 + $0x37d8] sm:$0xff]
        %v2069 = vld [vmem:[%s219 + $0x37e0] sm:$0xff]
        %v2070 = vld [vmem:[%s219 + $0x37e8] sm:$0xff]
        %v2071 = vld [vmem:[%s219 + $0x37f0] sm:$0xff]
        %v2072 = vld [vmem:[%s219 + $0x37f8] sm:$0xff]
        %v2073 = vld [vmem:[%s219 + $0x3800] sm:$0xff]
        %v2074 = vld [vmem:[%s219 + $0x3808] sm:$0xff]
        %v2075 = vld [vmem:[%s219 + $0x3810] sm:$0xff]
        %v2076 = vld [vmem:[%s219 + $0x3818] sm:$0xff]
        %v2077 = vld [vmem:[%s219 + $0x3820] sm:$0xff]
        %v2078 = vld [vmem:[%s219 + $0x3828] sm:$0xff]
        %v2079 = vld [vmem:[%s219 + $0x3830] sm:$0xff]
        %v2080 = vld [vmem:[%s219 + $0x3838] sm:$0xff]
        %v2081 = vld [vmem:[%s219 + $0x3840] sm:$0xff]
        %v2082 = vld [vmem:[%s219 + $0x3848] sm:$0xff]
        %v2083 = vld [vmem:[%s219 + $0x3850] sm:$0xff]
        %v2084 = vld [vmem:[%s219 + $0x3858] sm:$0xff]
        %v2085 = vld [vmem:[%s219 + $0x3860] sm:$0xff]
        %v2086 = vld [vmem:[%s219 + $0x3868] sm:$0xff]
        %v2087 = vld [vmem:[%s219 + $0x3870] sm:$0xff]
        %v2088 = vld [vmem:[%s219 + $0x3878] sm:$0xff]
        %v2089 = vld [vmem:[%s219 + $0x3880] sm:$0xff]
        %v2090 = vld [vmem:[%s219 + $0x3888] sm:$0xff]
        %v2091 = vld [vmem:[%s219 + $0x3890] sm:$0xff]
        %v2092 = vld [vmem:[%s219 + $0x3898] sm:$0xff]
        %v2093 = vld [vmem:[%s219 + $0x38a0] sm:$0xff]
        %v2094 = vld [vmem:[%s219 + $0x38a8] sm:$0xff]
        %v2095 = vld [vmem:[%s219 + $0x38b0] sm:$0xff]
        %v2096 = vld [vmem:[%s219 + $0x38b8] sm:$0xff]
        %v2097 = vld [vmem:[%s219 + $0x38c0] sm:$0xff]
        %v2098 = vld [vmem:[%s219 + $0x38c8] sm:$0xff]
        %v2099 = vld [vmem:[%s219 + $0x38d0] sm:$0xff]
        %v2100 = vld [vmem:[%s219 + $0x38d8] sm:$0xff]
        %v2101 = vld [vmem:[%s219 + $0x38e0] sm:$0xff]
        %v2102 = vld [vmem:[%s219 + $0x38e8] sm:$0xff]
        %v2103 = vld [vmem:[%s219 + $0x38f0] sm:$0xff]
        %v2104 = vld [vmem:[%s219 + $0x38f8] sm:$0xff]
        %v2105 = vld [vmem:[%s219 + $0x3900] sm:$0xff]
        %v2106 = vld [vmem:[%s219 + $0x3908] sm:$0xff]
        %v2107 = vld [vmem:[%s219 + $0x3910] sm:$0xff]
        %v2108 = vld [vmem:[%s219 + $0x3918] sm:$0xff]
        %v2109 = vld [vmem:[%s219 + $0x3920] sm:$0xff]
        %v2110 = vld [vmem:[%s219 + $0x3928] sm:$0xff]
        %v2111 = vld [vmem:[%s219 + $0x3930] sm:$0xff]
        %v2112 = vld [vmem:[%s219 + $0x3938] sm:$0xff]
        %v2113 = vld [vmem:[%s219 + $0x3940] sm:$0xff]
        %v2114 = vld [vmem:[%s219 + $0x3948] sm:$0xff]
        %v2115 = vld [vmem:[%s219 + $0x3950] sm:$0xff]
        %v2116 = vld [vmem:[%s219 + $0x3958] sm:$0xff]
        %v2117 = vld [vmem:[%s219 + $0x3960] sm:$0xff]
        %v2118 = vld [vmem:[%s219 + $0x3968] sm:$0xff]
        %v2119 = vld [vmem:[%s219 + $0x3970] sm:$0xff]
        %v2120 = vld [vmem:[%s219 + $0x3978] sm:$0xff]
        %v2121 = vld [vmem:[%s219 + $0x3980] sm:$0xff]
        %v2122 = vld [vmem:[%s219 + $0x3988] sm:$0xff]
        %v2123 = vld [vmem:[%s219 + $0x3990] sm:$0xff]
        %v2124 = vld [vmem:[%s219 + $0x3998] sm:$0xff]
        %v2125 = vld [vmem:[%s219 + $0x39a0] sm:$0xff]
        %v2126 = vld [vmem:[%s219 + $0x39a8] sm:$0xff]
        %v2127 = vld [vmem:[%s219 + $0x39b0] sm:$0xff]
        %v2128 = vld [vmem:[%s219 + $0x39b8] sm:$0xff]
        %v2129 = vld [vmem:[%s219 + $0x39c0] sm:$0xff]
        %v2130 = vld [vmem:[%s219 + $0x39c8] sm:$0xff]
        %v2131 = vld [vmem:[%s219 + $0x39d0] sm:$0xff]
        %v2132 = vld [vmem:[%s219 + $0x39d8] sm:$0xff]
        %v2133 = vld [vmem:[%s219 + $0x39e0] sm:$0xff]
        %v2134 = vld [vmem:[%s219 + $0x39e8] sm:$0xff]
        %v2135 = vld [vmem:[%s219 + $0x39f0] sm:$0xff]
        %v2136 = vld [vmem:[%s219 + $0x39f8] sm:$0xff]
        %v2137 = vld [vmem:[%s219 + $0x3a00] sm:$0xff]
        %v2138 = vld [vmem:[%s219 + $0x3a08] sm:$0xff]
        %v2139 = vld [vmem:[%s219 + $0x3a10] sm:$0xff]
        %v2140 = vld [vmem:[%s219 + $0x3a18] sm:$0xff]
        %v2141 = vld [vmem:[%s219 + $0x3a20] sm:$0xff]
        %v2142 = vld [vmem:[%s219 + $0x3a28] sm:$0xff]
        %v2143 = vld [vmem:[%s219 + $0x3a30] sm:$0xff]
        %v2144 = vld [vmem:[%s219 + $0x3a38] sm:$0xff]
        %v2145 = vld [vmem:[%s219 + $0x3a40] sm:$0xff]
        %v2146 = vld [vmem:[%s219 + $0x3a48] sm:$0xff]
        %v2147 = vld [vmem:[%s219 + $0x3a50] sm:$0xff]
        %v2148 = vld [vmem:[%s219 + $0x3a58] sm:$0xff]
        %v2149 = vld [vmem:[%s219 + $0x3a60] sm:$0xff]
        %v2150 = vld [vmem:[%s219 + $0x3a68] sm:$0xff]
        %v2151 = vld [vmem:[%s219 + $0x3a70] sm:$0xff]
        %v2152 = vld [vmem:[%s219 + $0x3a78] sm:$0xff]
        %v2153 = vld [vmem:[%s219 + $0x3a80] sm:$0xff]
        %v2154 = vld [vmem:[%s219 + $0x3a88] sm:$0xff]
        %v2155 = vld [vmem:[%s219 + $0x3a90] sm:$0xff]
        %v2156 = vld [vmem:[%s219 + $0x3a98] sm:$0xff]
        %v2157 = vld [vmem:[%s219 + $0x3aa0] sm:$0xff]
        %v2158 = vld [vmem:[%s219 + $0x3aa8] sm:$0xff]
        %v2159 = vld [vmem:[%s219 + $0x3ab0] sm:$0xff]
        %v2160 = vld [vmem:[%s219 + $0x3ab8] sm:$0xff]
        %v2161 = vld [vmem:[%s219 + $0x3ac0] sm:$0xff]
        %v2162 = vld [vmem:[%s219 + $0x3ac8] sm:$0xff]
        %v2163 = vld [vmem:[%s219 + $0x3ad0] sm:$0xff]
        %v2164 = vld [vmem:[%s219 + $0x3ad8] sm:$0xff]
        %v2165 = vld [vmem:[%s219 + $0x3ae0] sm:$0xff]
        %v2166 = vld [vmem:[%s219 + $0x3ae8] sm:$0xff]
        %v2167 = vld [vmem:[%s219 + $0x3af0] sm:$0xff]
        %v2168 = vld [vmem:[%s219 + $0x3af8] sm:$0xff]
        %v2169 = vld [vmem:[%s219 + $0x3b00] sm:$0xff]
        %v2170 = vld [vmem:[%s219 + $0x3b08] sm:$0xff]
        %v2171 = vld [vmem:[%s219 + $0x3b10] sm:$0xff]
        %v2172 = vld [vmem:[%s219 + $0x3b18] sm:$0xff]
        %v2173 = vld [vmem:[%s219 + $0x3b20] sm:$0xff]
        %v2174 = vld [vmem:[%s219 + $0x3b28] sm:$0xff]
        %v2175 = vld [vmem:[%s219 + $0x3b30] sm:$0xff]
        %v2176 = vld [vmem:[%s219 + $0x3b38] sm:$0xff]
        %v2177 = vld [vmem:[%s219 + $0x3b40] sm:$0xff]
        %v2178 = vld [vmem:[%s219 + $0x3b48] sm:$0xff]
        %v2179 = vld [vmem:[%s219 + $0x3b50] sm:$0xff]
        %v2180 = vld [vmem:[%s219 + $0x3b58] sm:$0xff]
        %v2181 = vld [vmem:[%s219 + $0x3b60] sm:$0xff]
        %v2182 = vld [vmem:[%s219 + $0x3b68] sm:$0xff]
        %v2183 = vld [vmem:[%s219 + $0x3b70] sm:$0xff]
        %v2184 = vld [vmem:[%s219 + $0x3b78] sm:$0xff]
        %v2185 = vld [vmem:[%s219 + $0x3b80] sm:$0xff]
        %v2186 = vld [vmem:[%s219 + $0x3b88] sm:$0xff]
        %v2187 = vld [vmem:[%s219 + $0x3b90] sm:$0xff]
        %v2188 = vld [vmem:[%s219 + $0x3b98] sm:$0xff]
        %v2189 = vld [vmem:[%s219 + $0x3ba0] sm:$0xff]
        %v2190 = vld [vmem:[%s219 + $0x3ba8] sm:$0xff]
        %v2191 = vld [vmem:[%s219 + $0x3bb0] sm:$0xff]
        %v2192 = vld [vmem:[%s219 + $0x3bb8] sm:$0xff]
        %v2193 = vld [vmem:[%s219 + $0x3bc0] sm:$0xff]
        %v2194 = vld [vmem:[%s219 + $0x3bc8] sm:$0xff]
        %v2195 = vld [vmem:[%s219 + $0x3bd0] sm:$0xff]
        %v2196 = vld [vmem:[%s219 + $0x3bd8] sm:$0xff]
        %v2197 = vld [vmem:[%s219 + $0x3be0] sm:$0xff]
        %v2198 = vld [vmem:[%s219 + $0x3be8] sm:$0xff]
        %v2199 = vld [vmem:[%s219 + $0x3bf0] sm:$0xff]
        %v2200 = vld [vmem:[%s219 + $0x3bf8] sm:$0xff]
        %v2201 = vld [vmem:[%s219 + $0x3c00] sm:$0xff]
        %v2202 = vld [vmem:[%s219 + $0x3c08] sm:$0xff]
        %v2203 = vld [vmem:[%s219 + $0x3c10] sm:$0xff]
        %v2204 = vld [vmem:[%s219 + $0x3c18] sm:$0xff]
        %v2205 = vld [vmem:[%s219 + $0x3c20] sm:$0xff]
        %v2206 = vld [vmem:[%s219 + $0x3c28] sm:$0xff]
        %v2207 = vld [vmem:[%s219 + $0x3c30] sm:$0xff]
        %v2208 = vld [vmem:[%s219 + $0x3c38] sm:$0xff]
        %v2209 = vld [vmem:[%s219 + $0x3c40] sm:$0xff]
        %v2210 = vld [vmem:[%s219 + $0x3c48] sm:$0xff]
        %v2211 = vld [vmem:[%s219 + $0x3c50] sm:$0xff]
        %v2212 = vld [vmem:[%s219 + $0x3c58] sm:$0xff]
        %v2213 = vld [vmem:[%s219 + $0x3c60] sm:$0xff]
        %v2214 = vld [vmem:[%s219 + $0x3c68] sm:$0xff]
        %v2215 = vld [vmem:[%s219 + $0x3c70] sm:$0xff]
        %v2216 = vld [vmem:[%s219 + $0x3c78] sm:$0xff]
        %v2217 = vld [vmem:[%s219 + $0x3c80] sm:$0xff]
        %v2218 = vld [vmem:[%s219 + $0x3c88] sm:$0xff]
        %v2219 = vld [vmem:[%s219 + $0x3c90] sm:$0xff]
        %v2220 = vld [vmem:[%s219 + $0x3c98] sm:$0xff]
        %v2221 = vld [vmem:[%s219 + $0x3ca0] sm:$0xff]
        %v2222 = vld [vmem:[%s219 + $0x3ca8] sm:$0xff]
        %v2223 = vld [vmem:[%s219 + $0x3cb0] sm:$0xff]
        %v2224 = vld [vmem:[%s219 + $0x3cb8] sm:$0xff]
        %v2225 = vld [vmem:[%s219 + $0x3cc0] sm:$0xff]
        %v2226 = vld [vmem:[%s219 + $0x3cc8] sm:$0xff]
        %v2227 = vld [vmem:[%s219 + $0x3cd0] sm:$0xff]
        %v2228 = vld [vmem:[%s219 + $0x3cd8] sm:$0xff]
        %v2229 = vld [vmem:[%s219 + $0x3ce0] sm:$0xff]
        %v2230 = vld [vmem:[%s219 + $0x3ce8] sm:$0xff]
        %v2231 = vld [vmem:[%s219 + $0x3cf0] sm:$0xff]
        %v2232 = vld [vmem:[%s219 + $0x3cf8] sm:$0xff]
        %v2233 = vld [vmem:[%s219 + $0x3d00] sm:$0xff]
        %v2234 = vld [vmem:[%s219 + $0x3d08] sm:$0xff]
        %v2235 = vld [vmem:[%s219 + $0x3d10] sm:$0xff]
        %v2236 = vld [vmem:[%s219 + $0x3d18] sm:$0xff]
        %v2237 = vld [vmem:[%s219 + $0x3d20] sm:$0xff]
        %v2238 = vld [vmem:[%s219 + $0x3d28] sm:$0xff]
        %v2239 = vld [vmem:[%s219 + $0x3d30] sm:$0xff]
        %v2240 = vld [vmem:[%s219 + $0x3d38] sm:$0xff]
        %v2241 = vld [vmem:[%s219 + $0x3d40] sm:$0xff]
        %v2242 = vld [vmem:[%s219 + $0x3d48] sm:$0xff]
        %v2243 = vld [vmem:[%s219 + $0x3d50] sm:$0xff]
        %v2244 = vld [vmem:[%s219 + $0x3d58] sm:$0xff]
        %v2245 = vld [vmem:[%s219 + $0x3d60] sm:$0xff]
        %v2246 = vld [vmem:[%s219 + $0x3d68] sm:$0xff]
        %v2247 = vld [vmem:[%s219 + $0x3d70] sm:$0xff]
        %v2248 = vld [vmem:[%s219 + $0x3d78] sm:$0xff]
        %v2249 = vld [vmem:[%s219 + $0x3d80] sm:$0xff]
        %v2250 = vld [vmem:[%s219 + $0x3d88] sm:$0xff]
        %v2251 = vld [vmem:[%s219 + $0x3d90] sm:$0xff]
        %v2252 = vld [vmem:[%s219 + $0x3d98] sm:$0xff]
        %v2253 = vld [vmem:[%s219 + $0x3da0] sm:$0xff]
        %v2254 = vld [vmem:[%s219 + $0x3da8] sm:$0xff]
        %v2255 = vld [vmem:[%s219 + $0x3db0] sm:$0xff]
        %v2256 = vld [vmem:[%s219 + $0x3db8] sm:$0xff]
        %v2257 = vld [vmem:[%s219 + $0x3dc0] sm:$0xff]
        %v2258 = vld [vmem:[%s219 + $0x3dc8] sm:$0xff]
        %v2259 = vld [vmem:[%s219 + $0x3dd0] sm:$0xff]
        %v2260 = vld [vmem:[%s219 + $0x3dd8] sm:$0xff]
        %v2261 = vld [vmem:[%s219 + $0x3de0] sm:$0xff]
        %v2262 = vld [vmem:[%s219 + $0x3de8] sm:$0xff]
        %v2263 = vld [vmem:[%s219 + $0x3df0] sm:$0xff]
        %v2264 = vld [vmem:[%s219 + $0x3df8] sm:$0xff]
        %v2265 = vld [vmem:[%s219 + $0x3e00] sm:$0xff]
        %v2266 = vld [vmem:[%s219 + $0x3e08] sm:$0xff]
        %v2267 = vld [vmem:[%s219 + $0x3e10] sm:$0xff]
        %v2268 = vld [vmem:[%s219 + $0x3e18] sm:$0xff]
        %v2269 = vld [vmem:[%s219 + $0x3e20] sm:$0xff]
        %v2270 = vld [vmem:[%s219 + $0x3e28] sm:$0xff]
        %v2271 = vld [vmem:[%s219 + $0x3e30] sm:$0xff]
        %v2272 = vld [vmem:[%s219 + $0x3e38] sm:$0xff]
        %v2273 = vld [vmem:[%s219 + $0x3e40] sm:$0xff]
        %v2274 = vld [vmem:[%s219 + $0x3e48] sm:$0xff]
        %v2275 = vld [vmem:[%s219 + $0x3e50] sm:$0xff]
        %v2276 = vld [vmem:[%s219 + $0x3e58] sm:$0xff]
        %v2277 = vld [vmem:[%s219 + $0x3e60] sm:$0xff]
        %v2278 = vld [vmem:[%s219 + $0x3e68] sm:$0xff]
        %v2279 = vld [vmem:[%s219 + $0x3e70] sm:$0xff]
        %v2280 = vld [vmem:[%s219 + $0x3e78] sm:$0xff]
        %v2281 = vld [vmem:[%s219 + $0x3e80] sm:$0xff]
        %v2282 = vld [vmem:[%s219 + $0x3e88] sm:$0xff]
        %v2283 = vld [vmem:[%s219 + $0x3e90] sm:$0xff]
        %v2284 = vld [vmem:[%s219 + $0x3e98] sm:$0xff]
        %v2285 = vld [vmem:[%s219 + $0x3ea0] sm:$0xff]
        %v2286 = vld [vmem:[%s219 + $0x3ea8] sm:$0xff]
        %v2287 = vld [vmem:[%s219 + $0x3eb0] sm:$0xff]
        %v2288 = vld [vmem:[%s219 + $0x3eb8] sm:$0xff]
        %v2289 = vld [vmem:[%s219 + $0x3ec0] sm:$0xff]
        %v2290 = vld [vmem:[%s219 + $0x3ec8] sm:$0xff]
        %v2291 = vld [vmem:[%s219 + $0x3ed0] sm:$0xff]
        %v2292 = vld [vmem:[%s219 + $0x3ed8] sm:$0xff]
        %v2293 = vld [vmem:[%s219 + $0x3ee0] sm:$0xff]
        %v2294 = vld [vmem:[%s219 + $0x3ee8] sm:$0xff]
        %v2295 = vld [vmem:[%s219 + $0x3ef0] sm:$0xff]
        %v2296 = vld [vmem:[%s219 + $0x3ef8] sm:$0xff]
        %v2297 = vld [vmem:[%s219 + $0x3f00] sm:$0xff]
        %v2298 = vld [vmem:[%s219 + $0x3f08] sm:$0xff]
        %v2299 = vld [vmem:[%s219 + $0x3f10] sm:$0xff]
        %v2300 = vld [vmem:[%s219 + $0x3f18] sm:$0xff]
        %v2301 = vld [vmem:[%s219 + $0x3f20] sm:$0xff]
        %v2302 = vld [vmem:[%s219 + $0x3f28] sm:$0xff]
        %v2303 = vld [vmem:[%s219 + $0x3f30] sm:$0xff]
        %v2304 = vld [vmem:[%s219 + $0x3f38] sm:$0xff]
        %v2305 = vld [vmem:[%s219 + $0x3f40] sm:$0xff]
        %v2306 = vld [vmem:[%s219 + $0x3f48] sm:$0xff]
        %v2307 = vld [vmem:[%s219 + $0x3f50] sm:$0xff]
        %v2308 = vld [vmem:[%s219 + $0x3f58] sm:$0xff]
        %v2309 = vld [vmem:[%s219 + $0x3f60] sm:$0xff]
        %v2310 = vld [vmem:[%s219 + $0x3f68] sm:$0xff]
        %v2311 = vld [vmem:[%s219 + $0x3f70] sm:$0xff]
        %v2312 = vld [vmem:[%s219 + $0x3f78] sm:$0xff]
        %v2313 = vld [vmem:[%s219 + $0x3f80] sm:$0xff]
        %v2314 = vld [vmem:[%s219 + $0x3f88] sm:$0xff]
        %v2315 = vld [vmem:[%s219 + $0x3f90] sm:$0xff]
        %v2316 = vld [vmem:[%s219 + $0x3f98] sm:$0xff]
        %v2317 = vld [vmem:[%s219 + $0x3fa0] sm:$0xff]
        %v2318 = vld [vmem:[%s219 + $0x3fa8] sm:$0xff]
        %v2319 = vld [vmem:[%s219 + $0x3fb0] sm:$0xff]
        %v2320 = vld [vmem:[%s219 + $0x3fb8] sm:$0xff]
        %v2321 = vld [vmem:[%s219 + $0x3fc0] sm:$0xff]
        %v2322 = vld [vmem:[%s219 + $0x3fc8] sm:$0xff]
        %v2323 = vld [vmem:[%s219 + $0x3fd0] sm:$0xff]
        %v2324 = vld [vmem:[%s219 + $0x3fd8] sm:$0xff]
        %v2325 = vld [vmem:[%s219 + $0x3fe0] sm:$0xff]
        %v2326 = vld [vmem:[%s219 + $0x3fe8] sm:$0xff]
        %v2327 = vld [vmem:[%s219 + $0x3ff0] sm:$0xff]
        %v2328 = vld [vmem:[%s219 + $0x3ff8] sm:$0xff]
        %v2329 = vld [vmem:[%s219 + $0x4000] sm:$0xff]
        %v2330 = vld [vmem:[%s219 + $0x4008] sm:$0xff]
        %v2331 = vld [vmem:[%s219 + $0x4010] sm:$0xff]
        %v2332 = vld [vmem:[%s219 + $0x4018] sm:$0xff]
        %v2333 = vld [vmem:[%s219 + $0x4020] sm:$0xff]
        %v2334 = vld [vmem:[%s219 + $0x4028] sm:$0xff]
        %v2335 = vld [vmem:[%s219 + $0x4030] sm:$0xff]
        %v2336 = vld [vmem:[%s219 + $0x4038] sm:$0xff]
        %v2337 = vld [vmem:[%s219 + $0x4040] sm:$0xff]
        %v2338 = vld [vmem:[%s219 + $0x4048] sm:$0xff]
        %v2339 = vld [vmem:[%s219 + $0x4050] sm:$0xff]
        %v2340 = vld [vmem:[%s219 + $0x4058] sm:$0xff]
        %v2341 = vld [vmem:[%s219 + $0x4060] sm:$0xff]
        %v2342 = vld [vmem:[%s219 + $0x4068] sm:$0xff]
        %v2343 = vld [vmem:[%s219 + $0x4070] sm:$0xff]
        %v2344 = vld [vmem:[%s219 + $0x4078] sm:$0xff]
        %v2345 = vld [vmem:[%s219 + $0x4080] sm:$0xff]
        %v2346 = vld [vmem:[%s219 + $0x4088] sm:$0xff]
        %v2347 = vld [vmem:[%s219 + $0x4090] sm:$0xff]
        %v2348 = vld [vmem:[%s219 + $0x4098] sm:$0xff]
        %v2349 = vld [vmem:[%s219 + $0x40a0] sm:$0xff]
        %v2350 = vld [vmem:[%s219 + $0x40a8] sm:$0xff]
        %v2351 = vld [vmem:[%s219 + $0x40b0] sm:$0xff]
        %v2352 = vld [vmem:[%s219 + $0x40b8] sm:$0xff]
        %v2353 = vld [vmem:[%s219 + $0x40c0] sm:$0xff]
        %v2354 = vld [vmem:[%s219 + $0x40c8] sm:$0xff]
        %v2355 = vld [vmem:[%s219 + $0x40d0] sm:$0xff]
        %v2356 = vld [vmem:[%s219 + $0x40d8] sm:$0xff]
        %v2357 = vld [vmem:[%s219 + $0x40e0] sm:$0xff]
        %v2358 = vld [vmem:[%s219 + $0x40e8] sm:$0xff]
        %v2359 = vld [vmem:[%s219 + $0x40f0] sm:$0xff]
        %v2360 = vld [vmem:[%s219 + $0x40f8] sm:$0xff]
        %v2361 = vld [vmem:[%s219 + $0x4100] sm:$0xff]
        %v2362 = vld [vmem:[%s219 + $0x4108] sm:$0xff]
        %v2363 = vld [vmem:[%s219 + $0x4110] sm:$0xff]
        %v2364 = vld [vmem:[%s219 + $0x4118] sm:$0xff]
        %v2365 = vld [vmem:[%s219 + $0x4120] sm:$0xff]
        %v2366 = vld [vmem:[%s219 + $0x4128] sm:$0xff]
        %v2367 = vld [vmem:[%s219 + $0x4130] sm:$0xff]
        %v2368 = vld [vmem:[%s219 + $0x4138] sm:$0xff]
        %v2369 = vld [vmem:[%s219 + $0x4140] sm:$0xff]
        %v2370 = vld [vmem:[%s219 + $0x4148] sm:$0xff]
        %v2371 = vld [vmem:[%s219 + $0x4150] sm:$0xff]
        %v2372 = vld [vmem:[%s219 + $0x4158] sm:$0xff]
        %v2373 = vld [vmem:[%s219 + $0x4160] sm:$0xff]
        %v2374 = vld [vmem:[%s219 + $0x4168] sm:$0xff]
        %v2375 = vld [vmem:[%s219 + $0x4170] sm:$0xff]
        %v2376 = vld [vmem:[%s219 + $0x4178] sm:$0xff]
        %v2377 = vld [vmem:[%s219 + $0x4180] sm:$0xff]
        %v2378 = vld [vmem:[%s219 + $0x4188] sm:$0xff]
        %v2379 = vld [vmem:[%s219 + $0x4190] sm:$0xff]
        %v2380 = vld [vmem:[%s219 + $0x4198] sm:$0xff]
        %v2381 = vld [vmem:[%s219 + $0x41a0] sm:$0xff]
        %v2382 = vld [vmem:[%s219 + $0x41a8] sm:$0xff]
        %v2383 = vld [vmem:[%s219 + $0x41b0] sm:$0xff]
        %v2384 = vld [vmem:[%s219 + $0x41b8] sm:$0xff]
        %v2385 = vld [vmem:[%s219 + $0x41c0] sm:$0xff]
        %v2386 = vld [vmem:[%s219 + $0x41c8] sm:$0xff]
        %v2387 = vld [vmem:[%s219 + $0x41d0] sm:$0xff]
        %v2388 = vld [vmem:[%s219 + $0x41d8] sm:$0xff]
        %v2389 = vld [vmem:[%s219 + $0x41e0] sm:$0xff]
        %v2390 = vld [vmem:[%s219 + $0x41e8] sm:$0xff]
        %v2391 = vld [vmem:[%s219 + $0x41f0] sm:$0xff]
        %v2392 = vld [vmem:[%s219 + $0x41f8] sm:$0xff]
        %v2393 = vld [vmem:[%s219 + $0x4200] sm:$0xff]
        %v2394 = vld [vmem:[%s219 + $0x4208] sm:$0xff]
        %v2395 = vld [vmem:[%s219 + $0x4210] sm:$0xff]
        %v2396 = vld [vmem:[%s219 + $0x4218] sm:$0xff]
        %v2397 = vld [vmem:[%s219 + $0x4220] sm:$0xff]
        %v2398 = vld [vmem:[%s219 + $0x4228] sm:$0xff]
        %v2399 = vld [vmem:[%s219 + $0x4230] sm:$0xff]
        %v2400 = vld [vmem:[%s219 + $0x4238] sm:$0xff]
        %v2401 = vld [vmem:[%s219 + $0x4240] sm:$0xff]
        %v2402 = vld [vmem:[%s219 + $0x4248] sm:$0xff]
        %v2403 = vld [vmem:[%s219 + $0x4250] sm:$0xff]
        %v2404 = vld [vmem:[%s219 + $0x4258] sm:$0xff]
        %v2405 = vld [vmem:[%s219 + $0x4260] sm:$0xff]
        %v2406 = vld [vmem:[%s219 + $0x4268] sm:$0xff]
        %v2407 = vld [vmem:[%s219 + $0x4270] sm:$0xff]
        %v2408 = vld [vmem:[%s219 + $0x4278] sm:$0xff]
        %v2409 = vld [vmem:[%s219 + $0x4280] sm:$0xff]
        %v2410 = vld [vmem:[%s219 + $0x4288] sm:$0xff]
        %v2411 = vld [vmem:[%s219 + $0x4290] sm:$0xff]
        %v2412 = vld [vmem:[%s219 + $0x4298] sm:$0xff]
        %v2413 = vld [vmem:[%s219 + $0x42a0] sm:$0xff]
        %v2414 = vld [vmem:[%s219 + $0x42a8] sm:$0xff]
        %v2415 = vld [vmem:[%s219 + $0x42b0] sm:$0xff]
        %v2416 = vld [vmem:[%s219 + $0x42b8] sm:$0xff]
        %v2417 = vld [vmem:[%s219 + $0x42c0] sm:$0xff]
        %v2418 = vld [vmem:[%s219 + $0x42c8] sm:$0xff]
        %v2419 = vld [vmem:[%s219 + $0x42d0] sm:$0xff]
        %v2420 = vld [vmem:[%s219 + $0x42d8] sm:$0xff]
        %v2421 = vld [vmem:[%s219 + $0x42e0] sm:$0xff]
        %v2422 = vld [vmem:[%s219 + $0x42e8] sm:$0xff]
        %v2423 = vld [vmem:[%s219 + $0x42f0] sm:$0xff]
        %v2424 = vld [vmem:[%s219 + $0x42f8] sm:$0xff]
        %v2425 = vld [vmem:[%s219 + $0x4300] sm:$0xff]
        %v2426 = vld [vmem:[%s219 + $0x4308] sm:$0xff]
        %v2427 = vld [vmem:[%s219 + $0x4310] sm:$0xff]
        %v2428 = vld [vmem:[%s219 + $0x4318] sm:$0xff]
        %v2429 = vld [vmem:[%s219 + $0x4320] sm:$0xff]
        %v2430 = vld [vmem:[%s219 + $0x4328] sm:$0xff]
        %v2431 = vld [vmem:[%s219 + $0x4330] sm:$0xff]
        %v2432 = vld [vmem:[%s219 + $0x4338] sm:$0xff]
        %v2433 = vld [vmem:[%s219 + $0x4340] sm:$0xff]
        %v2434 = vld [vmem:[%s219 + $0x4348] sm:$0xff]
        %v2435 = vld [vmem:[%s219 + $0x4350] sm:$0xff]
        %v2436 = vld [vmem:[%s219 + $0x4358] sm:$0xff]
        %v2437 = vld [vmem:[%s219 + $0x4360] sm:$0xff]
        %v2438 = vld [vmem:[%s219 + $0x4368] sm:$0xff]
        %v2439 = vld [vmem:[%s219 + $0x4370] sm:$0xff]
        %v2440 = vld [vmem:[%s219 + $0x4378] sm:$0xff]
        %v2441 = vld [vmem:[%s219 + $0x4380] sm:$0xff]
        %v2442 = vld [vmem:[%s219 + $0x4388] sm:$0xff]
        %v2443 = vld [vmem:[%s219 + $0x4390] sm:$0xff]
        %v2444 = vld [vmem:[%s219 + $0x4398] sm:$0xff]
        %v2445 = vld [vmem:[%s219 + $0x43a0] sm:$0xff]
        %v2446 = vld [vmem:[%s219 + $0x43a8] sm:$0xff]
        %v2447 = vld [vmem:[%s219 + $0x43b0] sm:$0xff]
        %v2448 = vld [vmem:[%s219 + $0x43b8] sm:$0xff]
        %v2449 = vld [vmem:[%s219 + $0x43c0] sm:$0xff]
        %v2450 = vld [vmem:[%s219 + $0x43c8] sm:$0xff]
        %v2451 = vld [vmem:[%s219 + $0x43d0] sm:$0xff]
        %v2452 = vld [vmem:[%s219 + $0x43d8] sm:$0xff]
        %v2453 = vld [vmem:[%s219 + $0x43e0] sm:$0xff]
        %v2454 = vld [vmem:[%s219 + $0x43e8] sm:$0xff]
        %v2455 = vld [vmem:[%s219 + $0x43f0] sm:$0xff]
        %v2456 = vld [vmem:[%s219 + $0x43f8] sm:$0xff]
        %v2457 = vld [vmem:[%s219 + $0x4400] sm:$0xff]
        %v2458 = vld [vmem:[%s219 + $0x4408] sm:$0xff]
        %v2459 = vld [vmem:[%s219 + $0x4410] sm:$0xff]
        %v2460 = vld [vmem:[%s219 + $0x4418] sm:$0xff]
        %v2461 = vld [vmem:[%s219 + $0x4420] sm:$0xff]
        %v2462 = vld [vmem:[%s219 + $0x4428] sm:$0xff]
        %v2463 = vld [vmem:[%s219 + $0x4430] sm:$0xff]
        %v2464 = vld [vmem:[%s219 + $0x4438] sm:$0xff]
        %v2465 = vld [vmem:[%s219 + $0x4440] sm:$0xff]
        %v2466 = vld [vmem:[%s219 + $0x4448] sm:$0xff]
        %v2467 = vld [vmem:[%s219 + $0x4450] sm:$0xff]
        %v2468 = vld [vmem:[%s219 + $0x4458] sm:$0xff]
        %v2469 = vld [vmem:[%s219 + $0x4460] sm:$0xff]
        %v2470 = vld [vmem:[%s219 + $0x4468] sm:$0xff]
        %v2471 = vld [vmem:[%s219 + $0x4470] sm:$0xff]
        %v2472 = vld [vmem:[%s219 + $0x4478] sm:$0xff]
        %v2473 = vld [vmem:[%s219 + $0x4480] sm:$0xff]
        %v2474 = vld [vmem:[%s219 + $0x4488] sm:$0xff]
        %v2475 = vld [vmem:[%s219 + $0x4490] sm:$0xff]
        %v2476 = vld [vmem:[%s219 + $0x4498] sm:$0xff]
        %v2477 = vld [vmem:[%s219 + $0x44a0] sm:$0xff]
        %v2478 = vld [vmem:[%s219 + $0x44a8] sm:$0xff]
        %v2479 = vld [vmem:[%s219 + $0x44b0] sm:$0xff]
        %v2480 = vld [vmem:[%s219 + $0x44b8] sm:$0xff]
        %v2481 = vld [vmem:[%s219 + $0x44c0] sm:$0xff]
        %v2482 = vld [vmem:[%s219 + $0x44c8] sm:$0xff]
        %v2483 = vld [vmem:[%s219 + $0x44d0] sm:$0xff]
        %v2484 = vld [vmem:[%s219 + $0x44d8] sm:$0xff]
        %v2485 = vld [vmem:[%s219 + $0x44e0] sm:$0xff]
        %v2486 = vld [vmem:[%s219 + $0x44e8] sm:$0xff]
        %v2487 = vld [vmem:[%s219 + $0x44f0] sm:$0xff]
        %v2488 = vld [vmem:[%s219 + $0x44f8] sm:$0xff]
        %v2489 = vld [vmem:[%s219 + $0x4500] sm:$0xff]
        %v2490 = vld [vmem:[%s219 + $0x4508] sm:$0xff]
        %v2491 = vld [vmem:[%s219 + $0x4510] sm:$0xff]
        %v2492 = vld [vmem:[%s219 + $0x4518] sm:$0xff]
        %v2493 = vld [vmem:[%s219 + $0x4520] sm:$0xff]
        %v2494 = vld [vmem:[%s219 + $0x4528] sm:$0xff]
        %v2495 = vld [vmem:[%s219 + $0x4530] sm:$0xff]
        %v2496 = vld [vmem:[%s219 + $0x4538] sm:$0xff]
        %v2497 = vld [vmem:[%s219 + $0x4540] sm:$0xff]
        %v2498 = vld [vmem:[%s219 + $0x4548] sm:$0xff]
        %v2499 = vld [vmem:[%s219 + $0x4550] sm:$0xff]
        %v2500 = vld [vmem:[%s219 + $0x4558] sm:$0xff]
        %v2501 = vld [vmem:[%s219 + $0x4560] sm:$0xff]
        %v2502 = vld [vmem:[%s219 + $0x4568] sm:$0xff]
        %v2503 = vld [vmem:[%s219 + $0x4570] sm:$0xff]
        %v2504 = vld [vmem:[%s219 + $0x4578] sm:$0xff]
        %v2505 = vld [vmem:[%s219 + $0x4580] sm:$0xff]
        %v2506 = vld [vmem:[%s219 + $0x4588] sm:$0xff]
        %v2507 = vld [vmem:[%s219 + $0x4590] sm:$0xff]
        %v2508 = vld [vmem:[%s219 + $0x4598] sm:$0xff]
        %v2509 = vld [vmem:[%s219 + $0x45a0] sm:$0xff]
        %v2510 = vld [vmem:[%s219 + $0x45a8] sm:$0xff]
        %v2511 = vld [vmem:[%s219 + $0x45b0] sm:$0xff]
        %v2512 = vld [vmem:[%s219 + $0x45b8] sm:$0xff]
        %v2513 = vld [vmem:[%s219 + $0x45c0] sm:$0xff]
        %v2514 = vld [vmem:[%s219 + $0x45c8] sm:$0xff]
        %v2515 = vld [vmem:[%s219 + $0x45d0] sm:$0xff]
        %v2516 = vld [vmem:[%s219 + $0x45d8] sm:$0xff]
        %v2517 = vld [vmem:[%s219 + $0x45e0] sm:$0xff]
        %v2518 = vld [vmem:[%s219 + $0x45e8] sm:$0xff]
        %v2519 = vld [vmem:[%s219 + $0x45f0] sm:$0xff]
        %v2520 = vld [vmem:[%s219 + $0x45f8] sm:$0xff]
        %v2521 = vld [vmem:[%s219 + $0x4600] sm:$0xff]
        %v2522 = vld [vmem:[%s219 + $0x4608] sm:$0xff]
        %v2523 = vld [vmem:[%s219 + $0x4610] sm:$0xff]
        %v2524 = vld [vmem:[%s219 + $0x4618] sm:$0xff]
        %v2525 = vld [vmem:[%s219 + $0x4620] sm:$0xff]
        %v2526 = vld [vmem:[%s219 + $0x4628] sm:$0xff]
        %v2527 = vld [vmem:[%s219 + $0x4630] sm:$0xff]
        %v2528 = vld [vmem:[%s219 + $0x4638] sm:$0xff]
        %v2529 = vld [vmem:[%s219 + $0x4640] sm:$0xff]
        %v2530 = vld [vmem:[%s219 + $0x4648] sm:$0xff]
        %v2531 = vld [vmem:[%s219 + $0x4650] sm:$0xff]
        %v2532 = vld [vmem:[%s219 + $0x4658] sm:$0xff]
        %v2533 = vld [vmem:[%s219 + $0x4660] sm:$0xff]
        %v2534 = vld [vmem:[%s219 + $0x4668] sm:$0xff]
        %v2535 = vld [vmem:[%s219 + $0x4670] sm:$0xff]
        %v2536 = vld [vmem:[%s219 + $0x4678] sm:$0xff]
        %v2537 = vld [vmem:[%s219 + $0x4680] sm:$0xff]
        %v2538 = vld [vmem:[%s219 + $0x4688] sm:$0xff]
        %v2539 = vld [vmem:[%s219 + $0x4690] sm:$0xff]
        %v2540 = vld [vmem:[%s219 + $0x4698] sm:$0xff]
        %v2541 = vld [vmem:[%s219 + $0x46a0] sm:$0xff]
        %v2542 = vld [vmem:[%s219 + $0x46a8] sm:$0xff]
        %v2543 = vld [vmem:[%s219 + $0x46b0] sm:$0xff]
        %v2544 = vld [vmem:[%s219 + $0x46b8] sm:$0xff]
        %v2545 = vld [vmem:[%s219 + $0x46c0] sm:$0xff]
        %v2546 = vld [vmem:[%s219 + $0x46c8] sm:$0xff]
        %v2547 = vld [vmem:[%s219 + $0x46d0] sm:$0xff]
        %v2548 = vld [vmem:[%s219 + $0x46d8] sm:$0xff]
        %v2549 = vld [vmem:[%s219 + $0x46e0] sm:$0xff]
        %v2550 = vld [vmem:[%s219 + $0x46e8] sm:$0xff]
        %v2551 = vld [vmem:[%s219 + $0x46f0] sm:$0xff]
        %v2552 = vld [vmem:[%s219 + $0x46f8] sm:$0xff]
        %v2553 = vld [vmem:[%s219 + $0x4700] sm:$0xff]
        %v2554 = vld [vmem:[%s219 + $0x4708] sm:$0xff]
        %v2555 = vld [vmem:[%s219 + $0x4710] sm:$0xff]
        %v2556 = vld [vmem:[%s219 + $0x4718] sm:$0xff]
        %v2557 = vld [vmem:[%s219 + $0x4720] sm:$0xff]
        %v2558 = vld [vmem:[%s219 + $0x4728] sm:$0xff]
        %v2559 = vld [vmem:[%s219 + $0x4730] sm:$0xff]
        %v2560 = vld [vmem:[%s219 + $0x4738] sm:$0xff]
        %v2561 = vld [vmem:[%s219 + $0x4740] sm:$0xff]
        %v2562 = vld [vmem:[%s219 + $0x4748] sm:$0xff]
        %v2563 = vld [vmem:[%s219 + $0x4750] sm:$0xff]
        %v2564 = vld [vmem:[%s219 + $0x4758] sm:$0xff]
        %v2565 = vld [vmem:[%s219 + $0x4760] sm:$0xff]
        %v2566 = vld [vmem:[%s219 + $0x4768] sm:$0xff]
        %v2567 = vld [vmem:[%s219 + $0x4770] sm:$0xff]
        %v2568 = vld [vmem:[%s219 + $0x4778] sm:$0xff]
        %v2569 = vld [vmem:[%s219 + $0x4780] sm:$0xff]
        %v2570 = vld [vmem:[%s219 + $0x4788] sm:$0xff]
        %v2571 = vld [vmem:[%s219 + $0x4790] sm:$0xff]
        %v2572 = vld [vmem:[%s219 + $0x4798] sm:$0xff]
        %v2573 = vld [vmem:[%s219 + $0x47a0] sm:$0xff]
        %v2574 = vld [vmem:[%s219 + $0x47a8] sm:$0xff]
        %v2575 = vld [vmem:[%s219 + $0x47b0] sm:$0xff]
        %v2576 = vld [vmem:[%s219 + $0x47b8] sm:$0xff]
        %v2577 = vld [vmem:[%s219 + $0x47c0] sm:$0xff]
        %v2578 = vld [vmem:[%s219 + $0x47c8] sm:$0xff]
        %v2579 = vld [vmem:[%s219 + $0x47d0] sm:$0xff]
        %v2580 = vld [vmem:[%s219 + $0x47d8] sm:$0xff]
        %v2581 = vld [vmem:[%s219 + $0x47e0] sm:$0xff]
        %v2582 = vld [vmem:[%s219 + $0x47e8] sm:$0xff]
        %v2583 = vld [vmem:[%s219 + $0x47f0] sm:$0xff]
        %v2584 = vld [vmem:[%s219 + $0x47f8] sm:$0xff]
        %v2597 = vcombine.high %v268, %v268
        %v2599 = vunpack.c.l.s4 1983009808
        %v2600 = vunpack.c.0.s8 %v2599
        %v2601 = vlaneseq
        %v2602 = vshrl.u32 %v2601, 7
        %v2603 = vsub.s32 %v2600, %v2602
        %v2604 = vrot.slane %v268, %v2603
        %v2606 = vunpack.c.l.s4 1983009808
        %v2607 = vunpack.c.0.s8 %v2606
        %v2608 = vlaneseq
        %v2609 = vshrl.u32 %v2608, 7
        %v2610 = vsub.s32 %v2607, %v2609
        %v2611 = vrot.slane %v2597, %v2610
        %v2612 = vcombine.high %v2604, %v2604
        %v2613 = vcombine.high %v2611, %v2611
        %v2614 = vcombine.high %v269, %v269
        %v2616 = vunpack.c.l.s4 1983009808
        %v2617 = vunpack.c.0.s8 %v2616
        %v2618 = vlaneseq
        %v2619 = vshrl.u32 %v2618, 7
        %v2620 = vsub.s32 %v2617, %v2619
        %v2621 = vrot.slane %v269, %v2620
        %v2623 = vunpack.c.l.s4 1983009808
        %v2624 = vunpack.c.0.s8 %v2623
        %v2625 = vlaneseq
        %v2626 = vshrl.u32 %v2625, 7
        %v2627 = vsub.s32 %v2624, %v2626
        %v2628 = vrot.slane %v2614, %v2627
        %v2629 = vcombine.high %v2621, %v2621
        %v2630 = vcombine.high %v2628, %v2628
        %v2631 = vcombine.high %v270, %v270
        %v2633 = vunpack.c.l.s4 1983009808
        %v2634 = vunpack.c.0.s8 %v2633
        %v2635 = vlaneseq
        %v2636 = vshrl.u32 %v2635, 7
        %v2637 = vsub.s32 %v2634, %v2636
        %v2638 = vrot.slane %v270, %v2637
        %v2640 = vunpack.c.l.s4 1983009808
        %v2641 = vunpack.c.0.s8 %v2640
        %v2642 = vlaneseq
        %v2643 = vshrl.u32 %v2642, 7
        %v2644 = vsub.s32 %v2641, %v2643
        %v2645 = vrot.slane %v2631, %v2644
        %v2646 = vcombine.high %v2638, %v2638
        %v2647 = vcombine.high %v2645, %v2645
        %v2648 = vcombine.high %v271, %v271
        %v2650 = vunpack.c.l.s4 1983009808
        %v2651 = vunpack.c.0.s8 %v2650
        %v2652 = vlaneseq
        %v2653 = vshrl.u32 %v2652, 7
        %v2654 = vsub.s32 %v2651, %v2653
        %v2655 = vrot.slane %v271, %v2654
        %v2657 = vunpack.c.l.s4 1983009808
        %v2658 = vunpack.c.0.s8 %v2657
        %v2659 = vlaneseq
        %v2660 = vshrl.u32 %v2659, 7
        %v2661 = vsub.s32 %v2658, %v2660
        %v2662 = vrot.slane %v2648, %v2661
        %v2663 = vcombine.high %v2655, %v2655
        %v2664 = vcombine.high %v2662, %v2662
        %v2665 = vcombine.high %v272, %v272
        %v2667 = vunpack.c.l.s4 1983009808
        %v2668 = vunpack.c.0.s8 %v2667
        %v2669 = vlaneseq
        %v2670 = vshrl.u32 %v2669, 7
        %v2671 = vsub.s32 %v2668, %v2670
        %v2672 = vrot.slane %v272, %v2671
        %v2674 = vunpack.c.l.s4 1983009808
        %v2675 = vunpack.c.0.s8 %v2674
        %v2676 = vlaneseq
        %v2677 = vshrl.u32 %v2676, 7
        %v2678 = vsub.s32 %v2675, %v2677
        %v2679 = vrot.slane %v2665, %v2678
        %v2680 = vcombine.high %v2672, %v2672
        %v2681 = vcombine.high %v2679, %v2679
        %v2682 = vcombine.high %v273, %v273
        %v2684 = vunpack.c.l.s4 1983009808
        %v2685 = vunpack.c.0.s8 %v2684
        %v2686 = vlaneseq
        %v2687 = vshrl.u32 %v2686, 7
        %v2688 = vsub.s32 %v2685, %v2687
        %v2689 = vrot.slane %v273, %v2688
        %v2691 = vunpack.c.l.s4 1983009808
        %v2692 = vunpack.c.0.s8 %v2691
        %v2693 = vlaneseq
        %v2694 = vshrl.u32 %v2693, 7
        %v2695 = vsub.s32 %v2692, %v2694
        %v2696 = vrot.slane %v2682, %v2695
        %v2697 = vcombine.high %v2689, %v2689
        %v2698 = vcombine.high %v2696, %v2696
        %v2699 = vcombine.high %v274, %v274
        %v2701 = vunpack.c.l.s4 1983009808
        %v2702 = vunpack.c.0.s8 %v2701
        %v2703 = vlaneseq
        %v2704 = vshrl.u32 %v2703, 7
        %v2705 = vsub.s32 %v2702, %v2704
        %v2706 = vrot.slane %v274, %v2705
        %v2708 = vunpack.c.l.s4 1983009808
        %v2709 = vunpack.c.0.s8 %v2708
        %v2710 = vlaneseq
        %v2711 = vshrl.u32 %v2710, 7
        %v2712 = vsub.s32 %v2709, %v2711
        %v2713 = vrot.slane %v2699, %v2712
        %v2714 = vcombine.high %v2706, %v2706
        %v2715 = vcombine.high %v2713, %v2713
        %v2716 = vcombine.high %v275, %v275
        %v2718 = vunpack.c.l.s4 1983009808
        %v2719 = vunpack.c.0.s8 %v2718
        %v2720 = vlaneseq
        %v2721 = vshrl.u32 %v2720, 7
        %v2722 = vsub.s32 %v2719, %v2721
        %v2723 = vrot.slane %v275, %v2722
        %v2725 = vunpack.c.l.s4 1983009808
        %v2726 = vunpack.c.0.s8 %v2725
        %v2727 = vlaneseq
        %v2728 = vshrl.u32 %v2727, 7
        %v2729 = vsub.s32 %v2726, %v2728
        %v2730 = vrot.slane %v2716, %v2729
        %v2731 = vcombine.high %v2723, %v2723
        %v2732 = vcombine.high %v2730, %v2730
        %v2733 = vcombine.high %v276, %v276
        %v2735 = vunpack.c.l.s4 1983009808
        %v2736 = vunpack.c.0.s8 %v2735
        %v2737 = vlaneseq
        %v2738 = vshrl.u32 %v2737, 7
        %v2739 = vsub.s32 %v2736, %v2738
        %v2740 = vrot.slane %v276, %v2739
        %v2742 = vunpack.c.l.s4 1983009808
        %v2743 = vunpack.c.0.s8 %v2742
        %v2744 = vlaneseq
        %v2745 = vshrl.u32 %v2744, 7
        %v2746 = vsub.s32 %v2743, %v2745
        %v2747 = vrot.slane %v2733, %v2746
        %v2748 = vcombine.high %v2740, %v2740
        %v2749 = vcombine.high %v2747, %v2747
        %v2750 = vcombine.high %v277, %v277
        %v2752 = vunpack.c.l.s4 1983009808
        %v2753 = vunpack.c.0.s8 %v2752
        %v2754 = vlaneseq
        %v2755 = vshrl.u32 %v2754, 7
        %v2756 = vsub.s32 %v2753, %v2755
        %v2757 = vrot.slane %v277, %v2756
        %v2759 = vunpack.c.l.s4 1983009808
        %v2760 = vunpack.c.0.s8 %v2759
        %v2761 = vlaneseq
        %v2762 = vshrl.u32 %v2761, 7
        %v2763 = vsub.s32 %v2760, %v2762
        %v2764 = vrot.slane %v2750, %v2763
        %v2765 = vcombine.high %v2757, %v2757
        %v2766 = vcombine.high %v2764, %v2764
        %v2767 = vcombine.high %v278, %v278
        %v2769 = vunpack.c.l.s4 1983009808
        %v2770 = vunpack.c.0.s8 %v2769
        %v2771 = vlaneseq
        %v2772 = vshrl.u32 %v2771, 7
        %v2773 = vsub.s32 %v2770, %v2772
        %v2774 = vrot.slane %v278, %v2773
        %v2776 = vunpack.c.l.s4 1983009808
        %v2777 = vunpack.c.0.s8 %v2776
        %v2778 = vlaneseq
        %v2779 = vshrl.u32 %v2778, 7
        %v2780 = vsub.s32 %v2777, %v2779
        %v2781 = vrot.slane %v2767, %v2780
        %v2782 = vcombine.high %v2774, %v2774
        %v2783 = vcombine.high %v2781, %v2781
        %v2784 = vcombine.high %v279, %v279
        %v2786 = vunpack.c.l.s4 1983009808
        %v2787 = vunpack.c.0.s8 %v2786
        %v2788 = vlaneseq
        %v2789 = vshrl.u32 %v2788, 7
        %v2790 = vsub.s32 %v2787, %v2789
        %v2791 = vrot.slane %v279, %v2790
        %v2793 = vunpack.c.l.s4 1983009808
        %v2794 = vunpack.c.0.s8 %v2793
        %v2795 = vlaneseq
        %v2796 = vshrl.u32 %v2795, 7
        %v2797 = vsub.s32 %v2794, %v2796
        %v2798 = vrot.slane %v2784, %v2797
        %v2799 = vcombine.high %v2791, %v2791
        %v2800 = vcombine.high %v2798, %v2798
        %2849 = vmatprep.subr.mxu0 %v327
        %2850 = vmatpush1.msra.mxu0 %v326
        %2851 = vmatprep.subr.mxu0 %v324
        %2852 = vmatpush1.msra.mxu0 %v323
        %2853 = vmatprep.subr.mxu0 %v321
        %2854 = vmatpush1.msra.mxu0 %v320
        %2855 = vmatprep.subr.mxu0 %v318
        %2856 = vmatpush1.msra.mxu0 %v317
        %2857 = vmatprep.subr.mxu0 %v315
        %2858 = vmatpush1.msra.mxu0 %v314
        %2859 = vmatprep.subr.mxu0 %v312
        %2860 = vmatpush1.msra.mxu0 %v311
        %2861 = vmatprep.subr.mxu0 %v309
        %2862 = vmatpush1.msra.mxu0 %v308
        %2863 = vmatprep.subr.mxu0 %v306
        %2864 = vmatpush1.msra.mxu0 %v305
        %2865 = vmatprep.subr.mxu0 %v303
        %2866 = vmatpush1.msra.mxu0 %v302
        %2867 = vmatprep.subr.mxu0 %v300
        %2868 = vmatpush1.msra.mxu0 %v299
        %2869 = vmatprep.subr.mxu0 %v297
        %2870 = vmatpush1.msra.mxu0 %v296
        %2871 = vmatprep.subr.mxu0 %v294
        %2872 = vmatpush1.msra.mxu0 %v293
        %2873 = vmatprep.subr.mxu0 %v291
        %2874 = vmatpush1.msra.mxu0 %v290
        %2875 = vmatprep.subr.mxu0 %v288
        %2876 = vmatpush1.msra.mxu0 %v287
        %2877 = vmatprep.subr.mxu0 %v285
        %2878 = vmatpush1.msra.mxu0 %v284
        %2879 = vmatprep.subr.mxu0 %v282
        %2880 = vmatpush1.msra.mxu0 %v281
        %2881 = vmatprep.subr.mxu0 %v375
        %2882 = vmatpush2.msra.mxu0 %v374
        %2883 = vmatprep.subr.mxu0 %v372
        %2884 = vmatpush2.msra.mxu0 %v371
        %2885 = vmatprep.subr.mxu0 %v369
        %2886 = vmatpush2.msra.mxu0 %v368
        %2887 = vmatprep.subr.mxu0 %v366
        %2888 = vmatpush2.msra.mxu0 %v365
        %2889 = vmatprep.subr.mxu0 %v363
        %2890 = vmatpush2.msra.mxu0 %v362
        %2891 = vmatprep.subr.mxu0 %v360
        %2892 = vmatpush2.msra.mxu0 %v359
        %2893 = vmatprep.subr.mxu0 %v357
        %2894 = vmatpush2.msra.mxu0 %v356
        %2895 = vmatprep.subr.mxu0 %v354
        %2896 = vmatpush2.msra.mxu0 %v353
        %2897 = vmatprep.subr.mxu0 %v351
        %2898 = vmatpush2.msra.mxu0 %v350
        %2899 = vmatprep.subr.mxu0 %v348
        %2900 = vmatpush2.msra.mxu0 %v347
        %2901 = vmatprep.subr.mxu0 %v345
        %2902 = vmatpush2.msra.mxu0 %v344
        %2903 = vmatprep.subr.mxu0 %v342
        %2904 = vmatpush2.msra.mxu0 %v341
        %2905 = vmatprep.subr.mxu0 %v339
        %2906 = vmatpush2.msra.mxu0 %v338
        %2907 = vmatprep.subr.mxu0 %v336
        %2908 = vmatpush2.msra.mxu0 %v335
        %2909 = vmatprep.subr.mxu0 %v333
        %2910 = vmatpush2.msra.mxu0 %v332
        %2911 = vmatprep.subr.mxu0 %v330
        %2912 = vmatpush2.msra.mxu0 %v329
        %2913 = vmatprep.mubr.f32.mxu0 %v2612
        %2914 = vmatmul.mubr.f32.gmra.mxu0 %v2604
        %v2915 = vpop.f32.mrf.mxu0
        %v2916 = vadd.f32 0.0, %v2915
        %v2917 = vpop.f32.mrf.mxu0
        %v2918 = vadd.f32 0.0, %v2917
        %2919 = vdwg.mxu0
        %2920 = vmatprep.subr.mxu0 %v423
        %2921 = vmatpush1.msra.mxu0 %v422
        %2922 = vmatprep.subr.mxu0 %v420
        %2923 = vmatpush1.msra.mxu0 %v419
        %2924 = vmatprep.subr.mxu0 %v417
        %2925 = vmatpush1.msra.mxu0 %v416
        %2926 = vmatprep.subr.mxu0 %v414
        %2927 = vmatpush1.msra.mxu0 %v413
        %2928 = vmatprep.subr.mxu0 %v411
        %2929 = vmatpush1.msra.mxu0 %v410
        %2930 = vmatprep.subr.mxu0 %v408
        %2931 = vmatpush1.msra.mxu0 %v407
        %2932 = vmatprep.subr.mxu0 %v405
        %2933 = vmatpush1.msra.mxu0 %v404
        %2934 = vmatprep.subr.mxu0 %v402
        %2935 = vmatpush1.msra.mxu0 %v401
        %2936 = vmatprep.subr.mxu0 %v399
        %2937 = vmatpush1.msra.mxu0 %v398
        %2938 = vmatprep.subr.mxu0 %v396
        %2939 = vmatpush1.msra.mxu0 %v395
        %2940 = vmatprep.subr.mxu0 %v393
        %2941 = vmatpush1.msra.mxu0 %v392
        %2942 = vmatprep.subr.mxu0 %v390
        %2943 = vmatpush1.msra.mxu0 %v389
        %2944 = vmatprep.subr.mxu0 %v387
        %2945 = vmatpush1.msra.mxu0 %v386
        %2946 = vmatprep.subr.mxu0 %v384
        %2947 = vmatpush1.msra.mxu0 %v383
        %2948 = vmatprep.subr.mxu0 %v381
        %2949 = vmatpush1.msra.mxu0 %v380
        %2950 = vmatprep.subr.mxu0 %v378
        %2951 = vmatpush1.msra.mxu0 %v377
        %2952 = vmatprep.subr.mxu0 %v471
        %2953 = vmatpush2.msra.mxu0 %v470
        %2954 = vmatprep.subr.mxu0 %v468
        %2955 = vmatpush2.msra.mxu0 %v467
        %2956 = vmatprep.subr.mxu0 %v465
        %2957 = vmatpush2.msra.mxu0 %v464
        %2958 = vmatprep.subr.mxu0 %v462
        %2959 = vmatpush2.msra.mxu0 %v461
        %2960 = vmatprep.subr.mxu0 %v459
        %2961 = vmatpush2.msra.mxu0 %v458
        %2962 = vmatprep.subr.mxu0 %v456
        %2963 = vmatpush2.msra.mxu0 %v455
        %2964 = vmatprep.subr.mxu0 %v453
        %2965 = vmatpush2.msra.mxu0 %v452
        %2966 = vmatprep.subr.mxu0 %v450
        %2967 = vmatpush2.msra.mxu0 %v449
        %2968 = vmatprep.subr.mxu0 %v447
        %2969 = vmatpush2.msra.mxu0 %v446
        %2970 = vmatprep.subr.mxu0 %v444
        %2971 = vmatpush2.msra.mxu0 %v443
        %2972 = vmatprep.subr.mxu0 %v441
        %2973 = vmatpush2.msra.mxu0 %v440
        %2974 = vmatprep.subr.mxu0 %v438
        %2975 = vmatpush2.msra.mxu0 %v437
        %2976 = vmatprep.subr.mxu0 %v435
        %2977 = vmatpush2.msra.mxu0 %v434
        %2978 = vmatprep.subr.mxu0 %v432
        %2979 = vmatpush2.msra.mxu0 %v431
        %2980 = vmatprep.subr.mxu0 %v429
        %2981 = vmatpush2.msra.mxu0 %v428
        %2982 = vmatprep.subr.mxu0 %v426
        %2983 = vmatpush2.msra.mxu0 %v425
        %2984 = vmatprep.mubr.f32.mxu0 %v2613
        %2985 = vmatmul.mubr.f32.gmra.mxu0 %v2611
        %v2986 = vpop.f32.mrf.mxu0
        %v2987 = vadd.f32 %v2916, %v2986
        %v2988 = vpop.f32.mrf.mxu0
        %v2989 = vadd.f32 %v2918, %v2988
        %2990 = vdwg.mxu0
        %2991 = vmatprep.subr.mxu0 %v519
        %2992 = vmatpush1.msra.mxu0 %v518
        %2993 = vmatprep.subr.mxu0 %v516
        %2994 = vmatpush1.msra.mxu0 %v515
        %2995 = vmatprep.subr.mxu0 %v513
        %2996 = vmatpush1.msra.mxu0 %v512
        %2997 = vmatprep.subr.mxu0 %v510
        %2998 = vmatpush1.msra.mxu0 %v509
        %2999 = vmatprep.subr.mxu0 %v507
        %3000 = vmatpush1.msra.mxu0 %v506
        %3001 = vmatprep.subr.mxu0 %v504
        %3002 = vmatpush1.msra.mxu0 %v503
        %3003 = vmatprep.subr.mxu0 %v501
        %3004 = vmatpush1.msra.mxu0 %v500
        %3005 = vmatprep.subr.mxu0 %v498
        %3006 = vmatpush1.msra.mxu0 %v497
        %3007 = vmatprep.subr.mxu0 %v495
        %3008 = vmatpush1.msra.mxu0 %v494
        %3009 = vmatprep.subr.mxu0 %v492
        %3010 = vmatpush1.msra.mxu0 %v491
        %3011 = vmatprep.subr.mxu0 %v489
        %3012 = vmatpush1.msra.mxu0 %v488
        %3013 = vmatprep.subr.mxu0 %v486
        %3014 = vmatpush1.msra.mxu0 %v485
        %3015 = vmatprep.subr.mxu0 %v483
        %3016 = vmatpush1.msra.mxu0 %v482
        %3017 = vmatprep.subr.mxu0 %v480
        %3018 = vmatpush1.msra.mxu0 %v479
        %3019 = vmatprep.subr.mxu0 %v477
        %3020 = vmatpush1.msra.mxu0 %v476
        %3021 = vmatprep.subr.mxu0 %v474
        %3022 = vmatpush1.msra.mxu0 %v473
        %3023 = vmatprep.subr.mxu0 %v567
        %3024 = vmatpush2.msra.mxu0 %v566
        %3025 = vmatprep.subr.mxu0 %v564
        %3026 = vmatpush2.msra.mxu0 %v563
        %3027 = vmatprep.subr.mxu0 %v561
        %3028 = vmatpush2.msra.mxu0 %v560
        %3029 = vmatprep.subr.mxu0 %v558
        %3030 = vmatpush2.msra.mxu0 %v557
        %3031 = vmatprep.subr.mxu0 %v555
        %3032 = vmatpush2.msra.mxu0 %v554
        %3033 = vmatprep.subr.mxu0 %v552
        %3034 = vmatpush2.msra.mxu0 %v551
        %3035 = vmatprep.subr.mxu0 %v549
        %3036 = vmatpush2.msra.mxu0 %v548
        %3037 = vmatprep.subr.mxu0 %v546
        %3038 = vmatpush2.msra.mxu0 %v545
        %3039 = vmatprep.subr.mxu0 %v543
        %3040 = vmatpush2.msra.mxu0 %v542
        %3041 = vmatprep.subr.mxu0 %v540
        %3042 = vmatpush2.msra.mxu0 %v539
        %3043 = vmatprep.subr.mxu0 %v537
        %3044 = vmatpush2.msra.mxu0 %v536
        %3045 = vmatprep.subr.mxu0 %v534
        %3046 = vmatpush2.msra.mxu0 %v533
        %3047 = vmatprep.subr.mxu0 %v531
        %3048 = vmatpush2.msra.mxu0 %v530
        %3049 = vmatprep.subr.mxu0 %v528
        %3050 = vmatpush2.msra.mxu0 %v527
        %3051 = vmatprep.subr.mxu0 %v525
        %3052 = vmatpush2.msra.mxu0 %v524
        %3053 = vmatprep.subr.mxu0 %v522
        %3054 = vmatpush2.msra.mxu0 %v521
        %3055 = vmatprep.mubr.f32.mxu0 %v2629
        %3056 = vmatmul.mubr.f32.gmra.mxu0 %v2621
        %v3057 = vpop.f32.mrf.mxu0
        %v3058 = vadd.f32 %v2987, %v3057
        %v3059 = vpop.f32.mrf.mxu0
        %v3060 = vadd.f32 %v2989, %v3059
        %3061 = vdwg.mxu0
        %3062 = vmatprep.subr.mxu0 %v615
        %3063 = vmatpush1.msra.mxu0 %v614
        %3064 = vmatprep.subr.mxu0 %v612
        %3065 = vmatpush1.msra.mxu0 %v611
        %3066 = vmatprep.subr.mxu0 %v609
        %3067 = vmatpush1.msra.mxu0 %v608
        %3068 = vmatprep.subr.mxu0 %v606
        %3069 = vmatpush1.msra.mxu0 %v605
        %3070 = vmatprep.subr.mxu0 %v603
        %3071 = vmatpush1.msra.mxu0 %v602
        %3072 = vmatprep.subr.mxu0 %v600
        %3073 = vmatpush1.msra.mxu0 %v599
        %3074 = vmatprep.subr.mxu0 %v597
        %3075 = vmatpush1.msra.mxu0 %v596
        %3076 = vmatprep.subr.mxu0 %v594
        %3077 = vmatpush1.msra.mxu0 %v593
        %3078 = vmatprep.subr.mxu0 %v591
        %3079 = vmatpush1.msra.mxu0 %v590
        %3080 = vmatprep.subr.mxu0 %v588
        %3081 = vmatpush1.msra.mxu0 %v587
        %3082 = vmatprep.subr.mxu0 %v585
        %3083 = vmatpush1.msra.mxu0 %v584
        %3084 = vmatprep.subr.mxu0 %v582
        %3085 = vmatpush1.msra.mxu0 %v581
        %3086 = vmatprep.subr.mxu0 %v579
        %3087 = vmatpush1.msra.mxu0 %v578
        %3088 = vmatprep.subr.mxu0 %v576
        %3089 = vmatpush1.msra.mxu0 %v575
        %3090 = vmatprep.subr.mxu0 %v573
        %3091 = vmatpush1.msra.mxu0 %v572
        %3092 = vmatprep.subr.mxu0 %v570
        %3093 = vmatpush1.msra.mxu0 %v569
        %3094 = vmatprep.subr.mxu0 %v663
        %3095 = vmatpush2.msra.mxu0 %v662
        %3096 = vmatprep.subr.mxu0 %v660
        %3097 = vmatpush2.msra.mxu0 %v659
        %3098 = vmatprep.subr.mxu0 %v657
        %3099 = vmatpush2.msra.mxu0 %v656
        %3100 = vmatprep.subr.mxu0 %v654
        %3101 = vmatpush2.msra.mxu0 %v653
        %3102 = vmatprep.subr.mxu0 %v651
        %3103 = vmatpush2.msra.mxu0 %v650
        %3104 = vmatprep.subr.mxu0 %v648
        %3105 = vmatpush2.msra.mxu0 %v647
        %3106 = vmatprep.subr.mxu0 %v645
        %3107 = vmatpush2.msra.mxu0 %v644
        %3108 = vmatprep.subr.mxu0 %v642
        %3109 = vmatpush2.msra.mxu0 %v641
        %3110 = vmatprep.subr.mxu0 %v639
        %3111 = vmatpush2.msra.mxu0 %v638
        %3112 = vmatprep.subr.mxu0 %v636
        %3113 = vmatpush2.msra.mxu0 %v635
        %3114 = vmatprep.subr.mxu0 %v633
        %3115 = vmatpush2.msra.mxu0 %v632
        %3116 = vmatprep.subr.mxu0 %v630
        %3117 = vmatpush2.msra.mxu0 %v629
        %3118 = vmatprep.subr.mxu0 %v627
        %3119 = vmatpush2.msra.mxu0 %v626
        %3120 = vmatprep.subr.mxu0 %v624
        %3121 = vmatpush2.msra.mxu0 %v623
        %3122 = vmatprep.subr.mxu0 %v621
        %3123 = vmatpush2.msra.mxu0 %v620
        %3124 = vmatprep.subr.mxu0 %v618
        %3125 = vmatpush2.msra.mxu0 %v617
        %3126 = vmatprep.mubr.f32.mxu0 %v2630
        %3127 = vmatmul.mubr.f32.gmra.mxu0 %v2628
        %v3128 = vpop.f32.mrf.mxu0
        %v3129 = vadd.f32 %v3058, %v3128
        %v3130 = vpop.f32.mrf.mxu0
        %v3131 = vadd.f32 %v3060, %v3130
        %3132 = vdwg.mxu0
        %3133 = vmatprep.subr.mxu0 %v711
        %3134 = vmatpush1.msra.mxu0 %v710
        %3135 = vmatprep.subr.mxu0 %v708
        %3136 = vmatpush1.msra.mxu0 %v707
        %3137 = vmatprep.subr.mxu0 %v705
        %3138 = vmatpush1.msra.mxu0 %v704
        %3139 = vmatprep.subr.mxu0 %v702
        %3140 = vmatpush1.msra.mxu0 %v701
        %3141 = vmatprep.subr.mxu0 %v699
        %3142 = vmatpush1.msra.mxu0 %v698
        %3143 = vmatprep.subr.mxu0 %v696
        %3144 = vmatpush1.msra.mxu0 %v695
        %3145 = vmatprep.subr.mxu0 %v693
        %3146 = vmatpush1.msra.mxu0 %v692
        %3147 = vmatprep.subr.mxu0 %v690
        %3148 = vmatpush1.msra.mxu0 %v689
        %3149 = vmatprep.subr.mxu0 %v687
        %3150 = vmatpush1.msra.mxu0 %v686
        %3151 = vmatprep.subr.mxu0 %v684
        %3152 = vmatpush1.msra.mxu0 %v683
        %3153 = vmatprep.subr.mxu0 %v681
        %3154 = vmatpush1.msra.mxu0 %v680
        %3155 = vmatprep.subr.mxu0 %v678
        %3156 = vmatpush1.msra.mxu0 %v677
        %3157 = vmatprep.subr.mxu0 %v675
        %3158 = vmatpush1.msra.mxu0 %v674
        %3159 = vmatprep.subr.mxu0 %v672
        %3160 = vmatpush1.msra.mxu0 %v671
        %3161 = vmatprep.subr.mxu0 %v669
        %3162 = vmatpush1.msra.mxu0 %v668
        %3163 = vmatprep.subr.mxu0 %v666
        %3164 = vmatpush1.msra.mxu0 %v665
        %3165 = vmatprep.subr.mxu0 %v759
        %3166 = vmatpush2.msra.mxu0 %v758
        %3167 = vmatprep.subr.mxu0 %v756
        %3168 = vmatpush2.msra.mxu0 %v755
        %3169 = vmatprep.subr.mxu0 %v753
        %3170 = vmatpush2.msra.mxu0 %v752
        %3171 = vmatprep.subr.mxu0 %v750
        %3172 = vmatpush2.msra.mxu0 %v749
        %3173 = vmatprep.subr.mxu0 %v747
        %3174 = vmatpush2.msra.mxu0 %v746
        %3175 = vmatprep.subr.mxu0 %v744
        %3176 = vmatpush2.msra.mxu0 %v743
        %3177 = vmatprep.subr.mxu0 %v741
        %3178 = vmatpush2.msra.mxu0 %v740
        %3179 = vmatprep.subr.mxu0 %v738
        %3180 = vmatpush2.msra.mxu0 %v737
        %3181 = vmatprep.subr.mxu0 %v735
        %3182 = vmatpush2.msra.mxu0 %v734
        %3183 = vmatprep.subr.mxu0 %v732
        %3184 = vmatpush2.msra.mxu0 %v731
        %3185 = vmatprep.subr.mxu0 %v729
        %3186 = vmatpush2.msra.mxu0 %v728
        %3187 = vmatprep.subr.mxu0 %v726
        %3188 = vmatpush2.msra.mxu0 %v725
        %3189 = vmatprep.subr.mxu0 %v723
        %3190 = vmatpush2.msra.mxu0 %v722
        %3191 = vmatprep.subr.mxu0 %v720
        %3192 = vmatpush2.msra.mxu0 %v719
        %3193 = vmatprep.subr.mxu0 %v717
        %3194 = vmatpush2.msra.mxu0 %v716
        %3195 = vmatprep.subr.mxu0 %v714
        %3196 = vmatpush2.msra.mxu0 %v713
        %3197 = vmatprep.mubr.f32.mxu0 %v2646
        %3198 = vmatmul.mubr.f32.gmra.mxu0 %v2638
        %v3199 = vpop.f32.mrf.mxu0
        %v3200 = vadd.f32 %v3129, %v3199
        %v3201 = vpop.f32.mrf.mxu0
        %v3202 = vadd.f32 %v3131, %v3201
        %3203 = vdwg.mxu0
        %3204 = vmatprep.subr.mxu0 %v807
        %3205 = vmatpush1.msra.mxu0 %v806
        %3206 = vmatprep.subr.mxu0 %v804
        %3207 = vmatpush1.msra.mxu0 %v803
        %3208 = vmatprep.subr.mxu0 %v801
        %3209 = vmatpush1.msra.mxu0 %v800
        %3210 = vmatprep.subr.mxu0 %v798
        %3211 = vmatpush1.msra.mxu0 %v797
        %3212 = vmatprep.subr.mxu0 %v795
        %3213 = vmatpush1.msra.mxu0 %v794
        %3214 = vmatprep.subr.mxu0 %v792
        %3215 = vmatpush1.msra.mxu0 %v791
        %3216 = vmatprep.subr.mxu0 %v789
        %3217 = vmatpush1.msra.mxu0 %v788
        %3218 = vmatprep.subr.mxu0 %v786
        %3219 = vmatpush1.msra.mxu0 %v785
        %3220 = vmatprep.subr.mxu0 %v783
        %3221 = vmatpush1.msra.mxu0 %v782
        %3222 = vmatprep.subr.mxu0 %v780
        %3223 = vmatpush1.msra.mxu0 %v779
        %3224 = vmatprep.subr.mxu0 %v777
        %3225 = vmatpush1.msra.mxu0 %v776
        %3226 = vmatprep.subr.mxu0 %v774
        %3227 = vmatpush1.msra.mxu0 %v773
        %3228 = vmatprep.subr.mxu0 %v771
        %3229 = vmatpush1.msra.mxu0 %v770
        %3230 = vmatprep.subr.mxu0 %v768
        %3231 = vmatpush1.msra.mxu0 %v767
        %3232 = vmatprep.subr.mxu0 %v765
        %3233 = vmatpush1.msra.mxu0 %v764
        %3234 = vmatprep.subr.mxu0 %v762
        %3235 = vmatpush1.msra.mxu0 %v761
        %3236 = vmatprep.subr.mxu0 %v855
        %3237 = vmatpush2.msra.mxu0 %v854
        %3238 = vmatprep.subr.mxu0 %v852
        %3239 = vmatpush2.msra.mxu0 %v851
        %3240 = vmatprep.subr.mxu0 %v849
        %3241 = vmatpush2.msra.mxu0 %v848
        %3242 = vmatprep.subr.mxu0 %v846
        %3243 = vmatpush2.msra.mxu0 %v845
        %3244 = vmatprep.subr.mxu0 %v843
        %3245 = vmatpush2.msra.mxu0 %v842
        %3246 = vmatprep.subr.mxu0 %v840
        %3247 = vmatpush2.msra.mxu0 %v839
        %3248 = vmatprep.subr.mxu0 %v837
        %3249 = vmatpush2.msra.mxu0 %v836
        %3250 = vmatprep.subr.mxu0 %v834
        %3251 = vmatpush2.msra.mxu0 %v833
        %3252 = vmatprep.subr.mxu0 %v831
        %3253 = vmatpush2.msra.mxu0 %v830
        %3254 = vmatprep.subr.mxu0 %v828
        %3255 = vmatpush2.msra.mxu0 %v827
        %3256 = vmatprep.subr.mxu0 %v825
        %3257 = vmatpush2.msra.mxu0 %v824
        %3258 = vmatprep.subr.mxu0 %v822
        %3259 = vmatpush2.msra.mxu0 %v821
        %3260 = vmatprep.subr.mxu0 %v819
        %3261 = vmatpush2.msra.mxu0 %v818
        %3262 = vmatprep.subr.mxu0 %v816
        %3263 = vmatpush2.msra.mxu0 %v815
        %3264 = vmatprep.subr.mxu0 %v813
        %3265 = vmatpush2.msra.mxu0 %v812
        %3266 = vmatprep.subr.mxu0 %v810
        %3267 = vmatpush2.msra.mxu0 %v809
        %3268 = vmatprep.mubr.f32.mxu0 %v2647
        %3269 = vmatmul.mubr.f32.gmra.mxu0 %v2645
        %v3270 = vpop.f32.mrf.mxu0
        %v3271 = vadd.f32 %v3200, %v3270
        %v3272 = vpop.f32.mrf.mxu0
        %v3273 = vadd.f32 %v3202, %v3272
        %3274 = vdwg.mxu0
        %3275 = vmatprep.subr.mxu0 %v903
        %3276 = vmatpush1.msra.mxu0 %v902
        %3277 = vmatprep.subr.mxu0 %v900
        %3278 = vmatpush1.msra.mxu0 %v899
        %3279 = vmatprep.subr.mxu0 %v897
        %3280 = vmatpush1.msra.mxu0 %v896
        %3281 = vmatprep.subr.mxu0 %v894
        %3282 = vmatpush1.msra.mxu0 %v893
        %3283 = vmatprep.subr.mxu0 %v891
        %3284 = vmatpush1.msra.mxu0 %v890
        %3285 = vmatprep.subr.mxu0 %v888
        %3286 = vmatpush1.msra.mxu0 %v887
        %3287 = vmatprep.subr.mxu0 %v885
        %3288 = vmatpush1.msra.mxu0 %v884
        %3289 = vmatprep.subr.mxu0 %v882
        %3290 = vmatpush1.msra.mxu0 %v881
        %3291 = vmatprep.subr.mxu0 %v879
        %3292 = vmatpush1.msra.mxu0 %v878
        %3293 = vmatprep.subr.mxu0 %v876
        %3294 = vmatpush1.msra.mxu0 %v875
        %3295 = vmatprep.subr.mxu0 %v873
        %3296 = vmatpush1.msra.mxu0 %v872
        %3297 = vmatprep.subr.mxu0 %v870
        %3298 = vmatpush1.msra.mxu0 %v869
        %3299 = vmatprep.subr.mxu0 %v867
        %3300 = vmatpush1.msra.mxu0 %v866
        %3301 = vmatprep.subr.mxu0 %v864
        %3302 = vmatpush1.msra.mxu0 %v863
        %3303 = vmatprep.subr.mxu0 %v861
        %3304 = vmatpush1.msra.mxu0 %v860
        %3305 = vmatprep.subr.mxu0 %v858
        %3306 = vmatpush1.msra.mxu0 %v857
        %3307 = vmatprep.subr.mxu0 %v951
        %3308 = vmatpush2.msra.mxu0 %v950
        %3309 = vmatprep.subr.mxu0 %v948
        %3310 = vmatpush2.msra.mxu0 %v947
        %3311 = vmatprep.subr.mxu0 %v945
        %3312 = vmatpush2.msra.mxu0 %v944
        %3313 = vmatprep.subr.mxu0 %v942
        %3314 = vmatpush2.msra.mxu0 %v941
        %3315 = vmatprep.subr.mxu0 %v939
        %3316 = vmatpush2.msra.mxu0 %v938
        %3317 = vmatprep.subr.mxu0 %v936
        %3318 = vmatpush2.msra.mxu0 %v935
        %3319 = vmatprep.subr.mxu0 %v933
        %3320 = vmatpush2.msra.mxu0 %v932
        %3321 = vmatprep.subr.mxu0 %v930
        %3322 = vmatpush2.msra.mxu0 %v929
        %3323 = vmatprep.subr.mxu0 %v927
        %3324 = vmatpush2.msra.mxu0 %v926
        %3325 = vmatprep.subr.mxu0 %v924
        %3326 = vmatpush2.msra.mxu0 %v923
        %3327 = vmatprep.subr.mxu0 %v921
        %3328 = vmatpush2.msra.mxu0 %v920
        %3329 = vmatprep.subr.mxu0 %v918
        %3330 = vmatpush2.msra.mxu0 %v917
        %3331 = vmatprep.subr.mxu0 %v915
        %3332 = vmatpush2.msra.mxu0 %v914
        %3333 = vmatprep.subr.mxu0 %v912
        %3334 = vmatpush2.msra.mxu0 %v911
        %3335 = vmatprep.subr.mxu0 %v909
        %3336 = vmatpush2.msra.mxu0 %v908
        %3337 = vmatprep.subr.mxu0 %v906
        %3338 = vmatpush2.msra.mxu0 %v905
        %3339 = vmatprep.mubr.f32.mxu0 %v2663
        %3340 = vmatmul.mubr.f32.gmra.mxu0 %v2655
        %v3341 = vpop.f32.mrf.mxu0
        %v3342 = vadd.f32 %v3271, %v3341
        %v3343 = vpop.f32.mrf.mxu0
        %v3344 = vadd.f32 %v3273, %v3343
        %3345 = vdwg.mxu0
        %3346 = vmatprep.subr.mxu0 %v999
        %3347 = vmatpush1.msra.mxu0 %v998
        %3348 = vmatprep.subr.mxu0 %v996
        %3349 = vmatpush1.msra.mxu0 %v995
        %3350 = vmatprep.subr.mxu0 %v993
        %3351 = vmatpush1.msra.mxu0 %v992
        %3352 = vmatprep.subr.mxu0 %v990
        %3353 = vmatpush1.msra.mxu0 %v989
        %3354 = vmatprep.subr.mxu0 %v987
        %3355 = vmatpush1.msra.mxu0 %v986
        %3356 = vmatprep.subr.mxu0 %v984
        %3357 = vmatpush1.msra.mxu0 %v983
        %3358 = vmatprep.subr.mxu0 %v981
        %3359 = vmatpush1.msra.mxu0 %v980
        %3360 = vmatprep.subr.mxu0 %v978
        %3361 = vmatpush1.msra.mxu0 %v977
        %3362 = vmatprep.subr.mxu0 %v975
        %3363 = vmatpush1.msra.mxu0 %v974
        %3364 = vmatprep.subr.mxu0 %v972
        %3365 = vmatpush1.msra.mxu0 %v971
        %3366 = vmatprep.subr.mxu0 %v969
        %3367 = vmatpush1.msra.mxu0 %v968
        %3368 = vmatprep.subr.mxu0 %v966
        %3369 = vmatpush1.msra.mxu0 %v965
        %3370 = vmatprep.subr.mxu0 %v963
        %3371 = vmatpush1.msra.mxu0 %v962
        %3372 = vmatprep.subr.mxu0 %v960
        %3373 = vmatpush1.msra.mxu0 %v959
        %3374 = vmatprep.subr.mxu0 %v957
        %3375 = vmatpush1.msra.mxu0 %v956
        %3376 = vmatprep.subr.mxu0 %v954
        %3377 = vmatpush1.msra.mxu0 %v953
        %3378 = vmatprep.subr.mxu0 %v1047
        %3379 = vmatpush2.msra.mxu0 %v1046
        %3380 = vmatprep.subr.mxu0 %v1044
        %3381 = vmatpush2.msra.mxu0 %v1043
        %3382 = vmatprep.subr.mxu0 %v1041
        %3383 = vmatpush2.msra.mxu0 %v1040
        %3384 = vmatprep.subr.mxu0 %v1038
        %3385 = vmatpush2.msra.mxu0 %v1037
        %3386 = vmatprep.subr.mxu0 %v1035
        %3387 = vmatpush2.msra.mxu0 %v1034
        %3388 = vmatprep.subr.mxu0 %v1032
        %3389 = vmatpush2.msra.mxu0 %v1031
        %3390 = vmatprep.subr.mxu0 %v1029
        %3391 = vmatpush2.msra.mxu0 %v1028
        %3392 = vmatprep.subr.mxu0 %v1026
        %3393 = vmatpush2.msra.mxu0 %v1025
        %3394 = vmatprep.subr.mxu0 %v1023
        %3395 = vmatpush2.msra.mxu0 %v1022
        %3396 = vmatprep.subr.mxu0 %v1020
        %3397 = vmatpush2.msra.mxu0 %v1019
        %3398 = vmatprep.subr.mxu0 %v1017
        %3399 = vmatpush2.msra.mxu0 %v1016
        %3400 = vmatprep.subr.mxu0 %v1014
        %3401 = vmatpush2.msra.mxu0 %v1013
        %3402 = vmatprep.subr.mxu0 %v1011
        %3403 = vmatpush2.msra.mxu0 %v1010
        %3404 = vmatprep.subr.mxu0 %v1008
        %3405 = vmatpush2.msra.mxu0 %v1007
        %3406 = vmatprep.subr.mxu0 %v1005
        %3407 = vmatpush2.msra.mxu0 %v1004
        %3408 = vmatprep.subr.mxu0 %v1002
        %3409 = vmatpush2.msra.mxu0 %v1001
        %3410 = vmatprep.mubr.f32.mxu0 %v2664
        %3411 = vmatmul.mubr.f32.gmra.mxu0 %v2662
        %v3412 = vpop.f32.mrf.mxu0
        %v3413 = vadd.f32 %v3342, %v3412
        %v3414 = vpop.f32.mrf.mxu0
        %v3415 = vadd.f32 %v3344, %v3414
        %3416 = vdwg.mxu0
        %3417 = vmatprep.subr.mxu0 %v1095
        %3418 = vmatpush1.msra.mxu0 %v1094
        %3419 = vmatprep.subr.mxu0 %v1092
        %3420 = vmatpush1.msra.mxu0 %v1091
        %3421 = vmatprep.subr.mxu0 %v1089
        %3422 = vmatpush1.msra.mxu0 %v1088
        %3423 = vmatprep.subr.mxu0 %v1086
        %3424 = vmatpush1.msra.mxu0 %v1085
        %3425 = vmatprep.subr.mxu0 %v1083
        %3426 = vmatpush1.msra.mxu0 %v1082
        %3427 = vmatprep.subr.mxu0 %v1080
        %3428 = vmatpush1.msra.mxu0 %v1079
        %3429 = vmatprep.subr.mxu0 %v1077
        %3430 = vmatpush1.msra.mxu0 %v1076
        %3431 = vmatprep.subr.mxu0 %v1074
        %3432 = vmatpush1.msra.mxu0 %v1073
        %3433 = vmatprep.subr.mxu0 %v1071
        %3434 = vmatpush1.msra.mxu0 %v1070
        %3435 = vmatprep.subr.mxu0 %v1068
        %3436 = vmatpush1.msra.mxu0 %v1067
        %3437 = vmatprep.subr.mxu0 %v1065
        %3438 = vmatpush1.msra.mxu0 %v1064
        %3439 = vmatprep.subr.mxu0 %v1062
        %3440 = vmatpush1.msra.mxu0 %v1061
        %3441 = vmatprep.subr.mxu0 %v1059
        %3442 = vmatpush1.msra.mxu0 %v1058
        %3443 = vmatprep.subr.mxu0 %v1056
        %3444 = vmatpush1.msra.mxu0 %v1055
        %3445 = vmatprep.subr.mxu0 %v1053
        %3446 = vmatpush1.msra.mxu0 %v1052
        %3447 = vmatprep.subr.mxu0 %v1050
        %3448 = vmatpush1.msra.mxu0 %v1049
        %3449 = vmatprep.subr.mxu0 %v1143
        %3450 = vmatpush2.msra.mxu0 %v1142
        %3451 = vmatprep.subr.mxu0 %v1140
        %3452 = vmatpush2.msra.mxu0 %v1139
        %3453 = vmatprep.subr.mxu0 %v1137
        %3454 = vmatpush2.msra.mxu0 %v1136
        %3455 = vmatprep.subr.mxu0 %v1134
        %3456 = vmatpush2.msra.mxu0 %v1133
        %3457 = vmatprep.subr.mxu0 %v1131
        %3458 = vmatpush2.msra.mxu0 %v1130
        %3459 = vmatprep.subr.mxu0 %v1128
        %3460 = vmatpush2.msra.mxu0 %v1127
        %3461 = vmatprep.subr.mxu0 %v1125
        %3462 = vmatpush2.msra.mxu0 %v1124
        %3463 = vmatprep.subr.mxu0 %v1122
        %3464 = vmatpush2.msra.mxu0 %v1121
        %3465 = vmatprep.subr.mxu0 %v1119
        %3466 = vmatpush2.msra.mxu0 %v1118
        %3467 = vmatprep.subr.mxu0 %v1116
        %3468 = vmatpush2.msra.mxu0 %v1115
        %3469 = vmatprep.subr.mxu0 %v1113
        %3470 = vmatpush2.msra.mxu0 %v1112
        %3471 = vmatprep.subr.mxu0 %v1110
        %3472 = vmatpush2.msra.mxu0 %v1109
        %3473 = vmatprep.subr.mxu0 %v1107
        %3474 = vmatpush2.msra.mxu0 %v1106
        %3475 = vmatprep.subr.mxu0 %v1104
        %3476 = vmatpush2.msra.mxu0 %v1103
        %3477 = vmatprep.subr.mxu0 %v1101
        %3478 = vmatpush2.msra.mxu0 %v1100
        %3479 = vmatprep.subr.mxu0 %v1098
        %3480 = vmatpush2.msra.mxu0 %v1097
        %3481 = vmatprep.mubr.f32.mxu0 %v2680
        %3482 = vmatmul.mubr.f32.gmra.mxu0 %v2672
        %v3483 = vpop.f32.mrf.mxu0
        %v3484 = vadd.f32 %v3413, %v3483
        %v3485 = vpop.f32.mrf.mxu0
        %v3486 = vadd.f32 %v3415, %v3485
        %3487 = vdwg.mxu0
        %3488 = vmatprep.subr.mxu0 %v1191
        %3489 = vmatpush1.msra.mxu0 %v1190
        %3490 = vmatprep.subr.mxu0 %v1188
        %3491 = vmatpush1.msra.mxu0 %v1187
        %3492 = vmatprep.subr.mxu0 %v1185
        %3493 = vmatpush1.msra.mxu0 %v1184
        %3494 = vmatprep.subr.mxu0 %v1182
        %3495 = vmatpush1.msra.mxu0 %v1181
        %3496 = vmatprep.subr.mxu0 %v1179
        %3497 = vmatpush1.msra.mxu0 %v1178
        %3498 = vmatprep.subr.mxu0 %v1176
        %3499 = vmatpush1.msra.mxu0 %v1175
        %3500 = vmatprep.subr.mxu0 %v1173
        %3501 = vmatpush1.msra.mxu0 %v1172
        %3502 = vmatprep.subr.mxu0 %v1170
        %3503 = vmatpush1.msra.mxu0 %v1169
        %3504 = vmatprep.subr.mxu0 %v1167
        %3505 = vmatpush1.msra.mxu0 %v1166
        %3506 = vmatprep.subr.mxu0 %v1164
        %3507 = vmatpush1.msra.mxu0 %v1163
        %3508 = vmatprep.subr.mxu0 %v1161
        %3509 = vmatpush1.msra.mxu0 %v1160
        %3510 = vmatprep.subr.mxu0 %v1158
        %3511 = vmatpush1.msra.mxu0 %v1157
        %3512 = vmatprep.subr.mxu0 %v1155
        %3513 = vmatpush1.msra.mxu0 %v1154
        %3514 = vmatprep.subr.mxu0 %v1152
        %3515 = vmatpush1.msra.mxu0 %v1151
        %3516 = vmatprep.subr.mxu0 %v1149
        %3517 = vmatpush1.msra.mxu0 %v1148
        %3518 = vmatprep.subr.mxu0 %v1146
        %3519 = vmatpush1.msra.mxu0 %v1145
        %3520 = vmatprep.subr.mxu0 %v1239
        %3521 = vmatpush2.msra.mxu0 %v1238
        %3522 = vmatprep.subr.mxu0 %v1236
        %3523 = vmatpush2.msra.mxu0 %v1235
        %3524 = vmatprep.subr.mxu0 %v1233
        %3525 = vmatpush2.msra.mxu0 %v1232
        %3526 = vmatprep.subr.mxu0 %v1230
        %3527 = vmatpush2.msra.mxu0 %v1229
        %3528 = vmatprep.subr.mxu0 %v1227
        %3529 = vmatpush2.msra.mxu0 %v1226
        %3530 = vmatprep.subr.mxu0 %v1224
        %3531 = vmatpush2.msra.mxu0 %v1223
        %3532 = vmatprep.subr.mxu0 %v1221
        %3533 = vmatpush2.msra.mxu0 %v1220
        %3534 = vmatprep.subr.mxu0 %v1218
        %3535 = vmatpush2.msra.mxu0 %v1217
        %3536 = vmatprep.subr.mxu0 %v1215
        %3537 = vmatpush2.msra.mxu0 %v1214
        %3538 = vmatprep.subr.mxu0 %v1212
        %3539 = vmatpush2.msra.mxu0 %v1211
        %3540 = vmatprep.subr.mxu0 %v1209
        %3541 = vmatpush2.msra.mxu0 %v1208
        %3542 = vmatprep.subr.mxu0 %v1206
        %3543 = vmatpush2.msra.mxu0 %v1205
        %3544 = vmatprep.subr.mxu0 %v1203
        %3545 = vmatpush2.msra.mxu0 %v1202
        %3546 = vmatprep.subr.mxu0 %v1200
        %3547 = vmatpush2.msra.mxu0 %v1199
        %3548 = vmatprep.subr.mxu0 %v1197
        %3549 = vmatpush2.msra.mxu0 %v1196
        %3550 = vmatprep.subr.mxu0 %v1194
        %3551 = vmatpush2.msra.mxu0 %v1193
        %3552 = vmatprep.mubr.f32.mxu0 %v2681
        %3553 = vmatmul.mubr.f32.gmra.mxu0 %v2679
        %v3554 = vpop.f32.mrf.mxu0
        %v3555 = vadd.f32 %v3484, %v3554
        %v3556 = vpop.f32.mrf.mxu0
        %v3557 = vadd.f32 %v3486, %v3556
        %3558 = vdwg.mxu0
        %3559 = vmatprep.subr.mxu0 %v1287
        %3560 = vmatpush1.msra.mxu0 %v1286
        %3561 = vmatprep.subr.mxu0 %v1284
        %3562 = vmatpush1.msra.mxu0 %v1283
        %3563 = vmatprep.subr.mxu0 %v1281
        %3564 = vmatpush1.msra.mxu0 %v1280
        %3565 = vmatprep.subr.mxu0 %v1278
        %3566 = vmatpush1.msra.mxu0 %v1277
        %3567 = vmatprep.subr.mxu0 %v1275
        %3568 = vmatpush1.msra.mxu0 %v1274
        %3569 = vmatprep.subr.mxu0 %v1272
        %3570 = vmatpush1.msra.mxu0 %v1271
        %3571 = vmatprep.subr.mxu0 %v1269
        %3572 = vmatpush1.msra.mxu0 %v1268
        %3573 = vmatprep.subr.mxu0 %v1266
        %3574 = vmatpush1.msra.mxu0 %v1265
        %3575 = vmatprep.subr.mxu0 %v1263
        %3576 = vmatpush1.msra.mxu0 %v1262
        %3577 = vmatprep.subr.mxu0 %v1260
        %3578 = vmatpush1.msra.mxu0 %v1259
        %3579 = vmatprep.subr.mxu0 %v1257
        %3580 = vmatpush1.msra.mxu0 %v1256
        %3581 = vmatprep.subr.mxu0 %v1254
        %3582 = vmatpush1.msra.mxu0 %v1253
        %3583 = vmatprep.subr.mxu0 %v1251
        %3584 = vmatpush1.msra.mxu0 %v1250
        %3585 = vmatprep.subr.mxu0 %v1248
        %3586 = vmatpush1.msra.mxu0 %v1247
        %3587 = vmatprep.subr.mxu0 %v1245
        %3588 = vmatpush1.msra.mxu0 %v1244
        %3589 = vmatprep.subr.mxu0 %v1242
        %3590 = vmatpush1.msra.mxu0 %v1241
        %3591 = vmatprep.subr.mxu0 %v1335
        %3592 = vmatpush2.msra.mxu0 %v1334
        %3593 = vmatprep.subr.mxu0 %v1332
        %3594 = vmatpush2.msra.mxu0 %v1331
        %3595 = vmatprep.subr.mxu0 %v1329
        %3596 = vmatpush2.msra.mxu0 %v1328
        %3597 = vmatprep.subr.mxu0 %v1326
        %3598 = vmatpush2.msra.mxu0 %v1325
        %3599 = vmatprep.subr.mxu0 %v1323
        %3600 = vmatpush2.msra.mxu0 %v1322
        %3601 = vmatprep.subr.mxu0 %v1320
        %3602 = vmatpush2.msra.mxu0 %v1319
        %3603 = vmatprep.subr.mxu0 %v1317
        %3604 = vmatpush2.msra.mxu0 %v1316
        %3605 = vmatprep.subr.mxu0 %v1314
        %3606 = vmatpush2.msra.mxu0 %v1313
        %3607 = vmatprep.subr.mxu0 %v1311
        %3608 = vmatpush2.msra.mxu0 %v1310
        %3609 = vmatprep.subr.mxu0 %v1308
        %3610 = vmatpush2.msra.mxu0 %v1307
        %3611 = vmatprep.subr.mxu0 %v1305
        %3612 = vmatpush2.msra.mxu0 %v1304
        %3613 = vmatprep.subr.mxu0 %v1302
        %3614 = vmatpush2.msra.mxu0 %v1301
        %3615 = vmatprep.subr.mxu0 %v1299
        %3616 = vmatpush2.msra.mxu0 %v1298
        %3617 = vmatprep.subr.mxu0 %v1296
        %3618 = vmatpush2.msra.mxu0 %v1295
        %3619 = vmatprep.subr.mxu0 %v1293
        %3620 = vmatpush2.msra.mxu0 %v1292
        %3621 = vmatprep.subr.mxu0 %v1290
        %3622 = vmatpush2.msra.mxu0 %v1289
        %3623 = vmatprep.mubr.f32.mxu0 %v2697
        %3624 = vmatmul.mubr.f32.gmra.mxu0 %v2689
        %v3625 = vpop.f32.mrf.mxu0
        %v3626 = vadd.f32 %v3555, %v3625
        %v3627 = vpop.f32.mrf.mxu0
        %v3628 = vadd.f32 %v3557, %v3627
        %3629 = vdwg.mxu0
        %3630 = vmatprep.subr.mxu0 %v1383
        %3631 = vmatpush1.msra.mxu0 %v1382
        %3632 = vmatprep.subr.mxu0 %v1380
        %3633 = vmatpush1.msra.mxu0 %v1379
        %3634 = vmatprep.subr.mxu0 %v1377
        %3635 = vmatpush1.msra.mxu0 %v1376
        %3636 = vmatprep.subr.mxu0 %v1374
        %3637 = vmatpush1.msra.mxu0 %v1373
        %3638 = vmatprep.subr.mxu0 %v1371
        %3639 = vmatpush1.msra.mxu0 %v1370
        %3640 = vmatprep.subr.mxu0 %v1368
        %3641 = vmatpush1.msra.mxu0 %v1367
        %3642 = vmatprep.subr.mxu0 %v1365
        %3643 = vmatpush1.msra.mxu0 %v1364
        %3644 = vmatprep.subr.mxu0 %v1362
        %3645 = vmatpush1.msra.mxu0 %v1361
        %3646 = vmatprep.subr.mxu0 %v1359
        %3647 = vmatpush1.msra.mxu0 %v1358
        %3648 = vmatprep.subr.mxu0 %v1356
        %3649 = vmatpush1.msra.mxu0 %v1355
        %3650 = vmatprep.subr.mxu0 %v1353
        %3651 = vmatpush1.msra.mxu0 %v1352
        %3652 = vmatprep.subr.mxu0 %v1350
        %3653 = vmatpush1.msra.mxu0 %v1349
        %3654 = vmatprep.subr.mxu0 %v1347
        %3655 = vmatpush1.msra.mxu0 %v1346
        %3656 = vmatprep.subr.mxu0 %v1344
        %3657 = vmatpush1.msra.mxu0 %v1343
        %3658 = vmatprep.subr.mxu0 %v1341
        %3659 = vmatpush1.msra.mxu0 %v1340
        %3660 = vmatprep.subr.mxu0 %v1338
        %3661 = vmatpush1.msra.mxu0 %v1337
        %3662 = vmatprep.subr.mxu0 %v1431
        %3663 = vmatpush2.msra.mxu0 %v1430
        %3664 = vmatprep.subr.mxu0 %v1428
        %3665 = vmatpush2.msra.mxu0 %v1427
        %3666 = vmatprep.subr.mxu0 %v1425
        %3667 = vmatpush2.msra.mxu0 %v1424
        %3668 = vmatprep.subr.mxu0 %v1422
        %3669 = vmatpush2.msra.mxu0 %v1421
        %3670 = vmatprep.subr.mxu0 %v1419
        %3671 = vmatpush2.msra.mxu0 %v1418
        %3672 = vmatprep.subr.mxu0 %v1416
        %3673 = vmatpush2.msra.mxu0 %v1415
        %3674 = vmatprep.subr.mxu0 %v1413
        %3675 = vmatpush2.msra.mxu0 %v1412
        %3676 = vmatprep.subr.mxu0 %v1410
        %3677 = vmatpush2.msra.mxu0 %v1409
        %3678 = vmatprep.subr.mxu0 %v1407
        %3679 = vmatpush2.msra.mxu0 %v1406
        %3680 = vmatprep.subr.mxu0 %v1404
        %3681 = vmatpush2.msra.mxu0 %v1403
        %3682 = vmatprep.subr.mxu0 %v1401
        %3683 = vmatpush2.msra.mxu0 %v1400
        %3684 = vmatprep.subr.mxu0 %v1398
        %3685 = vmatpush2.msra.mxu0 %v1397
        %3686 = vmatprep.subr.mxu0 %v1395
        %3687 = vmatpush2.msra.mxu0 %v1394
        %3688 = vmatprep.subr.mxu0 %v1392
        %3689 = vmatpush2.msra.mxu0 %v1391
        %3690 = vmatprep.subr.mxu0 %v1389
        %3691 = vmatpush2.msra.mxu0 %v1388
        %3692 = vmatprep.subr.mxu0 %v1386
        %3693 = vmatpush2.msra.mxu0 %v1385
        %3694 = vmatprep.mubr.f32.mxu0 %v2698
        %3695 = vmatmul.mubr.f32.gmra.mxu0 %v2696
        %v3696 = vpop.f32.mrf.mxu0
        %v3697 = vadd.f32 %v3626, %v3696
        %v3698 = vpop.f32.mrf.mxu0
        %v3699 = vadd.f32 %v3628, %v3698
        %3700 = vdwg.mxu0
        %3701 = vmatprep.subr.mxu0 %v1479
        %3702 = vmatpush1.msra.mxu0 %v1478
        %3703 = vmatprep.subr.mxu0 %v1476
        %3704 = vmatpush1.msra.mxu0 %v1475
        %3705 = vmatprep.subr.mxu0 %v1473
        %3706 = vmatpush1.msra.mxu0 %v1472
        %3707 = vmatprep.subr.mxu0 %v1470
        %3708 = vmatpush1.msra.mxu0 %v1469
        %3709 = vmatprep.subr.mxu0 %v1467
        %3710 = vmatpush1.msra.mxu0 %v1466
        %3711 = vmatprep.subr.mxu0 %v1464
        %3712 = vmatpush1.msra.mxu0 %v1463
        %3713 = vmatprep.subr.mxu0 %v1461
        %3714 = vmatpush1.msra.mxu0 %v1460
        %3715 = vmatprep.subr.mxu0 %v1458
        %3716 = vmatpush1.msra.mxu0 %v1457
        %3717 = vmatprep.subr.mxu0 %v1455
        %3718 = vmatpush1.msra.mxu0 %v1454
        %3719 = vmatprep.subr.mxu0 %v1452
        %3720 = vmatpush1.msra.mxu0 %v1451
        %3721 = vmatprep.subr.mxu0 %v1449
        %3722 = vmatpush1.msra.mxu0 %v1448
        %3723 = vmatprep.subr.mxu0 %v1446
        %3724 = vmatpush1.msra.mxu0 %v1445
        %3725 = vmatprep.subr.mxu0 %v1443
        %3726 = vmatpush1.msra.mxu0 %v1442
        %3727 = vmatprep.subr.mxu0 %v1440
        %3728 = vmatpush1.msra.mxu0 %v1439
        %3729 = vmatprep.subr.mxu0 %v1437
        %3730 = vmatpush1.msra.mxu0 %v1436
        %3731 = vmatprep.subr.mxu0 %v1434
        %3732 = vmatpush1.msra.mxu0 %v1433
        %3733 = vmatprep.subr.mxu0 %v1527
        %3734 = vmatpush2.msra.mxu0 %v1526
        %3735 = vmatprep.subr.mxu0 %v1524
        %3736 = vmatpush2.msra.mxu0 %v1523
        %3737 = vmatprep.subr.mxu0 %v1521
        %3738 = vmatpush2.msra.mxu0 %v1520
        %3739 = vmatprep.subr.mxu0 %v1518
        %3740 = vmatpush2.msra.mxu0 %v1517
        %3741 = vmatprep.subr.mxu0 %v1515
        %3742 = vmatpush2.msra.mxu0 %v1514
        %3743 = vmatprep.subr.mxu0 %v1512
        %3744 = vmatpush2.msra.mxu0 %v1511
        %3745 = vmatprep.subr.mxu0 %v1509
        %3746 = vmatpush2.msra.mxu0 %v1508
        %3747 = vmatprep.subr.mxu0 %v1506
        %3748 = vmatpush2.msra.mxu0 %v1505
        %3749 = vmatprep.subr.mxu0 %v1503
        %3750 = vmatpush2.msra.mxu0 %v1502
        %3751 = vmatprep.subr.mxu0 %v1500
        %3752 = vmatpush2.msra.mxu0 %v1499
        %3753 = vmatprep.subr.mxu0 %v1497
        %3754 = vmatpush2.msra.mxu0 %v1496
        %3755 = vmatprep.subr.mxu0 %v1494
        %3756 = vmatpush2.msra.mxu0 %v1493
        %3757 = vmatprep.subr.mxu0 %v1491
        %3758 = vmatpush2.msra.mxu0 %v1490
        %3759 = vmatprep.subr.mxu0 %v1488
        %3760 = vmatpush2.msra.mxu0 %v1487
        %3761 = vmatprep.subr.mxu0 %v1485
        %3762 = vmatpush2.msra.mxu0 %v1484
        %3763 = vmatprep.subr.mxu0 %v1482
        %3764 = vmatpush2.msra.mxu0 %v1481
        %3765 = vmatprep.mubr.f32.mxu0 %v2714
        %3766 = vmatmul.mubr.f32.gmra.mxu0 %v2706
        %v3767 = vpop.f32.mrf.mxu0
        %v3768 = vadd.f32 %v3697, %v3767
        %v3769 = vpop.f32.mrf.mxu0
        %v3770 = vadd.f32 %v3699, %v3769
        %3771 = vdwg.mxu0
        %3772 = vmatprep.subr.mxu0 %v1575
        %3773 = vmatpush1.msra.mxu0 %v1574
        %3774 = vmatprep.subr.mxu0 %v1572
        %3775 = vmatpush1.msra.mxu0 %v1571
        %3776 = vmatprep.subr.mxu0 %v1569
        %3777 = vmatpush1.msra.mxu0 %v1568
        %3778 = vmatprep.subr.mxu0 %v1566
        %3779 = vmatpush1.msra.mxu0 %v1565
        %3780 = vmatprep.subr.mxu0 %v1563
        %3781 = vmatpush1.msra.mxu0 %v1562
        %3782 = vmatprep.subr.mxu0 %v1560
        %3783 = vmatpush1.msra.mxu0 %v1559
        %3784 = vmatprep.subr.mxu0 %v1557
        %3785 = vmatpush1.msra.mxu0 %v1556
        %3786 = vmatprep.subr.mxu0 %v1554
        %3787 = vmatpush1.msra.mxu0 %v1553
        %3788 = vmatprep.subr.mxu0 %v1551
        %3789 = vmatpush1.msra.mxu0 %v1550
        %3790 = vmatprep.subr.mxu0 %v1548
        %3791 = vmatpush1.msra.mxu0 %v1547
        %3792 = vmatprep.subr.mxu0 %v1545
        %3793 = vmatpush1.msra.mxu0 %v1544
        %3794 = vmatprep.subr.mxu0 %v1542
        %3795 = vmatpush1.msra.mxu0 %v1541
        %3796 = vmatprep.subr.mxu0 %v1539
        %3797 = vmatpush1.msra.mxu0 %v1538
        %3798 = vmatprep.subr.mxu0 %v1536
        %3799 = vmatpush1.msra.mxu0 %v1535
        %3800 = vmatprep.subr.mxu0 %v1533
        %3801 = vmatpush1.msra.mxu0 %v1532
        %3802 = vmatprep.subr.mxu0 %v1530
        %3803 = vmatpush1.msra.mxu0 %v1529
        %3804 = vmatprep.subr.mxu0 %v1623
        %3805 = vmatpush2.msra.mxu0 %v1622
        %3806 = vmatprep.subr.mxu0 %v1620
        %3807 = vmatpush2.msra.mxu0 %v1619
        %3808 = vmatprep.subr.mxu0 %v1617
        %3809 = vmatpush2.msra.mxu0 %v1616
        %3810 = vmatprep.subr.mxu0 %v1614
        %3811 = vmatpush2.msra.mxu0 %v1613
        %3812 = vmatprep.subr.mxu0 %v1611
        %3813 = vmatpush2.msra.mxu0 %v1610
        %3814 = vmatprep.subr.mxu0 %v1608
        %3815 = vmatpush2.msra.mxu0 %v1607
        %3816 = vmatprep.subr.mxu0 %v1605
        %3817 = vmatpush2.msra.mxu0 %v1604
        %3818 = vmatprep.subr.mxu0 %v1602
        %3819 = vmatpush2.msra.mxu0 %v1601
        %3820 = vmatprep.subr.mxu0 %v1599
        %3821 = vmatpush2.msra.mxu0 %v1598
        %3822 = vmatprep.subr.mxu0 %v1596
        %3823 = vmatpush2.msra.mxu0 %v1595
        %3824 = vmatprep.subr.mxu0 %v1593
        %3825 = vmatpush2.msra.mxu0 %v1592
        %3826 = vmatprep.subr.mxu0 %v1590
        %3827 = vmatpush2.msra.mxu0 %v1589
        %3828 = vmatprep.subr.mxu0 %v1587
        %3829 = vmatpush2.msra.mxu0 %v1586
        %3830 = vmatprep.subr.mxu0 %v1584
        %3831 = vmatpush2.msra.mxu0 %v1583
        %3832 = vmatprep.subr.mxu0 %v1581
        %3833 = vmatpush2.msra.mxu0 %v1580
        %3834 = vmatprep.subr.mxu0 %v1578
        %3835 = vmatpush2.msra.mxu0 %v1577
        %3836 = vmatprep.mubr.f32.mxu0 %v2715
        %3837 = vmatmul.mubr.f32.gmra.mxu0 %v2713
        %v3838 = vpop.f32.mrf.mxu0
        %v3839 = vadd.f32 %v3768, %v3838
        %v3840 = vpop.f32.mrf.mxu0
        %v3841 = vadd.f32 %v3770, %v3840
        %3842 = vdwg.mxu0
        %3843 = vmatprep.subr.mxu0 %v1671
        %3844 = vmatpush1.msra.mxu0 %v1670
        %3845 = vmatprep.subr.mxu0 %v1668
        %3846 = vmatpush1.msra.mxu0 %v1667
        %3847 = vmatprep.subr.mxu0 %v1665
        %3848 = vmatpush1.msra.mxu0 %v1664
        %3849 = vmatprep.subr.mxu0 %v1662
        %3850 = vmatpush1.msra.mxu0 %v1661
        %3851 = vmatprep.subr.mxu0 %v1659
        %3852 = vmatpush1.msra.mxu0 %v1658
        %3853 = vmatprep.subr.mxu0 %v1656
        %3854 = vmatpush1.msra.mxu0 %v1655
        %3855 = vmatprep.subr.mxu0 %v1653
        %3856 = vmatpush1.msra.mxu0 %v1652
        %3857 = vmatprep.subr.mxu0 %v1650
        %3858 = vmatpush1.msra.mxu0 %v1649
        %3859 = vmatprep.subr.mxu0 %v1647
        %3860 = vmatpush1.msra.mxu0 %v1646
        %3861 = vmatprep.subr.mxu0 %v1644
        %3862 = vmatpush1.msra.mxu0 %v1643
        %3863 = vmatprep.subr.mxu0 %v1641
        %3864 = vmatpush1.msra.mxu0 %v1640
        %3865 = vmatprep.subr.mxu0 %v1638
        %3866 = vmatpush1.msra.mxu0 %v1637
        %3867 = vmatprep.subr.mxu0 %v1635
        %3868 = vmatpush1.msra.mxu0 %v1634
        %3869 = vmatprep.subr.mxu0 %v1632
        %3870 = vmatpush1.msra.mxu0 %v1631
        %3871 = vmatprep.subr.mxu0 %v1629
        %3872 = vmatpush1.msra.mxu0 %v1628
        %3873 = vmatprep.subr.mxu0 %v1626
        %3874 = vmatpush1.msra.mxu0 %v1625
        %3875 = vmatprep.subr.mxu0 %v1719
        %3876 = vmatpush2.msra.mxu0 %v1718
        %3877 = vmatprep.subr.mxu0 %v1716
        %3878 = vmatpush2.msra.mxu0 %v1715
        %3879 = vmatprep.subr.mxu0 %v1713
        %3880 = vmatpush2.msra.mxu0 %v1712
        %3881 = vmatprep.subr.mxu0 %v1710
        %3882 = vmatpush2.msra.mxu0 %v1709
        %3883 = vmatprep.subr.mxu0 %v1707
        %3884 = vmatpush2.msra.mxu0 %v1706
        %3885 = vmatprep.subr.mxu0 %v1704
        %3886 = vmatpush2.msra.mxu0 %v1703
        %3887 = vmatprep.subr.mxu0 %v1701
        %3888 = vmatpush2.msra.mxu0 %v1700
        %3889 = vmatprep.subr.mxu0 %v1698
        %3890 = vmatpush2.msra.mxu0 %v1697
        %3891 = vmatprep.subr.mxu0 %v1695
        %3892 = vmatpush2.msra.mxu0 %v1694
        %3893 = vmatprep.subr.mxu0 %v1692
        %3894 = vmatpush2.msra.mxu0 %v1691
        %3895 = vmatprep.subr.mxu0 %v1689
        %3896 = vmatpush2.msra.mxu0 %v1688
        %3897 = vmatprep.subr.mxu0 %v1686
        %3898 = vmatpush2.msra.mxu0 %v1685
        %3899 = vmatprep.subr.mxu0 %v1683
        %3900 = vmatpush2.msra.mxu0 %v1682
        %3901 = vmatprep.subr.mxu0 %v1680
        %3902 = vmatpush2.msra.mxu0 %v1679
        %3903 = vmatprep.subr.mxu0 %v1677
        %3904 = vmatpush2.msra.mxu0 %v1676
        %3905 = vmatprep.subr.mxu0 %v1674
        %3906 = vmatpush2.msra.mxu0 %v1673
        %3907 = vmatprep.mubr.f32.mxu0 %v2731
        %3908 = vmatmul.mubr.f32.gmra.mxu0 %v2723
        %v3909 = vpop.f32.mrf.mxu0
        %v3910 = vadd.f32 %v3839, %v3909
        %v3911 = vpop.f32.mrf.mxu0
        %v3912 = vadd.f32 %v3841, %v3911
        %3913 = vdwg.mxu0
        %3914 = vmatprep.subr.mxu0 %v1767
        %3915 = vmatpush1.msra.mxu0 %v1766
        %3916 = vmatprep.subr.mxu0 %v1764
        %3917 = vmatpush1.msra.mxu0 %v1763
        %3918 = vmatprep.subr.mxu0 %v1761
        %3919 = vmatpush1.msra.mxu0 %v1760
        %3920 = vmatprep.subr.mxu0 %v1758
        %3921 = vmatpush1.msra.mxu0 %v1757
        %3922 = vmatprep.subr.mxu0 %v1755
        %3923 = vmatpush1.msra.mxu0 %v1754
        %3924 = vmatprep.subr.mxu0 %v1752
        %3925 = vmatpush1.msra.mxu0 %v1751
        %3926 = vmatprep.subr.mxu0 %v1749
        %3927 = vmatpush1.msra.mxu0 %v1748
        %3928 = vmatprep.subr.mxu0 %v1746
        %3929 = vmatpush1.msra.mxu0 %v1745
        %3930 = vmatprep.subr.mxu0 %v1743
        %3931 = vmatpush1.msra.mxu0 %v1742
        %3932 = vmatprep.subr.mxu0 %v1740
        %3933 = vmatpush1.msra.mxu0 %v1739
        %3934 = vmatprep.subr.mxu0 %v1737
        %3935 = vmatpush1.msra.mxu0 %v1736
        %3936 = vmatprep.subr.mxu0 %v1734
        %3937 = vmatpush1.msra.mxu0 %v1733
        %3938 = vmatprep.subr.mxu0 %v1731
        %3939 = vmatpush1.msra.mxu0 %v1730
        %3940 = vmatprep.subr.mxu0 %v1728
        %3941 = vmatpush1.msra.mxu0 %v1727
        %3942 = vmatprep.subr.mxu0 %v1725
        %3943 = vmatpush1.msra.mxu0 %v1724
        %3944 = vmatprep.subr.mxu0 %v1722
        %3945 = vmatpush1.msra.mxu0 %v1721
        %3946 = vmatprep.subr.mxu0 %v1815
        %3947 = vmatpush2.msra.mxu0 %v1814
        %3948 = vmatprep.subr.mxu0 %v1812
        %3949 = vmatpush2.msra.mxu0 %v1811
        %3950 = vmatprep.subr.mxu0 %v1809
        %3951 = vmatpush2.msra.mxu0 %v1808
        %3952 = vmatprep.subr.mxu0 %v1806
        %3953 = vmatpush2.msra.mxu0 %v1805
        %3954 = vmatprep.subr.mxu0 %v1803
        %3955 = vmatpush2.msra.mxu0 %v1802
        %3956 = vmatprep.subr.mxu0 %v1800
        %3957 = vmatpush2.msra.mxu0 %v1799
        %3958 = vmatprep.subr.mxu0 %v1797
        %3959 = vmatpush2.msra.mxu0 %v1796
        %3960 = vmatprep.subr.mxu0 %v1794
        %3961 = vmatpush2.msra.mxu0 %v1793
        %3962 = vmatprep.subr.mxu0 %v1791
        %3963 = vmatpush2.msra.mxu0 %v1790
        %3964 = vmatprep.subr.mxu0 %v1788
        %3965 = vmatpush2.msra.mxu0 %v1787
        %3966 = vmatprep.subr.mxu0 %v1785
        %3967 = vmatpush2.msra.mxu0 %v1784
        %3968 = vmatprep.subr.mxu0 %v1782
        %3969 = vmatpush2.msra.mxu0 %v1781
        %3970 = vmatprep.subr.mxu0 %v1779
        %3971 = vmatpush2.msra.mxu0 %v1778
        %3972 = vmatprep.subr.mxu0 %v1776
        %3973 = vmatpush2.msra.mxu0 %v1775
        %3974 = vmatprep.subr.mxu0 %v1773
        %3975 = vmatpush2.msra.mxu0 %v1772
        %3976 = vmatprep.subr.mxu0 %v1770
        %3977 = vmatpush2.msra.mxu0 %v1769
        %3978 = vmatprep.mubr.f32.mxu0 %v2732
        %3979 = vmatmul.mubr.f32.gmra.mxu0 %v2730
        %v3980 = vpop.f32.mrf.mxu0
        %v3981 = vadd.f32 %v3910, %v3980
        %v3982 = vpop.f32.mrf.mxu0
        %v3983 = vadd.f32 %v3912, %v3982
        %3984 = vdwg.mxu0
        %3985 = vmatprep.subr.mxu0 %v1863
        %3986 = vmatpush1.msra.mxu0 %v1862
        %3987 = vmatprep.subr.mxu0 %v1860
        %3988 = vmatpush1.msra.mxu0 %v1859
        %3989 = vmatprep.subr.mxu0 %v1857
        %3990 = vmatpush1.msra.mxu0 %v1856
        %3991 = vmatprep.subr.mxu0 %v1854
        %3992 = vmatpush1.msra.mxu0 %v1853
        %3993 = vmatprep.subr.mxu0 %v1851
        %3994 = vmatpush1.msra.mxu0 %v1850
        %3995 = vmatprep.subr.mxu0 %v1848
        %3996 = vmatpush1.msra.mxu0 %v1847
        %3997 = vmatprep.subr.mxu0 %v1845
        %3998 = vmatpush1.msra.mxu0 %v1844
        %3999 = vmatprep.subr.mxu0 %v1842
        %4000 = vmatpush1.msra.mxu0 %v1841
        %4001 = vmatprep.subr.mxu0 %v1839
        %4002 = vmatpush1.msra.mxu0 %v1838
        %4003 = vmatprep.subr.mxu0 %v1836
        %4004 = vmatpush1.msra.mxu0 %v1835
        %4005 = vmatprep.subr.mxu0 %v1833
        %4006 = vmatpush1.msra.mxu0 %v1832
        %4007 = vmatprep.subr.mxu0 %v1830
        %4008 = vmatpush1.msra.mxu0 %v1829
        %4009 = vmatprep.subr.mxu0 %v1827
        %4010 = vmatpush1.msra.mxu0 %v1826
        %4011 = vmatprep.subr.mxu0 %v1824
        %4012 = vmatpush1.msra.mxu0 %v1823
        %4013 = vmatprep.subr.mxu0 %v1821
        %4014 = vmatpush1.msra.mxu0 %v1820
        %4015 = vmatprep.subr.mxu0 %v1818
        %4016 = vmatpush1.msra.mxu0 %v1817
        %4017 = vmatprep.subr.mxu0 %v1911
        %4018 = vmatpush2.msra.mxu0 %v1910
        %4019 = vmatprep.subr.mxu0 %v1908
        %4020 = vmatpush2.msra.mxu0 %v1907
        %4021 = vmatprep.subr.mxu0 %v1905
        %4022 = vmatpush2.msra.mxu0 %v1904
        %4023 = vmatprep.subr.mxu0 %v1902
        %4024 = vmatpush2.msra.mxu0 %v1901
        %4025 = vmatprep.subr.mxu0 %v1899
        %4026 = vmatpush2.msra.mxu0 %v1898
        %4027 = vmatprep.subr.mxu0 %v1896
        %4028 = vmatpush2.msra.mxu0 %v1895
        %4029 = vmatprep.subr.mxu0 %v1893
        %4030 = vmatpush2.msra.mxu0 %v1892
        %4031 = vmatprep.subr.mxu0 %v1890
        %4032 = vmatpush2.msra.mxu0 %v1889
        %4033 = vmatprep.subr.mxu0 %v1887
        %4034 = vmatpush2.msra.mxu0 %v1886
        %4035 = vmatprep.subr.mxu0 %v1884
        %4036 = vmatpush2.msra.mxu0 %v1883
        %4037 = vmatprep.subr.mxu0 %v1881
        %4038 = vmatpush2.msra.mxu0 %v1880
        %4039 = vmatprep.subr.mxu0 %v1878
        %4040 = vmatpush2.msra.mxu0 %v1877
        %4041 = vmatprep.subr.mxu0 %v1875
        %4042 = vmatpush2.msra.mxu0 %v1874
        %4043 = vmatprep.subr.mxu0 %v1872
        %4044 = vmatpush2.msra.mxu0 %v1871
        %4045 = vmatprep.subr.mxu0 %v1869
        %4046 = vmatpush2.msra.mxu0 %v1868
        %4047 = vmatprep.subr.mxu0 %v1866
        %4048 = vmatpush2.msra.mxu0 %v1865
        %4049 = vmatprep.mubr.f32.mxu0 %v2748
        %4050 = vmatmul.mubr.f32.gmra.mxu0 %v2740
        %v4051 = vpop.f32.mrf.mxu0
        %v4052 = vadd.f32 %v3981, %v4051
        %v4053 = vpop.f32.mrf.mxu0
        %v4054 = vadd.f32 %v3983, %v4053
        %4055 = vdwg.mxu0
        %4056 = vmatprep.subr.mxu0 %v1959
        %4057 = vmatpush1.msra.mxu0 %v1958
        %4058 = vmatprep.subr.mxu0 %v1956
        %4059 = vmatpush1.msra.mxu0 %v1955
        %4060 = vmatprep.subr.mxu0 %v1953
        %4061 = vmatpush1.msra.mxu0 %v1952
        %4062 = vmatprep.subr.mxu0 %v1950
        %4063 = vmatpush1.msra.mxu0 %v1949
        %4064 = vmatprep.subr.mxu0 %v1947
        %4065 = vmatpush1.msra.mxu0 %v1946
        %4066 = vmatprep.subr.mxu0 %v1944
        %4067 = vmatpush1.msra.mxu0 %v1943
        %4068 = vmatprep.subr.mxu0 %v1941
        %4069 = vmatpush1.msra.mxu0 %v1940
        %4070 = vmatprep.subr.mxu0 %v1938
        %4071 = vmatpush1.msra.mxu0 %v1937
        %4072 = vmatprep.subr.mxu0 %v1935
        %4073 = vmatpush1.msra.mxu0 %v1934
        %4074 = vmatprep.subr.mxu0 %v1932
        %4075 = vmatpush1.msra.mxu0 %v1931
        %4076 = vmatprep.subr.mxu0 %v1929
        %4077 = vmatpush1.msra.mxu0 %v1928
        %4078 = vmatprep.subr.mxu0 %v1926
        %4079 = vmatpush1.msra.mxu0 %v1925
        %4080 = vmatprep.subr.mxu0 %v1923
        %4081 = vmatpush1.msra.mxu0 %v1922
        %4082 = vmatprep.subr.mxu0 %v1920
        %4083 = vmatpush1.msra.mxu0 %v1919
        %4084 = vmatprep.subr.mxu0 %v1917
        %4085 = vmatpush1.msra.mxu0 %v1916
        %4086 = vmatprep.subr.mxu0 %v1914
        %4087 = vmatpush1.msra.mxu0 %v1913
        %4088 = vmatprep.subr.mxu0 %v2007
        %4089 = vmatpush2.msra.mxu0 %v2006
        %4090 = vmatprep.subr.mxu0 %v2004
        %4091 = vmatpush2.msra.mxu0 %v2003
        %4092 = vmatprep.subr.mxu0 %v2001
        %4093 = vmatpush2.msra.mxu0 %v2000
        %4094 = vmatprep.subr.mxu0 %v1998
        %4095 = vmatpush2.msra.mxu0 %v1997
        %4096 = vmatprep.subr.mxu0 %v1995
        %4097 = vmatpush2.msra.mxu0 %v1994
        %4098 = vmatprep.subr.mxu0 %v1992
        %4099 = vmatpush2.msra.mxu0 %v1991
        %4100 = vmatprep.subr.mxu0 %v1989
        %4101 = vmatpush2.msra.mxu0 %v1988
        %4102 = vmatprep.subr.mxu0 %v1986
        %4103 = vmatpush2.msra.mxu0 %v1985
        %4104 = vmatprep.subr.mxu0 %v1983
        %4105 = vmatpush2.msra.mxu0 %v1982
        %4106 = vmatprep.subr.mxu0 %v1980
        %4107 = vmatpush2.msra.mxu0 %v1979
        %4108 = vmatprep.subr.mxu0 %v1977
        %4109 = vmatpush2.msra.mxu0 %v1976
        %4110 = vmatprep.subr.mxu0 %v1974
        %4111 = vmatpush2.msra.mxu0 %v1973
        %4112 = vmatprep.subr.mxu0 %v1971
        %4113 = vmatpush2.msra.mxu0 %v1970
        %4114 = vmatprep.subr.mxu0 %v1968
        %4115 = vmatpush2.msra.mxu0 %v1967
        %4116 = vmatprep.subr.mxu0 %v1965
        %4117 = vmatpush2.msra.mxu0 %v1964
        %4118 = vmatprep.subr.mxu0 %v1962
        %4119 = vmatpush2.msra.mxu0 %v1961
        %4120 = vmatprep.mubr.f32.mxu0 %v2749
        %4121 = vmatmul.mubr.f32.gmra.mxu0 %v2747
        %v4122 = vpop.f32.mrf.mxu0
        %v4123 = vadd.f32 %v4052, %v4122
        %v4124 = vpop.f32.mrf.mxu0
        %v4125 = vadd.f32 %v4054, %v4124
        %4126 = vdwg.mxu0
        %4127 = vmatprep.subr.mxu0 %v2055
        %4128 = vmatpush1.msra.mxu0 %v2054
        %4129 = vmatprep.subr.mxu0 %v2052
        %4130 = vmatpush1.msra.mxu0 %v2051
        %4131 = vmatprep.subr.mxu0 %v2049
        %4132 = vmatpush1.msra.mxu0 %v2048
        %4133 = vmatprep.subr.mxu0 %v2046
        %4134 = vmatpush1.msra.mxu0 %v2045
        %4135 = vmatprep.subr.mxu0 %v2043
        %4136 = vmatpush1.msra.mxu0 %v2042
        %4137 = vmatprep.subr.mxu0 %v2040
        %4138 = vmatpush1.msra.mxu0 %v2039
        %4139 = vmatprep.subr.mxu0 %v2037
        %4140 = vmatpush1.msra.mxu0 %v2036
        %4141 = vmatprep.subr.mxu0 %v2034
        %4142 = vmatpush1.msra.mxu0 %v2033
        %4143 = vmatprep.subr.mxu0 %v2031
        %4144 = vmatpush1.msra.mxu0 %v2030
        %4145 = vmatprep.subr.mxu0 %v2028
        %4146 = vmatpush1.msra.mxu0 %v2027
        %4147 = vmatprep.subr.mxu0 %v2025
        %4148 = vmatpush1.msra.mxu0 %v2024
        %4149 = vmatprep.subr.mxu0 %v2022
        %4150 = vmatpush1.msra.mxu0 %v2021
        %4151 = vmatprep.subr.mxu0 %v2019
        %4152 = vmatpush1.msra.mxu0 %v2018
        %4153 = vmatprep.subr.mxu0 %v2016
        %4154 = vmatpush1.msra.mxu0 %v2015
        %4155 = vmatprep.subr.mxu0 %v2013
        %4156 = vmatpush1.msra.mxu0 %v2012
        %4157 = vmatprep.subr.mxu0 %v2010
        %4158 = vmatpush1.msra.mxu0 %v2009
        %4159 = vmatprep.subr.mxu0 %v2103
        %4160 = vmatpush2.msra.mxu0 %v2102
        %4161 = vmatprep.subr.mxu0 %v2100
        %4162 = vmatpush2.msra.mxu0 %v2099
        %4163 = vmatprep.subr.mxu0 %v2097
        %4164 = vmatpush2.msra.mxu0 %v2096
        %4165 = vmatprep.subr.mxu0 %v2094
        %4166 = vmatpush2.msra.mxu0 %v2093
        %4167 = vmatprep.subr.mxu0 %v2091
        %4168 = vmatpush2.msra.mxu0 %v2090
        %4169 = vmatprep.subr.mxu0 %v2088
        %4170 = vmatpush2.msra.mxu0 %v2087
        %4171 = vmatprep.subr.mxu0 %v2085
        %4172 = vmatpush2.msra.mxu0 %v2084
        %4173 = vmatprep.subr.mxu0 %v2082
        %4174 = vmatpush2.msra.mxu0 %v2081
        %4175 = vmatprep.subr.mxu0 %v2079
        %4176 = vmatpush2.msra.mxu0 %v2078
        %4177 = vmatprep.subr.mxu0 %v2076
        %4178 = vmatpush2.msra.mxu0 %v2075
        %4179 = vmatprep.subr.mxu0 %v2073
        %4180 = vmatpush2.msra.mxu0 %v2072
        %4181 = vmatprep.subr.mxu0 %v2070
        %4182 = vmatpush2.msra.mxu0 %v2069
        %4183 = vmatprep.subr.mxu0 %v2067
        %4184 = vmatpush2.msra.mxu0 %v2066
        %4185 = vmatprep.subr.mxu0 %v2064
        %4186 = vmatpush2.msra.mxu0 %v2063
        %4187 = vmatprep.subr.mxu0 %v2061
        %4188 = vmatpush2.msra.mxu0 %v2060
        %4189 = vmatprep.subr.mxu0 %v2058
        %4190 = vmatpush2.msra.mxu0 %v2057
        %4191 = vmatprep.mubr.f32.mxu0 %v2765
        %4192 = vmatmul.mubr.f32.gmra.mxu0 %v2757
        %v4193 = vpop.f32.mrf.mxu0
        %v4194 = vadd.f32 %v4123, %v4193
        %v4195 = vpop.f32.mrf.mxu0
        %v4196 = vadd.f32 %v4125, %v4195
        %4197 = vdwg.mxu0
        %4198 = vmatprep.subr.mxu0 %v2151
        %4199 = vmatpush1.msra.mxu0 %v2150
        %4200 = vmatprep.subr.mxu0 %v2148
        %4201 = vmatpush1.msra.mxu0 %v2147
        %4202 = vmatprep.subr.mxu0 %v2145
        %4203 = vmatpush1.msra.mxu0 %v2144
        %4204 = vmatprep.subr.mxu0 %v2142
        %4205 = vmatpush1.msra.mxu0 %v2141
        %4206 = vmatprep.subr.mxu0 %v2139
        %4207 = vmatpush1.msra.mxu0 %v2138
        %4208 = vmatprep.subr.mxu0 %v2136
        %4209 = vmatpush1.msra.mxu0 %v2135
        %4210 = vmatprep.subr.mxu0 %v2133
        %4211 = vmatpush1.msra.mxu0 %v2132
        %4212 = vmatprep.subr.mxu0 %v2130
        %4213 = vmatpush1.msra.mxu0 %v2129
        %4214 = vmatprep.subr.mxu0 %v2127
        %4215 = vmatpush1.msra.mxu0 %v2126
        %4216 = vmatprep.subr.mxu0 %v2124
        %4217 = vmatpush1.msra.mxu0 %v2123
        %4218 = vmatprep.subr.mxu0 %v2121
        %4219 = vmatpush1.msra.mxu0 %v2120
        %4220 = vmatprep.subr.mxu0 %v2118
        %4221 = vmatpush1.msra.mxu0 %v2117
        %4222 = vmatprep.subr.mxu0 %v2115
        %4223 = vmatpush1.msra.mxu0 %v2114
        %4224 = vmatprep.subr.mxu0 %v2112
        %4225 = vmatpush1.msra.mxu0 %v2111
        %4226 = vmatprep.subr.mxu0 %v2109
        %4227 = vmatpush1.msra.mxu0 %v2108
        %4228 = vmatprep.subr.mxu0 %v2106
        %4229 = vmatpush1.msra.mxu0 %v2105
        %4230 = vmatprep.subr.mxu0 %v2199
        %4231 = vmatpush2.msra.mxu0 %v2198
        %4232 = vmatprep.subr.mxu0 %v2196
        %4233 = vmatpush2.msra.mxu0 %v2195
        %4234 = vmatprep.subr.mxu0 %v2193
        %4235 = vmatpush2.msra.mxu0 %v2192
        %4236 = vmatprep.subr.mxu0 %v2190
        %4237 = vmatpush2.msra.mxu0 %v2189
        %4238 = vmatprep.subr.mxu0 %v2187
        %4239 = vmatpush2.msra.mxu0 %v2186
        %4240 = vmatprep.subr.mxu0 %v2184
        %4241 = vmatpush2.msra.mxu0 %v2183
        %4242 = vmatprep.subr.mxu0 %v2181
        %4243 = vmatpush2.msra.mxu0 %v2180
        %4244 = vmatprep.subr.mxu0 %v2178
        %4245 = vmatpush2.msra.mxu0 %v2177
        %4246 = vmatprep.subr.mxu0 %v2175
        %4247 = vmatpush2.msra.mxu0 %v2174
        %4248 = vmatprep.subr.mxu0 %v2172
        %4249 = vmatpush2.msra.mxu0 %v2171
        %4250 = vmatprep.subr.mxu0 %v2169
        %4251 = vmatpush2.msra.mxu0 %v2168
        %4252 = vmatprep.subr.mxu0 %v2166
        %4253 = vmatpush2.msra.mxu0 %v2165
        %4254 = vmatprep.subr.mxu0 %v2163
        %4255 = vmatpush2.msra.mxu0 %v2162
        %4256 = vmatprep.subr.mxu0 %v2160
        %4257 = vmatpush2.msra.mxu0 %v2159
        %4258 = vmatprep.subr.mxu0 %v2157
        %4259 = vmatpush2.msra.mxu0 %v2156
        %4260 = vmatprep.subr.mxu0 %v2154
        %4261 = vmatpush2.msra.mxu0 %v2153
        %4262 = vmatprep.mubr.f32.mxu0 %v2766
        %4263 = vmatmul.mubr.f32.gmra.mxu0 %v2764
        %v4264 = vpop.f32.mrf.mxu0
        %v4265 = vadd.f32 %v4194, %v4264
        %v4266 = vpop.f32.mrf.mxu0
        %v4267 = vadd.f32 %v4196, %v4266
        %4268 = vdwg.mxu0
        %4269 = vmatprep.subr.mxu0 %v2247
        %4270 = vmatpush1.msra.mxu0 %v2246
        %4271 = vmatprep.subr.mxu0 %v2244
        %4272 = vmatpush1.msra.mxu0 %v2243
        %4273 = vmatprep.subr.mxu0 %v2241
        %4274 = vmatpush1.msra.mxu0 %v2240
        %4275 = vmatprep.subr.mxu0 %v2238
        %4276 = vmatpush1.msra.mxu0 %v2237
        %4277 = vmatprep.subr.mxu0 %v2235
        %4278 = vmatpush1.msra.mxu0 %v2234
        %4279 = vmatprep.subr.mxu0 %v2232
        %4280 = vmatpush1.msra.mxu0 %v2231
        %4281 = vmatprep.subr.mxu0 %v2229
        %4282 = vmatpush1.msra.mxu0 %v2228
        %4283 = vmatprep.subr.mxu0 %v2226
        %4284 = vmatpush1.msra.mxu0 %v2225
        %4285 = vmatprep.subr.mxu0 %v2223
        %4286 = vmatpush1.msra.mxu0 %v2222
        %4287 = vmatprep.subr.mxu0 %v2220
        %4288 = vmatpush1.msra.mxu0 %v2219
        %4289 = vmatprep.subr.mxu0 %v2217
        %4290 = vmatpush1.msra.mxu0 %v2216
        %4291 = vmatprep.subr.mxu0 %v2214
        %4292 = vmatpush1.msra.mxu0 %v2213
        %4293 = vmatprep.subr.mxu0 %v2211
        %4294 = vmatpush1.msra.mxu0 %v2210
        %4295 = vmatprep.subr.mxu0 %v2208
        %4296 = vmatpush1.msra.mxu0 %v2207
        %4297 = vmatprep.subr.mxu0 %v2205
        %4298 = vmatpush1.msra.mxu0 %v2204
        %4299 = vmatprep.subr.mxu0 %v2202
        %4300 = vmatpush1.msra.mxu0 %v2201
        %4301 = vmatprep.subr.mxu0 %v2295
        %4302 = vmatpush2.msra.mxu0 %v2294
        %4303 = vmatprep.subr.mxu0 %v2292
        %4304 = vmatpush2.msra.mxu0 %v2291
        %4305 = vmatprep.subr.mxu0 %v2289
        %4306 = vmatpush2.msra.mxu0 %v2288
        %4307 = vmatprep.subr.mxu0 %v2286
        %4308 = vmatpush2.msra.mxu0 %v2285
        %4309 = vmatprep.subr.mxu0 %v2283
        %4310 = vmatpush2.msra.mxu0 %v2282
        %4311 = vmatprep.subr.mxu0 %v2280
        %4312 = vmatpush2.msra.mxu0 %v2279
        %4313 = vmatprep.subr.mxu0 %v2277
        %4314 = vmatpush2.msra.mxu0 %v2276
        %4315 = vmatprep.subr.mxu0 %v2274
        %4316 = vmatpush2.msra.mxu0 %v2273
        %4317 = vmatprep.subr.mxu0 %v2271
        %4318 = vmatpush2.msra.mxu0 %v2270
        %4319 = vmatprep.subr.mxu0 %v2268
        %4320 = vmatpush2.msra.mxu0 %v2267
        %4321 = vmatprep.subr.mxu0 %v2265
        %4322 = vmatpush2.msra.mxu0 %v2264
        %4323 = vmatprep.subr.mxu0 %v2262
        %4324 = vmatpush2.msra.mxu0 %v2261
        %4325 = vmatprep.subr.mxu0 %v2259
        %4326 = vmatpush2.msra.mxu0 %v2258
        %4327 = vmatprep.subr.mxu0 %v2256
        %4328 = vmatpush2.msra.mxu0 %v2255
        %4329 = vmatprep.subr.mxu0 %v2253
        %4330 = vmatpush2.msra.mxu0 %v2252
        %4331 = vmatprep.subr.mxu0 %v2250
        %4332 = vmatpush2.msra.mxu0 %v2249
        %4333 = vmatprep.mubr.f32.mxu0 %v2782
        %4334 = vmatmul.mubr.f32.gmra.mxu0 %v2774
        %v4335 = vpop.f32.mrf.mxu0
        %v4336 = vadd.f32 %v4265, %v4335
        %v4337 = vpop.f32.mrf.mxu0
        %v4338 = vadd.f32 %v4267, %v4337
        %4339 = vdwg.mxu0
        %4340 = vmatprep.subr.mxu0 %v2343
        %4341 = vmatpush1.msra.mxu0 %v2342
        %4342 = vmatprep.subr.mxu0 %v2340
        %4343 = vmatpush1.msra.mxu0 %v2339
        %4344 = vmatprep.subr.mxu0 %v2337
        %4345 = vmatpush1.msra.mxu0 %v2336
        %4346 = vmatprep.subr.mxu0 %v2334
        %4347 = vmatpush1.msra.mxu0 %v2333
        %4348 = vmatprep.subr.mxu0 %v2331
        %4349 = vmatpush1.msra.mxu0 %v2330
        %4350 = vmatprep.subr.mxu0 %v2328
        %4351 = vmatpush1.msra.mxu0 %v2327
        %4352 = vmatprep.subr.mxu0 %v2325
        %4353 = vmatpush1.msra.mxu0 %v2324
        %4354 = vmatprep.subr.mxu0 %v2322
        %4355 = vmatpush1.msra.mxu0 %v2321
        %4356 = vmatprep.subr.mxu0 %v2319
        %4357 = vmatpush1.msra.mxu0 %v2318
        %4358 = vmatprep.subr.mxu0 %v2316
        %4359 = vmatpush1.msra.mxu0 %v2315
        %4360 = vmatprep.subr.mxu0 %v2313
        %4361 = vmatpush1.msra.mxu0 %v2312
        %4362 = vmatprep.subr.mxu0 %v2310
        %4363 = vmatpush1.msra.mxu0 %v2309
        %4364 = vmatprep.subr.mxu0 %v2307
        %4365 = vmatpush1.msra.mxu0 %v2306
        %4366 = vmatprep.subr.mxu0 %v2304
        %4367 = vmatpush1.msra.mxu0 %v2303
        %4368 = vmatprep.subr.mxu0 %v2301
        %4369 = vmatpush1.msra.mxu0 %v2300
        %4370 = vmatprep.subr.mxu0 %v2298
        %4371 = vmatpush1.msra.mxu0 %v2297
        %4372 = vmatprep.subr.mxu0 %v2391
        %4373 = vmatpush2.msra.mxu0 %v2390
        %4374 = vmatprep.subr.mxu0 %v2388
        %4375 = vmatpush2.msra.mxu0 %v2387
        %4376 = vmatprep.subr.mxu0 %v2385
        %4377 = vmatpush2.msra.mxu0 %v2384
        %4378 = vmatprep.subr.mxu0 %v2382
        %4379 = vmatpush2.msra.mxu0 %v2381
        %4380 = vmatprep.subr.mxu0 %v2379
        %4381 = vmatpush2.msra.mxu0 %v2378
        %4382 = vmatprep.subr.mxu0 %v2376
        %4383 = vmatpush2.msra.mxu0 %v2375
        %4384 = vmatprep.subr.mxu0 %v2373
        %4385 = vmatpush2.msra.mxu0 %v2372
        %4386 = vmatprep.subr.mxu0 %v2370
        %4387 = vmatpush2.msra.mxu0 %v2369
        %4388 = vmatprep.subr.mxu0 %v2367
        %4389 = vmatpush2.msra.mxu0 %v2366
        %4390 = vmatprep.subr.mxu0 %v2364
        %4391 = vmatpush2.msra.mxu0 %v2363
        %4392 = vmatprep.subr.mxu0 %v2361
        %4393 = vmatpush2.msra.mxu0 %v2360
        %4394 = vmatprep.subr.mxu0 %v2358
        %4395 = vmatpush2.msra.mxu0 %v2357
        %4396 = vmatprep.subr.mxu0 %v2355
        %4397 = vmatpush2.msra.mxu0 %v2354
        %4398 = vmatprep.subr.mxu0 %v2352
        %4399 = vmatpush2.msra.mxu0 %v2351
        %4400 = vmatprep.subr.mxu0 %v2349
        %4401 = vmatpush2.msra.mxu0 %v2348
        %4402 = vmatprep.subr.mxu0 %v2346
        %4403 = vmatpush2.msra.mxu0 %v2345
        %4404 = vmatprep.mubr.f32.mxu0 %v2783
        %4405 = vmatmul.mubr.f32.gmra.mxu0 %v2781
        %v4406 = vpop.f32.mrf.mxu0
        %v4407 = vadd.f32 %v4336, %v4406
        %v4408 = vpop.f32.mrf.mxu0
        %v4409 = vadd.f32 %v4338, %v4408
        %4410 = vdwg.mxu0
        %4411 = vmatprep.subr.mxu0 %v2439
        %4412 = vmatpush1.msra.mxu0 %v2438
        %4413 = vmatprep.subr.mxu0 %v2436
        %4414 = vmatpush1.msra.mxu0 %v2435
        %4415 = vmatprep.subr.mxu0 %v2433
        %4416 = vmatpush1.msra.mxu0 %v2432
        %4417 = vmatprep.subr.mxu0 %v2430
        %4418 = vmatpush1.msra.mxu0 %v2429
        %4419 = vmatprep.subr.mxu0 %v2427
        %4420 = vmatpush1.msra.mxu0 %v2426
        %4421 = vmatprep.subr.mxu0 %v2424
        %4422 = vmatpush1.msra.mxu0 %v2423
        %4423 = vmatprep.subr.mxu0 %v2421
        %4424 = vmatpush1.msra.mxu0 %v2420
        %4425 = vmatprep.subr.mxu0 %v2418
        %4426 = vmatpush1.msra.mxu0 %v2417
        %4427 = vmatprep.subr.mxu0 %v2415
        %4428 = vmatpush1.msra.mxu0 %v2414
        %4429 = vmatprep.subr.mxu0 %v2412
        %4430 = vmatpush1.msra.mxu0 %v2411
        %4431 = vmatprep.subr.mxu0 %v2409
        %4432 = vmatpush1.msra.mxu0 %v2408
        %4433 = vmatprep.subr.mxu0 %v2406
        %4434 = vmatpush1.msra.mxu0 %v2405
        %4435 = vmatprep.subr.mxu0 %v2403
        %4436 = vmatpush1.msra.mxu0 %v2402
        %4437 = vmatprep.subr.mxu0 %v2400
        %4438 = vmatpush1.msra.mxu0 %v2399
        %4439 = vmatprep.subr.mxu0 %v2397
        %4440 = vmatpush1.msra.mxu0 %v2396
        %4441 = vmatprep.subr.mxu0 %v2394
        %4442 = vmatpush1.msra.mxu0 %v2393
        %4443 = vmatprep.subr.mxu0 %v2487
        %4444 = vmatpush2.msra.mxu0 %v2486
        %4445 = vmatprep.subr.mxu0 %v2484
        %4446 = vmatpush2.msra.mxu0 %v2483
        %4447 = vmatprep.subr.mxu0 %v2481
        %4448 = vmatpush2.msra.mxu0 %v2480
        %4449 = vmatprep.subr.mxu0 %v2478
        %4450 = vmatpush2.msra.mxu0 %v2477
        %4451 = vmatprep.subr.mxu0 %v2475
        %4452 = vmatpush2.msra.mxu0 %v2474
        %4453 = vmatprep.subr.mxu0 %v2472
        %4454 = vmatpush2.msra.mxu0 %v2471
        %4455 = vmatprep.subr.mxu0 %v2469
        %4456 = vmatpush2.msra.mxu0 %v2468
        %4457 = vmatprep.subr.mxu0 %v2466
        %4458 = vmatpush2.msra.mxu0 %v2465
        %4459 = vmatprep.subr.mxu0 %v2463
        %4460 = vmatpush2.msra.mxu0 %v2462
        %4461 = vmatprep.subr.mxu0 %v2460
        %4462 = vmatpush2.msra.mxu0 %v2459
        %4463 = vmatprep.subr.mxu0 %v2457
        %4464 = vmatpush2.msra.mxu0 %v2456
        %4465 = vmatprep.subr.mxu0 %v2454
        %4466 = vmatpush2.msra.mxu0 %v2453
        %4467 = vmatprep.subr.mxu0 %v2451
        %4468 = vmatpush2.msra.mxu0 %v2450
        %4469 = vmatprep.subr.mxu0 %v2448
        %4470 = vmatpush2.msra.mxu0 %v2447
        %4471 = vmatprep.subr.mxu0 %v2445
        %4472 = vmatpush2.msra.mxu0 %v2444
        %4473 = vmatprep.subr.mxu0 %v2442
        %4474 = vmatpush2.msra.mxu0 %v2441
        %4475 = vmatprep.mubr.f32.mxu0 %v2799
        %4476 = vmatmul.mubr.f32.gmra.mxu0 %v2791
        %v4477 = vpop.f32.mrf.mxu0
        %v4478 = vadd.f32 %v4407, %v4477
        %v4479 = vpop.f32.mrf.mxu0
        %v4480 = vadd.f32 %v4409, %v4479
        %4481 = vdwg.mxu0
        %4482 = vmatprep.subr.mxu0 %v2535
        %4483 = vmatpush1.msra.mxu0 %v2534
        %4484 = vmatprep.subr.mxu0 %v2532
        %4485 = vmatpush1.msra.mxu0 %v2531
        %4486 = vmatprep.subr.mxu0 %v2529
        %4487 = vmatpush1.msra.mxu0 %v2528
        %4488 = vmatprep.subr.mxu0 %v2526
        %4489 = vmatpush1.msra.mxu0 %v2525
        %4490 = vmatprep.subr.mxu0 %v2523
        %4491 = vmatpush1.msra.mxu0 %v2522
        %4492 = vmatprep.subr.mxu0 %v2520
        %4493 = vmatpush1.msra.mxu0 %v2519
        %4494 = vmatprep.subr.mxu0 %v2517
        %4495 = vmatpush1.msra.mxu0 %v2516
        %4496 = vmatprep.subr.mxu0 %v2514
        %4497 = vmatpush1.msra.mxu0 %v2513
        %4498 = vmatprep.subr.mxu0 %v2511
        %4499 = vmatpush1.msra.mxu0 %v2510
        %4500 = vmatprep.subr.mxu0 %v2508
        %4501 = vmatpush1.msra.mxu0 %v2507
        %4502 = vmatprep.subr.mxu0 %v2505
        %4503 = vmatpush1.msra.mxu0 %v2504
        %4504 = vmatprep.subr.mxu0 %v2502
        %4505 = vmatpush1.msra.mxu0 %v2501
        %4506 = vmatprep.subr.mxu0 %v2499
        %4507 = vmatpush1.msra.mxu0 %v2498
        %4508 = vmatprep.subr.mxu0 %v2496
        %4509 = vmatpush1.msra.mxu0 %v2495
        %4510 = vmatprep.subr.mxu0 %v2493
        %4511 = vmatpush1.msra.mxu0 %v2492
        %4512 = vmatprep.subr.mxu0 %v2490
        %4513 = vmatpush1.msra.mxu0 %v2489
        %4514 = vmatprep.subr.mxu0 %v2583
        %4515 = vmatpush2.msra.mxu0 %v2582
        %4516 = vmatprep.subr.mxu0 %v2580
        %4517 = vmatpush2.msra.mxu0 %v2579
        %4518 = vmatprep.subr.mxu0 %v2577
        %4519 = vmatpush2.msra.mxu0 %v2576
        %4520 = vmatprep.subr.mxu0 %v2574
        %4521 = vmatpush2.msra.mxu0 %v2573
        %4522 = vmatprep.subr.mxu0 %v2571
        %4523 = vmatpush2.msra.mxu0 %v2570
        %4524 = vmatprep.subr.mxu0 %v2568
        %4525 = vmatpush2.msra.mxu0 %v2567
        %4526 = vmatprep.subr.mxu0 %v2565
        %4527 = vmatpush2.msra.mxu0 %v2564
        %4528 = vmatprep.subr.mxu0 %v2562
        %4529 = vmatpush2.msra.mxu0 %v2561
        %4530 = vmatprep.subr.mxu0 %v2559
        %4531 = vmatpush2.msra.mxu0 %v2558
        %4532 = vmatprep.subr.mxu0 %v2556
        %4533 = vmatpush2.msra.mxu0 %v2555
        %4534 = vmatprep.subr.mxu0 %v2553
        %4535 = vmatpush2.msra.mxu0 %v2552
        %4536 = vmatprep.subr.mxu0 %v2550
        %4537 = vmatpush2.msra.mxu0 %v2549
        %4538 = vmatprep.subr.mxu0 %v2547
        %4539 = vmatpush2.msra.mxu0 %v2546
        %4540 = vmatprep.subr.mxu0 %v2544
        %4541 = vmatpush2.msra.mxu0 %v2543
        %4542 = vmatprep.subr.mxu0 %v2541
        %4543 = vmatpush2.msra.mxu0 %v2540
        %4544 = vmatprep.subr.mxu0 %v2538
        %4545 = vmatpush2.msra.mxu0 %v2537
        %4546 = vmatprep.mubr.f32.mxu0 %v2800
        %4547 = vmatmul.mubr.f32.gmra.mxu0 %v2798
        %v4548 = vpop.f32.mrf.mxu0
        %v4549 = vadd.f32 %v4478, %v4548
        %v4550 = vpop.f32.mrf.mxu0
        %v4551 = vadd.f32 %v4480, %v4550
        %4552 = vdwg.mxu0
        %4553 = vmatprep.subr.mxu0 0.0
        %4554 = vmatpush1.msra.mxu0 %v328
        %4555 = vmatprep.subr.mxu0 0.0
        %4556 = vmatpush1.msra.mxu0 %v325
        %4557 = vmatprep.subr.mxu0 0.0
        %4558 = vmatpush1.msra.mxu0 %v322
        %4559 = vmatprep.subr.mxu0 0.0
        %4560 = vmatpush1.msra.mxu0 %v319
        %4561 = vmatprep.subr.mxu0 0.0
        %4562 = vmatpush1.msra.mxu0 %v316
        %4563 = vmatprep.subr.mxu0 0.0
        %4564 = vmatpush1.msra.mxu0 %v313
        %4565 = vmatprep.subr.mxu0 0.0
        %4566 = vmatpush1.msra.mxu0 %v310
        %4567 = vmatprep.subr.mxu0 0.0
        %4568 = vmatpush1.msra.mxu0 %v307
        %4569 = vmatprep.subr.mxu0 0.0
        %4570 = vmatpush1.msra.mxu0 %v304
        %4571 = vmatprep.subr.mxu0 0.0
        %4572 = vmatpush1.msra.mxu0 %v301
        %4573 = vmatprep.subr.mxu0 0.0
        %4574 = vmatpush1.msra.mxu0 %v298
        %4575 = vmatprep.subr.mxu0 0.0
        %4576 = vmatpush1.msra.mxu0 %v295
        %4577 = vmatprep.subr.mxu0 0.0
        %4578 = vmatpush1.msra.mxu0 %v292
        %4579 = vmatprep.subr.mxu0 0.0
        %4580 = vmatpush1.msra.mxu0 %v289
        %4581 = vmatprep.subr.mxu0 0.0
        %4582 = vmatpush1.msra.mxu0 %v286
        %4583 = vmatprep.subr.mxu0 0.0
        %4584 = vmatpush1.msra.mxu0 %v283
        %4585 = vmatprep.subr.mxu0 0.0
        %4586 = vmatpush2.msra.mxu0 %v376
        %4587 = vmatprep.subr.mxu0 0.0
        %4588 = vmatpush2.msra.mxu0 %v373
        %4589 = vmatprep.subr.mxu0 0.0
        %4590 = vmatpush2.msra.mxu0 %v370
        %4591 = vmatprep.subr.mxu0 0.0
        %4592 = vmatpush2.msra.mxu0 %v367
        %4593 = vmatprep.subr.mxu0 0.0
        %4594 = vmatpush2.msra.mxu0 %v364
        %4595 = vmatprep.subr.mxu0 0.0
        %4596 = vmatpush2.msra.mxu0 %v361
        %4597 = vmatprep.subr.mxu0 0.0
        %4598 = vmatpush2.msra.mxu0 %v358
        %4599 = vmatprep.subr.mxu0 0.0
        %4600 = vmatpush2.msra.mxu0 %v355
        %4601 = vmatprep.subr.mxu0 0.0
        %4602 = vmatpush2.msra.mxu0 %v352
        %4603 = vmatprep.subr.mxu0 0.0
        %4604 = vmatpush2.msra.mxu0 %v349
        %4605 = vmatprep.subr.mxu0 0.0
        %4606 = vmatpush2.msra.mxu0 %v346
        %4607 = vmatprep.subr.mxu0 0.0
        %4608 = vmatpush2.msra.mxu0 %v343
        %4609 = vmatprep.subr.mxu0 0.0
        %4610 = vmatpush2.msra.mxu0 %v340
        %4611 = vmatprep.subr.mxu0 0.0
        %4612 = vmatpush2.msra.mxu0 %v337
        %4613 = vmatprep.subr.mxu0 0.0
        %4614 = vmatpush2.msra.mxu0 %v334
        %4615 = vmatprep.subr.mxu0 0.0
        %4616 = vmatpush2.msra.mxu0 %v331
        %4617 = vmatprep.mubr.f32.mxu0 %v2612
        %4618 = vmatmul.mubr.f32.gmra.mxu0 %v2604
        %v4619 = vpop.f32.mrf.mxu0
        %v4620 = vadd.f32 0.0, %v4619
        %v4621 = vpop.f32.mrf.mxu0
        %4622 = vdwg.mxu0
        %4623 = vmatprep.subr.mxu0 0.0
        %4624 = vmatpush1.msra.mxu0 %v424
        %4625 = vmatprep.subr.mxu0 0.0
        %4626 = vmatpush1.msra.mxu0 %v421
        %4627 = vmatprep.subr.mxu0 0.0
        %4628 = vmatpush1.msra.mxu0 %v418
        %4629 = vmatprep.subr.mxu0 0.0
        %4630 = vmatpush1.msra.mxu0 %v415
        %4631 = vmatprep.subr.mxu0 0.0
        %4632 = vmatpush1.msra.mxu0 %v412
        %4633 = vmatprep.subr.mxu0 0.0
        %4634 = vmatpush1.msra.mxu0 %v409
        %4635 = vmatprep.subr.mxu0 0.0
        %4636 = vmatpush1.msra.mxu0 %v406
        %4637 = vmatprep.subr.mxu0 0.0
        %4638 = vmatpush1.msra.mxu0 %v403
        %4639 = vmatprep.subr.mxu0 0.0
        %4640 = vmatpush1.msra.mxu0 %v400
        %4641 = vmatprep.subr.mxu0 0.0
        %4642 = vmatpush1.msra.mxu0 %v397
        %4643 = vmatprep.subr.mxu0 0.0
        %4644 = vmatpush1.msra.mxu0 %v394
        %4645 = vmatprep.subr.mxu0 0.0
        %4646 = vmatpush1.msra.mxu0 %v391
        %4647 = vmatprep.subr.mxu0 0.0
        %4648 = vmatpush1.msra.mxu0 %v388
        %4649 = vmatprep.subr.mxu0 0.0
        %4650 = vmatpush1.msra.mxu0 %v385
        %4651 = vmatprep.subr.mxu0 0.0
        %4652 = vmatpush1.msra.mxu0 %v382
        %4653 = vmatprep.subr.mxu0 0.0
        %4654 = vmatpush1.msra.mxu0 %v379
        %4655 = vmatprep.subr.mxu0 0.0
        %4656 = vmatpush2.msra.mxu0 %v472
        %4657 = vmatprep.subr.mxu0 0.0
        %4658 = vmatpush2.msra.mxu0 %v469
        %4659 = vmatprep.subr.mxu0 0.0
        %4660 = vmatpush2.msra.mxu0 %v466
        %4661 = vmatprep.subr.mxu0 0.0
        %4662 = vmatpush2.msra.mxu0 %v463
        %4663 = vmatprep.subr.mxu0 0.0
        %4664 = vmatpush2.msra.mxu0 %v460
        %4665 = vmatprep.subr.mxu0 0.0
        %4666 = vmatpush2.msra.mxu0 %v457
        %4667 = vmatprep.subr.mxu0 0.0
        %4668 = vmatpush2.msra.mxu0 %v454
        %4669 = vmatprep.subr.mxu0 0.0
        %4670 = vmatpush2.msra.mxu0 %v451
        %4671 = vmatprep.subr.mxu0 0.0
        %4672 = vmatpush2.msra.mxu0 %v448
        %4673 = vmatprep.subr.mxu0 0.0
        %4674 = vmatpush2.msra.mxu0 %v445
        %4675 = vmatprep.subr.mxu0 0.0
        %4676 = vmatpush2.msra.mxu0 %v442
        %4677 = vmatprep.subr.mxu0 0.0
        %4678 = vmatpush2.msra.mxu0 %v439
        %4679 = vmatprep.subr.mxu0 0.0
        %4680 = vmatpush2.msra.mxu0 %v436
        %4681 = vmatprep.subr.mxu0 0.0
        %4682 = vmatpush2.msra.mxu0 %v433
        %4683 = vmatprep.subr.mxu0 0.0
        %4684 = vmatpush2.msra.mxu0 %v430
        %4685 = vmatprep.subr.mxu0 0.0
        %4686 = vmatpush2.msra.mxu0 %v427
        %4687 = vmatprep.mubr.f32.mxu0 %v2613
        %4688 = vmatmul.mubr.f32.gmra.mxu0 %v2611
        %v4689 = vpop.f32.mrf.mxu0
        %v4690 = vadd.f32 %v4620, %v4689
        %v4691 = vpop.f32.mrf.mxu0
        %4692 = vdwg.mxu0
        %4693 = vmatprep.subr.mxu0 0.0
        %4694 = vmatpush1.msra.mxu0 %v520
        %4695 = vmatprep.subr.mxu0 0.0
        %4696 = vmatpush1.msra.mxu0 %v517
        %4697 = vmatprep.subr.mxu0 0.0
        %4698 = vmatpush1.msra.mxu0 %v514
        %4699 = vmatprep.subr.mxu0 0.0
        %4700 = vmatpush1.msra.mxu0 %v511
        %4701 = vmatprep.subr.mxu0 0.0
        %4702 = vmatpush1.msra.mxu0 %v508
        %4703 = vmatprep.subr.mxu0 0.0
        %4704 = vmatpush1.msra.mxu0 %v505
        %4705 = vmatprep.subr.mxu0 0.0
        %4706 = vmatpush1.msra.mxu0 %v502
        %4707 = vmatprep.subr.mxu0 0.0
        %4708 = vmatpush1.msra.mxu0 %v499
        %4709 = vmatprep.subr.mxu0 0.0
        %4710 = vmatpush1.msra.mxu0 %v496
        %4711 = vmatprep.subr.mxu0 0.0
        %4712 = vmatpush1.msra.mxu0 %v493
        %4713 = vmatprep.subr.mxu0 0.0
        %4714 = vmatpush1.msra.mxu0 %v490
        %4715 = vmatprep.subr.mxu0 0.0
        %4716 = vmatpush1.msra.mxu0 %v487
        %4717 = vmatprep.subr.mxu0 0.0
        %4718 = vmatpush1.msra.mxu0 %v484
        %4719 = vmatprep.subr.mxu0 0.0
        %4720 = vmatpush1.msra.mxu0 %v481
        %4721 = vmatprep.subr.mxu0 0.0
        %4722 = vmatpush1.msra.mxu0 %v478
        %4723 = vmatprep.subr.mxu0 0.0
        %4724 = vmatpush1.msra.mxu0 %v475
        %4725 = vmatprep.subr.mxu0 0.0
        %4726 = vmatpush2.msra.mxu0 %v568
        %4727 = vmatprep.subr.mxu0 0.0
        %4728 = vmatpush2.msra.mxu0 %v565
        %4729 = vmatprep.subr.mxu0 0.0
        %4730 = vmatpush2.msra.mxu0 %v562
        %4731 = vmatprep.subr.mxu0 0.0
        %4732 = vmatpush2.msra.mxu0 %v559
        %4733 = vmatprep.subr.mxu0 0.0
        %4734 = vmatpush2.msra.mxu0 %v556
        %4735 = vmatprep.subr.mxu0 0.0
        %4736 = vmatpush2.msra.mxu0 %v553
        %4737 = vmatprep.subr.mxu0 0.0
        %4738 = vmatpush2.msra.mxu0 %v550
        %4739 = vmatprep.subr.mxu0 0.0
        %4740 = vmatpush2.msra.mxu0 %v547
        %4741 = vmatprep.subr.mxu0 0.0
        %4742 = vmatpush2.msra.mxu0 %v544
        %4743 = vmatprep.subr.mxu0 0.0
        %4744 = vmatpush2.msra.mxu0 %v541
        %4745 = vmatprep.subr.mxu0 0.0
        %4746 = vmatpush2.msra.mxu0 %v538
        %4747 = vmatprep.subr.mxu0 0.0
        %4748 = vmatpush2.msra.mxu0 %v535
        %4749 = vmatprep.subr.mxu0 0.0
        %4750 = vmatpush2.msra.mxu0 %v532
        %4751 = vmatprep.subr.mxu0 0.0
        %4752 = vmatpush2.msra.mxu0 %v529
        %4753 = vmatprep.subr.mxu0 0.0
        %4754 = vmatpush2.msra.mxu0 %v526
        %4755 = vmatprep.subr.mxu0 0.0
        %4756 = vmatpush2.msra.mxu0 %v523
        %4757 = vmatprep.mubr.f32.mxu0 %v2629
        %4758 = vmatmul.mubr.f32.gmra.mxu0 %v2621
        %v4759 = vpop.f32.mrf.mxu0
        %v4760 = vadd.f32 %v4690, %v4759
        %v4761 = vpop.f32.mrf.mxu0
        %4762 = vdwg.mxu0
        %4763 = vmatprep.subr.mxu0 0.0
        %4764 = vmatpush1.msra.mxu0 %v616
        %4765 = vmatprep.subr.mxu0 0.0
        %4766 = vmatpush1.msra.mxu0 %v613
        %4767 = vmatprep.subr.mxu0 0.0
        %4768 = vmatpush1.msra.mxu0 %v610
        %4769 = vmatprep.subr.mxu0 0.0
        %4770 = vmatpush1.msra.mxu0 %v607
        %4771 = vmatprep.subr.mxu0 0.0
        %4772 = vmatpush1.msra.mxu0 %v604
        %4773 = vmatprep.subr.mxu0 0.0
        %4774 = vmatpush1.msra.mxu0 %v601
        %4775 = vmatprep.subr.mxu0 0.0
        %4776 = vmatpush1.msra.mxu0 %v598
        %4777 = vmatprep.subr.mxu0 0.0
        %4778 = vmatpush1.msra.mxu0 %v595
        %4779 = vmatprep.subr.mxu0 0.0
        %4780 = vmatpush1.msra.mxu0 %v592
        %4781 = vmatprep.subr.mxu0 0.0
        %4782 = vmatpush1.msra.mxu0 %v589
        %4783 = vmatprep.subr.mxu0 0.0
        %4784 = vmatpush1.msra.mxu0 %v586
        %4785 = vmatprep.subr.mxu0 0.0
        %4786 = vmatpush1.msra.mxu0 %v583
        %4787 = vmatprep.subr.mxu0 0.0
        %4788 = vmatpush1.msra.mxu0 %v580
        %4789 = vmatprep.subr.mxu0 0.0
        %4790 = vmatpush1.msra.mxu0 %v577
        %4791 = vmatprep.subr.mxu0 0.0
        %4792 = vmatpush1.msra.mxu0 %v574
        %4793 = vmatprep.subr.mxu0 0.0
        %4794 = vmatpush1.msra.mxu0 %v571
        %4795 = vmatprep.subr.mxu0 0.0
        %4796 = vmatpush2.msra.mxu0 %v664
        %4797 = vmatprep.subr.mxu0 0.0
        %4798 = vmatpush2.msra.mxu0 %v661
        %4799 = vmatprep.subr.mxu0 0.0
        %4800 = vmatpush2.msra.mxu0 %v658
        %4801 = vmatprep.subr.mxu0 0.0
        %4802 = vmatpush2.msra.mxu0 %v655
        %4803 = vmatprep.subr.mxu0 0.0
        %4804 = vmatpush2.msra.mxu0 %v652
        %4805 = vmatprep.subr.mxu0 0.0
        %4806 = vmatpush2.msra.mxu0 %v649
        %4807 = vmatprep.subr.mxu0 0.0
        %4808 = vmatpush2.msra.mxu0 %v646
        %4809 = vmatprep.subr.mxu0 0.0
        %4810 = vmatpush2.msra.mxu0 %v643
        %4811 = vmatprep.subr.mxu0 0.0
        %4812 = vmatpush2.msra.mxu0 %v640
        %4813 = vmatprep.subr.mxu0 0.0
        %4814 = vmatpush2.msra.mxu0 %v637
        %4815 = vmatprep.subr.mxu0 0.0
        %4816 = vmatpush2.msra.mxu0 %v634
        %4817 = vmatprep.subr.mxu0 0.0
        %4818 = vmatpush2.msra.mxu0 %v631
        %4819 = vmatprep.subr.mxu0 0.0
        %4820 = vmatpush2.msra.mxu0 %v628
        %4821 = vmatprep.subr.mxu0 0.0
        %4822 = vmatpush2.msra.mxu0 %v625
        %4823 = vmatprep.subr.mxu0 0.0
        %4824 = vmatpush2.msra.mxu0 %v622
        %4825 = vmatprep.subr.mxu0 0.0
        %4826 = vmatpush2.msra.mxu0 %v619
        %4827 = vmatprep.mubr.f32.mxu0 %v2630
        %4828 = vmatmul.mubr.f32.gmra.mxu0 %v2628
        %v4829 = vpop.f32.mrf.mxu0
        %v4830 = vadd.f32 %v4760, %v4829
        %v4831 = vpop.f32.mrf.mxu0
        %4832 = vdwg.mxu0
        %4833 = vmatprep.subr.mxu0 0.0
        %4834 = vmatpush1.msra.mxu0 %v712
        %4835 = vmatprep.subr.mxu0 0.0
        %4836 = vmatpush1.msra.mxu0 %v709
        %4837 = vmatprep.subr.mxu0 0.0
        %4838 = vmatpush1.msra.mxu0 %v706
        %4839 = vmatprep.subr.mxu0 0.0
        %4840 = vmatpush1.msra.mxu0 %v703
        %4841 = vmatprep.subr.mxu0 0.0
        %4842 = vmatpush1.msra.mxu0 %v700
        %4843 = vmatprep.subr.mxu0 0.0
        %4844 = vmatpush1.msra.mxu0 %v697
        %4845 = vmatprep.subr.mxu0 0.0
        %4846 = vmatpush1.msra.mxu0 %v694
        %4847 = vmatprep.subr.mxu0 0.0
        %4848 = vmatpush1.msra.mxu0 %v691
        %4849 = vmatprep.subr.mxu0 0.0
        %4850 = vmatpush1.msra.mxu0 %v688
        %4851 = vmatprep.subr.mxu0 0.0
        %4852 = vmatpush1.msra.mxu0 %v685
        %4853 = vmatprep.subr.mxu0 0.0
        %4854 = vmatpush1.msra.mxu0 %v682
        %4855 = vmatprep.subr.mxu0 0.0
        %4856 = vmatpush1.msra.mxu0 %v679
        %4857 = vmatprep.subr.mxu0 0.0
        %4858 = vmatpush1.msra.mxu0 %v676
        %4859 = vmatprep.subr.mxu0 0.0
        %4860 = vmatpush1.msra.mxu0 %v673
        %4861 = vmatprep.subr.mxu0 0.0
        %4862 = vmatpush1.msra.mxu0 %v670
        %4863 = vmatprep.subr.mxu0 0.0
        %4864 = vmatpush1.msra.mxu0 %v667
        %4865 = vmatprep.subr.mxu0 0.0
        %4866 = vmatpush2.msra.mxu0 %v760
        %4867 = vmatprep.subr.mxu0 0.0
        %4868 = vmatpush2.msra.mxu0 %v757
        %4869 = vmatprep.subr.mxu0 0.0
        %4870 = vmatpush2.msra.mxu0 %v754
        %4871 = vmatprep.subr.mxu0 0.0
        %4872 = vmatpush2.msra.mxu0 %v751
        %4873 = vmatprep.subr.mxu0 0.0
        %4874 = vmatpush2.msra.mxu0 %v748
        %4875 = vmatprep.subr.mxu0 0.0
        %4876 = vmatpush2.msra.mxu0 %v745
        %4877 = vmatprep.subr.mxu0 0.0
        %4878 = vmatpush2.msra.mxu0 %v742
        %4879 = vmatprep.subr.mxu0 0.0
        %4880 = vmatpush2.msra.mxu0 %v739
        %4881 = vmatprep.subr.mxu0 0.0
        %4882 = vmatpush2.msra.mxu0 %v736
        %4883 = vmatprep.subr.mxu0 0.0
        %4884 = vmatpush2.msra.mxu0 %v733
        %4885 = vmatprep.subr.mxu0 0.0
        %4886 = vmatpush2.msra.mxu0 %v730
        %4887 = vmatprep.subr.mxu0 0.0
        %4888 = vmatpush2.msra.mxu0 %v727
        %4889 = vmatprep.subr.mxu0 0.0
        %4890 = vmatpush2.msra.mxu0 %v724
        %4891 = vmatprep.subr.mxu0 0.0
        %4892 = vmatpush2.msra.mxu0 %v721
        %4893 = vmatprep.subr.mxu0 0.0
        %4894 = vmatpush2.msra.mxu0 %v718
        %4895 = vmatprep.subr.mxu0 0.0
        %4896 = vmatpush2.msra.mxu0 %v715
        %4897 = vmatprep.mubr.f32.mxu0 %v2646
        %4898 = vmatmul.mubr.f32.gmra.mxu0 %v2638
        %v4899 = vpop.f32.mrf.mxu0
        %v4900 = vadd.f32 %v4830, %v4899
        %v4901 = vpop.f32.mrf.mxu0
        %4902 = vdwg.mxu0
        %4903 = vmatprep.subr.mxu0 0.0
        %4904 = vmatpush1.msra.mxu0 %v808
        %4905 = vmatprep.subr.mxu0 0.0
        %4906 = vmatpush1.msra.mxu0 %v805
        %4907 = vmatprep.subr.mxu0 0.0
        %4908 = vmatpush1.msra.mxu0 %v802
        %4909 = vmatprep.subr.mxu0 0.0
        %4910 = vmatpush1.msra.mxu0 %v799
        %4911 = vmatprep.subr.mxu0 0.0
        %4912 = vmatpush1.msra.mxu0 %v796
        %4913 = vmatprep.subr.mxu0 0.0
        %4914 = vmatpush1.msra.mxu0 %v793
        %4915 = vmatprep.subr.mxu0 0.0
        %4916 = vmatpush1.msra.mxu0 %v790
        %4917 = vmatprep.subr.mxu0 0.0
        %4918 = vmatpush1.msra.mxu0 %v787
        %4919 = vmatprep.subr.mxu0 0.0
        %4920 = vmatpush1.msra.mxu0 %v784
        %4921 = vmatprep.subr.mxu0 0.0
        %4922 = vmatpush1.msra.mxu0 %v781
        %4923 = vmatprep.subr.mxu0 0.0
        %4924 = vmatpush1.msra.mxu0 %v778
        %4925 = vmatprep.subr.mxu0 0.0
        %4926 = vmatpush1.msra.mxu0 %v775
        %4927 = vmatprep.subr.mxu0 0.0
        %4928 = vmatpush1.msra.mxu0 %v772
        %4929 = vmatprep.subr.mxu0 0.0
        %4930 = vmatpush1.msra.mxu0 %v769
        %4931 = vmatprep.subr.mxu0 0.0
        %4932 = vmatpush1.msra.mxu0 %v766
        %4933 = vmatprep.subr.mxu0 0.0
        %4934 = vmatpush1.msra.mxu0 %v763
        %4935 = vmatprep.subr.mxu0 0.0
        %4936 = vmatpush2.msra.mxu0 %v856
        %4937 = vmatprep.subr.mxu0 0.0
        %4938 = vmatpush2.msra.mxu0 %v853
        %4939 = vmatprep.subr.mxu0 0.0
        %4940 = vmatpush2.msra.mxu0 %v850
        %4941 = vmatprep.subr.mxu0 0.0
        %4942 = vmatpush2.msra.mxu0 %v847
        %4943 = vmatprep.subr.mxu0 0.0
        %4944 = vmatpush2.msra.mxu0 %v844
        %4945 = vmatprep.subr.mxu0 0.0
        %4946 = vmatpush2.msra.mxu0 %v841
        %4947 = vmatprep.subr.mxu0 0.0
        %4948 = vmatpush2.msra.mxu0 %v838
        %4949 = vmatprep.subr.mxu0 0.0
        %4950 = vmatpush2.msra.mxu0 %v835
        %4951 = vmatprep.subr.mxu0 0.0
        %4952 = vmatpush2.msra.mxu0 %v832
        %4953 = vmatprep.subr.mxu0 0.0
        %4954 = vmatpush2.msra.mxu0 %v829
        %4955 = vmatprep.subr.mxu0 0.0
        %4956 = vmatpush2.msra.mxu0 %v826
        %4957 = vmatprep.subr.mxu0 0.0
        %4958 = vmatpush2.msra.mxu0 %v823
        %4959 = vmatprep.subr.mxu0 0.0
        %4960 = vmatpush2.msra.mxu0 %v820
        %4961 = vmatprep.subr.mxu0 0.0
        %4962 = vmatpush2.msra.mxu0 %v817
        %4963 = vmatprep.subr.mxu0 0.0
        %4964 = vmatpush2.msra.mxu0 %v814
        %4965 = vmatprep.subr.mxu0 0.0
        %4966 = vmatpush2.msra.mxu0 %v811
        %4967 = vmatprep.mubr.f32.mxu0 %v2647
        %4968 = vmatmul.mubr.f32.gmra.mxu0 %v2645
        %v4969 = vpop.f32.mrf.mxu0
        %v4970 = vadd.f32 %v4900, %v4969
        %v4971 = vpop.f32.mrf.mxu0
        %4972 = vdwg.mxu0
        %4973 = vmatprep.subr.mxu0 0.0
        %4974 = vmatpush1.msra.mxu0 %v904
        %4975 = vmatprep.subr.mxu0 0.0
        %4976 = vmatpush1.msra.mxu0 %v901
        %4977 = vmatprep.subr.mxu0 0.0
        %4978 = vmatpush1.msra.mxu0 %v898
        %4979 = vmatprep.subr.mxu0 0.0
        %4980 = vmatpush1.msra.mxu0 %v895
        %4981 = vmatprep.subr.mxu0 0.0
        %4982 = vmatpush1.msra.mxu0 %v892
        %4983 = vmatprep.subr.mxu0 0.0
        %4984 = vmatpush1.msra.mxu0 %v889
        %4985 = vmatprep.subr.mxu0 0.0
        %4986 = vmatpush1.msra.mxu0 %v886
        %4987 = vmatprep.subr.mxu0 0.0
        %4988 = vmatpush1.msra.mxu0 %v883
        %4989 = vmatprep.subr.mxu0 0.0
        %4990 = vmatpush1.msra.mxu0 %v880
        %4991 = vmatprep.subr.mxu0 0.0
        %4992 = vmatpush1.msra.mxu0 %v877
        %4993 = vmatprep.subr.mxu0 0.0
        %4994 = vmatpush1.msra.mxu0 %v874
        %4995 = vmatprep.subr.mxu0 0.0
        %4996 = vmatpush1.msra.mxu0 %v871
        %4997 = vmatprep.subr.mxu0 0.0
        %4998 = vmatpush1.msra.mxu0 %v868
        %4999 = vmatprep.subr.mxu0 0.0
        %5000 = vmatpush1.msra.mxu0 %v865
        %5001 = vmatprep.subr.mxu0 0.0
        %5002 = vmatpush1.msra.mxu0 %v862
        %5003 = vmatprep.subr.mxu0 0.0
        %5004 = vmatpush1.msra.mxu0 %v859
        %5005 = vmatprep.subr.mxu0 0.0
        %5006 = vmatpush2.msra.mxu0 %v952
        %5007 = vmatprep.subr.mxu0 0.0
        %5008 = vmatpush2.msra.mxu0 %v949
        %5009 = vmatprep.subr.mxu0 0.0
        %5010 = vmatpush2.msra.mxu0 %v946
        %5011 = vmatprep.subr.mxu0 0.0
        %5012 = vmatpush2.msra.mxu0 %v943
        %5013 = vmatprep.subr.mxu0 0.0
        %5014 = vmatpush2.msra.mxu0 %v940
        %5015 = vmatprep.subr.mxu0 0.0
        %5016 = vmatpush2.msra.mxu0 %v937
        %5017 = vmatprep.subr.mxu0 0.0
        %5018 = vmatpush2.msra.mxu0 %v934
        %5019 = vmatprep.subr.mxu0 0.0
        %5020 = vmatpush2.msra.mxu0 %v931
        %5021 = vmatprep.subr.mxu0 0.0
        %5022 = vmatpush2.msra.mxu0 %v928
        %5023 = vmatprep.subr.mxu0 0.0
        %5024 = vmatpush2.msra.mxu0 %v925
        %5025 = vmatprep.subr.mxu0 0.0
        %5026 = vmatpush2.msra.mxu0 %v922
        %5027 = vmatprep.subr.mxu0 0.0
        %5028 = vmatpush2.msra.mxu0 %v919
        %5029 = vmatprep.subr.mxu0 0.0
        %5030 = vmatpush2.msra.mxu0 %v916
        %5031 = vmatprep.subr.mxu0 0.0
        %5032 = vmatpush2.msra.mxu0 %v913
        %5033 = vmatprep.subr.mxu0 0.0
        %5034 = vmatpush2.msra.mxu0 %v910
        %5035 = vmatprep.subr.mxu0 0.0
        %5036 = vmatpush2.msra.mxu0 %v907
        %5037 = vmatprep.mubr.f32.mxu0 %v2663
        %5038 = vmatmul.mubr.f32.gmra.mxu0 %v2655
        %v5039 = vpop.f32.mrf.mxu0
        %v5040 = vadd.f32 %v4970, %v5039
        %v5041 = vpop.f32.mrf.mxu0
        %5042 = vdwg.mxu0
        %5043 = vmatprep.subr.mxu0 0.0
        %5044 = vmatpush1.msra.mxu0 %v1000
        %5045 = vmatprep.subr.mxu0 0.0
        %5046 = vmatpush1.msra.mxu0 %v997
        %5047 = vmatprep.subr.mxu0 0.0
        %5048 = vmatpush1.msra.mxu0 %v994
        %5049 = vmatprep.subr.mxu0 0.0
        %5050 = vmatpush1.msra.mxu0 %v991
        %5051 = vmatprep.subr.mxu0 0.0
        %5052 = vmatpush1.msra.mxu0 %v988
        %5053 = vmatprep.subr.mxu0 0.0
        %5054 = vmatpush1.msra.mxu0 %v985
        %5055 = vmatprep.subr.mxu0 0.0
        %5056 = vmatpush1.msra.mxu0 %v982
        %5057 = vmatprep.subr.mxu0 0.0
        %5058 = vmatpush1.msra.mxu0 %v979
        %5059 = vmatprep.subr.mxu0 0.0
        %5060 = vmatpush1.msra.mxu0 %v976
        %5061 = vmatprep.subr.mxu0 0.0
        %5062 = vmatpush1.msra.mxu0 %v973
        %5063 = vmatprep.subr.mxu0 0.0
        %5064 = vmatpush1.msra.mxu0 %v970
        %5065 = vmatprep.subr.mxu0 0.0
        %5066 = vmatpush1.msra.mxu0 %v967
        %5067 = vmatprep.subr.mxu0 0.0
        %5068 = vmatpush1.msra.mxu0 %v964
        %5069 = vmatprep.subr.mxu0 0.0
        %5070 = vmatpush1.msra.mxu0 %v961
        %5071 = vmatprep.subr.mxu0 0.0
        %5072 = vmatpush1.msra.mxu0 %v958
        %5073 = vmatprep.subr.mxu0 0.0
        %5074 = vmatpush1.msra.mxu0 %v955
        %5075 = vmatprep.subr.mxu0 0.0
        %5076 = vmatpush2.msra.mxu0 %v1048
        %5077 = vmatprep.subr.mxu0 0.0
        %5078 = vmatpush2.msra.mxu0 %v1045
        %5079 = vmatprep.subr.mxu0 0.0
        %5080 = vmatpush2.msra.mxu0 %v1042
        %5081 = vmatprep.subr.mxu0 0.0
        %5082 = vmatpush2.msra.mxu0 %v1039
        %5083 = vmatprep.subr.mxu0 0.0
        %5084 = vmatpush2.msra.mxu0 %v1036
        %5085 = vmatprep.subr.mxu0 0.0
        %5086 = vmatpush2.msra.mxu0 %v1033
        %5087 = vmatprep.subr.mxu0 0.0
        %5088 = vmatpush2.msra.mxu0 %v1030
        %5089 = vmatprep.subr.mxu0 0.0
        %5090 = vmatpush2.msra.mxu0 %v1027
        %5091 = vmatprep.subr.mxu0 0.0
        %5092 = vmatpush2.msra.mxu0 %v1024
        %5093 = vmatprep.subr.mxu0 0.0
        %5094 = vmatpush2.msra.mxu0 %v1021
        %5095 = vmatprep.subr.mxu0 0.0
        %5096 = vmatpush2.msra.mxu0 %v1018
        %5097 = vmatprep.subr.mxu0 0.0
        %5098 = vmatpush2.msra.mxu0 %v1015
        %5099 = vmatprep.subr.mxu0 0.0
        %5100 = vmatpush2.msra.mxu0 %v1012
        %5101 = vmatprep.subr.mxu0 0.0
        %5102 = vmatpush2.msra.mxu0 %v1009
        %5103 = vmatprep.subr.mxu0 0.0
        %5104 = vmatpush2.msra.mxu0 %v1006
        %5105 = vmatprep.subr.mxu0 0.0
        %5106 = vmatpush2.msra.mxu0 %v1003
        %5107 = vmatprep.mubr.f32.mxu0 %v2664
        %5108 = vmatmul.mubr.f32.gmra.mxu0 %v2662
        %v5109 = vpop.f32.mrf.mxu0
        %v5110 = vadd.f32 %v5040, %v5109
        %v5111 = vpop.f32.mrf.mxu0
        %5112 = vdwg.mxu0
        %5113 = vmatprep.subr.mxu0 0.0
        %5114 = vmatpush1.msra.mxu0 %v1096
        %5115 = vmatprep.subr.mxu0 0.0
        %5116 = vmatpush1.msra.mxu0 %v1093
        %5117 = vmatprep.subr.mxu0 0.0
        %5118 = vmatpush1.msra.mxu0 %v1090
        %5119 = vmatprep.subr.mxu0 0.0
        %5120 = vmatpush1.msra.mxu0 %v1087
        %5121 = vmatprep.subr.mxu0 0.0
        %5122 = vmatpush1.msra.mxu0 %v1084
        %5123 = vmatprep.subr.mxu0 0.0
        %5124 = vmatpush1.msra.mxu0 %v1081
        %5125 = vmatprep.subr.mxu0 0.0
        %5126 = vmatpush1.msra.mxu0 %v1078
        %5127 = vmatprep.subr.mxu0 0.0
        %5128 = vmatpush1.msra.mxu0 %v1075
        %5129 = vmatprep.subr.mxu0 0.0
        %5130 = vmatpush1.msra.mxu0 %v1072
        %5131 = vmatprep.subr.mxu0 0.0
        %5132 = vmatpush1.msra.mxu0 %v1069
        %5133 = vmatprep.subr.mxu0 0.0
        %5134 = vmatpush1.msra.mxu0 %v1066
        %5135 = vmatprep.subr.mxu0 0.0
        %5136 = vmatpush1.msra.mxu0 %v1063
        %5137 = vmatprep.subr.mxu0 0.0
        %5138 = vmatpush1.msra.mxu0 %v1060
        %5139 = vmatprep.subr.mxu0 0.0
        %5140 = vmatpush1.msra.mxu0 %v1057
        %5141 = vmatprep.subr.mxu0 0.0
        %5142 = vmatpush1.msra.mxu0 %v1054
        %5143 = vmatprep.subr.mxu0 0.0
        %5144 = vmatpush1.msra.mxu0 %v1051
        %5145 = vmatprep.subr.mxu0 0.0
        %5146 = vmatpush2.msra.mxu0 %v1144
        %5147 = vmatprep.subr.mxu0 0.0
        %5148 = vmatpush2.msra.mxu0 %v1141
        %5149 = vmatprep.subr.mxu0 0.0
        %5150 = vmatpush2.msra.mxu0 %v1138
        %5151 = vmatprep.subr.mxu0 0.0
        %5152 = vmatpush2.msra.mxu0 %v1135
        %5153 = vmatprep.subr.mxu0 0.0
        %5154 = vmatpush2.msra.mxu0 %v1132
        %5155 = vmatprep.subr.mxu0 0.0
        %5156 = vmatpush2.msra.mxu0 %v1129
        %5157 = vmatprep.subr.mxu0 0.0
        %5158 = vmatpush2.msra.mxu0 %v1126
        %5159 = vmatprep.subr.mxu0 0.0
        %5160 = vmatpush2.msra.mxu0 %v1123
        %5161 = vmatprep.subr.mxu0 0.0
        %5162 = vmatpush2.msra.mxu0 %v1120
        %5163 = vmatprep.subr.mxu0 0.0
        %5164 = vmatpush2.msra.mxu0 %v1117
        %5165 = vmatprep.subr.mxu0 0.0
        %5166 = vmatpush2.msra.mxu0 %v1114
        %5167 = vmatprep.subr.mxu0 0.0
        %5168 = vmatpush2.msra.mxu0 %v1111
        %5169 = vmatprep.subr.mxu0 0.0
        %5170 = vmatpush2.msra.mxu0 %v1108
        %5171 = vmatprep.subr.mxu0 0.0
        %5172 = vmatpush2.msra.mxu0 %v1105
        %5173 = vmatprep.subr.mxu0 0.0
        %5174 = vmatpush2.msra.mxu0 %v1102
        %5175 = vmatprep.subr.mxu0 0.0
        %5176 = vmatpush2.msra.mxu0 %v1099
        %5177 = vmatprep.mubr.f32.mxu0 %v2680
        %5178 = vmatmul.mubr.f32.gmra.mxu0 %v2672
        %v5179 = vpop.f32.mrf.mxu0
        %v5180 = vadd.f32 %v5110, %v5179
        %v5181 = vpop.f32.mrf.mxu0
        %5182 = vdwg.mxu0
        %5183 = vmatprep.subr.mxu0 0.0
        %5184 = vmatpush1.msra.mxu0 %v1192
        %5185 = vmatprep.subr.mxu0 0.0
        %5186 = vmatpush1.msra.mxu0 %v1189
        %5187 = vmatprep.subr.mxu0 0.0
        %5188 = vmatpush1.msra.mxu0 %v1186
        %5189 = vmatprep.subr.mxu0 0.0
        %5190 = vmatpush1.msra.mxu0 %v1183
        %5191 = vmatprep.subr.mxu0 0.0
        %5192 = vmatpush1.msra.mxu0 %v1180
        %5193 = vmatprep.subr.mxu0 0.0
        %5194 = vmatpush1.msra.mxu0 %v1177
        %5195 = vmatprep.subr.mxu0 0.0
        %5196 = vmatpush1.msra.mxu0 %v1174
        %5197 = vmatprep.subr.mxu0 0.0
        %5198 = vmatpush1.msra.mxu0 %v1171
        %5199 = vmatprep.subr.mxu0 0.0
        %5200 = vmatpush1.msra.mxu0 %v1168
        %5201 = vmatprep.subr.mxu0 0.0
        %5202 = vmatpush1.msra.mxu0 %v1165
        %5203 = vmatprep.subr.mxu0 0.0
        %5204 = vmatpush1.msra.mxu0 %v1162
        %5205 = vmatprep.subr.mxu0 0.0
        %5206 = vmatpush1.msra.mxu0 %v1159
        %5207 = vmatprep.subr.mxu0 0.0
        %5208 = vmatpush1.msra.mxu0 %v1156
        %5209 = vmatprep.subr.mxu0 0.0
        %5210 = vmatpush1.msra.mxu0 %v1153
        %5211 = vmatprep.subr.mxu0 0.0
        %5212 = vmatpush1.msra.mxu0 %v1150
        %5213 = vmatprep.subr.mxu0 0.0
        %5214 = vmatpush1.msra.mxu0 %v1147
        %5215 = vmatprep.subr.mxu0 0.0
        %5216 = vmatpush2.msra.mxu0 %v1240
        %5217 = vmatprep.subr.mxu0 0.0
        %5218 = vmatpush2.msra.mxu0 %v1237
        %5219 = vmatprep.subr.mxu0 0.0
        %5220 = vmatpush2.msra.mxu0 %v1234
        %5221 = vmatprep.subr.mxu0 0.0
        %5222 = vmatpush2.msra.mxu0 %v1231
        %5223 = vmatprep.subr.mxu0 0.0
        %5224 = vmatpush2.msra.mxu0 %v1228
        %5225 = vmatprep.subr.mxu0 0.0
        %5226 = vmatpush2.msra.mxu0 %v1225
        %5227 = vmatprep.subr.mxu0 0.0
        %5228 = vmatpush2.msra.mxu0 %v1222
        %5229 = vmatprep.subr.mxu0 0.0
        %5230 = vmatpush2.msra.mxu0 %v1219
        %5231 = vmatprep.subr.mxu0 0.0
        %5232 = vmatpush2.msra.mxu0 %v1216
        %5233 = vmatprep.subr.mxu0 0.0
        %5234 = vmatpush2.msra.mxu0 %v1213
        %5235 = vmatprep.subr.mxu0 0.0
        %5236 = vmatpush2.msra.mxu0 %v1210
        %5237 = vmatprep.subr.mxu0 0.0
        %5238 = vmatpush2.msra.mxu0 %v1207
        %5239 = vmatprep.subr.mxu0 0.0
        %5240 = vmatpush2.msra.mxu0 %v1204
        %5241 = vmatprep.subr.mxu0 0.0
        %5242 = vmatpush2.msra.mxu0 %v1201
        %5243 = vmatprep.subr.mxu0 0.0
        %5244 = vmatpush2.msra.mxu0 %v1198
        %5245 = vmatprep.subr.mxu0 0.0
        %5246 = vmatpush2.msra.mxu0 %v1195
        %5247 = vmatprep.mubr.f32.mxu0 %v2681
        %5248 = vmatmul.mubr.f32.gmra.mxu0 %v2679
        %v5249 = vpop.f32.mrf.mxu0
        %v5250 = vadd.f32 %v5180, %v5249
        %v5251 = vpop.f32.mrf.mxu0
        %5252 = vdwg.mxu0
        %5253 = vmatprep.subr.mxu0 0.0
        %5254 = vmatpush1.msra.mxu0 %v1288
        %5255 = vmatprep.subr.mxu0 0.0
        %5256 = vmatpush1.msra.mxu0 %v1285
        %5257 = vmatprep.subr.mxu0 0.0
        %5258 = vmatpush1.msra.mxu0 %v1282
        %5259 = vmatprep.subr.mxu0 0.0
        %5260 = vmatpush1.msra.mxu0 %v1279
        %5261 = vmatprep.subr.mxu0 0.0
        %5262 = vmatpush1.msra.mxu0 %v1276
        %5263 = vmatprep.subr.mxu0 0.0
        %5264 = vmatpush1.msra.mxu0 %v1273
        %5265 = vmatprep.subr.mxu0 0.0
        %5266 = vmatpush1.msra.mxu0 %v1270
        %5267 = vmatprep.subr.mxu0 0.0
        %5268 = vmatpush1.msra.mxu0 %v1267
        %5269 = vmatprep.subr.mxu0 0.0
        %5270 = vmatpush1.msra.mxu0 %v1264
        %5271 = vmatprep.subr.mxu0 0.0
        %5272 = vmatpush1.msra.mxu0 %v1261
        %5273 = vmatprep.subr.mxu0 0.0
        %5274 = vmatpush1.msra.mxu0 %v1258
        %5275 = vmatprep.subr.mxu0 0.0
        %5276 = vmatpush1.msra.mxu0 %v1255
        %5277 = vmatprep.subr.mxu0 0.0
        %5278 = vmatpush1.msra.mxu0 %v1252
        %5279 = vmatprep.subr.mxu0 0.0
        %5280 = vmatpush1.msra.mxu0 %v1249
        %5281 = vmatprep.subr.mxu0 0.0
        %5282 = vmatpush1.msra.mxu0 %v1246
        %5283 = vmatprep.subr.mxu0 0.0
        %5284 = vmatpush1.msra.mxu0 %v1243
        %5285 = vmatprep.subr.mxu0 0.0
        %5286 = vmatpush2.msra.mxu0 %v1336
        %5287 = vmatprep.subr.mxu0 0.0
        %5288 = vmatpush2.msra.mxu0 %v1333
        %5289 = vmatprep.subr.mxu0 0.0
        %5290 = vmatpush2.msra.mxu0 %v1330
        %5291 = vmatprep.subr.mxu0 0.0
        %5292 = vmatpush2.msra.mxu0 %v1327
        %5293 = vmatprep.subr.mxu0 0.0
        %5294 = vmatpush2.msra.mxu0 %v1324
        %5295 = vmatprep.subr.mxu0 0.0
        %5296 = vmatpush2.msra.mxu0 %v1321
        %5297 = vmatprep.subr.mxu0 0.0
        %5298 = vmatpush2.msra.mxu0 %v1318
        %5299 = vmatprep.subr.mxu0 0.0
        %5300 = vmatpush2.msra.mxu0 %v1315
        %5301 = vmatprep.subr.mxu0 0.0
        %5302 = vmatpush2.msra.mxu0 %v1312
        %5303 = vmatprep.subr.mxu0 0.0
        %5304 = vmatpush2.msra.mxu0 %v1309
        %5305 = vmatprep.subr.mxu0 0.0
        %5306 = vmatpush2.msra.mxu0 %v1306
        %5307 = vmatprep.subr.mxu0 0.0
        %5308 = vmatpush2.msra.mxu0 %v1303
        %5309 = vmatprep.subr.mxu0 0.0
        %5310 = vmatpush2.msra.mxu0 %v1300
        %5311 = vmatprep.subr.mxu0 0.0
        %5312 = vmatpush2.msra.mxu0 %v1297
        %5313 = vmatprep.subr.mxu0 0.0
        %5314 = vmatpush2.msra.mxu0 %v1294
        %5315 = vmatprep.subr.mxu0 0.0
        %5316 = vmatpush2.msra.mxu0 %v1291
        %5317 = vmatprep.mubr.f32.mxu0 %v2697
        %5318 = vmatmul.mubr.f32.gmra.mxu0 %v2689
        %v5319 = vpop.f32.mrf.mxu0
        %v5320 = vadd.f32 %v5250, %v5319
        %v5321 = vpop.f32.mrf.mxu0
        %5322 = vdwg.mxu0
        %5323 = vmatprep.subr.mxu0 0.0
        %5324 = vmatpush1.msra.mxu0 %v1384
        %5325 = vmatprep.subr.mxu0 0.0
        %5326 = vmatpush1.msra.mxu0 %v1381
        %5327 = vmatprep.subr.mxu0 0.0
        %5328 = vmatpush1.msra.mxu0 %v1378
        %5329 = vmatprep.subr.mxu0 0.0
        %5330 = vmatpush1.msra.mxu0 %v1375
        %5331 = vmatprep.subr.mxu0 0.0
        %5332 = vmatpush1.msra.mxu0 %v1372
        %5333 = vmatprep.subr.mxu0 0.0
        %5334 = vmatpush1.msra.mxu0 %v1369
        %5335 = vmatprep.subr.mxu0 0.0
        %5336 = vmatpush1.msra.mxu0 %v1366
        %5337 = vmatprep.subr.mxu0 0.0
        %5338 = vmatpush1.msra.mxu0 %v1363
        %5339 = vmatprep.subr.mxu0 0.0
        %5340 = vmatpush1.msra.mxu0 %v1360
        %5341 = vmatprep.subr.mxu0 0.0
        %5342 = vmatpush1.msra.mxu0 %v1357
        %5343 = vmatprep.subr.mxu0 0.0
        %5344 = vmatpush1.msra.mxu0 %v1354
        %5345 = vmatprep.subr.mxu0 0.0
        %5346 = vmatpush1.msra.mxu0 %v1351
        %5347 = vmatprep.subr.mxu0 0.0
        %5348 = vmatpush1.msra.mxu0 %v1348
        %5349 = vmatprep.subr.mxu0 0.0
        %5350 = vmatpush1.msra.mxu0 %v1345
        %5351 = vmatprep.subr.mxu0 0.0
        %5352 = vmatpush1.msra.mxu0 %v1342
        %5353 = vmatprep.subr.mxu0 0.0
        %5354 = vmatpush1.msra.mxu0 %v1339
        %5355 = vmatprep.subr.mxu0 0.0
        %5356 = vmatpush2.msra.mxu0 %v1432
        %5357 = vmatprep.subr.mxu0 0.0
        %5358 = vmatpush2.msra.mxu0 %v1429
        %5359 = vmatprep.subr.mxu0 0.0
        %5360 = vmatpush2.msra.mxu0 %v1426
        %5361 = vmatprep.subr.mxu0 0.0
        %5362 = vmatpush2.msra.mxu0 %v1423
        %5363 = vmatprep.subr.mxu0 0.0
        %5364 = vmatpush2.msra.mxu0 %v1420
        %5365 = vmatprep.subr.mxu0 0.0
        %5366 = vmatpush2.msra.mxu0 %v1417
        %5367 = vmatprep.subr.mxu0 0.0
        %5368 = vmatpush2.msra.mxu0 %v1414
        %5369 = vmatprep.subr.mxu0 0.0
        %5370 = vmatpush2.msra.mxu0 %v1411
        %5371 = vmatprep.subr.mxu0 0.0
        %5372 = vmatpush2.msra.mxu0 %v1408
        %5373 = vmatprep.subr.mxu0 0.0
        %5374 = vmatpush2.msra.mxu0 %v1405
        %5375 = vmatprep.subr.mxu0 0.0
        %5376 = vmatpush2.msra.mxu0 %v1402
        %5377 = vmatprep.subr.mxu0 0.0
        %5378 = vmatpush2.msra.mxu0 %v1399
        %5379 = vmatprep.subr.mxu0 0.0
        %5380 = vmatpush2.msra.mxu0 %v1396
        %5381 = vmatprep.subr.mxu0 0.0
        %5382 = vmatpush2.msra.mxu0 %v1393
        %5383 = vmatprep.subr.mxu0 0.0
        %5384 = vmatpush2.msra.mxu0 %v1390
        %5385 = vmatprep.subr.mxu0 0.0
        %5386 = vmatpush2.msra.mxu0 %v1387
        %5387 = vmatprep.mubr.f32.mxu0 %v2698
        %5388 = vmatmul.mubr.f32.gmra.mxu0 %v2696
        %v5389 = vpop.f32.mrf.mxu0
        %v5390 = vadd.f32 %v5320, %v5389
        %v5391 = vpop.f32.mrf.mxu0
        %5392 = vdwg.mxu0
        %5393 = vmatprep.subr.mxu0 0.0
        %5394 = vmatpush1.msra.mxu0 %v1480
        %5395 = vmatprep.subr.mxu0 0.0
        %5396 = vmatpush1.msra.mxu0 %v1477
        %5397 = vmatprep.subr.mxu0 0.0
        %5398 = vmatpush1.msra.mxu0 %v1474
        %5399 = vmatprep.subr.mxu0 0.0
        %5400 = vmatpush1.msra.mxu0 %v1471
        %5401 = vmatprep.subr.mxu0 0.0
        %5402 = vmatpush1.msra.mxu0 %v1468
        %5403 = vmatprep.subr.mxu0 0.0
        %5404 = vmatpush1.msra.mxu0 %v1465
        %5405 = vmatprep.subr.mxu0 0.0
        %5406 = vmatpush1.msra.mxu0 %v1462
        %5407 = vmatprep.subr.mxu0 0.0
        %5408 = vmatpush1.msra.mxu0 %v1459
        %5409 = vmatprep.subr.mxu0 0.0
        %5410 = vmatpush1.msra.mxu0 %v1456
        %5411 = vmatprep.subr.mxu0 0.0
        %5412 = vmatpush1.msra.mxu0 %v1453
        %5413 = vmatprep.subr.mxu0 0.0
        %5414 = vmatpush1.msra.mxu0 %v1450
        %5415 = vmatprep.subr.mxu0 0.0
        %5416 = vmatpush1.msra.mxu0 %v1447
        %5417 = vmatprep.subr.mxu0 0.0
        %5418 = vmatpush1.msra.mxu0 %v1444
        %5419 = vmatprep.subr.mxu0 0.0
        %5420 = vmatpush1.msra.mxu0 %v1441
        %5421 = vmatprep.subr.mxu0 0.0
        %5422 = vmatpush1.msra.mxu0 %v1438
        %5423 = vmatprep.subr.mxu0 0.0
        %5424 = vmatpush1.msra.mxu0 %v1435
        %5425 = vmatprep.subr.mxu0 0.0
        %5426 = vmatpush2.msra.mxu0 %v1528
        %5427 = vmatprep.subr.mxu0 0.0
        %5428 = vmatpush2.msra.mxu0 %v1525
        %5429 = vmatprep.subr.mxu0 0.0
        %5430 = vmatpush2.msra.mxu0 %v1522
        %5431 = vmatprep.subr.mxu0 0.0
        %5432 = vmatpush2.msra.mxu0 %v1519
        %5433 = vmatprep.subr.mxu0 0.0
        %5434 = vmatpush2.msra.mxu0 %v1516
        %5435 = vmatprep.subr.mxu0 0.0
        %5436 = vmatpush2.msra.mxu0 %v1513
        %5437 = vmatprep.subr.mxu0 0.0
        %5438 = vmatpush2.msra.mxu0 %v1510
        %5439 = vmatprep.subr.mxu0 0.0
        %5440 = vmatpush2.msra.mxu0 %v1507
        %5441 = vmatprep.subr.mxu0 0.0
        %5442 = vmatpush2.msra.mxu0 %v1504
        %5443 = vmatprep.subr.mxu0 0.0
        %5444 = vmatpush2.msra.mxu0 %v1501
        %5445 = vmatprep.subr.mxu0 0.0
        %5446 = vmatpush2.msra.mxu0 %v1498
        %5447 = vmatprep.subr.mxu0 0.0
        %5448 = vmatpush2.msra.mxu0 %v1495
        %5449 = vmatprep.subr.mxu0 0.0
        %5450 = vmatpush2.msra.mxu0 %v1492
        %5451 = vmatprep.subr.mxu0 0.0
        %5452 = vmatpush2.msra.mxu0 %v1489
        %5453 = vmatprep.subr.mxu0 0.0
        %5454 = vmatpush2.msra.mxu0 %v1486
        %5455 = vmatprep.subr.mxu0 0.0
        %5456 = vmatpush2.msra.mxu0 %v1483
        %5457 = vmatprep.mubr.f32.mxu0 %v2714
        %5458 = vmatmul.mubr.f32.gmra.mxu0 %v2706
        %v5459 = vpop.f32.mrf.mxu0
        %v5460 = vadd.f32 %v5390, %v5459
        %v5461 = vpop.f32.mrf.mxu0
        %5462 = vdwg.mxu0
        %5463 = vmatprep.subr.mxu0 0.0
        %5464 = vmatpush1.msra.mxu0 %v1576
        %5465 = vmatprep.subr.mxu0 0.0
        %5466 = vmatpush1.msra.mxu0 %v1573
        %5467 = vmatprep.subr.mxu0 0.0
        %5468 = vmatpush1.msra.mxu0 %v1570
        %5469 = vmatprep.subr.mxu0 0.0
        %5470 = vmatpush1.msra.mxu0 %v1567
        %5471 = vmatprep.subr.mxu0 0.0
        %5472 = vmatpush1.msra.mxu0 %v1564
        %5473 = vmatprep.subr.mxu0 0.0
        %5474 = vmatpush1.msra.mxu0 %v1561
        %5475 = vmatprep.subr.mxu0 0.0
        %5476 = vmatpush1.msra.mxu0 %v1558
        %5477 = vmatprep.subr.mxu0 0.0
        %5478 = vmatpush1.msra.mxu0 %v1555
        %5479 = vmatprep.subr.mxu0 0.0
        %5480 = vmatpush1.msra.mxu0 %v1552
        %5481 = vmatprep.subr.mxu0 0.0
        %5482 = vmatpush1.msra.mxu0 %v1549
        %5483 = vmatprep.subr.mxu0 0.0
        %5484 = vmatpush1.msra.mxu0 %v1546
        %5485 = vmatprep.subr.mxu0 0.0
        %5486 = vmatpush1.msra.mxu0 %v1543
        %5487 = vmatprep.subr.mxu0 0.0
        %5488 = vmatpush1.msra.mxu0 %v1540
        %5489 = vmatprep.subr.mxu0 0.0
        %5490 = vmatpush1.msra.mxu0 %v1537
        %5491 = vmatprep.subr.mxu0 0.0
        %5492 = vmatpush1.msra.mxu0 %v1534
        %5493 = vmatprep.subr.mxu0 0.0
        %5494 = vmatpush1.msra.mxu0 %v1531
        %5495 = vmatprep.subr.mxu0 0.0
        %5496 = vmatpush2.msra.mxu0 %v1624
        %5497 = vmatprep.subr.mxu0 0.0
        %5498 = vmatpush2.msra.mxu0 %v1621
        %5499 = vmatprep.subr.mxu0 0.0
        %5500 = vmatpush2.msra.mxu0 %v1618
        %5501 = vmatprep.subr.mxu0 0.0
        %5502 = vmatpush2.msra.mxu0 %v1615
        %5503 = vmatprep.subr.mxu0 0.0
        %5504 = vmatpush2.msra.mxu0 %v1612
        %5505 = vmatprep.subr.mxu0 0.0
        %5506 = vmatpush2.msra.mxu0 %v1609
        %5507 = vmatprep.subr.mxu0 0.0
        %5508 = vmatpush2.msra.mxu0 %v1606
        %5509 = vmatprep.subr.mxu0 0.0
        %5510 = vmatpush2.msra.mxu0 %v1603
        %5511 = vmatprep.subr.mxu0 0.0
        %5512 = vmatpush2.msra.mxu0 %v1600
        %5513 = vmatprep.subr.mxu0 0.0
        %5514 = vmatpush2.msra.mxu0 %v1597
        %5515 = vmatprep.subr.mxu0 0.0
        %5516 = vmatpush2.msra.mxu0 %v1594
        %5517 = vmatprep.subr.mxu0 0.0
        %5518 = vmatpush2.msra.mxu0 %v1591
        %5519 = vmatprep.subr.mxu0 0.0
        %5520 = vmatpush2.msra.mxu0 %v1588
        %5521 = vmatprep.subr.mxu0 0.0
        %5522 = vmatpush2.msra.mxu0 %v1585
        %5523 = vmatprep.subr.mxu0 0.0
        %5524 = vmatpush2.msra.mxu0 %v1582
        %5525 = vmatprep.subr.mxu0 0.0
        %5526 = vmatpush2.msra.mxu0 %v1579
        %5527 = vmatprep.mubr.f32.mxu0 %v2715
        %5528 = vmatmul.mubr.f32.gmra.mxu0 %v2713
        %v5529 = vpop.f32.mrf.mxu0
        %v5530 = vadd.f32 %v5460, %v5529
        %v5531 = vpop.f32.mrf.mxu0
        %5532 = vdwg.mxu0
        %5533 = vmatprep.subr.mxu0 0.0
        %5534 = vmatpush1.msra.mxu0 %v1672
        %5535 = vmatprep.subr.mxu0 0.0
        %5536 = vmatpush1.msra.mxu0 %v1669
        %5537 = vmatprep.subr.mxu0 0.0
        %5538 = vmatpush1.msra.mxu0 %v1666
        %5539 = vmatprep.subr.mxu0 0.0
        %5540 = vmatpush1.msra.mxu0 %v1663
        %5541 = vmatprep.subr.mxu0 0.0
        %5542 = vmatpush1.msra.mxu0 %v1660
        %5543 = vmatprep.subr.mxu0 0.0
        %5544 = vmatpush1.msra.mxu0 %v1657
        %5545 = vmatprep.subr.mxu0 0.0
        %5546 = vmatpush1.msra.mxu0 %v1654
        %5547 = vmatprep.subr.mxu0 0.0
        %5548 = vmatpush1.msra.mxu0 %v1651
        %5549 = vmatprep.subr.mxu0 0.0
        %5550 = vmatpush1.msra.mxu0 %v1648
        %5551 = vmatprep.subr.mxu0 0.0
        %5552 = vmatpush1.msra.mxu0 %v1645
        %5553 = vmatprep.subr.mxu0 0.0
        %5554 = vmatpush1.msra.mxu0 %v1642
        %5555 = vmatprep.subr.mxu0 0.0
        %5556 = vmatpush1.msra.mxu0 %v1639
        %5557 = vmatprep.subr.mxu0 0.0
        %5558 = vmatpush1.msra.mxu0 %v1636
        %5559 = vmatprep.subr.mxu0 0.0
        %5560 = vmatpush1.msra.mxu0 %v1633
        %5561 = vmatprep.subr.mxu0 0.0
        %5562 = vmatpush1.msra.mxu0 %v1630
        %5563 = vmatprep.subr.mxu0 0.0
        %5564 = vmatpush1.msra.mxu0 %v1627
        %5565 = vmatprep.subr.mxu0 0.0
        %5566 = vmatpush2.msra.mxu0 %v1720
        %5567 = vmatprep.subr.mxu0 0.0
        %5568 = vmatpush2.msra.mxu0 %v1717
        %5569 = vmatprep.subr.mxu0 0.0
        %5570 = vmatpush2.msra.mxu0 %v1714
        %5571 = vmatprep.subr.mxu0 0.0
        %5572 = vmatpush2.msra.mxu0 %v1711
        %5573 = vmatprep.subr.mxu0 0.0
        %5574 = vmatpush2.msra.mxu0 %v1708
        %5575 = vmatprep.subr.mxu0 0.0
        %5576 = vmatpush2.msra.mxu0 %v1705
        %5577 = vmatprep.subr.mxu0 0.0
        %5578 = vmatpush2.msra.mxu0 %v1702
        %5579 = vmatprep.subr.mxu0 0.0
        %5580 = vmatpush2.msra.mxu0 %v1699
        %5581 = vmatprep.subr.mxu0 0.0
        %5582 = vmatpush2.msra.mxu0 %v1696
        %5583 = vmatprep.subr.mxu0 0.0
        %5584 = vmatpush2.msra.mxu0 %v1693
        %5585 = vmatprep.subr.mxu0 0.0
        %5586 = vmatpush2.msra.mxu0 %v1690
        %5587 = vmatprep.subr.mxu0 0.0
        %5588 = vmatpush2.msra.mxu0 %v1687
        %5589 = vmatprep.subr.mxu0 0.0
        %5590 = vmatpush2.msra.mxu0 %v1684
        %5591 = vmatprep.subr.mxu0 0.0
        %5592 = vmatpush2.msra.mxu0 %v1681
        %5593 = vmatprep.subr.mxu0 0.0
        %5594 = vmatpush2.msra.mxu0 %v1678
        %5595 = vmatprep.subr.mxu0 0.0
        %5596 = vmatpush2.msra.mxu0 %v1675
        %5597 = vmatprep.mubr.f32.mxu0 %v2731
        %5598 = vmatmul.mubr.f32.gmra.mxu0 %v2723
        %v5599 = vpop.f32.mrf.mxu0
        %v5600 = vadd.f32 %v5530, %v5599
        %v5601 = vpop.f32.mrf.mxu0
        %5602 = vdwg.mxu0
        %5603 = vmatprep.subr.mxu0 0.0
        %5604 = vmatpush1.msra.mxu0 %v1768
        %5605 = vmatprep.subr.mxu0 0.0
        %5606 = vmatpush1.msra.mxu0 %v1765
        %5607 = vmatprep.subr.mxu0 0.0
        %5608 = vmatpush1.msra.mxu0 %v1762
        %5609 = vmatprep.subr.mxu0 0.0
        %5610 = vmatpush1.msra.mxu0 %v1759
        %5611 = vmatprep.subr.mxu0 0.0
        %5612 = vmatpush1.msra.mxu0 %v1756
        %5613 = vmatprep.subr.mxu0 0.0
        %5614 = vmatpush1.msra.mxu0 %v1753
        %5615 = vmatprep.subr.mxu0 0.0
        %5616 = vmatpush1.msra.mxu0 %v1750
        %5617 = vmatprep.subr.mxu0 0.0
        %5618 = vmatpush1.msra.mxu0 %v1747
        %5619 = vmatprep.subr.mxu0 0.0
        %5620 = vmatpush1.msra.mxu0 %v1744
        %5621 = vmatprep.subr.mxu0 0.0
        %5622 = vmatpush1.msra.mxu0 %v1741
        %5623 = vmatprep.subr.mxu0 0.0
        %5624 = vmatpush1.msra.mxu0 %v1738
        %5625 = vmatprep.subr.mxu0 0.0
        %5626 = vmatpush1.msra.mxu0 %v1735
        %5627 = vmatprep.subr.mxu0 0.0
        %5628 = vmatpush1.msra.mxu0 %v1732
        %5629 = vmatprep.subr.mxu0 0.0
        %5630 = vmatpush1.msra.mxu0 %v1729
        %5631 = vmatprep.subr.mxu0 0.0
        %5632 = vmatpush1.msra.mxu0 %v1726
        %5633 = vmatprep.subr.mxu0 0.0
        %5634 = vmatpush1.msra.mxu0 %v1723
        %5635 = vmatprep.subr.mxu0 0.0
        %5636 = vmatpush2.msra.mxu0 %v1816
        %5637 = vmatprep.subr.mxu0 0.0
        %5638 = vmatpush2.msra.mxu0 %v1813
        %5639 = vmatprep.subr.mxu0 0.0
        %5640 = vmatpush2.msra.mxu0 %v1810
        %5641 = vmatprep.subr.mxu0 0.0
        %5642 = vmatpush2.msra.mxu0 %v1807
        %5643 = vmatprep.subr.mxu0 0.0
        %5644 = vmatpush2.msra.mxu0 %v1804
        %5645 = vmatprep.subr.mxu0 0.0
        %5646 = vmatpush2.msra.mxu0 %v1801
        %5647 = vmatprep.subr.mxu0 0.0
        %5648 = vmatpush2.msra.mxu0 %v1798
        %5649 = vmatprep.subr.mxu0 0.0
        %5650 = vmatpush2.msra.mxu0 %v1795
        %5651 = vmatprep.subr.mxu0 0.0
        %5652 = vmatpush2.msra.mxu0 %v1792
        %5653 = vmatprep.subr.mxu0 0.0
        %5654 = vmatpush2.msra.mxu0 %v1789
        %5655 = vmatprep.subr.mxu0 0.0
        %5656 = vmatpush2.msra.mxu0 %v1786
        %5657 = vmatprep.subr.mxu0 0.0
        %5658 = vmatpush2.msra.mxu0 %v1783
        %5659 = vmatprep.subr.mxu0 0.0
        %5660 = vmatpush2.msra.mxu0 %v1780
        %5661 = vmatprep.subr.mxu0 0.0
        %5662 = vmatpush2.msra.mxu0 %v1777
        %5663 = vmatprep.subr.mxu0 0.0
        %5664 = vmatpush2.msra.mxu0 %v1774
        %5665 = vmatprep.subr.mxu0 0.0
        %5666 = vmatpush2.msra.mxu0 %v1771
        %5667 = vmatprep.mubr.f32.mxu0 %v2732
        %5668 = vmatmul.mubr.f32.gmra.mxu0 %v2730
        %v5669 = vpop.f32.mrf.mxu0
        %v5670 = vadd.f32 %v5600, %v5669
        %v5671 = vpop.f32.mrf.mxu0
        %5672 = vdwg.mxu0
        %5673 = vmatprep.subr.mxu0 0.0
        %5674 = vmatpush1.msra.mxu0 %v1864
        %5675 = vmatprep.subr.mxu0 0.0
        %5676 = vmatpush1.msra.mxu0 %v1861
        %5677 = vmatprep.subr.mxu0 0.0
        %5678 = vmatpush1.msra.mxu0 %v1858
        %5679 = vmatprep.subr.mxu0 0.0
        %5680 = vmatpush1.msra.mxu0 %v1855
        %5681 = vmatprep.subr.mxu0 0.0
        %5682 = vmatpush1.msra.mxu0 %v1852
        %5683 = vmatprep.subr.mxu0 0.0
        %5684 = vmatpush1.msra.mxu0 %v1849
        %5685 = vmatprep.subr.mxu0 0.0
        %5686 = vmatpush1.msra.mxu0 %v1846
        %5687 = vmatprep.subr.mxu0 0.0
        %5688 = vmatpush1.msra.mxu0 %v1843
        %5689 = vmatprep.subr.mxu0 0.0
        %5690 = vmatpush1.msra.mxu0 %v1840
        %5691 = vmatprep.subr.mxu0 0.0
        %5692 = vmatpush1.msra.mxu0 %v1837
        %5693 = vmatprep.subr.mxu0 0.0
        %5694 = vmatpush1.msra.mxu0 %v1834
        %5695 = vmatprep.subr.mxu0 0.0
        %5696 = vmatpush1.msra.mxu0 %v1831
        %5697 = vmatprep.subr.mxu0 0.0
        %5698 = vmatpush1.msra.mxu0 %v1828
        %5699 = vmatprep.subr.mxu0 0.0
        %5700 = vmatpush1.msra.mxu0 %v1825
        %5701 = vmatprep.subr.mxu0 0.0
        %5702 = vmatpush1.msra.mxu0 %v1822
        %5703 = vmatprep.subr.mxu0 0.0
        %5704 = vmatpush1.msra.mxu0 %v1819
        %5705 = vmatprep.subr.mxu0 0.0
        %5706 = vmatpush2.msra.mxu0 %v1912
        %5707 = vmatprep.subr.mxu0 0.0
        %5708 = vmatpush2.msra.mxu0 %v1909
        %5709 = vmatprep.subr.mxu0 0.0
        %5710 = vmatpush2.msra.mxu0 %v1906
        %5711 = vmatprep.subr.mxu0 0.0
        %5712 = vmatpush2.msra.mxu0 %v1903
        %5713 = vmatprep.subr.mxu0 0.0
        %5714 = vmatpush2.msra.mxu0 %v1900
        %5715 = vmatprep.subr.mxu0 0.0
        %5716 = vmatpush2.msra.mxu0 %v1897
        %5717 = vmatprep.subr.mxu0 0.0
        %5718 = vmatpush2.msra.mxu0 %v1894
        %5719 = vmatprep.subr.mxu0 0.0
        %5720 = vmatpush2.msra.mxu0 %v1891
        %5721 = vmatprep.subr.mxu0 0.0
        %5722 = vmatpush2.msra.mxu0 %v1888
        %5723 = vmatprep.subr.mxu0 0.0
        %5724 = vmatpush2.msra.mxu0 %v1885
        %5725 = vmatprep.subr.mxu0 0.0
        %5726 = vmatpush2.msra.mxu0 %v1882
        %5727 = vmatprep.subr.mxu0 0.0
        %5728 = vmatpush2.msra.mxu0 %v1879
        %5729 = vmatprep.subr.mxu0 0.0
        %5730 = vmatpush2.msra.mxu0 %v1876
        %5731 = vmatprep.subr.mxu0 0.0
        %5732 = vmatpush2.msra.mxu0 %v1873
        %5733 = vmatprep.subr.mxu0 0.0
        %5734 = vmatpush2.msra.mxu0 %v1870
        %5735 = vmatprep.subr.mxu0 0.0
        %5736 = vmatpush2.msra.mxu0 %v1867
        %5737 = vmatprep.mubr.f32.mxu0 %v2748
        %5738 = vmatmul.mubr.f32.gmra.mxu0 %v2740
        %v5739 = vpop.f32.mrf.mxu0
        %v5740 = vadd.f32 %v5670, %v5739
        %v5741 = vpop.f32.mrf.mxu0
        %5742 = vdwg.mxu0
        %5743 = vmatprep.subr.mxu0 0.0
        %5744 = vmatpush1.msra.mxu0 %v1960
        %5745 = vmatprep.subr.mxu0 0.0
        %5746 = vmatpush1.msra.mxu0 %v1957
        %5747 = vmatprep.subr.mxu0 0.0
        %5748 = vmatpush1.msra.mxu0 %v1954
        %5749 = vmatprep.subr.mxu0 0.0
        %5750 = vmatpush1.msra.mxu0 %v1951
        %5751 = vmatprep.subr.mxu0 0.0
        %5752 = vmatpush1.msra.mxu0 %v1948
        %5753 = vmatprep.subr.mxu0 0.0
        %5754 = vmatpush1.msra.mxu0 %v1945
        %5755 = vmatprep.subr.mxu0 0.0
        %5756 = vmatpush1.msra.mxu0 %v1942
        %5757 = vmatprep.subr.mxu0 0.0
        %5758 = vmatpush1.msra.mxu0 %v1939
        %5759 = vmatprep.subr.mxu0 0.0
        %5760 = vmatpush1.msra.mxu0 %v1936
        %5761 = vmatprep.subr.mxu0 0.0
        %5762 = vmatpush1.msra.mxu0 %v1933
        %5763 = vmatprep.subr.mxu0 0.0
        %5764 = vmatpush1.msra.mxu0 %v1930
        %5765 = vmatprep.subr.mxu0 0.0
        %5766 = vmatpush1.msra.mxu0 %v1927
        %5767 = vmatprep.subr.mxu0 0.0
        %5768 = vmatpush1.msra.mxu0 %v1924
        %5769 = vmatprep.subr.mxu0 0.0
        %5770 = vmatpush1.msra.mxu0 %v1921
        %5771 = vmatprep.subr.mxu0 0.0
        %5772 = vmatpush1.msra.mxu0 %v1918
        %5773 = vmatprep.subr.mxu0 0.0
        %5774 = vmatpush1.msra.mxu0 %v1915
        %5775 = vmatprep.subr.mxu0 0.0
        %5776 = vmatpush2.msra.mxu0 %v2008
        %5777 = vmatprep.subr.mxu0 0.0
        %5778 = vmatpush2.msra.mxu0 %v2005
        %5779 = vmatprep.subr.mxu0 0.0
        %5780 = vmatpush2.msra.mxu0 %v2002
        %5781 = vmatprep.subr.mxu0 0.0
        %5782 = vmatpush2.msra.mxu0 %v1999
        %5783 = vmatprep.subr.mxu0 0.0
        %5784 = vmatpush2.msra.mxu0 %v1996
        %5785 = vmatprep.subr.mxu0 0.0
        %5786 = vmatpush2.msra.mxu0 %v1993
        %5787 = vmatprep.subr.mxu0 0.0
        %5788 = vmatpush2.msra.mxu0 %v1990
        %5789 = vmatprep.subr.mxu0 0.0
        %5790 = vmatpush2.msra.mxu0 %v1987
        %5791 = vmatprep.subr.mxu0 0.0
        %5792 = vmatpush2.msra.mxu0 %v1984
        %5793 = vmatprep.subr.mxu0 0.0
        %5794 = vmatpush2.msra.mxu0 %v1981
        %5795 = vmatprep.subr.mxu0 0.0
        %5796 = vmatpush2.msra.mxu0 %v1978
        %5797 = vmatprep.subr.mxu0 0.0
        %5798 = vmatpush2.msra.mxu0 %v1975
        %5799 = vmatprep.subr.mxu0 0.0
        %5800 = vmatpush2.msra.mxu0 %v1972
        %5801 = vmatprep.subr.mxu0 0.0
        %5802 = vmatpush2.msra.mxu0 %v1969
        %5803 = vmatprep.subr.mxu0 0.0
        %5804 = vmatpush2.msra.mxu0 %v1966
        %5805 = vmatprep.subr.mxu0 0.0
        %5806 = vmatpush2.msra.mxu0 %v1963
        %5807 = vmatprep.mubr.f32.mxu0 %v2749
        %5808 = vmatmul.mubr.f32.gmra.mxu0 %v2747
        %v5809 = vpop.f32.mrf.mxu0
        %v5810 = vadd.f32 %v5740, %v5809
        %v5811 = vpop.f32.mrf.mxu0
        %5812 = vdwg.mxu0
        %5813 = vmatprep.subr.mxu0 0.0
        %5814 = vmatpush1.msra.mxu0 %v2056
        %5815 = vmatprep.subr.mxu0 0.0
        %5816 = vmatpush1.msra.mxu0 %v2053
        %5817 = vmatprep.subr.mxu0 0.0
        %5818 = vmatpush1.msra.mxu0 %v2050
        %5819 = vmatprep.subr.mxu0 0.0
        %5820 = vmatpush1.msra.mxu0 %v2047
        %5821 = vmatprep.subr.mxu0 0.0
        %5822 = vmatpush1.msra.mxu0 %v2044
        %5823 = vmatprep.subr.mxu0 0.0
        %5824 = vmatpush1.msra.mxu0 %v2041
        %5825 = vmatprep.subr.mxu0 0.0
        %5826 = vmatpush1.msra.mxu0 %v2038
        %5827 = vmatprep.subr.mxu0 0.0
        %5828 = vmatpush1.msra.mxu0 %v2035
        %5829 = vmatprep.subr.mxu0 0.0
        %5830 = vmatpush1.msra.mxu0 %v2032
        %5831 = vmatprep.subr.mxu0 0.0
        %5832 = vmatpush1.msra.mxu0 %v2029
        %5833 = vmatprep.subr.mxu0 0.0
        %5834 = vmatpush1.msra.mxu0 %v2026
        %5835 = vmatprep.subr.mxu0 0.0
        %5836 = vmatpush1.msra.mxu0 %v2023
        %5837 = vmatprep.subr.mxu0 0.0
        %5838 = vmatpush1.msra.mxu0 %v2020
        %5839 = vmatprep.subr.mxu0 0.0
        %5840 = vmatpush1.msra.mxu0 %v2017
        %5841 = vmatprep.subr.mxu0 0.0
        %5842 = vmatpush1.msra.mxu0 %v2014
        %5843 = vmatprep.subr.mxu0 0.0
        %5844 = vmatpush1.msra.mxu0 %v2011
        %5845 = vmatprep.subr.mxu0 0.0
        %5846 = vmatpush2.msra.mxu0 %v2104
        %5847 = vmatprep.subr.mxu0 0.0
        %5848 = vmatpush2.msra.mxu0 %v2101
        %5849 = vmatprep.subr.mxu0 0.0
        %5850 = vmatpush2.msra.mxu0 %v2098
        %5851 = vmatprep.subr.mxu0 0.0
        %5852 = vmatpush2.msra.mxu0 %v2095
        %5853 = vmatprep.subr.mxu0 0.0
        %5854 = vmatpush2.msra.mxu0 %v2092
        %5855 = vmatprep.subr.mxu0 0.0
        %5856 = vmatpush2.msra.mxu0 %v2089
        %5857 = vmatprep.subr.mxu0 0.0
        %5858 = vmatpush2.msra.mxu0 %v2086
        %5859 = vmatprep.subr.mxu0 0.0
        %5860 = vmatpush2.msra.mxu0 %v2083
        %5861 = vmatprep.subr.mxu0 0.0
        %5862 = vmatpush2.msra.mxu0 %v2080
        %5863 = vmatprep.subr.mxu0 0.0
        %5864 = vmatpush2.msra.mxu0 %v2077
        %5865 = vmatprep.subr.mxu0 0.0
        %5866 = vmatpush2.msra.mxu0 %v2074
        %5867 = vmatprep.subr.mxu0 0.0
        %5868 = vmatpush2.msra.mxu0 %v2071
        %5869 = vmatprep.subr.mxu0 0.0
        %5870 = vmatpush2.msra.mxu0 %v2068
        %5871 = vmatprep.subr.mxu0 0.0
        %5872 = vmatpush2.msra.mxu0 %v2065
        %5873 = vmatprep.subr.mxu0 0.0
        %5874 = vmatpush2.msra.mxu0 %v2062
        %5875 = vmatprep.subr.mxu0 0.0
        %5876 = vmatpush2.msra.mxu0 %v2059
        %5877 = vmatprep.mubr.f32.mxu0 %v2765
        %5878 = vmatmul.mubr.f32.gmra.mxu0 %v2757
        %v5879 = vpop.f32.mrf.mxu0
        %v5880 = vadd.f32 %v5810, %v5879
        %v5881 = vpop.f32.mrf.mxu0
        %5882 = vdwg.mxu0
        %5883 = vmatprep.subr.mxu0 0.0
        %5884 = vmatpush1.msra.mxu0 %v2152
        %5885 = vmatprep.subr.mxu0 0.0
        %5886 = vmatpush1.msra.mxu0 %v2149
        %5887 = vmatprep.subr.mxu0 0.0
        %5888 = vmatpush1.msra.mxu0 %v2146
        %5889 = vmatprep.subr.mxu0 0.0
        %5890 = vmatpush1.msra.mxu0 %v2143
        %5891 = vmatprep.subr.mxu0 0.0
        %5892 = vmatpush1.msra.mxu0 %v2140
        %5893 = vmatprep.subr.mxu0 0.0
        %5894 = vmatpush1.msra.mxu0 %v2137
        %5895 = vmatprep.subr.mxu0 0.0
        %5896 = vmatpush1.msra.mxu0 %v2134
        %5897 = vmatprep.subr.mxu0 0.0
        %5898 = vmatpush1.msra.mxu0 %v2131
        %5899 = vmatprep.subr.mxu0 0.0
        %5900 = vmatpush1.msra.mxu0 %v2128
        %5901 = vmatprep.subr.mxu0 0.0
        %5902 = vmatpush1.msra.mxu0 %v2125
        %5903 = vmatprep.subr.mxu0 0.0
        %5904 = vmatpush1.msra.mxu0 %v2122
        %5905 = vmatprep.subr.mxu0 0.0
        %5906 = vmatpush1.msra.mxu0 %v2119
        %5907 = vmatprep.subr.mxu0 0.0
        %5908 = vmatpush1.msra.mxu0 %v2116
        %5909 = vmatprep.subr.mxu0 0.0
        %5910 = vmatpush1.msra.mxu0 %v2113
        %5911 = vmatprep.subr.mxu0 0.0
        %5912 = vmatpush1.msra.mxu0 %v2110
        %5913 = vmatprep.subr.mxu0 0.0
        %5914 = vmatpush1.msra.mxu0 %v2107
        %5915 = vmatprep.subr.mxu0 0.0
        %5916 = vmatpush2.msra.mxu0 %v2200
        %5917 = vmatprep.subr.mxu0 0.0
        %5918 = vmatpush2.msra.mxu0 %v2197
        %5919 = vmatprep.subr.mxu0 0.0
        %5920 = vmatpush2.msra.mxu0 %v2194
        %5921 = vmatprep.subr.mxu0 0.0
        %5922 = vmatpush2.msra.mxu0 %v2191
        %5923 = vmatprep.subr.mxu0 0.0
        %5924 = vmatpush2.msra.mxu0 %v2188
        %5925 = vmatprep.subr.mxu0 0.0
        %5926 = vmatpush2.msra.mxu0 %v2185
        %5927 = vmatprep.subr.mxu0 0.0
        %5928 = vmatpush2.msra.mxu0 %v2182
        %5929 = vmatprep.subr.mxu0 0.0
        %5930 = vmatpush2.msra.mxu0 %v2179
        %5931 = vmatprep.subr.mxu0 0.0
        %5932 = vmatpush2.msra.mxu0 %v2176
        %5933 = vmatprep.subr.mxu0 0.0
        %5934 = vmatpush2.msra.mxu0 %v2173
        %5935 = vmatprep.subr.mxu0 0.0
        %5936 = vmatpush2.msra.mxu0 %v2170
        %5937 = vmatprep.subr.mxu0 0.0
        %5938 = vmatpush2.msra.mxu0 %v2167
        %5939 = vmatprep.subr.mxu0 0.0
        %5940 = vmatpush2.msra.mxu0 %v2164
        %5941 = vmatprep.subr.mxu0 0.0
        %5942 = vmatpush2.msra.mxu0 %v2161
        %5943 = vmatprep.subr.mxu0 0.0
        %5944 = vmatpush2.msra.mxu0 %v2158
        %5945 = vmatprep.subr.mxu0 0.0
        %5946 = vmatpush2.msra.mxu0 %v2155
        %5947 = vmatprep.mubr.f32.mxu0 %v2766
        %5948 = vmatmul.mubr.f32.gmra.mxu0 %v2764
        %v5949 = vpop.f32.mrf.mxu0
        %v5950 = vadd.f32 %v5880, %v5949
        %v5951 = vpop.f32.mrf.mxu0
        %5952 = vdwg.mxu0
        %5953 = vmatprep.subr.mxu0 0.0
        %5954 = vmatpush1.msra.mxu0 %v2248
        %5955 = vmatprep.subr.mxu0 0.0
        %5956 = vmatpush1.msra.mxu0 %v2245
        %5957 = vmatprep.subr.mxu0 0.0
        %5958 = vmatpush1.msra.mxu0 %v2242
        %5959 = vmatprep.subr.mxu0 0.0
        %5960 = vmatpush1.msra.mxu0 %v2239
        %5961 = vmatprep.subr.mxu0 0.0
        %5962 = vmatpush1.msra.mxu0 %v2236
        %5963 = vmatprep.subr.mxu0 0.0
        %5964 = vmatpush1.msra.mxu0 %v2233
        %5965 = vmatprep.subr.mxu0 0.0
        %5966 = vmatpush1.msra.mxu0 %v2230
        %5967 = vmatprep.subr.mxu0 0.0
        %5968 = vmatpush1.msra.mxu0 %v2227
        %5969 = vmatprep.subr.mxu0 0.0
        %5970 = vmatpush1.msra.mxu0 %v2224
        %5971 = vmatprep.subr.mxu0 0.0
        %5972 = vmatpush1.msra.mxu0 %v2221
        %5973 = vmatprep.subr.mxu0 0.0
        %5974 = vmatpush1.msra.mxu0 %v2218
        %5975 = vmatprep.subr.mxu0 0.0
        %5976 = vmatpush1.msra.mxu0 %v2215
        %5977 = vmatprep.subr.mxu0 0.0
        %5978 = vmatpush1.msra.mxu0 %v2212
        %5979 = vmatprep.subr.mxu0 0.0
        %5980 = vmatpush1.msra.mxu0 %v2209
        %5981 = vmatprep.subr.mxu0 0.0
        %5982 = vmatpush1.msra.mxu0 %v2206
        %5983 = vmatprep.subr.mxu0 0.0
        %5984 = vmatpush1.msra.mxu0 %v2203
        %5985 = vmatprep.subr.mxu0 0.0
        %5986 = vmatpush2.msra.mxu0 %v2296
        %5987 = vmatprep.subr.mxu0 0.0
        %5988 = vmatpush2.msra.mxu0 %v2293
        %5989 = vmatprep.subr.mxu0 0.0
        %5990 = vmatpush2.msra.mxu0 %v2290
        %5991 = vmatprep.subr.mxu0 0.0
        %5992 = vmatpush2.msra.mxu0 %v2287
        %5993 = vmatprep.subr.mxu0 0.0
        %5994 = vmatpush2.msra.mxu0 %v2284
        %5995 = vmatprep.subr.mxu0 0.0
        %5996 = vmatpush2.msra.mxu0 %v2281
        %5997 = vmatprep.subr.mxu0 0.0
        %5998 = vmatpush2.msra.mxu0 %v2278
        %5999 = vmatprep.subr.mxu0 0.0
        %6000 = vmatpush2.msra.mxu0 %v2275
        %6001 = vmatprep.subr.mxu0 0.0
        %6002 = vmatpush2.msra.mxu0 %v2272
        %6003 = vmatprep.subr.mxu0 0.0
        %6004 = vmatpush2.msra.mxu0 %v2269
        %6005 = vmatprep.subr.mxu0 0.0
        %6006 = vmatpush2.msra.mxu0 %v2266
        %6007 = vmatprep.subr.mxu0 0.0
        %6008 = vmatpush2.msra.mxu0 %v2263
        %6009 = vmatprep.subr.mxu0 0.0
        %6010 = vmatpush2.msra.mxu0 %v2260
        %6011 = vmatprep.subr.mxu0 0.0
        %6012 = vmatpush2.msra.mxu0 %v2257
        %6013 = vmatprep.subr.mxu0 0.0
        %6014 = vmatpush2.msra.mxu0 %v2254
        %6015 = vmatprep.subr.mxu0 0.0
        %6016 = vmatpush2.msra.mxu0 %v2251
        %6017 = vmatprep.mubr.f32.mxu0 %v2782
        %6018 = vmatmul.mubr.f32.gmra.mxu0 %v2774
        %v6019 = vpop.f32.mrf.mxu0
        %v6020 = vadd.f32 %v5950, %v6019
        %v6021 = vpop.f32.mrf.mxu0
        %6022 = vdwg.mxu0
        %6023 = vmatprep.subr.mxu0 0.0
        %6024 = vmatpush1.msra.mxu0 %v2344
        %6025 = vmatprep.subr.mxu0 0.0
        %6026 = vmatpush1.msra.mxu0 %v2341
        %6027 = vmatprep.subr.mxu0 0.0
        %6028 = vmatpush1.msra.mxu0 %v2338
        %6029 = vmatprep.subr.mxu0 0.0
        %6030 = vmatpush1.msra.mxu0 %v2335
        %6031 = vmatprep.subr.mxu0 0.0
        %6032 = vmatpush1.msra.mxu0 %v2332
        %6033 = vmatprep.subr.mxu0 0.0
        %6034 = vmatpush1.msra.mxu0 %v2329
        %6035 = vmatprep.subr.mxu0 0.0
        %6036 = vmatpush1.msra.mxu0 %v2326
        %6037 = vmatprep.subr.mxu0 0.0
        %6038 = vmatpush1.msra.mxu0 %v2323
        %6039 = vmatprep.subr.mxu0 0.0
        %6040 = vmatpush1.msra.mxu0 %v2320
        %6041 = vmatprep.subr.mxu0 0.0
        %6042 = vmatpush1.msra.mxu0 %v2317
        %6043 = vmatprep.subr.mxu0 0.0
        %6044 = vmatpush1.msra.mxu0 %v2314
        %6045 = vmatprep.subr.mxu0 0.0
        %6046 = vmatpush1.msra.mxu0 %v2311
        %6047 = vmatprep.subr.mxu0 0.0
        %6048 = vmatpush1.msra.mxu0 %v2308
        %6049 = vmatprep.subr.mxu0 0.0
        %6050 = vmatpush1.msra.mxu0 %v2305
        %6051 = vmatprep.subr.mxu0 0.0
        %6052 = vmatpush1.msra.mxu0 %v2302
        %6053 = vmatprep.subr.mxu0 0.0
        %6054 = vmatpush1.msra.mxu0 %v2299
        %6055 = vmatprep.subr.mxu0 0.0
        %6056 = vmatpush2.msra.mxu0 %v2392
        %6057 = vmatprep.subr.mxu0 0.0
        %6058 = vmatpush2.msra.mxu0 %v2389
        %6059 = vmatprep.subr.mxu0 0.0
        %6060 = vmatpush2.msra.mxu0 %v2386
        %6061 = vmatprep.subr.mxu0 0.0
        %6062 = vmatpush2.msra.mxu0 %v2383
        %6063 = vmatprep.subr.mxu0 0.0
        %6064 = vmatpush2.msra.mxu0 %v2380
        %6065 = vmatprep.subr.mxu0 0.0
        %6066 = vmatpush2.msra.mxu0 %v2377
        %6067 = vmatprep.subr.mxu0 0.0
        %6068 = vmatpush2.msra.mxu0 %v2374
        %6069 = vmatprep.subr.mxu0 0.0
        %6070 = vmatpush2.msra.mxu0 %v2371
        %6071 = vmatprep.subr.mxu0 0.0
        %6072 = vmatpush2.msra.mxu0 %v2368
        %6073 = vmatprep.subr.mxu0 0.0
        %6074 = vmatpush2.msra.mxu0 %v2365
        %6075 = vmatprep.subr.mxu0 0.0
        %6076 = vmatpush2.msra.mxu0 %v2362
        %6077 = vmatprep.subr.mxu0 0.0
        %6078 = vmatpush2.msra.mxu0 %v2359
        %6079 = vmatprep.subr.mxu0 0.0
        %6080 = vmatpush2.msra.mxu0 %v2356
        %6081 = vmatprep.subr.mxu0 0.0
        %6082 = vmatpush2.msra.mxu0 %v2353
        %6083 = vmatprep.subr.mxu0 0.0
        %6084 = vmatpush2.msra.mxu0 %v2350
        %6085 = vmatprep.subr.mxu0 0.0
        %6086 = vmatpush2.msra.mxu0 %v2347
        %6087 = vmatprep.mubr.f32.mxu0 %v2783
        %6088 = vmatmul.mubr.f32.gmra.mxu0 %v2781
        %v6089 = vpop.f32.mrf.mxu0
        %v6090 = vadd.f32 %v6020, %v6089
        %v6091 = vpop.f32.mrf.mxu0
        %6092 = vdwg.mxu0
        %6093 = vmatprep.subr.mxu0 0.0
        %6094 = vmatpush1.msra.mxu0 %v2440
        %6095 = vmatprep.subr.mxu0 0.0
        %6096 = vmatpush1.msra.mxu0 %v2437
        %6097 = vmatprep.subr.mxu0 0.0
        %6098 = vmatpush1.msra.mxu0 %v2434
        %6099 = vmatprep.subr.mxu0 0.0
        %6100 = vmatpush1.msra.mxu0 %v2431
        %6101 = vmatprep.subr.mxu0 0.0
        %6102 = vmatpush1.msra.mxu0 %v2428
        %6103 = vmatprep.subr.mxu0 0.0
        %6104 = vmatpush1.msra.mxu0 %v2425
        %6105 = vmatprep.subr.mxu0 0.0
        %6106 = vmatpush1.msra.mxu0 %v2422
        %6107 = vmatprep.subr.mxu0 0.0
        %6108 = vmatpush1.msra.mxu0 %v2419
        %6109 = vmatprep.subr.mxu0 0.0
        %6110 = vmatpush1.msra.mxu0 %v2416
        %6111 = vmatprep.subr.mxu0 0.0
        %6112 = vmatpush1.msra.mxu0 %v2413
        %6113 = vmatprep.subr.mxu0 0.0
        %6114 = vmatpush1.msra.mxu0 %v2410
        %6115 = vmatprep.subr.mxu0 0.0
        %6116 = vmatpush1.msra.mxu0 %v2407
        %6117 = vmatprep.subr.mxu0 0.0
        %6118 = vmatpush1.msra.mxu0 %v2404
        %6119 = vmatprep.subr.mxu0 0.0
        %6120 = vmatpush1.msra.mxu0 %v2401
        %6121 = vmatprep.subr.mxu0 0.0
        %6122 = vmatpush1.msra.mxu0 %v2398
        %6123 = vmatprep.subr.mxu0 0.0
        %6124 = vmatpush1.msra.mxu0 %v2395
        %6125 = vmatprep.subr.mxu0 0.0
        %6126 = vmatpush2.msra.mxu0 %v2488
        %6127 = vmatprep.subr.mxu0 0.0
        %6128 = vmatpush2.msra.mxu0 %v2485
        %6129 = vmatprep.subr.mxu0 0.0
        %6130 = vmatpush2.msra.mxu0 %v2482
        %6131 = vmatprep.subr.mxu0 0.0
        %6132 = vmatpush2.msra.mxu0 %v2479
        %6133 = vmatprep.subr.mxu0 0.0
        %6134 = vmatpush2.msra.mxu0 %v2476
        %6135 = vmatprep.subr.mxu0 0.0
        %6136 = vmatpush2.msra.mxu0 %v2473
        %6137 = vmatprep.subr.mxu0 0.0
        %6138 = vmatpush2.msra.mxu0 %v2470
        %6139 = vmatprep.subr.mxu0 0.0
        %6140 = vmatpush2.msra.mxu0 %v2467
        %6141 = vmatprep.subr.mxu0 0.0
        %6142 = vmatpush2.msra.mxu0 %v2464
        %6143 = vmatprep.subr.mxu0 0.0
        %6144 = vmatpush2.msra.mxu0 %v2461
        %6145 = vmatprep.subr.mxu0 0.0
        %6146 = vmatpush2.msra.mxu0 %v2458
        %6147 = vmatprep.subr.mxu0 0.0
        %6148 = vmatpush2.msra.mxu0 %v2455
        %6149 = vmatprep.subr.mxu0 0.0
        %6150 = vmatpush2.msra.mxu0 %v2452
        %6151 = vmatprep.subr.mxu0 0.0
        %6152 = vmatpush2.msra.mxu0 %v2449
        %6153 = vmatprep.subr.mxu0 0.0
        %6154 = vmatpush2.msra.mxu0 %v2446
        %6155 = vmatprep.subr.mxu0 0.0
        %6156 = vmatpush2.msra.mxu0 %v2443
        %6157 = vmatprep.mubr.f32.mxu0 %v2799
        %6158 = vmatmul.mubr.f32.gmra.mxu0 %v2791
        %v6159 = vpop.f32.mrf.mxu0
        %v6160 = vadd.f32 %v6090, %v6159
        %v6161 = vpop.f32.mrf.mxu0
        %6162 = vdwg.mxu0
        %6163 = vmatprep.subr.mxu0 0.0
        %6164 = vmatpush1.msra.mxu0 %v2536
        %6165 = vmatprep.subr.mxu0 0.0
        %6166 = vmatpush1.msra.mxu0 %v2533
        %6167 = vmatprep.subr.mxu0 0.0
        %6168 = vmatpush1.msra.mxu0 %v2530
        %6169 = vmatprep.subr.mxu0 0.0
        %6170 = vmatpush1.msra.mxu0 %v2527
        %6171 = vmatprep.subr.mxu0 0.0
        %6172 = vmatpush1.msra.mxu0 %v2524
        %6173 = vmatprep.subr.mxu0 0.0
        %6174 = vmatpush1.msra.mxu0 %v2521
        %6175 = vmatprep.subr.mxu0 0.0
        %6176 = vmatpush1.msra.mxu0 %v2518
        %6177 = vmatprep.subr.mxu0 0.0
        %6178 = vmatpush1.msra.mxu0 %v2515
        %6179 = vmatprep.subr.mxu0 0.0
        %6180 = vmatpush1.msra.mxu0 %v2512
        %6181 = vmatprep.subr.mxu0 0.0
        %6182 = vmatpush1.msra.mxu0 %v2509
        %6183 = vmatprep.subr.mxu0 0.0
        %6184 = vmatpush1.msra.mxu0 %v2506
        %6185 = vmatprep.subr.mxu0 0.0
        %6186 = vmatpush1.msra.mxu0 %v2503
        %6187 = vmatprep.subr.mxu0 0.0
        %6188 = vmatpush1.msra.mxu0 %v2500
        %6189 = vmatprep.subr.mxu0 0.0
        %6190 = vmatpush1.msra.mxu0 %v2497
        %6191 = vmatprep.subr.mxu0 0.0
        %6192 = vmatpush1.msra.mxu0 %v2494
        %6193 = vmatprep.subr.mxu0 0.0
        %6194 = vmatpush1.msra.mxu0 %v2491
        %6195 = vmatprep.subr.mxu0 0.0
        %6196 = vmatpush2.msra.mxu0 %v2584
        %6197 = vmatprep.subr.mxu0 0.0
        %6198 = vmatpush2.msra.mxu0 %v2581
        %6199 = vmatprep.subr.mxu0 0.0
        %6200 = vmatpush2.msra.mxu0 %v2578
        %6201 = vmatprep.subr.mxu0 0.0
        %6202 = vmatpush2.msra.mxu0 %v2575
        %6203 = vmatprep.subr.mxu0 0.0
        %6204 = vmatpush2.msra.mxu0 %v2572
        %6205 = vmatprep.subr.mxu0 0.0
        %6206 = vmatpush2.msra.mxu0 %v2569
        %6207 = vmatprep.subr.mxu0 0.0
        %6208 = vmatpush2.msra.mxu0 %v2566
        %6209 = vmatprep.subr.mxu0 0.0
        %6210 = vmatpush2.msra.mxu0 %v2563
        %6211 = vmatprep.subr.mxu0 0.0
        %6212 = vmatpush2.msra.mxu0 %v2560
        %6213 = vmatprep.subr.mxu0 0.0
        %6214 = vmatpush2.msra.mxu0 %v2557
        %6215 = vmatprep.subr.mxu0 0.0
        %6216 = vmatpush2.msra.mxu0 %v2554
        %6217 = vmatprep.subr.mxu0 0.0
        %6218 = vmatpush2.msra.mxu0 %v2551
        %6219 = vmatprep.subr.mxu0 0.0
        %6220 = vmatpush2.msra.mxu0 %v2548
        %6221 = vmatprep.subr.mxu0 0.0
        %6222 = vmatpush2.msra.mxu0 %v2545
        %6223 = vmatprep.subr.mxu0 0.0
        %6224 = vmatpush2.msra.mxu0 %v2542
        %6225 = vmatprep.subr.mxu0 0.0
        %6226 = vmatpush2.msra.mxu0 %v2539
        %6227 = vmatprep.mubr.f32.mxu0 %v2800
        %6228 = vmatmul.mubr.f32.gmra.mxu0 %v2798
        %v6229 = vpop.f32.mrf.mxu0
        %v6230 = vadd.f32 %v6160, %v6229
        %v6231 = vpop.f32.mrf.mxu0
        %6232 = vdwg.mxu0
        %v6236 = vcombine.low %v4549, %v4551
        %v6238 = vunpack.c.l.s4 1983009808
        %v6239 = vunpack.c.0.s8 %v6238
        %v6240 = vlaneseq
        %v6241 = vshrl.u32 %v6240, 7
        %v6242 = vsub.s32 %v6239, %v6241
        %v6243 = vrot.slane %v6236, %v6242
        %v6245 = vunpack.c.l.s4 1983009808
        %v6246 = vunpack.c.0.s8 %v6245
        %v6247 = vlaneseq
        %v6248 = vshrl.u32 %v6247, 7
        %v6249 = vsub.s32 %v6246, %v6248
        %v6250 = vrot.slane %v6230, %v6249
        %v6251 = vcombine.low %v6243, %v6250
        %v6253 = vadd.f32 %v280, %v6251
        %6254 = vst [vmem:[%s255] sm:$0x3f] %v6253
        %p6255 = scmp.eq.s32.totalorder %s26, 24
        // Predicated region
        $region49: #{tpu_custom_call.1} parent=31 // pred_check
          %p6256 = pneg %p6255
        $region50: #{tpu_custom_call.1} parent=31 // pred_check_branch
          %6258 = sbr.rel (%p6256) target = $region52
        $region51: #{tpu_custom_call.1} parent=31 // pred_region
          %v6259 = vld [vmem:[%s255] sm:$0x3f]
          %v6260 = vld [vmem:[%s228] sm:$0x7]
          %v6262 = vlaneseq
          %v6263 = vshrl.u32 %v6262, 7
          %v6264 = vsub.s32 0, %v6263
          %v6265 = vrot.slane %v6260, %v6264
          %v6266 = vlaneseq
          %v6267 = vshrl.u32 %v6266, 7
          %v6268 = vsub.s32 1, %v6267
          %v6269 = vrot.slane %v6260, %v6268
          %v6270 = vlaneseq
          %v6271 = vshrl.u32 %v6270, 7
          %v6272 = vsub.s32 2, %v6271
          %v6273 = vrot.slane %v6260, %v6272
          %v6274 = vcombine.low %v6265, %v6269
          %v6276 = vunpack.c.l.s4 1983009808
          %v6277 = vunpack.c.0.s8 %v6276
          %v6278 = vlaneseq
          %v6279 = vshrl.u32 %v6278, 7
          %v6280 = vsub.s32 %v6277, %v6279
          %v6281 = vrot.slane %v6274, %v6280
          %v6283 = vunpack.c.l.s4 1983009808
          %v6284 = vunpack.c.0.s8 %v6283
          %v6285 = vlaneseq
          %v6286 = vshrl.u32 %v6285, 7
          %v6287 = vsub.s32 %v6284, %v6286
          %v6288 = vrot.slane %v6273, %v6287
          %v6289 = vcombine.low %v6281, %v6288
          %v6291 = vadd.f32 %v6259, %v6289
          %v6292 = vmax.f32 %v6291, 0.0
          %6293 = vst [vmem:[%s255] sm:$0x3f] %v6292
        $region52: #{tpu_custom_call.1} parent=31 // pred_fallthru
          _
        %s6294 = sand.u32 %s116, 1
        %s6295 = scalar_lea.sflag [#allocation4], %s6294
        %s6296 = sand.u32 %s116, 1
        %s6297 = smul.addr %s6296, 6
        %s6298 = scalar_lea.vmem [#allocation8], %s6297
        // Predicated region
        $region53: #{tpu_custom_call.1} parent=31 // pred_check
          %p6299 = pneg %p126
        $region54: #{tpu_custom_call.1} parent=31 // pred_check_branch
          %6301 = sbr.rel (%p6299) target = $region56
        $region55: #{tpu_custom_call.1} parent=31 // pred_region
          %s6302 = smul.u32 3, %s25
          %s6304 = ssub.s32 96, 96
          %6305 = vsyncadd %s6295, %s6304
          %s6306 = smul.addr %s6302, 32
          %s6307 = scalar_lea.hbm %s3, %s6306
          %s6309 = sshll.u32 %s6298, 4
          %s6310 = int_to_ptr.vmem [resolvable:$true] %s6309
          %6312 = dma.vmem_to_hbm [thread:$0]  %s6310, 96, %s6307, %s6295
        $region56: #{tpu_custom_call.1} parent=31 // pred_fallthru
          _
      $region32: #{tpu_custom_call.1} parent=5 // pred_fallthru
        _
      %p6313 = scmp.le.s32.totalorder 2, %s16
      // Predicated region
      $region57: #{tpu_custom_call.1} parent=5 // pred_check
        %p6314 = pneg %p6313
      $region58: #{tpu_custom_call.1} parent=5 // pred_check_branch
        %6316 = sbr.rel (%p6314) target = $region60
      $region59: #{tpu_custom_call.1} parent=5 // pred_region
        %s6317 = ssub.s32 %s16, 2
        // Predicated region
        $region61: #{tpu_custom_call.1} parent=59 // pred_check
          %p6318 = pneg %p132
        $region62: #{tpu_custom_call.1} parent=59 // pred_check_branch
          %6320 = sbr.rel (%p6318) target = $region64
        $region63: #{tpu_custom_call.1} parent=59 // pred_region
          %s6321 = sand.u32 %s117, 1
          %s6322 = scalar_lea.sflag [#allocation4], %s6321
          %s6323 = sand.u32 %s117, 1
          %s6324 = smul.addr %s6323, 6
          %s6325 = scalar_lea.vmem [#allocation8], %s6324
          %6326 = dma.done %s6322, 96
        $region64: #{tpu_custom_call.1} parent=59 // pred_fallthru
          _
      $region60: #{tpu_custom_call.1} parent=5 // pred_fallthru
        _
    $region6: #{tpu_custom_call.1} parent=1 // loop_footer
      %s20 = sadd.s32 1, %s16
    $region7: #{tpu_custom_call.1} parent=1 // loop_footer_branch
      %15 = sbr.rel target = $region3
    $region8: #{tpu_custom_call.1} parent=1 // loop_exit
      _
    %6327 = vsyncpa [#allocation3], 1
    %s6328 = scalar_lea.sflag [#allocation3], 1
    %6329 = vsyncpa %s6328, 1
    %6330 = vsyncpa [#allocation6], 1
    %s6331 = scalar_lea.sflag [#allocation6], 1
    %6332 = vsyncpa %s6331, 1
    %6333 = vsyncpa [#allocation4], 1
    %s6334 = scalar_lea.sflag [#allocation4], 1
    %6335 = vsyncpa %s6334, 1

</llo_original>
